<compile_context>
chip_gen: v7x
topology: tpu7x:2x2x1
jax: 0.10.0
libtpu: 0.0.40
codegen_flags: <defaults>
</compile_context>

<pallas_src>
import functools

import jax
import jax.numpy as jnp
from jax.experimental import pallas as pl
from jax.experimental.pallas import tpu as pltpu


# ----------------------------- Pallas kernels ------------------------------

def log_norm_kernel(x_ref, o_ref):
    # x_ref/o_ref: (1, 1, T*F) lane-dense.  torch.log(spec + 1e-8) followed by
    # Normalization.
    # TODO(synk): exact Normalization(mode=norm_mode) definition not given;
    # per-sample ('imagewise') min-max normalization to [0, 1] is used here.
    y = jnp.log(x_ref[...] + 1e-8)
    mn = jnp.min(y, axis=-1, keepdims=True)
    mx = jnp.max(y, axis=-1, keepdims=True)
    o_ref[...] = (y - mn) * pl.reciprocal(mx - mn + 1e-8, approx=True)


def conv3x3_bn_relu_kernel(x_ref, w_ref, s_ref, b_ref, o_ref, *, pool, tt):
    # 3x3 'same' conv + folded BatchNorm + ReLU (+ optional fused
    # MaxPool2d((1, 2))) for one batch element, channels-last output.
    #   x_ref: (1, T, F, Cin)           unpadded input tile (f32 or bf16)
    #   w_ref: (9*Cin, Cout)  bf16      HWIO weights reshaped for im2col
    #   s_ref, b_ref: (1, Cout) f32     folded BN scale / (conv bias + BN) bias
    #   o_ref: (1, T, F', Cout)  bf16
    #   tt: static time-chunk size bounding the im2col working-set inflation.
    _, T, F, Cin = x_ref.shape
    Cout = s_ref.shape[1]

    # 'same' padding built in VMEM, in bf16 (halves the im2col working set).
    x = x_ref[0].astype(jnp.bfloat16)                    # (T, F, Cin)
    zf = jnp.zeros((T, 1, Cin), jnp.bfloat16)
    xp = jnp.concatenate([zf, x, zf], axis=1)            # (T, F+2, Cin)
    zt = jnp.zeros((1, F + 2, Cin), jnp.bfloat16)
    xp = jnp.concatenate([zt, xp, zt], axis=0)           # (T+2, F+2, Cin)

    # TODO(synk): conv1 (Cin=1, K=9) could use a direct VPU 9-tap FMA
    # formulation instead of im2col+MXU; kept on the shared path here.
    for c0 in range(0, T, tt):
        rows = min(tt, T - c0)
        # K split over dh: 3 accumulating matmuls (K = 3*Cin each) so tap
        # building for dh+1 overlaps the MXU matmul for dh.
        acc = None
        for dh in range(3):
            taps = [xp[c0 + dh:c0 + dh + rows, dw:dw + F, :] for dw in range(3)]
            patch = jnp.concatenate(taps, axis=2).reshape(rows * F, 3 * Cin)
            part = jnp.dot(patch, w_ref[dh * 3 * Cin:(dh + 1) * 3 * Cin, :],
                           preferred_element_type=jnp.float32)
            acc = part if acc is None else acc + part

        y = jnp.maximum(acc * s_ref[0] + b_ref[0], 0.0)  # bias + BN(eval) + ReLU
        y = y.reshape(rows, F, Cout)
        if pool:                                         # fused MaxPool2d((1, 2))
            y4 = y.reshape(rows, F // 2, 2, Cout)
            y = jnp.maximum(y4[:, :, 0, :], y4[:, :, 1, :])
        o_ref[0, c0:c0 + rows] = y.astype(o_ref.dtype)   # bf16 inter-layer act.


def bilstm_classifier_kernel(x_ref, fcw_ref, fcb_ref,
                             wihf_ref, whhf_ref, bf_ref,
                             wihb_ref, whhb_ref, bb_ref,
                             cwf_ref, cwb_ref, cb_ref,
                             pred_ref,
                             gxf_ref, gxb_ref, hf_ref, hb_ref):
    # Fused FC (Linear, Dropout=identity) + bidirectional LSTM (PyTorch gate
    # order i, f, g, o) + classifier, for one batch chunk.
    #   x_ref: (tb, T, Dc) bf16 conv features (channels-last flatten order)
    #   fcw_ref: (Dc, Dh) bf16; fcb_ref: (1, Dh) f32
    #   wih*: (Dh, 4H) bf16; whh*: (H, 4H) bf16; b*: (1, 4H) f32
    #   cw*: (H, O) bf16 (fwd/bwd halves of classifier weight); cb: (1, O) f32
    #   pred_ref: (tb, T, O) f32
    #   scratch: gx fwd/bwd (T, tb, 4H) f32, per-step hidden (T, tb, H) bf16
    tb, T, Dc = x_ref.shape
    Dh = fcw_ref.shape[1]
    H = whhf_ref.shape[0]
    O = cb_ref.shape[1]

    # FC fused as a pre-stage: one big MXU matmul, no HBM round trip.
    x2 = x_ref[...].reshape(tb * T, Dc)
    xh = jnp.dot(x2, fcw_ref[...], preferred_element_type=jnp.float32) + fcb_ref[0]
    # Reorder to time-major once (in bf16, before the 4H expansion) so the
    # recurrence reads gx with a cheap leading-axis dynamic index.
    xh = jnp.transpose(xh.astype(jnp.bfloat16).reshape(tb, T, Dh),
                       (1, 0, 2)).reshape(T * tb, Dh)

    # Input projections for both directions across all timesteps.
    # TODO(synk): for production-length T, chunk gx over time (double-buffered
    # VMEM) instead of keeping the full (T, tb, 4H) scratch resident.
    gxf_ref[...] = (jnp.dot(xh, wihf_ref[...], preferred_element_type=jnp.float32)
                    + bf_ref[0]).reshape(T, tb, 4 * H)
    gxb_ref[...] = (jnp.dot(xh, wihb_ref[...], preferred_element_type=jnp.float32)
                    + bb_ref[0]).reshape(T, tb, 4 * H)

    whh_f = whhf_ref[...]        # bf16 operands -> fewer MXU passes per step
    whh_b = whhb_ref[...]

    def cell(g, c):
        i = jax.nn.sigmoid(g[:, 0:H])
        f = jax.nn.sigmoid(g[:, H:2 * H])
        gg = jnp.tanh(g[:, 2 * H:3 * H])
        o = jax.nn.sigmoid(g[:, 3 * H:4 * H])
        c_new = f * c + i * gg
        return o * jnp.tanh(c_new), c_new

    def step(t, carry):
        # h/c stay as fori_loop carries (vregs): no VMEM traffic on the serial
        # critical path.  The backward direction reads gx / writes its hidden
        # state at time T-1-t (no [::-1] reversal copies).
        h_f, c_f, h_b, c_b = carry
        g_f = gxf_ref[t] + jnp.dot(h_f.astype(jnp.bfloat16), whh_f,
                                   preferred_element_type=jnp.float32)
        g_b = gxb_ref[T - 1 - t] + jnp.dot(h_b.astype(jnp.bfloat16), whh_b,
                                           preferred_element_type=jnp.float32)
        h_f, c_f = cell(g_f, c_f)
        h_b, c_b = cell(g_b, c_b)
        hf_ref[t] = h_f.astype(jnp.bfloat16)
        hb_ref[T - 1 - t] = h_b.astype(jnp.bfloat16)
        return h_f, c_f, h_b, c_b

    z = jnp.zeros((tb, H), jnp.float32)
    jax.lax.fori_loop(0, T, step, (z, z, z, z))

    # Fused classifier: pred = h_fwd @ Wf + h_bwd @ Wb + b (no lstm_out concat
    # or separate dense pass).
    hf2 = hf_ref[...].reshape(T * tb, H)
    hb2 = hb_ref[...].reshape(T * tb, H)
    pred = (jnp.dot(hf2, cwf_ref[...], preferred_element_type=jnp.float32)
            + jnp.dot(hb2, cwb_ref[...], preferred_element_type=jnp.float32)
            + cb_ref[0])
    pred_ref[...] = jnp.transpose(pred.reshape(T, tb, O), (1, 0, 2))


# ------------------------------ wrappers -----------------------------------

def log_norm(x_btf):
    B, T, F = x_btf.shape
    N = T * F
    x2 = x_btf.reshape(B, 1, N)                      # lane-dense, free reshape
    out = pl.pallas_call(
        log_norm_kernel,
        out_shape=jax.ShapeDtypeStruct((B, 1, N), jnp.float32),
        grid=(B,),
        in_specs=[pl.BlockSpec((1, 1, N), lambda b: (b, 0, 0))],
        out_specs=pl.BlockSpec((1, 1, N), lambda b: (b, 0, 0)),
        compiler_params=pltpu.CompilerParams(dimension_semantics=("parallel",)),
    )(x2)
    return out.reshape(B, T, F)


def conv3x3_bn_relu(x_nhwc, w_hwio, scale, bias, *, pool=False):
    # TODO(synk): for production-length T on v7x, also tile the time axis at
    # the grid level (grid=(B, T//tt) with a 1-row halo) so the raw input
    # block itself stays within the scoped-VMEM budget.
    B, T, F, Cin = x_nhwc.shape
    Cout = w_hwio.shape[-1]
    Fo = F // 2 if pool else F
    w2 = w_hwio.reshape(9 * Cin, Cout).astype(jnp.bfloat16)   # im2col weights
    tt = min(T, 128)                                          # in-kernel T chunk

    kern = functools.partial(conv3x3_bn_relu_kernel, pool=pool, tt=tt)
    return pl.pallas_call(
        kern,
        out_shape=jax.ShapeDtypeStruct((B, T, Fo, Cout), jnp.bfloat16),
        grid=(B,),
        in_specs=[
            pl.BlockSpec((1, T, F, Cin), lambda b: (b, 0, 0, 0)),
            pl.BlockSpec((9 * Cin, Cout), lambda b: (0, 0)),
            pl.BlockSpec((1, Cout), lambda b: (0, 0)),
            pl.BlockSpec((1, Cout), lambda b: (0, 0)),
        ],
        out_specs=pl.BlockSpec((1, T, Fo, Cout), lambda b: (b, 0, 0, 0)),
        compiler_params=pltpu.CompilerParams(
            dimension_semantics=("parallel",),
            vmem_limit_bytes=64 << 20),
    )(x_nhwc, w2, scale.reshape(1, Cout), bias.reshape(1, Cout))


def bilstm_classifier(x_btd, p):
    # x_btd: (B, T, Dc) conv features (channels-last flatten); fc fused inside.
    B, T, Dc = x_btd.shape
    Dh = p['fc_w'].shape[1]
    H = p['whh_f'].shape[0]
    O = p['cls_b'].shape[0]

    # Batch chunking: at least 2 grid steps when B >= 2 (so v7x's two
    # TensorCores both run the serial recurrence), chunks of up to 8 rows to
    # fill MXU sublanes when batch allows.
    tb = B
    for cand in (8, 4, 2, 1):
        if B % cand == 0 and B // cand >= 2:
            tb = cand
            break

    return pl.pallas_call(
        bilstm_classifier_kernel,
        out_shape=jax.ShapeDtypeStruct((B, T, O), jnp.float32),
        grid=(B // tb,),
        in_specs=[
            pl.BlockSpec((tb, T, Dc), lambda i: (i, 0, 0)),
            pl.BlockSpec((Dc, Dh), lambda i: (0, 0)),
            pl.BlockSpec((1, Dh), lambda i: (0, 0)),
            pl.BlockSpec((Dh, 4 * H), lambda i: (0, 0)),
            pl.BlockSpec((H, 4 * H), lambda i: (0, 0)),
            pl.BlockSpec((1, 4 * H), lambda i: (0, 0)),
            pl.BlockSpec((Dh, 4 * H), lambda i: (0, 0)),
            pl.BlockSpec((H, 4 * H), lambda i: (0, 0)),
            pl.BlockSpec((1, 4 * H), lambda i: (0, 0)),
            pl.BlockSpec((H, O), lambda i: (0, 0)),
            pl.BlockSpec((H, O), lambda i: (0, 0)),
            pl.BlockSpec((1, O), lambda i: (0, 0)),
        ],
        out_specs=pl.BlockSpec((tb, T, O), lambda i: (i, 0, 0)),
        scratch_shapes=[
            pltpu.VMEM((T, tb, 4 * H), jnp.float32),   # gx forward
            pltpu.VMEM((T, tb, 4 * H), jnp.float32),   # gx backward
            pltpu.VMEM((T, tb, H), jnp.bfloat16),      # h forward per step
            pltpu.VMEM((T, tb, H), jnp.bfloat16),      # h backward per step
        ],
        compiler_params=pltpu.CompilerParams(
            dimension_semantics=("parallel",),
            vmem_limit_bytes=64 << 20),
    )(x_btd.astype(jnp.bfloat16),
      p['fc_w'].astype(jnp.bfloat16), p['fc_b'].reshape(1, -1),
      p['wih_f'].astype(jnp.bfloat16), p['whh_f'].astype(jnp.bfloat16),
      p['bias_f'].reshape(1, -1),
      p['wih_b'].astype(jnp.bfloat16), p['whh_b'].astype(jnp.bfloat16),
      p['bias_b'].reshape(1, -1),
      p['cls_w'][:H].astype(jnp.bfloat16), p['cls_w'][H:].astype(jnp.bfloat16),
      p['cls_b'].reshape(1, -1))


# ----------------------------- parameters ----------------------------------

def make_params(key, input_dim, hidden_dim, output_dim):
    c1 = hidden_dim // 16
    c3 = hidden_dim // 8
    keys = jax.random.split(key, 32)
    ki = iter(range(32))

    def nrm(shape, scale=0.1):
        return scale * jax.random.normal(keys[next(ki)], shape, jnp.float32)

    def conv_bn(cin, cout):
        # NOTE: real PyTorch Conv2d weights are OIHW; transpose to HWIO
        # (kh, kw, cin, cout) before use so the im2col reshape matches.
        w = nrm((3, 3, cin, cout))
        conv_b = nrm((cout,))
        gamma = 1.0 + nrm((cout,))
        beta = nrm((cout,))
        mean = nrm((cout,))
        var = 1.0 + 0.1 * jnp.abs(jax.random.normal(keys[next(ki)], (cout,),
                                                    jnp.float32))
        s = gamma / jnp.sqrt(var + 1e-5)            # fold BN (eval mode)
        b = beta + s * (conv_b - mean)
        return w, s, b

    p = {}
    p['w1'], p['s1'], p['b1'] = conv_bn(1, c1)
    p['w2'], p['s2'], p['b2'] = conv_bn(c1, c1)
    p['w3'], p['s3'], p['b3'] = conv_bn(c1, c3)

    # FC: torch's flatten order is channel-major (C, F').  Conv3 stores
    # channels-last (F', C), so permute fc_w's rows once here (one-time host
    # cost) instead of transposing the activation in the conv kernel.
    Fo = input_dim // 4
    fc_in = c3 * Fo
    fc_w_cmajor = nrm((fc_in, hidden_dim))          # rows ordered (c, f') like torch
    p['fc_w'] = (fc_w_cmajor.reshape(c3, Fo, hidden_dim)
                 .transpose(1, 0, 2).reshape(Fo * c3, hidden_dim))
    p['fc_b'] = nrm((hidden_dim,))

    H = hidden_dim // 2
    p['wih_f'] = nrm((hidden_dim, 4 * H))
    p['whh_f'] = nrm((H, 4 * H))
    p['bias_f'] = nrm((4 * H,))                     # b_ih + b_hh combined
    p['wih_b'] = nrm((hidden_dim, 4 * H))
    p['whh_b'] = nrm((H, 4 * H))
    p['bias_b'] = nrm((4 * H,))

    p['cls_w'] = nrm((hidden_dim, output_dim))
    p['cls_b'] = nrm((output_dim,))
    return p


# ------------------------------ forward ------------------------------------

def cnn_lstm_forward(params, spec):
    # spec: (B, freq, time) — output of spec_layer.
    # TODO(synk): spec_layer (nnAudio spectrogram frontend) has no clean Pallas
    # equivalent; the input is treated as the precomputed spectrogram.
    B, F, T = spec.shape

    x = jnp.transpose(spec, (0, 2, 1))              # (B, T, F) == transpose(1, 2)
    x = log_norm(x)                                 # log(.+1e-8) + Normalization
    spec_out = x[:, None, :, :]                     # (B, 1, T, F) == unsqueeze(1)

    h = x[..., None]                                # NHWC: (B, T, F, 1)
    h = conv3x3_bn_relu(h, params['w1'], params['s1'], params['b1'])
    h = conv3x3_bn_relu(h, params['w2'], params['s2'], params['b2'], pool=True)
    h = conv3x3_bn_relu(h, params['w3'], params['s3'], params['b3'], pool=True)
    # Channels-last flatten; fc_w's rows were permuted in make_params so this
    # matches torch's x.transpose(1,2).flatten(2).  Free reshape, bf16.
    h = h.reshape(B, T, -1)                         # (B, T, F//4 * C3)

    # Fused FC + bidirectional LSTM + classifier (single kernel, batch grid).
    pred = bilstm_classifier(h, params)             # (B, T, output_dim)

    return {'prediction': pred, 'spectrogram': spec_out}


# -------------------------------- main --------------------------------------

if __name__ == "__main__":
    key = jax.random.PRNGKey(0)
    kp, kx = jax.random.split(key)

    B, F, T = 2, 16, 8            # batch, freq bins (input_dim), time steps
    hidden_dim, output_dim = 32, 8

    params = make_params(kp, F, hidden_dim, output_dim)
    # synthetic non-negative spectrogram (stand-in for spec_layer output)
    x = jax.random.uniform(kx, (B, F, T), jnp.float32, minval=1e-4, maxval=1.0)

    out = jax.jit(cnn_lstm_forward)(params, x)
    out = jax.block_until_ready(out)

    assert out['prediction'].shape == (B, T, output_dim)
    assert out['spectrogram'].shape == (B, 1, T, F)
    assert jnp.all(jnp.isfinite(out['prediction']))
    print("KERNEL_OK")
</pallas_src>

<mosaic_0001>
module attributes {stable_mosaic.version = 11 : i64} {
  func.func @log_norm_kernel(%arg0: i32, %arg1: memref<1x1x128xf32, #tpu.memory_space<vmem>>, %arg2: memref<1x1x128xf32, #tpu.memory_space<vmem>>) attributes {dimension_semantics = [#tpu.dimension_semantics<parallel>], iteration_bounds = array<i64: 2>, scalar_prefetch = 0 : i64, scratch_operands = 0 : i64, tpu.core_type = #tpu.core_type<tc>, window_params = [{transform_indices = @transform_0, window_bounds = array<i64: 1, 1, 128>}, {transform_indices = @transform_1, window_bounds = array<i64: 1, 1, 128>}]} {
    %c0 = arith.constant 0 : index
    %c0_0 = arith.constant 0 : index
    %c0_1 = arith.constant 0 : index
    %0 = vector.load %arg1[%c0, %c0_0, %c0_1] : memref<1x1x128xf32, #tpu.memory_space<vmem>>, vector<1x1x128xf32>
    %cst = arith.constant 9.99999993E-9 : f32
    %1 = vector.broadcast %cst : f32 to vector<1x1x128xf32>
    %2 = arith.addf %0, %1 : vector<1x1x128xf32>
    %3 = math.log %2 : vector<1x1x128xf32>
    %cst_2 = arith.constant dense<0x7F800000> : vector<1x1xf32>
    %4 = vector.multi_reduction <minimumf>, %3, %cst_2 [2] : vector<1x1x128xf32> to vector<1x1xf32>
    %5 = vector.shape_cast %4 : vector<1x1xf32> to vector<1x1x1xf32>
    %cst_3 = arith.constant dense<0xFF800000> : vector<1x1xf32>
    %6 = vector.multi_reduction <maximumf>, %3, %cst_3 [2] : vector<1x1x128xf32> to vector<1x1xf32>
    %7 = vector.shape_cast %6 : vector<1x1xf32> to vector<1x1x1xf32>
    %8 = vector.broadcast %5 : vector<1x1x1xf32> to vector<1x1x128xf32>
    %9 = arith.subf %3, %8 : vector<1x1x128xf32>
    %10 = arith.subf %7, %5 : vector<1x1x1xf32>
    %cst_4 = arith.constant 9.99999993E-9 : f32
    %11 = vector.broadcast %cst_4 : f32 to vector<1x1x1xf32>
    %12 = arith.addf %10, %11 : vector<1x1x1xf32>
    %13 = tpu.reciprocal %12 {approx = true} : vector<1x1x1xf32> -> vector<1x1x1xf32>
    %14 = vector.broadcast %13 : vector<1x1x1xf32> to vector<1x1x128xf32>
    %15 = arith.mulf %9, %14 : vector<1x1x128xf32>
    %c0_5 = arith.constant 0 : index
    %c0_6 = arith.constant 0 : index
    %c0_7 = arith.constant 0 : index
    %16 = vector.load %arg2[%c0_5, %c0_6, %c0_7] : memref<1x1x128xf32, #tpu.memory_space<vmem>>, vector<1x1x128xf32>
    tpu.vector_store %arg2[%c0_5, %c0_6, %c0_7], %15 {strides = array<i32>} : memref<1x1x128xf32, #tpu.memory_space<vmem>>, vector<1x1x128xf32>,
    return
  }
  func.func @transform_0(%arg0: i32) -> (i32, i32, i32) {
    %c0_i32 = arith.constant 0 : i32
    %c0_i32_0 = arith.constant 0 : i32
    %c0_i32_1 = arith.constant 0 : i32
    return %arg0, %c0_i32, %c0_i32_0 : i32, i32, i32
  }
  func.func @transform_1(%arg0: i32) -> (i32, i32, i32) {
    %c0_i32 = arith.constant 0 : i32
    %c0_i32_0 = arith.constant 0 : i32
    %c0_i32_1 = arith.constant 0 : i32
    return %arg0, %c0_i32, %c0_i32_0 : i32, i32, i32
  }
}

module attributes {stable_mosaic.version = 11 : i64} {
  func.func @conv3x3_bn_relu_kernel(%arg0: i32, %arg1: memref<1x8x16x1xf32, #tpu.memory_space<vmem>>, %arg2: memref<9x2xbf16, #tpu.memory_space<vmem>>, %arg3: memref<1x2xf32, #tpu.memory_space<vmem>>, %arg4: memref<1x2xf32, #tpu.memory_space<vmem>>, %arg5: memref<1x8x16x2xbf16, #tpu.memory_space<vmem>>) attributes {dimension_semantics = [#tpu.dimension_semantics<parallel>], iteration_bounds = array<i64: 2>, scalar_prefetch = 0 : i64, scratch_operands = 0 : i64, tpu.core_type = #tpu.core_type<tc>, window_params = [{transform_indices = @transform_0, window_bounds = array<i64: 1, 8, 16, 1>}, {pipeline_mode = #tpu.pipeline_mode<synchronous>, transform_indices = @transform_1, window_bounds = array<i64: 9, 2>}, {pipeline_mode = #tpu.pipeline_mode<synchronous>, transform_indices = @transform_2, window_bounds = array<i64: 1, 2>}, {pipeline_mode = #tpu.pipeline_mode<synchronous>, transform_indices = @transform_3, window_bounds = array<i64: 1, 2>}, {transform_indices = @transform_4, window_bounds = array<i64: 1, 8, 16, 2>}]} {
    %c0 = arith.constant 0 : index
    %c0_0 = arith.constant 0 : index
    %c0_1 = arith.constant 0 : index
    %c0_2 = arith.constant 0 : index
    %0 = vector.load %arg1[%c0, %c0_0, %c0_1, %c0_2] : memref<1x8x16x1xf32, #tpu.memory_space<vmem>>, vector<1x8x16x1xf32>
    %1 = vector.shape_cast %0 : vector<1x8x16x1xf32> to vector<8x16x1xf32>
    %2 = arith.truncf %1 : vector<8x16x1xf32> to vector<8x16x1xbf16>
    %cst = arith.constant 0.000000e+00 : bf16
    %3 = vector.broadcast %cst : bf16 to vector<8x1x1xbf16>
    %4 = tpu.concatenate %3, %2, %3 in 1 : vector<8x1x1xbf16>, vector<8x16x1xbf16>, vector<8x1x1xbf16> -> vector<8x18x1xbf16>
    %cst_3 = arith.constant 0.000000e+00 : bf16
    %5 = vector.broadcast %cst_3 : bf16 to vector<1x18x1xbf16>
    %6 = tpu.concatenate %5, %4, %5 in 0 : vector<1x18x1xbf16>, vector<8x18x1xbf16>, vector<1x18x1xbf16> -> vector<10x18x1xbf16>
    %7 = vector.extract_strided_slice %6 {offsets = [0, 0, 0], sizes = [8, 16, 1], strides = [1, 1, 1]} : vector<10x18x1xbf16> to vector<8x16x1xbf16>
    %8 = vector.extract_strided_slice %6 {offsets = [0, 1, 0], sizes = [8, 16, 1], strides = [1, 1, 1]} : vector<10x18x1xbf16> to vector<8x16x1xbf16>
    %9 = vector.extract_strided_slice %6 {offsets = [0, 2, 0], sizes = [8, 16, 1], strides = [1, 1, 1]} : vector<10x18x1xbf16> to vector<8x16x1xbf16>
    %10 = tpu.concatenate %7, %8, %9 in 2 : vector<8x16x1xbf16>, vector<8x16x1xbf16>, vector<8x16x1xbf16> -> vector<8x16x3xbf16>
    %11 = vector.shape_cast %10 : vector<8x16x3xbf16> to vector<128x3xbf16>
    %c0_4 = arith.constant 0 : index
    %c0_5 = arith.constant 0 : index
    %12 = vector.load %arg2[%c0_4, %c0_5] : memref<9x2xbf16, #tpu.memory_space<vmem>>, vector<3x2xbf16>
    %cst_6 = arith.constant dense<0.000000e+00> : vector<128x2xf32>
    %13 = tpu.matmul %11, %12, %cst_6 {dimension_numbers = #tpu.dot_dimension_numbers<[1], [0], [0], [1], [0, 0, 1, 1], [], []>} : vector<128x3xbf16>, vector<3x2xbf16>, vector<128x2xf32> -> vector<128x2xf32>
    %14 = vector.extract_strided_slice %6 {offsets = [1, 0, 0], sizes = [8, 16, 1], strides = [1, 1, 1]} : vector<10x18x1xbf16> to vector<8x16x1xbf16>
    %15 = vector.extract_strided_slice %6 {offsets = [1, 1, 0], sizes = [8, 16, 1], strides = [1, 1, 1]} : vector<10x18x1xbf16> to vector<8x16x1xbf16>
    %16 = vector.extract_strided_slice %6 {offsets = [1, 2, 0], sizes = [8, 16, 1], strides = [1, 1, 1]} : vector<10x18x1xbf16> to vector<8x16x1xbf16>
    %17 = tpu.concatenate %14, %15, %16 in 2 : vector<8x16x1xbf16>, vector<8x16x1xbf16>, vector<8x16x1xbf16> -> vector<8x16x3xbf16>
    %18 = vector.shape_cast %17 : vector<8x16x3xbf16> to vector<128x3xbf16>
    %c3 = arith.constant 3 : index
    %c0_7 = arith.constant 0 : index
    %19 = vector.load %arg2[%c3, %c0_7] : memref<9x2xbf16, #tpu.memory_space<vmem>>, vector<3x2xbf16>
    %cst_8 = arith.constant dense<0.000000e+00> : vector<128x2xf32>
    %20 = tpu.matmul %18, %19, %cst_8 {dimension_numbers = #tpu.dot_dimension_numbers<[1], [0], [0], [1], [0, 0, 1, 1], [], []>} : vector<128x3xbf16>, vector<3x2xbf16>, vector<128x2xf32> -> vector<128x2xf32>
    %21 = arith.addf %13, %20 : vector<128x2xf32>
    %22 = vector.extract_strided_slice %6 {offsets = [2, 0, 0], sizes = [8, 16, 1], strides = [1, 1, 1]} : vector<10x18x1xbf16> to vector<8x16x1xbf16>
    %23 = vector.extract_strided_slice %6 {offsets = [2, 1, 0], sizes = [8, 16, 1], strides = [1, 1, 1]} : vector<10x18x1xbf16> to vector<8x16x1xbf16>
    %24 = vector.extract_strided_slice %6 {offsets = [2, 2, 0], sizes = [8, 16, 1], strides = [1, 1, 1]} : vector<10x18x1xbf16> to vector<8x16x1xbf16>
    %25 = tpu.concatenate %22, %23, %24 in 2 : vector<8x16x1xbf16>, vector<8x16x1xbf16>, vector<8x16x1xbf16> -> vector<8x16x3xbf16>
    %26 = vector.shape_cast %25 : vector<8x16x3xbf16> to vector<128x3xbf16>
    %c6 = arith.constant 6 : index
    %c0_9 = arith.constant 0 : index
    %27 = vector.load %arg2[%c6, %c0_9] : memref<9x2xbf16, #tpu.memory_space<vmem>>, vector<3x2xbf16>
    %cst_10 = arith.constant dense<0.000000e+00> : vector<128x2xf32>
    %28 = tpu.matmul %26, %27, %cst_10 {dimension_numbers = #tpu.dot_dimension_numbers<[1], [0], [0], [1], [0, 0, 1, 1], [], []>} : vector<128x3xbf16>, vector<3x2xbf16>, vector<128x2xf32> -> vector<128x2xf32>
    %29 = arith.addf %21, %28 : vector<128x2xf32>
    %c0_11 = arith.constant 0 : index
    %c0_12 = arith.constant 0 : index
    %30 = vector.load %arg3[%c0_11, %c0_12] : memref<1x2xf32, #tpu.memory_space<vmem>>, vector<1x2xf32>
    %31 = vector.shape_cast %30 : vector<1x2xf32> to vector<2xf32>
    %32 = vector.shape_cast %31 : vector<2xf32> to vector<1x2xf32>
    %33 = vector.broadcast %32 : vector<1x2xf32> to vector<128x2xf32>
    %34 = arith.mulf %29, %33 : vector<128x2xf32>
    %c0_13 = arith.constant 0 : index
    %c0_14 = arith.constant 0 : index
    %35 = vector.load %arg4[%c0_13, %c0_14] : memref<1x2xf32, #tpu.memory_space<vmem>>, vector<1x2xf32>
    %36 = vector.shape_cast %35 : vector<1x2xf32> to vector<2xf32>
    %37 = vector.shape_cast %36 : vector<2xf32> to vector<1x2xf32>
    %38 = vector.broadcast %37 : vector<1x2xf32> to vector<128x2xf32>
    %39 = arith.addf %34, %38 : vector<128x2xf32>
    %cst_15 = arith.constant 0.000000e+00 : f32
    %40 = vector.broadcast %cst_15 : f32 to vector<128x2xf32>
    %41 = arith.maximumf %39, %40 : vector<128x2xf32>
    %42 = vector.shape_cast %41 : vector<128x2xf32> to vector<8x16x2xf32>
    %43 = arith.truncf %42 : vector<8x16x2xf32> to vector<8x16x2xbf16>
    %c0_16 = arith.constant 0 : index
    %c0_17 = arith.constant 0 : index
    %c0_18 = arith.constant 0 : index
    %c0_19 = arith.constant 0 : index
    %44 = vector.load %arg5[%c0_16, %c0_17, %c0_18, %c0_19] : memref<1x8x16x2xbf16, #tpu.memory_space<vmem>>, vector<1x8x16x2xbf16>
    %45 = vector.shape_cast %44 : vector<1x8x16x2xbf16> to vector<8x16x2xbf16>
    %46 = vector.shape_cast %43 : vector<8x16x2xbf16> to vector<1x8x16x2xbf16>
    tpu.vector_store %arg5[%c0_16, %c0_17, %c0_18, %c0_19], %46 {strides = array<i32>} : memref<1x8x16x2xbf16, #tpu.memory_space<vmem>>, vector<1x8x16x2xbf16>,
    return
  }
  func.func @transform_0(%arg0: i32) -> (i32, i32, i32, i32) {
    %c0_i32 = arith.constant 0 : i32
    %c0_i32_0 = arith.constant 0 : i32
    %c0_i32_1 = arith.constant 0 : i32
    %c0_i32_2 = arith.constant 0 : i32
    return %arg0, %c0_i32, %c0_i32_0, %c0_i32_1 : i32, i32, i32, i32
  }
  func.func @transform_1(%arg0: i32) -> (i32, i32) {
    %c0_i32 = arith.constant 0 : i32
    %c0_i32_0 = arith.constant 0 : i32
    %c0_i32_1 = arith.constant 0 : i32
    return %c0_i32, %c0_i32_0 : i32, i32
  }
  func.func @transform_2(%arg0: i32) -> (i32, i32) {
    %c0_i32 = arith.constant 0 : i32
    %c0_i32_0 = arith.constant 0 : i32
    %c0_i32_1 = arith.constant 0 : i32
    return %c0_i32, %c0_i32_0 : i32, i32
  }
  func.func @transform_3(%arg0: i32) -> (i32, i32) {
    %c0_i32 = arith.constant 0 : i32
    %c0_i32_0 = arith.constant 0 : i32
    %c0_i32_1 = arith.constant 0 : i32
    return %c0_i32, %c0_i32_0 : i32, i32
  }
  func.func @transform_4(%arg0: i32) -> (i32, i32, i32, i32) {
    %c0_i32 = arith.constant 0 : i32
    %c0_i32_0 = arith.constant 0 : i32
    %c0_i32_1 = arith.constant 0 : i32
    %c0_i32_2 = arith.constant 0 : i32
    return %arg0, %c0_i32, %c0_i32_0, %c0_i32_1 : i32, i32, i32, i32
  }
}

module attributes {stable_mosaic.version = 11 : i64} {
  func.func @conv3x3_bn_relu_kernel(%arg0: i32, %arg1: memref<1x8x16x2xbf16, #tpu.memory_space<vmem>>, %arg2: memref<18x2xbf16, #tpu.memory_space<vmem>>, %arg3: memref<1x2xf32, #tpu.memory_space<vmem>>, %arg4: memref<1x2xf32, #tpu.memory_space<vmem>>, %arg5: memref<1x8x8x2xbf16, #tpu.memory_space<vmem>>) attributes {dimension_semantics = [#tpu.dimension_semantics<parallel>], iteration_bounds = array<i64: 2>, scalar_prefetch = 0 : i64, scratch_operands = 0 : i64, tpu.core_type = #tpu.core_type<tc>, window_params = [{transform_indices = @transform_0, window_bounds = array<i64: 1, 8, 16, 2>}, {pipeline_mode = #tpu.pipeline_mode<synchronous>, transform_indices = @transform_1, window_bounds = array<i64: 18, 2>}, {pipeline_mode = #tpu.pipeline_mode<synchronous>, transform_indices = @transform_2, window_bounds = array<i64: 1, 2>}, {pipeline_mode = #tpu.pipeline_mode<synchronous>, transform_indices = @transform_3, window_bounds = array<i64: 1, 2>}, {transform_indices = @transform_4, window_bounds = array<i64: 1, 8, 8, 2>}]} {
    %c0 = arith.constant 0 : index
    %c0_0 = arith.constant 0 : index
    %c0_1 = arith.constant 0 : index
    %c0_2 = arith.constant 0 : index
    %0 = vector.load %arg1[%c0, %c0_0, %c0_1, %c0_2] : memref<1x8x16x2xbf16, #tpu.memory_space<vmem>>, vector<1x8x16x2xbf16>
    %1 = vector.shape_cast %0 : vector<1x8x16x2xbf16> to vector<8x16x2xbf16>
    %cst = arith.constant 0.000000e+00 : bf16
    %2 = vector.broadcast %cst : bf16 to vector<8x1x2xbf16>
    %3 = tpu.concatenate %2, %1, %2 in 1 : vector<8x1x2xbf16>, vector<8x16x2xbf16>, vector<8x1x2xbf16> -> vector<8x18x2xbf16>
    %cst_3 = arith.constant 0.000000e+00 : bf16
    %4 = vector.broadcast %cst_3 : bf16 to vector<1x18x2xbf16>
    %5 = tpu.concatenate %4, %3, %4 in 0 : vector<1x18x2xbf16>, vector<8x18x2xbf16>, vector<1x18x2xbf16> -> vector<10x18x2xbf16>
    %6 = vector.extract_strided_slice %5 {offsets = [0, 0, 0], sizes = [8, 16, 2], strides = [1, 1, 1]} : vector<10x18x2xbf16> to vector<8x16x2xbf16>
    %7 = vector.extract_strided_slice %5 {offsets = [0, 1, 0], sizes = [8, 16, 2], strides = [1, 1, 1]} : vector<10x18x2xbf16> to vector<8x16x2xbf16>
    %8 = vector.extract_strided_slice %5 {offsets = [0, 2, 0], sizes = [8, 16, 2], strides = [1, 1, 1]} : vector<10x18x2xbf16> to vector<8x16x2xbf16>
    %9 = tpu.concatenate %6, %7, %8 in 2 : vector<8x16x2xbf16>, vector<8x16x2xbf16>, vector<8x16x2xbf16> -> vector<8x16x6xbf16>
    %10 = vector.shape_cast %9 : vector<8x16x6xbf16> to vector<128x6xbf16>
    %c0_4 = arith.constant 0 : index
    %c0_5 = arith.constant 0 : index
    %11 = vector.load %arg2[%c0_4, %c0_5] : memref<18x2xbf16, #tpu.memory_space<vmem>>, vector<6x2xbf16>
    %cst_6 = arith.constant dense<0.000000e+00> : vector<128x2xf32>
    %12 = tpu.matmul %10, %11, %cst_6 {dimension_numbers = #tpu.dot_dimension_numbers<[1], [0], [0], [1], [0, 0, 1, 1], [], []>} : vector<128x6xbf16>, vector<6x2xbf16>, vector<128x2xf32> -> vector<128x2xf32>
    %13 = vector.extract_strided_slice %5 {offsets = [1, 0, 0], sizes = [8, 16, 2], strides = [1, 1, 1]} : vector<10x18x2xbf16> to vector<8x16x2xbf16>
    %14 = vector.extract_strided_slice %5 {offsets = [1, 1, 0], sizes = [8, 16, 2], strides = [1, 1, 1]} : vector<10x18x2xbf16> to vector<8x16x2xbf16>
    %15 = vector.extract_strided_slice %5 {offsets = [1, 2, 0], sizes = [8, 16, 2], strides = [1, 1, 1]} : vector<10x18x2xbf16> to vector<8x16x2xbf16>
    %16 = tpu.concatenate %13, %14, %15 in 2 : vector<8x16x2xbf16>, vector<8x16x2xbf16>, vector<8x16x2xbf16> -> vector<8x16x6xbf16>
    %17 = vector.shape_cast %16 : vector<8x16x6xbf16> to vector<128x6xbf16>
    %c6 = arith.constant 6 : index
    %c0_7 = arith.constant 0 : index
    %18 = vector.load %arg2[%c6, %c0_7] : memref<18x2xbf16, #tpu.memory_space<vmem>>, vector<6x2xbf16>
    %cst_8 = arith.constant dense<0.000000e+00> : vector<128x2xf32>
    %19 = tpu.matmul %17, %18, %cst_8 {dimension_numbers = #tpu.dot_dimension_numbers<[1], [0], [0], [1], [0, 0, 1, 1], [], []>} : vector<128x6xbf16>, vector<6x2xbf16>, vector<128x2xf32> -> vector<128x2xf32>
    %20 = arith.addf %12, %19 : vector<128x2xf32>
    %21 = vector.extract_strided_slice %5 {offsets = [2, 0, 0], sizes = [8, 16, 2], strides = [1, 1, 1]} : vector<10x18x2xbf16> to vector<8x16x2xbf16>
    %22 = vector.extract_strided_slice %5 {offsets = [2, 1, 0], sizes = [8, 16, 2], strides = [1, 1, 1]} : vector<10x18x2xbf16> to vector<8x16x2xbf16>
    %23 = vector.extract_strided_slice %5 {offsets = [2, 2, 0], sizes = [8, 16, 2], strides = [1, 1, 1]} : vector<10x18x2xbf16> to vector<8x16x2xbf16>
    %24 = tpu.concatenate %21, %22, %23 in 2 : vector<8x16x2xbf16>, vector<8x16x2xbf16>, vector<8x16x2xbf16> -> vector<8x16x6xbf16>
    %25 = vector.shape_cast %24 : vector<8x16x6xbf16> to vector<128x6xbf16>
    %c12 = arith.constant 12 : index
    %c0_9 = arith.constant 0 : index
    %26 = vector.load %arg2[%c12, %c0_9] : memref<18x2xbf16, #tpu.memory_space<vmem>>, vector<6x2xbf16>
    %cst_10 = arith.constant dense<0.000000e+00> : vector<128x2xf32>
    %27 = tpu.matmul %25, %26, %cst_10 {dimension_numbers = #tpu.dot_dimension_numbers<[1], [0], [0], [1], [0, 0, 1, 1], [], []>} : vector<128x6xbf16>, vector<6x2xbf16>, vector<128x2xf32> -> vector<128x2xf32>
    %28 = arith.addf %20, %27 : vector<128x2xf32>
    %c0_11 = arith.constant 0 : index
    %c0_12 = arith.constant 0 : index
    %29 = vector.load %arg3[%c0_11, %c0_12] : memref<1x2xf32, #tpu.memory_space<vmem>>, vector<1x2xf32>
    %30 = vector.shape_cast %29 : vector<1x2xf32> to vector<2xf32>
    %31 = vector.shape_cast %30 : vector<2xf32> to vector<1x2xf32>
    %32 = vector.broadcast %31 : vector<1x2xf32> to vector<128x2xf32>
    %33 = arith.mulf %28, %32 : vector<128x2xf32>
    %c0_13 = arith.constant 0 : index
    %c0_14 = arith.constant 0 : index
    %34 = vector.load %arg4[%c0_13, %c0_14] : memref<1x2xf32, #tpu.memory_space<vmem>>, vector<1x2xf32>
    %35 = vector.shape_cast %34 : vector<1x2xf32> to vector<2xf32>
    %36 = vector.shape_cast %35 : vector<2xf32> to vector<1x2xf32>
    %37 = vector.broadcast %36 : vector<1x2xf32> to vector<128x2xf32>
    %38 = arith.addf %33, %37 : vector<128x2xf32>
    %cst_15 = arith.constant 0.000000e+00 : f32
    %39 = vector.broadcast %cst_15 : f32 to vector<128x2xf32>
    %40 = arith.maximumf %38, %39 : vector<128x2xf32>
    %41 = vector.shape_cast %40 : vector<128x2xf32> to vector<8x16x2xf32>
    %42 = vector.shape_cast %41 : vector<8x16x2xf32> to vector<8x8x2x2xf32>
    %43 = vector.extract_strided_slice %42 {offsets = [0, 0, 0, 0], sizes = [8, 8, 1, 2], strides = [1, 1, 1, 1]} : vector<8x8x2x2xf32> to vector<8x8x1x2xf32>
    %44 = vector.shape_cast %43 : vector<8x8x1x2xf32> to vector<8x8x2xf32>
    %45 = vector.extract_strided_slice %42 {offsets = [0, 0, 1, 0], sizes = [8, 8, 1, 2], strides = [1, 1, 1, 1]} : vector<8x8x2x2xf32> to vector<8x8x1x2xf32>
    %46 = vector.shape_cast %45 : vector<8x8x1x2xf32> to vector<8x8x2xf32>
    %47 = arith.maximumf %44, %46 : vector<8x8x2xf32>
    %48 = arith.truncf %47 : vector<8x8x2xf32> to vector<8x8x2xbf16>
    %c0_16 = arith.constant 0 : index
    %c0_17 = arith.constant 0 : index
    %c0_18 = arith.constant 0 : index
    %c0_19 = arith.constant 0 : index
    %49 = vector.load %arg5[%c0_16, %c0_17, %c0_18, %c0_19] : memref<1x8x8x2xbf16, #tpu.memory_space<vmem>>, vector<1x8x8x2xbf16>
    %50 = vector.shape_cast %49 : vector<1x8x8x2xbf16> to vector<8x8x2xbf16>
    %51 = vector.shape_cast %48 : vector<8x8x2xbf16> to vector<1x8x8x2xbf16>
    tpu.vector_store %arg5[%c0_16, %c0_17, %c0_18, %c0_19], %51 {strides = array<i32>} : memref<1x8x8x2xbf16, #tpu.memory_space<vmem>>, vector<1x8x8x2xbf16>,
    return
  }
  func.func @transform_0(%arg0: i32) -> (i32, i32, i32, i32) {
    %c0_i32 = arith.constant 0 : i32
    %c0_i32_0 = arith.constant 0 : i32
    %c0_i32_1 = arith.constant 0 : i32
    %c0_i32_2 = arith.constant 0 : i32
    return %arg0, %c0_i32, %c0_i32_0, %c0_i32_1 : i32, i32, i32, i32
  }
  func.func @transform_1(%arg0: i32) -> (i32, i32) {
    %c0_i32 = arith.constant 0 : i32
    %c0_i32_0 = arith.constant 0 : i32
    %c0_i32_1 = arith.constant 0 : i32
    return %c0_i32, %c0_i32_0 : i32, i32
  }
  func.func @transform_2(%arg0: i32) -> (i32, i32) {
    %c0_i32 = arith.constant 0 : i32
    %c0_i32_0 = arith.constant 0 : i32
    %c0_i32_1 = arith.constant 0 : i32
    return %c0_i32, %c0_i32_0 : i32, i32
  }
  func.func @transform_3(%arg0: i32) -> (i32, i32) {
    %c0_i32 = arith.constant 0 : i32
    %c0_i32_0 = arith.constant 0 : i32
    %c0_i32_1 = arith.constant 0 : i32
    return %c0_i32, %c0_i32_0 : i32, i32
  }
  func.func @transform_4(%arg0: i32) -> (i32, i32, i32, i32) {
    %c0_i32 = arith.constant 0 : i32
    %c0_i32_0 = arith.constant 0 : i32
    %c0_i32_1 = arith.constant 0 : i32
    %c0_i32_2 = arith.constant 0 : i32
    return %arg0, %c0_i32, %c0_i32_0, %c0_i32_1 : i32, i32, i32, i32
  }
}

module attributes {stable_mosaic.version = 11 : i64} {
  func.func @conv3x3_bn_relu_kernel(%arg0: i32, %arg1: memref<1x8x8x2xbf16, #tpu.memory_space<vmem>>, %arg2: memref<18x4xbf16, #tpu.memory_space<vmem>>, %arg3: memref<1x4xf32, #tpu.memory_space<vmem>>, %arg4: memref<1x4xf32, #tpu.memory_space<vmem>>, %arg5: memref<1x8x4x4xbf16, #tpu.memory_space<vmem>>) attributes {dimension_semantics = [#tpu.dimension_semantics<parallel>], iteration_bounds = array<i64: 2>, scalar_prefetch = 0 : i64, scratch_operands = 0 : i64, tpu.core_type = #tpu.core_type<tc>, window_params = [{transform_indices = @transform_0, window_bounds = array<i64: 1, 8, 8, 2>}, {pipeline_mode = #tpu.pipeline_mode<synchronous>, transform_indices = @transform_1, window_bounds = array<i64: 18, 4>}, {pipeline_mode = #tpu.pipeline_mode<synchronous>, transform_indices = @transform_2, window_bounds = array<i64: 1, 4>}, {pipeline_mode = #tpu.pipeline_mode<synchronous>, transform_indices = @transform_3, window_bounds = array<i64: 1, 4>}, {transform_indices = @transform_4, window_bounds = array<i64: 1, 8, 4, 4>}]} {
    %c0 = arith.constant 0 : index
    %c0_0 = arith.constant 0 : index
    %c0_1 = arith.constant 0 : index
    %c0_2 = arith.constant 0 : index
    %0 = vector.load %arg1[%c0, %c0_0, %c0_1, %c0_2] : memref<1x8x8x2xbf16, #tpu.memory_space<vmem>>, vector<1x8x8x2xbf16>
    %1 = vector.shape_cast %0 : vector<1x8x8x2xbf16> to vector<8x8x2xbf16>
    %cst = arith.constant 0.000000e+00 : bf16
    %2 = vector.broadcast %cst : bf16 to vector<8x1x2xbf16>
    %3 = tpu.concatenate %2, %1, %2 in 1 : vector<8x1x2xbf16>, vector<8x8x2xbf16>, vector<8x1x2xbf16> -> vector<8x10x2xbf16>
    %cst_3 = arith.constant 0.000000e+00 : bf16
    %4 = vector.broadcast %cst_3 : bf16 to vector<1x10x2xbf16>
    %5 = tpu.concatenate %4, %3, %4 in 0 : vector<1x10x2xbf16>, vector<8x10x2xbf16>, vector<1x10x2xbf16> -> vector<10x10x2xbf16>
    %6 = vector.extract_strided_slice %5 {offsets = [0, 0, 0], sizes = [8, 8, 2], strides = [1, 1, 1]} : vector<10x10x2xbf16> to vector<8x8x2xbf16>
    %7 = vector.extract_strided_slice %5 {offsets = [0, 1, 0], sizes = [8, 8, 2], strides = [1, 1, 1]} : vector<10x10x2xbf16> to vector<8x8x2xbf16>
    %8 = vector.extract_strided_slice %5 {offsets = [0, 2, 0], sizes = [8, 8, 2], strides = [1, 1, 1]} : vector<10x10x2xbf16> to vector<8x8x2xbf16>
    %9 = tpu.concatenate %6, %7, %8 in 2 : vector<8x8x2xbf16>, vector<8x8x2xbf16>, vector<8x8x2xbf16> -> vector<8x8x6xbf16>
    %10 = vector.shape_cast %9 : vector<8x8x6xbf16> to vector<64x6xbf16>
    %c0_4 = arith.constant 0 : index
    %c0_5 = arith.constant 0 : index
    %11 = vector.load %arg2[%c0_4, %c0_5] : memref<18x4xbf16, #tpu.memory_space<vmem>>, vector<6x4xbf16>
    %cst_6 = arith.constant dense<0.000000e+00> : vector<64x4xf32>
    %12 = tpu.matmul %10, %11, %cst_6 {dimension_numbers = #tpu.dot_dimension_numbers<[1], [0], [0], [1], [0, 0, 1, 1], [], []>} : vector<64x6xbf16>, vector<6x4xbf16>, vector<64x4xf32> -> vector<64x4xf32>
    %13 = vector.extract_strided_slice %5 {offsets = [1, 0, 0], sizes = [8, 8, 2], strides = [1, 1, 1]} : vector<10x10x2xbf16> to vector<8x8x2xbf16>
    %14 = vector.extract_strided_slice %5 {offsets = [1, 1, 0], sizes = [8, 8, 2], strides = [1, 1, 1]} : vector<10x10x2xbf16> to vector<8x8x2xbf16>
    %15 = vector.extract_strided_slice %5 {offsets = [1, 2, 0], sizes = [8, 8, 2], strides = [1, 1, 1]} : vector<10x10x2xbf16> to vector<8x8x2xbf16>
    %16 = tpu.concatenate %13, %14, %15 in 2 : vector<8x8x2xbf16>, vector<8x8x2xbf16>, vector<8x8x2xbf16> -> vector<8x8x6xbf16>
    %17 = vector.shape_cast %16 : vector<8x8x6xbf16> to vector<64x6xbf16>
    %c6 = arith.constant 6 : index
    %c0_7 = arith.constant 0 : index
    %18 = vector.load %arg2[%c6, %c0_7] : memref<18x4xbf16, #tpu.memory_space<vmem>>, vector<6x4xbf16>
    %cst_8 = arith.constant dense<0.000000e+00> : vector<64x4xf32>
    %19 = tpu.matmul %17, %18, %cst_8 {dimension_numbers = #tpu.dot_dimension_numbers<[1], [0], [0], [1], [0, 0, 1, 1], [], []>} : vector<64x6xbf16>, vector<6x4xbf16>, vector<64x4xf32> -> vector<64x4xf32>
    %20 = arith.addf %12, %19 : vector<64x4xf32>
    %21 = vector.extract_strided_slice %5 {offsets = [2, 0, 0], sizes = [8, 8, 2], strides = [1, 1, 1]} : vector<10x10x2xbf16> to vector<8x8x2xbf16>
    %22 = vector.extract_strided_slice %5 {offsets = [2, 1, 0], sizes = [8, 8, 2], strides = [1, 1, 1]} : vector<10x10x2xbf16> to vector<8x8x2xbf16>
    %23 = vector.extract_strided_slice %5 {offsets = [2, 2, 0], sizes = [8, 8, 2], strides = [1, 1, 1]} : vector<10x10x2xbf16> to vector<8x8x2xbf16>
    %24 = tpu.concatenate %21, %22, %23 in 2 : vector<8x8x2xbf16>, vector<8x8x2xbf16>, vector<8x8x2xbf16> -> vector<8x8x6xbf16>
    %25 = vector.shape_cast %24 : vector<8x8x6xbf16> to vector<64x6xbf16>
    %c12 = arith.constant 12 : index
    %c0_9 = arith.constant 0 : index
    %26 = vector.load %arg2[%c12, %c0_9] : memref<18x4xbf16, #tpu.memory_space<vmem>>, vector<6x4xbf16>
    %cst_10 = arith.constant dense<0.000000e+00> : vector<64x4xf32>
    %27 = tpu.matmul %25, %26, %cst_10 {dimension_numbers = #tpu.dot_dimension_numbers<[1], [0], [0], [1], [0, 0, 1, 1], [], []>} : vector<64x6xbf16>, vector<6x4xbf16>, vector<64x4xf32> -> vector<64x4xf32>
    %28 = arith.addf %20, %27 : vector<64x4xf32>
    %c0_11 = arith.constant 0 : index
    %c0_12 = arith.constant 0 : index
    %29 = vector.load %arg3[%c0_11, %c0_12] : memref<1x4xf32, #tpu.memory_space<vmem>>, vector<1x4xf32>
    %30 = vector.shape_cast %29 : vector<1x4xf32> to vector<4xf32>
    %31 = vector.shape_cast %30 : vector<4xf32> to vector<1x4xf32>
    %32 = vector.broadcast %31 : vector<1x4xf32> to vector<64x4xf32>
    %33 = arith.mulf %28, %32 : vector<64x4xf32>
    %c0_13 = arith.constant 0 : index
    %c0_14 = arith.constant 0 : index
    %34 = vector.load %arg4[%c0_13, %c0_14] : memref<1x4xf32, #tpu.memory_space<vmem>>, vector<1x4xf32>
    %35 = vector.shape_cast %34 : vector<1x4xf32> to vector<4xf32>
    %36 = vector.shape_cast %35 : vector<4xf32> to vector<1x4xf32>
    %37 = vector.broadcast %36 : vector<1x4xf32> to vector<64x4xf32>
    %38 = arith.addf %33, %37 : vector<64x4xf32>
    %cst_15 = arith.constant 0.000000e+00 : f32
    %39 = vector.broadcast %cst_15 : f32 to vector<64x4xf32>
    %40 = arith.maximumf %38, %39 : vector<64x4xf32>
    %41 = vector.shape_cast %40 : vector<64x4xf32> to vector<8x8x4xf32>
    %42 = vector.shape_cast %41 : vector<8x8x4xf32> to vector<8x4x2x4xf32>
    %43 = vector.extract_strided_slice %42 {offsets = [0, 0, 0, 0], sizes = [8, 4, 1, 4], strides = [1, 1, 1, 1]} : vector<8x4x2x4xf32> to vector<8x4x1x4xf32>
    %44 = vector.shape_cast %43 : vector<8x4x1x4xf32> to vector<8x4x4xf32>
    %45 = vector.extract_strided_slice %42 {offsets = [0, 0, 1, 0], sizes = [8, 4, 1, 4], strides = [1, 1, 1, 1]} : vector<8x4x2x4xf32> to vector<8x4x1x4xf32>
    %46 = vector.shape_cast %45 : vector<8x4x1x4xf32> to vector<8x4x4xf32>
    %47 = arith.maximumf %44, %46 : vector<8x4x4xf32>
    %48 = arith.truncf %47 : vector<8x4x4xf32> to vector<8x4x4xbf16>
    %c0_16 = arith.constant 0 : index
    %c0_17 = arith.constant 0 : index
    %c0_18 = arith.constant 0 : index
    %c0_19 = arith.constant 0 : index
    %49 = vector.load %arg5[%c0_16, %c0_17, %c0_18, %c0_19] : memref<1x8x4x4xbf16, #tpu.memory_space<vmem>>, vector<1x8x4x4xbf16>
    %50 = vector.shape_cast %49 : vector<1x8x4x4xbf16> to vector<8x4x4xbf16>
    %51 = vector.shape_cast %48 : vector<8x4x4xbf16> to vector<1x8x4x4xbf16>
    tpu.vector_store %arg5[%c0_16, %c0_17, %c0_18, %c0_19], %51 {strides = array<i32>} : memref<1x8x4x4xbf16, #tpu.memory_space<vmem>>, vector<1x8x4x4xbf16>,
    return
  }
  func.func @transform_0(%arg0: i32) -> (i32, i32, i32, i32) {
    %c0_i32 = arith.constant 0 : i32
    %c0_i32_0 = arith.constant 0 : i32
    %c0_i32_1 = arith.constant 0 : i32
    %c0_i32_2 = arith.constant 0 : i32
    return %arg0, %c0_i32, %c0_i32_0, %c0_i32_1 : i32, i32, i32, i32
  }
  func.func @transform_1(%arg0: i32) -> (i32, i32) {
    %c0_i32 = arith.constant 0 : i32
    %c0_i32_0 = arith.constant 0 : i32
    %c0_i32_1 = arith.constant 0 : i32
    return %c0_i32, %c0_i32_0 : i32, i32
  }
  func.func @transform_2(%arg0: i32) -> (i32, i32) {
    %c0_i32 = arith.constant 0 : i32
    %c0_i32_0 = arith.constant 0 : i32
    %c0_i32_1 = arith.constant 0 : i32
    return %c0_i32, %c0_i32_0 : i32, i32
  }
  func.func @transform_3(%arg0: i32) -> (i32, i32) {
    %c0_i32 = arith.constant 0 : i32
    %c0_i32_0 = arith.constant 0 : i32
    %c0_i32_1 = arith.constant 0 : i32
    return %c0_i32, %c0_i32_0 : i32, i32
  }
  func.func @transform_4(%arg0: i32) -> (i32, i32, i32, i32) {
    %c0_i32 = arith.constant 0 : i32
    %c0_i32_0 = arith.constant 0 : i32
    %c0_i32_1 = arith.constant 0 : i32
    %c0_i32_2 = arith.constant 0 : i32
    return %arg0, %c0_i32, %c0_i32_0, %c0_i32_1 : i32, i32, i32, i32
  }
}

module attributes {stable_mosaic.version = 11 : i64} {
  func.func @bilstm_classifier_kernel(%arg0: i32, %arg1: memref<1x8x16xbf16, #tpu.memory_space<vmem>>, %arg2: memref<16x32xbf16, #tpu.memory_space<vmem>>, %arg3: memref<1x32xf32, #tpu.memory_space<vmem>>, %arg4: memref<32x64xbf16, #tpu.memory_space<vmem>>, %arg5: memref<16x64xbf16, #tpu.memory_space<vmem>>, %arg6: memref<1x64xf32, #tpu.memory_space<vmem>>, %arg7: memref<32x64xbf16, #tpu.memory_space<vmem>>, %arg8: memref<16x64xbf16, #tpu.memory_space<vmem>>, %arg9: memref<1x64xf32, #tpu.memory_space<vmem>>, %arg10: memref<16x8xbf16, #tpu.memory_space<vmem>>, %arg11: memref<16x8xbf16, #tpu.memory_space<vmem>>, %arg12: memref<1x8xf32, #tpu.memory_space<vmem>>, %arg13: memref<1x8x8xf32, #tpu.memory_space<vmem>>, %arg14: memref<8x1x64xf32, #tpu.memory_space<vmem>>, %arg15: memref<8x1x64xf32, #tpu.memory_space<vmem>>, %arg16: memref<8x1x16xbf16, #tpu.memory_space<vmem>>, %arg17: memref<8x1x16xbf16, #tpu.memory_space<vmem>>) attributes {dimension_semantics = [#tpu.dimension_semantics<parallel>], iteration_bounds = array<i64: 2>, scalar_prefetch = 0 : i64, scratch_operands = 4 : i64, tpu.core_type = #tpu.core_type<tc>, window_params = [{transform_indices = @transform_0, window_bounds = array<i64: 1, 8, 16>}, {pipeline_mode = #tpu.pipeline_mode<synchronous>, transform_indices = @transform_1, window_bounds = array<i64: 16, 32>}, {pipeline_mode = #tpu.pipeline_mode<synchronous>, transform_indices = @transform_2, window_bounds = array<i64: 1, 32>}, {pipeline_mode = #tpu.pipeline_mode<synchronous>, transform_indices = @transform_3, window_bounds = array<i64: 32, 64>}, {pipeline_mode = #tpu.pipeline_mode<synchronous>, transform_indices = @transform_4, window_bounds = array<i64: 16, 64>}, {pipeline_mode = #tpu.pipeline_mode<synchronous>, transform_indices = @transform_5, window_bounds = array<i64: 1, 64>}, {pipeline_mode = #tpu.pipeline_mode<synchronous>, transform_indices = @transform_6, window_bounds = array<i64: 32, 64>}, {pipeline_mode = #tpu.pipeline_mode<synchronous>, transform_indices = @transform_7, window_bounds = array<i64: 16, 64>}, {pipeline_mode = #tpu.pipeline_mode<synchronous>, transform_indices = @transform_8, window_bounds = array<i64: 1, 64>}, {pipeline_mode = #tpu.pipeline_mode<synchronous>, transform_indices = @transform_9, window_bounds = array<i64: 16, 8>}, {pipeline_mode = #tpu.pipeline_mode<synchronous>, transform_indices = @transform_10, window_bounds = array<i64: 16, 8>}, {pipeline_mode = #tpu.pipeline_mode<synchronous>, transform_indices = @transform_11, window_bounds = array<i64: 1, 8>}, {transform_indices = @transform_12, window_bounds = array<i64: 1, 8, 8>}]} {
    %c0 = arith.constant 0 : index
    %c0_0 = arith.constant 0 : index
    %c0_1 = arith.constant 0 : index
    %0 = vector.load %arg1[%c0, %c0_0, %c0_1] : memref<1x8x16xbf16, #tpu.memory_space<vmem>>, vector<1x8x16xbf16>
    %1 = vector.shape_cast %0 : vector<1x8x16xbf16> to vector<8x16xbf16>
    %c0_2 = arith.constant 0 : index
    %c0_3 = arith.constant 0 : index
    %2 = vector.load %arg2[%c0_2, %c0_3] : memref<16x32xbf16, #tpu.memory_space<vmem>>, vector<16x32xbf16>
    %cst = arith.constant dense<0.000000e+00> : vector<8x32xf32>
    %3 = tpu.matmul %1, %2, %cst {dimension_numbers = #tpu.dot_dimension_numbers<[1], [0], [0], [1], [0, 0, 1, 1], [], []>} : vector<8x16xbf16>, vector<16x32xbf16>, vector<8x32xf32> -> vector<8x32xf32>
    %c0_4 = arith.constant 0 : index
    %c0_5 = arith.constant 0 : index
    %4 = vector.load %arg3[%c0_4, %c0_5] : memref<1x32xf32, #tpu.memory_space<vmem>>, vector<1x32xf32>
    %5 = vector.shape_cast %4 : vector<1x32xf32> to vector<32xf32>
    %6 = vector.shape_cast %5 : vector<32xf32> to vector<1x32xf32>
    %7 = vector.broadcast %6 : vector<1x32xf32> to vector<8x32xf32>
    %8 = arith.addf %3, %7 : vector<8x32xf32>
    %9 = arith.truncf %8 : vector<8x32xf32> to vector<8x32xbf16>
    %10 = vector.shape_cast %9 : vector<8x32xbf16> to vector<1x8x32xbf16>
    %11 = tpu.transpose %10, [1, 0, 2] : vector<1x8x32xbf16> -> vector<8x1x32xbf16>
    %12 = vector.shape_cast %11 : vector<8x1x32xbf16> to vector<8x32xbf16>
    %c0_6 = arith.constant 0 : index
    %c0_7 = arith.constant 0 : index
    %13 = vector.load %arg4[%c0_6, %c0_7] : memref<32x64xbf16, #tpu.memory_space<vmem>>, vector<32x64xbf16>
    %cst_8 = arith.constant dense<0.000000e+00> : vector<8x64xf32>
    %14 = tpu.matmul %12, %13, %cst_8 {dimension_numbers = #tpu.dot_dimension_numbers<[1], [0], [0], [1], [0, 0, 1, 1], [], []>} : vector<8x32xbf16>, vector<32x64xbf16>, vector<8x64xf32> -> vector<8x64xf32>
    %c0_9 = arith.constant 0 : index
    %c0_10 = arith.constant 0 : index
    %15 = vector.load %arg6[%c0_9, %c0_10] : memref<1x64xf32, #tpu.memory_space<vmem>>, vector<1x64xf32>
    %16 = vector.shape_cast %15 : vector<1x64xf32> to vector<64xf32>
    %17 = vector.shape_cast %16 : vector<64xf32> to vector<1x64xf32>
    %18 = vector.broadcast %17 : vector<1x64xf32> to vector<8x64xf32>
    %19 = arith.addf %14, %18 : vector<8x64xf32>
    %20 = vector.shape_cast %19 : vector<8x64xf32> to vector<8x1x64xf32>
    %c0_11 = arith.constant 0 : index
    %c0_12 = arith.constant 0 : index
    %c0_13 = arith.constant 0 : index
    %21 = vector.load %arg14[%c0_11, %c0_12, %c0_13] : memref<8x1x64xf32, #tpu.memory_space<vmem>>, vector<8x1x64xf32>
    tpu.vector_store %arg14[%c0_11, %c0_12, %c0_13], %20 {strides = array<i32>} : memref<8x1x64xf32, #tpu.memory_space<vmem>>, vector<8x1x64xf32>,
    %c0_14 = arith.constant 0 : index
    %c0_15 = arith.constant 0 : index
    %22 = vector.load %arg7[%c0_14, %c0_15] : memref<32x64xbf16, #tpu.memory_space<vmem>>, vector<32x64xbf16>
    %cst_16 = arith.constant dense<0.000000e+00> : vector<8x64xf32>
    %23 = tpu.matmul %12, %22, %cst_16 {dimension_numbers = #tpu.dot_dimension_numbers<[1], [0], [0], [1], [0, 0, 1, 1], [], []>} : vector<8x32xbf16>, vector<32x64xbf16>, vector<8x64xf32> -> vector<8x64xf32>
    %c0_17 = arith.constant 0 : index
    %c0_18 = arith.constant 0 : index
    %24 = vector.load %arg9[%c0_17, %c0_18] : memref<1x64xf32, #tpu.memory_space<vmem>>, vector<1x64xf32>
    %25 = vector.shape_cast %24 : vector<1x64xf32> to vector<64xf32>
    %26 = vector.shape_cast %25 : vector<64xf32> to vector<1x64xf32>
    %27 = vector.broadcast %26 : vector<1x64xf32> to vector<8x64xf32>
    %28 = arith.addf %23, %27 : vector<8x64xf32>
    %29 = vector.shape_cast %28 : vector<8x64xf32> to vector<8x1x64xf32>
    %c0_19 = arith.constant 0 : index
    %c0_20 = arith.constant 0 : index
    %c0_21 = arith.constant 0 : index
    %30 = vector.load %arg15[%c0_19, %c0_20, %c0_21] : memref<8x1x64xf32, #tpu.memory_space<vmem>>, vector<8x1x64xf32>
    tpu.vector_store %arg15[%c0_19, %c0_20, %c0_21], %29 {strides = array<i32>} : memref<8x1x64xf32, #tpu.memory_space<vmem>>, vector<8x1x64xf32>,
    %c0_22 = arith.constant 0 : index
    %c0_23 = arith.constant 0 : index
    %31 = vector.load %arg5[%c0_22, %c0_23] : memref<16x64xbf16, #tpu.memory_space<vmem>>, vector<16x64xbf16>
    %c0_24 = arith.constant 0 : index
    %c0_25 = arith.constant 0 : index
    %32 = vector.load %arg8[%c0_24, %c0_25] : memref<16x64xbf16, #tpu.memory_space<vmem>>, vector<16x64xbf16>
    %cst_26 = arith.constant 0.000000e+00 : f32
    %33 = vector.broadcast %cst_26 : f32 to vector<1x16xf32>
    %c0_i32 = arith.constant 0 : i32
    %c8_i32 = arith.constant 8 : i32
    %34 = arith.addi %c0_i32, %c8_i32 : i32
    %c1_i32 = arith.constant 1 : i32
    %35:4 = scf.for %arg18 = %c0_i32 to %34 step %c1_i32 iter_args(%arg19 = %33, %arg20 = %33, %arg21 = %33, %arg22 = %33) -> (vector<1x16xf32>, vector<1x16xf32>, vector<1x16xf32>, vector<1x16xf32>)  : i32 {
      %53 = arith.index_cast %arg18 : i32 to index
      %c0_45 = arith.constant 0 : index
      %c0_46 = arith.constant 0 : index
      %54 = vector.load %arg14[%53, %c0_45, %c0_46] : memref<8x1x64xf32, #tpu.memory_space<vmem>>, vector<1x1x64xf32>
      %55 = vector.shape_cast %54 : vector<1x1x64xf32> to vector<1x64xf32>
      %56 = arith.truncf %arg19 : vector<1x16xf32> to vector<1x16xbf16>
      %cst_47 = arith.constant dense<0.000000e+00> : vector<1x64xf32>
      %57 = tpu.matmul %56, %31, %cst_47 {dimension_numbers = #tpu.dot_dimension_numbers<[1], [0], [0], [1], [0, 0, 1, 1], [], []>} : vector<1x16xbf16>, vector<16x64xbf16>, vector<1x64xf32> -> vector<1x64xf32>
      %58 = arith.addf %55, %57 : vector<1x64xf32>
      %c7_i32 = arith.constant 7 : i32
      %59 = arith.subi %c7_i32, %arg18 : i32
      %60 = arith.index_cast %59 : i32 to index
      %c0_48 = arith.constant 0 : index
      %c0_49 = arith.constant 0 : index
      %61 = vector.load %arg15[%60, %c0_48, %c0_49] : memref<8x1x64xf32, #tpu.memory_space<vmem>>, vector<1x1x64xf32>
      %62 = vector.shape_cast %61 : vector<1x1x64xf32> to vector<1x64xf32>
      %63 = arith.truncf %arg21 : vector<1x16xf32> to vector<1x16xbf16>
      %cst_50 = arith.constant dense<0.000000e+00> : vector<1x64xf32>
      %64 = tpu.matmul %63, %32, %cst_50 {dimension_numbers = #tpu.dot_dimension_numbers<[1], [0], [0], [1], [0, 0, 1, 1], [], []>} : vector<1x16xbf16>, vector<16x64xbf16>, vector<1x64xf32> -> vector<1x64xf32>
      %65 = arith.addf %62, %64 : vector<1x64xf32>
      %66 = vector.extract_strided_slice %58 {offsets = [0, 0], sizes = [1, 16], strides = [1, 1]} : vector<1x64xf32> to vector<1x16xf32>
      %67 = arith.negf %66 : vector<1x16xf32>
      %68 = math.exp %67 : vector<1x16xf32>
      %cst_51 = arith.constant 1.000000e+00 : f32
      %69 = vector.broadcast %cst_51 : f32 to vector<1x16xf32>
      %70 = arith.addf %69, %68 : vector<1x16xf32>
      %71 = arith.divf %69, %70 : vector<1x16xf32>
      %72 = vector.extract_strided_slice %58 {offsets = [0, 16], sizes = [1, 16], strides = [1, 1]} : vector<1x64xf32> to vector<1x16xf32>
      %73 = arith.negf %72 : vector<1x16xf32>
      %74 = math.exp %73 : vector<1x16xf32>
      %cst_52 = arith.constant 1.000000e+00 : f32
      %75 = vector.broadcast %cst_52 : f32 to vector<1x16xf32>
      %76 = arith.addf %75, %74 : vector<1x16xf32>
      %77 = arith.divf %75, %76 : vector<1x16xf32>
      %78 = vector.extract_strided_slice %58 {offsets = [0, 32], sizes = [1, 16], strides = [1, 1]} : vector<1x64xf32> to vector<1x16xf32>
      %79 = math.tanh %78 : vector<1x16xf32>
      %80 = vector.extract_strided_slice %58 {offsets = [0, 48], sizes = [1, 16], strides = [1, 1]} : vector<1x64xf32> to vector<1x16xf32>
      %81 = arith.negf %80 : vector<1x16xf32>
      %82 = math.exp %81 : vector<1x16xf32>
      %cst_53 = arith.constant 1.000000e+00 : f32
      %83 = vector.broadcast %cst_53 : f32 to vector<1x16xf32>
      %84 = arith.addf %83, %82 : vector<1x16xf32>
      %85 = arith.divf %83, %84 : vector<1x16xf32>
      %86 = arith.mulf %77, %arg20 : vector<1x16xf32>
      %87 = arith.mulf %71, %79 : vector<1x16xf32>
      %88 = arith.addf %86, %87 : vector<1x16xf32>
      %89 = math.tanh %88 : vector<1x16xf32>
      %90 = arith.mulf %85, %89 : vector<1x16xf32>
      %91 = vector.extract_strided_slice %65 {offsets = [0, 0], sizes = [1, 16], strides = [1, 1]} : vector<1x64xf32> to vector<1x16xf32>
      %92 = arith.negf %91 : vector<1x16xf32>
      %93 = math.exp %92 : vector<1x16xf32>
      %cst_54 = arith.constant 1.000000e+00 : f32
      %94 = vector.broadcast %cst_54 : f32 to vector<1x16xf32>
      %95 = arith.addf %94, %93 : vector<1x16xf32>
      %96 = arith.divf %94, %95 : vector<1x16xf32>
      %97 = vector.extract_strided_slice %65 {offsets = [0, 16], sizes = [1, 16], strides = [1, 1]} : vector<1x64xf32> to vector<1x16xf32>
      %98 = arith.negf %97 : vector<1x16xf32>
      %99 = math.exp %98 : vector<1x16xf32>
      %cst_55 = arith.constant 1.000000e+00 : f32
      %100 = vector.broadcast %cst_55 : f32 to vector<1x16xf32>
      %101 = arith.addf %100, %99 : vector<1x16xf32>
      %102 = arith.divf %100, %101 : vector<1x16xf32>
      %103 = vector.extract_strided_slice %65 {offsets = [0, 32], sizes = [1, 16], strides = [1, 1]} : vector<1x64xf32> to vector<1x16xf32>
      %104 = math.tanh %103 : vector<1x16xf32>
      %105 = vector.extract_strided_slice %65 {offsets = [0, 48], sizes = [1, 16], strides = [1, 1]} : vector<1x64xf32> to vector<1x16xf32>
      %106 = arith.negf %105 : vector<1x16xf32>
      %107 = math.exp %106 : vector<1x16xf32>
      %cst_56 = arith.constant 1.000000e+00 : f32
      %108 = vector.broadcast %cst_56 : f32 to vector<1x16xf32>
      %109 = arith.addf %108, %107 : vector<1x16xf32>
      %110 = arith.divf %108, %109 : vector<1x16xf32>
      %111 = arith.mulf %102, %arg22 : vector<1x16xf32>
      %112 = arith.mulf %96, %104 : vector<1x16xf32>
      %113 = arith.addf %111, %112 : vector<1x16xf32>
      %114 = math.tanh %113 : vector<1x16xf32>
      %115 = arith.mulf %110, %114 : vector<1x16xf32>
      %116 = arith.truncf %90 : vector<1x16xf32> to vector<1x16xbf16>
      %117 = arith.index_cast %arg18 : i32 to index
      %c0_57 = arith.constant 0 : index
      %c0_58 = arith.constant 0 : index
      %118 = vector.load %arg16[%117, %c0_57, %c0_58] : memref<8x1x16xbf16, #tpu.memory_space<vmem>>, vector<1x1x16xbf16>
      %119 = vector.shape_cast %118 : vector<1x1x16xbf16> to vector<1x16xbf16>
      %120 = vector.shape_cast %116 : vector<1x16xbf16> to vector<1x1x16xbf16>
      tpu.vector_store %arg16[%117, %c0_57, %c0_58], %120 {strides = array<i32>} : memref<8x1x16xbf16, #tpu.memory_space<vmem>>, vector<1x1x16xbf16>,
      %121 = arith.truncf %115 : vector<1x16xf32> to vector<1x16xbf16>
      %c7_i32_59 = arith.constant 7 : i32
      %122 = arith.subi %c7_i32_59, %arg18 : i32
      %123 = arith.index_cast %122 : i32 to index
      %c0_60 = arith.constant 0 : index
      %c0_61 = arith.constant 0 : index
      %124 = vector.load %arg17[%123, %c0_60, %c0_61] : memref<8x1x16xbf16, #tpu.memory_space<vmem>>, vector<1x1x16xbf16>
      %125 = vector.shape_cast %124 : vector<1x1x16xbf16> to vector<1x16xbf16>
      %126 = vector.shape_cast %121 : vector<1x16xbf16> to vector<1x1x16xbf16>
      tpu.vector_store %arg17[%123, %c0_60, %c0_61], %126 {strides = array<i32>} : memref<8x1x16xbf16, #tpu.memory_space<vmem>>, vector<1x1x16xbf16>,
      scf.yield %90, %88, %115, %113 : vector<1x16xf32>, vector<1x16xf32>, vector<1x16xf32>, vector<1x16xf32>
    }
    %c8_i32_27 = arith.constant 8 : i32
    %c0_28 = arith.constant 0 : index
    %c0_29 = arith.constant 0 : index
    %c0_30 = arith.constant 0 : index
    %36 = vector.load %arg16[%c0_28, %c0_29, %c0_30] : memref<8x1x16xbf16, #tpu.memory_space<vmem>>, vector<8x1x16xbf16>
    %37 = vector.shape_cast %36 : vector<8x1x16xbf16> to vector<8x16xbf16>
    %c0_31 = arith.constant 0 : index
    %c0_32 = arith.constant 0 : index
    %c0_33 = arith.constant 0 : index
    %38 = vector.load %arg17[%c0_31, %c0_32, %c0_33] : memref<8x1x16xbf16, #tpu.memory_space<vmem>>, vector<8x1x16xbf16>
    %39 = vector.shape_cast %38 : vector<8x1x16xbf16> to vector<8x16xbf16>
    %c0_34 = arith.constant 0 : index
    %c0_35 = arith.constant 0 : index
    %40 = vector.load %arg10[%c0_34, %c0_35] : memref<16x8xbf16, #tpu.memory_space<vmem>>, vector<16x8xbf16>
    %cst_36 = arith.constant dense<0.000000e+00> : vector<8x8xf32>
    %41 = tpu.matmul %37, %40, %cst_36 {dimension_numbers = #tpu.dot_dimension_numbers<[1], [0], [0], [1], [0, 0, 1, 1], [], []>} : vector<8x16xbf16>, vector<16x8xbf16>, vector<8x8xf32> -> vector<8x8xf32>
    %c0_37 = arith.constant 0 : index
    %c0_38 = arith.constant 0 : index
    %42 = vector.load %arg11[%c0_37, %c0_38] : memref<16x8xbf16, #tpu.memory_space<vmem>>, vector<16x8xbf16>
    %cst_39 = arith.constant dense<0.000000e+00> : vector<8x8xf32>
    %43 = tpu.matmul %39, %42, %cst_39 {dimension_numbers = #tpu.dot_dimension_numbers<[1], [0], [0], [1], [0, 0, 1, 1], [], []>} : vector<8x16xbf16>, vector<16x8xbf16>, vector<8x8xf32> -> vector<8x8xf32>
    %44 = arith.addf %41, %43 : vector<8x8xf32>
    %c0_40 = arith.constant 0 : index
    %c0_41 = arith.constant 0 : index
    %45 = vector.load %arg12[%c0_40, %c0_41] : memref<1x8xf32, #tpu.memory_space<vmem>>, vector<1x8xf32>
    %46 = vector.shape_cast %45 : vector<1x8xf32> to vector<8xf32>
    %47 = vector.shape_cast %46 : vector<8xf32> to vector<1x8xf32>
    %48 = vector.broadcast %47 : vector<1x8xf32> to vector<8x8xf32>
    %49 = arith.addf %44, %48 : vector<8x8xf32>
    %50 = vector.shape_cast %49 : vector<8x8xf32> to vector<8x1x8xf32>
    %51 = tpu.transpose %50, [1, 0, 2] : vector<8x1x8xf32> -> vector<1x8x8xf32>
    %c0_42 = arith.constant 0 : index
    %c0_43 = arith.constant 0 : index
    %c0_44 = arith.constant 0 : index
    %52 = vector.load %arg13[%c0_42, %c0_43, %c0_44] : memref<1x8x8xf32, #tpu.memory_space<vmem>>, vector<1x8x8xf32>
    tpu.vector_store %arg13[%c0_42, %c0_43, %c0_44], %51 {strides = array<i32>} : memref<1x8x8xf32, #tpu.memory_space<vmem>>, vector<1x8x8xf32>,
    return
  }
  func.func @transform_0(%arg0: i32) -> (i32, i32, i32) {
    %c0_i32 = arith.constant 0 : i32
    %c0_i32_0 = arith.constant 0 : i32
    %c0_i32_1 = arith.constant 0 : i32
    return %arg0, %c0_i32, %c0_i32_0 : i32, i32, i32
  }
  func.func @transform_1(%arg0: i32) -> (i32, i32) {
    %c0_i32 = arith.constant 0 : i32
    %c0_i32_0 = arith.constant 0 : i32
    %c0_i32_1 = arith.constant 0 : i32
    return %c0_i32, %c0_i32_0 : i32, i32
  }
  func.func @transform_2(%arg0: i32) -> (i32, i32) {
    %c0_i32 = arith.constant 0 : i32
    %c0_i32_0 = arith.constant 0 : i32
    %c0_i32_1 = arith.constant 0 : i32
    return %c0_i32, %c0_i32_0 : i32, i32
  }
  func.func @transform_3(%arg0: i32) -> (i32, i32) {
    %c0_i32 = arith.constant 0 : i32
    %c0_i32_0 = arith.constant 0 : i32
    %c0_i32_1 = arith.constant 0 : i32
    return %c0_i32, %c0_i32_0 : i32, i32
  }
  func.func @transform_4(%arg0: i32) -> (i32, i32) {
    %c0_i32 = arith.constant 0 : i32
    %c0_i32_0 = arith.constant 0 : i32
    %c0_i32_1 = arith.constant 0 : i32
    return %c0_i32, %c0_i32_0 : i32, i32
  }
  func.func @transform_5(%arg0: i32) -> (i32, i32) {
    %c0_i32 = arith.constant 0 : i32
    %c0_i32_0 = arith.constant 0 : i32
    %c0_i32_1 = arith.constant 0 : i32
    return %c0_i32, %c0_i32_0 : i32, i32
  }
  func.func @transform_6(%arg0: i32) -> (i32, i32) {
    %c0_i32 = arith.constant 0 : i32
    %c0_i32_0 = arith.constant 0 : i32
    %c0_i32_1 = arith.constant 0 : i32
    return %c0_i32, %c0_i32_0 : i32, i32
  }
  func.func @transform_7(%arg0: i32) -> (i32, i32) {
    %c0_i32 = arith.constant 0 : i32
    %c0_i32_0 = arith.constant 0 : i32
    %c0_i32_1 = arith.constant 0 : i32
    return %c0_i32, %c0_i32_0 : i32, i32
  }
  func.func @transform_8(%arg0: i32) -> (i32, i32) {
    %c0_i32 = arith.constant 0 : i32
    %c0_i32_0 = arith.constant 0 : i32
    %c0_i32_1 = arith.constant 0 : i32
    return %c0_i32, %c0_i32_0 : i32, i32
  }
  func.func @transform_9(%arg0: i32) -> (i32, i32) {
    %c0_i32 = arith.constant 0 : i32
    %c0_i32_0 = arith.constant 0 : i32
    %c0_i32_1 = arith.constant 0 : i32
    return %c0_i32, %c0_i32_0 : i32, i32
  }
  func.func @transform_10(%arg0: i32) -> (i32, i32) {
    %c0_i32 = arith.constant 0 : i32
    %c0_i32_0 = arith.constant 0 : i32
    %c0_i32_1 = arith.constant 0 : i32
    return %c0_i32, %c0_i32_0 : i32, i32
  }
  func.func @transform_11(%arg0: i32) -> (i32, i32) {
    %c0_i32 = arith.constant 0 : i32
    %c0_i32_0 = arith.constant 0 : i32
    %c0_i32_1 = arith.constant 0 : i32
    return %c0_i32, %c0_i32_0 : i32, i32
  }
  func.func @transform_12(%arg0: i32) -> (i32, i32, i32) {
    %c0_i32 = arith.constant 0 : i32
    %c0_i32_0 = arith.constant 0 : i32
    %c0_i32_1 = arith.constant 0 : i32
    return %arg0, %c0_i32, %c0_i32_0 : i32, i32, i32
  }
}

</mosaic_0001>

<llo_original>
// kernel: cnn_lstm_forward.5
$region0: #{cnn_lstm_forward.5}
  #allocation0 [shape = 'u32[]', space=smem, size = 0x4, offset = 0x4, fixed_abs, tag = 'smem constant byte address 0x4 - core index']
  #allocation1 [shape = 'u32[144,128]{1,0:T(1,128)}', space=vmem, size = 0x12000, scoped, tag = 'internal scratch']
  %s0 = inlined_call_operand.vmem [shape: f32[2,1,128], index: 0, kind: input, shape index: {}]
  %s1 = inlined_call_operand.vmem [shape: f32[2,1,128], index: 1, kind: output, shape index: {}]
  %s2 = sld [smem:[#allocation0]]
  $region37: #{cnn_lstm_forward.5} parent=0
    _
  %s4 = ssub.s32 1, %s2
  %s5 = scalar_select 0, %s4, %s2
  loop: start=0, step=1, limit=4
  $region2: #{cnn_lstm_forward.5} parent=0 // loop_pre_header
    _
  $region3: #{cnn_lstm_forward.5} parent=0 // loop_header
    %s7 = sphi 0, %s11
    %p8 = scmp.ge.s32.totalorder %s7, 4
    %s17 = sphi 0, %s19
    %s20 = sphi 0, %s17
    %s21 = sphi 0, %s20
    %s37 = sphi 0, %s21
    %s43 = sphi 0, %s45
    %s46 = sphi 0, %s43
    %s47 = sphi 0, %s46
    %s63 = sphi 0, %s47
  $region4: #{cnn_lstm_forward.5} parent=0 // loop_header_branch
    %10 = sbr.rel (%p8) target = $region8
  $region5: #{cnn_lstm_forward.5} parent=0 // loop_body
    %s12 = ssub.s32 %s7, 1
    %s13 = ssub.s32 %s7, 2
    %s14 = sadd.s32 %s7, 1
    %s15 = ssub.s32 %s7, %s14
    %p16 = scmp.eq.s32.totalorder %s15, 0
    %s18 = sadd.s32 %s17, 1
    %s19 = scalar_select %p16, %s17, %s18
    %p22 = pneg %p16
    %p23 = scmp.eq.s32.totalorder %s7, 1
    %p24 = por %p22, %p23
    %p25 = scmp.ne.s32.totalorder %s17, %s20
    %p26 = scmp.eq.s32.totalorder %s7, 0
    %p27 = por %p25, %p26
    %p28 = scmp.ne.s32.totalorder %s17, %s20
    %p29 = scmp.eq.s32.totalorder %s12, 1
    %p30 = por %p28, %p29
    %p31 = scmp.ne.s32.totalorder %s20, %s21
    %p32 = scmp.eq.s32.totalorder %s12, 0
    %p33 = por %p31, %p32
    %p34 = scmp.ne.s32.totalorder %s20, %s21
    %p35 = scmp.eq.s32.totalorder %s13, 1
    %p36 = por %p34, %p35
    %p38 = scmp.ne.s32.totalorder %s21, %s37
    %p39 = scmp.eq.s32.totalorder %s13, 0
    %p40 = por %p38, %p39
    %s41 = ssub.s32 %s7, %s14
    %p42 = scmp.eq.s32.totalorder %s41, 0
    %s44 = sadd.s32 %s43, 1
    %s45 = scalar_select %p42, %s43, %s44
    %p48 = pneg %p42
    %p49 = scmp.eq.s32.totalorder %s7, 1
    %p50 = por %p48, %p49
    %p51 = scmp.ne.s32.totalorder %s43, %s46
    %p52 = scmp.eq.s32.totalorder %s7, 0
    %p53 = por %p51, %p52
    %p54 = scmp.ne.s32.totalorder %s43, %s46
    %p55 = scmp.eq.s32.totalorder %s12, 1
    %p56 = por %p54, %p55
    %p57 = scmp.ne.s32.totalorder %s46, %s47
    %p58 = scmp.eq.s32.totalorder %s12, 0
    %p59 = por %p57, %p58
    %p60 = scmp.ne.s32.totalorder %s46, %s47
    %p61 = scmp.eq.s32.totalorder %s13, 1
    %p62 = por %p60, %p61
    %p64 = scmp.ne.s32.totalorder %s47, %s63
    %p65 = scmp.eq.s32.totalorder %s13, 0
    %p66 = por %p64, %p65
    %p67 = scmp.le.s32.totalorder 1, %s7
    %p68 = scmp.lt.s32.totalorder %s7, 3
    %p69 = pnand %p67, %p68
    %p70 = pneg %p69
    // Predicated region
    $region9: #{cnn_lstm_forward.5} parent=5 // pred_check
      _
    $region10: #{cnn_lstm_forward.5} parent=5 // pred_check_branch
      %72 = sbr.rel (%p69) target = $region12
    $region11: #{cnn_lstm_forward.5} parent=5 // pred_region
      %s73 = ssub.s32 %s7, 1
    $region12: #{cnn_lstm_forward.5} parent=5 // pred_fallthru
      _
    %p74 = scmp.lt.s32.totalorder %s7, 2
    // Predicated region
    $region13: #{cnn_lstm_forward.5} parent=5 // pred_check
      %p75 = pneg %p74
    $region14: #{cnn_lstm_forward.5} parent=5 // pred_check_branch
      %77 = sbr.rel (%p75) target = $region16
    $region15: #{cnn_lstm_forward.5} parent=5 // pred_region
      // Predicated region
      $region17: #{cnn_lstm_forward.5} parent=15 // pred_check
        %p78 = pneg %p27
      $region18: #{cnn_lstm_forward.5} parent=15 // pred_check_branch
        %80 = sbr.rel (%p78) target = $region20
      $region19: #{cnn_lstm_forward.5} parent=15 // pred_region
        %p81 = scmp.lt.s32.totalorder %s7, 1
        %s82 = scalar_select %p81, %s7, 1
        %s83 = scalar_lea.vmem %s0, %s82
      $region20: #{cnn_lstm_forward.5} parent=15 // pred_fallthru
        _
    $region16: #{cnn_lstm_forward.5} parent=5 // pred_fallthru
      _
    %p84 = scmp.le.s32.totalorder 1, %s7
    %p85 = scmp.lt.s32.totalorder %s7, 3
    %p86 = pnand %p84, %p85
    %p87 = pneg %p86
    // Predicated region
    $region21: #{cnn_lstm_forward.5} parent=5 // pred_check
      _
    $region22: #{cnn_lstm_forward.5} parent=5 // pred_check_branch
      %89 = sbr.rel (%p86) target = $region24
    $region23: #{cnn_lstm_forward.5} parent=5 // pred_region
      %s90 = ssub.s32 %s7, 1
      %p91 = scmp.lt.s32.totalorder %s12, 1
      %s92 = scalar_select %p91, %s12, 1
      %s93 = scalar_lea.vmem %s0, %s92
      %p94 = pneg %p33
      %p95 = pneg %p30
      %p96 = pneg %p59
      %p97 = pneg %p56
      %p98 = scmp.lt.s32.totalorder %s12, 1
      %s99 = scalar_select %p98, %s12, 1
      %s100 = scalar_lea.vmem %s1, %s99
      %p101 = scmp.lt.s32.totalorder %s12, 1
      %s102 = scalar_select %p101, %s12, 1
      %s103 = scalar_lea.vmem %s0, %s102
      %p104 = scmp.lt.s32.totalorder %s12, 1
      %s105 = scalar_select %p104, %s12, 1
      %s106 = scalar_lea.vmem %s1, %s105
      %v107 = vld [vmem:[%s103] sm:$0x1]
      %v108 = vadd.f32 %v107, 1e-08
      %v109 = vlog2.pop %v108
      %v110 = vmul.f32 %v109, 0.6931472
      %vm111 = vcmask 1040384
      %v112 = vsel %vm111, %v110, inf
      %113 = vmin.xlane.f32.xlu0 %v112
      %v114 = vpop.xlane.xlu0 %113
      %v115 = vsel %vm111, %v110, -inf
      %116 = vmax.xlane.f32.xlu0 %v115
      %v117 = vpop.xlane.xlu0 %116
      %v118 = vsub.f32 %v110, %v114
      %v119 = vsub.f32 %v117, %v114
      %v120 = vadd.f32 %v119, 1e-08
      %v121 = vrcp.pop %v120
      %v122 = vmul.f32 %v118, %v121
      %123 = vst [vmem:[%s106] sm:$0x1] %v122
      %p124 = scmp.lt.s32.totalorder %s12, 1
      %s125 = scalar_select %p124, %s12, 1
      %s126 = scalar_lea.vmem %s1, %s125
      // Predicated region
      $region25: #{cnn_lstm_forward.5} parent=23 // pred_check
        %p127 = pneg %p56
      $region26: #{cnn_lstm_forward.5} parent=23 // pred_check_branch
        %129 = sbr.rel (%p127) target = $region28
      $region27: #{cnn_lstm_forward.5} parent=23 // pred_region
        _
      $region28: #{cnn_lstm_forward.5} parent=23 // pred_fallthru
        _
    $region24: #{cnn_lstm_forward.5} parent=5 // pred_fallthru
      _
    %p130 = scmp.le.s32.totalorder 2, %s7
    // Predicated region
    $region29: #{cnn_lstm_forward.5} parent=5 // pred_check
      %p131 = pneg %p130
    $region30: #{cnn_lstm_forward.5} parent=5 // pred_check_branch
      %133 = sbr.rel (%p131) target = $region32
    $region31: #{cnn_lstm_forward.5} parent=5 // pred_region
      %s134 = ssub.s32 %s7, 2
      // Predicated region
      $region33: #{cnn_lstm_forward.5} parent=31 // pred_check
        %p135 = pneg %p62
      $region34: #{cnn_lstm_forward.5} parent=31 // pred_check_branch
        %137 = sbr.rel (%p135) target = $region36
      $region35: #{cnn_lstm_forward.5} parent=31 // pred_region
        %p138 = scmp.lt.s32.totalorder %s13, 1
        %s139 = scalar_select %p138, %s13, 1
        %s140 = scalar_lea.vmem %s1, %s139
      $region36: #{cnn_lstm_forward.5} parent=31 // pred_fallthru
        _
    $region32: #{cnn_lstm_forward.5} parent=5 // pred_fallthru
      _
  $region6: #{cnn_lstm_forward.5} parent=0 // loop_footer
    %s11 = sadd.s32 1, %s7
  $region7: #{cnn_lstm_forward.5} parent=0 // loop_footer_branch
    %6 = sbr.rel target = $region3
  $region8: #{cnn_lstm_forward.5} parent=0 // loop_exit
    _

// kernel: cnn_lstm_forward.6
$region0: #{cnn_lstm_forward.6}
  #allocation0 [shape = 'u32[]', space=smem, size = 0x4, offset = 0x4, fixed_abs, tag = 'smem constant byte address 0x4 - core index']
  #allocation1 [shape = 'u32[144,128]{1,0:T(1,128)}', space=vmem, size = 0x12000, scoped, tag = 'internal scratch']
  %s0 = inlined_call_operand.hbm [shape: f32[2,8,16,1], index: 0, kind: input, shape index: {}]
  %s1 = inlined_call_operand.hbm [shape: bf16[9,2], index: 1, kind: input, shape index: {}]
  %s2 = inlined_call_operand.hbm [shape: f32[1,2], index: 2, kind: input, shape index: {}]
  %s3 = inlined_call_operand.hbm [shape: f32[1,2], index: 3, kind: input, shape index: {}]
  %s4 = inlined_call_operand.hbm [shape: bf16[2,8,16,2], index: 4, kind: output, shape index: {}]
  %s5 = sld [smem:[#allocation0]]
  $region65: #{cnn_lstm_forward.6} parent=0
    _
  %s7 = ssub.s32 1, %s5
  %s8 = scalar_select 0, %s7, %s5
  $region1: #{cnn_lstm_forward.6} parent=0
    #allocation2 [shape = 'u8[131072]{0}', space=vmem, size = 0x20000, scoped, tag = 'input window, operand 0']
    #allocation3 [shape = 's32[2]{0}', space=sflag, size = 0x8, scoped, tag = 'scoped memory for cnn_lstm_forward.6']
    #allocation4 [shape = 's32[2]{0}', space=sflag, size = 0x8, scoped, tag = 'scoped memory for cnn_lstm_forward.6']
    #allocation5 [shape = 'u8[4096]{0}', space=vmem, size = 0x1000, scoped, tag = 'input window, operand 1, single buffered']
    #allocation6 [shape = 's32[1]{0}', space=sflag, size = 0x4, scoped, tag = 'scoped memory for cnn_lstm_forward.6']
    #allocation7 [shape = 'u8[512]{0}', space=vmem, size = 0x400, scoped, tag = 'input window, operand 2, single buffered']
    #allocation8 [shape = 'u8[512]{0}', space=vmem, size = 0x400, scoped, tag = 'input window, operand 3, single buffered']
    #allocation9 [shape = 's32[1]{0}', space=sflag, size = 0x4, scoped, tag = 'scoped memory for cnn_lstm_forward.6']
    #allocation10 [shape = 'u8[65536]{0}', space=vmem, size = 0x10000, scoped, tag = 'output window, operand 0']
    %9 = vsyncpa [#allocation3], 0
    %s10 = scalar_lea.sflag [#allocation3], 1
    %11 = vsyncpa %s10, 0
    %12 = vsyncpa [#allocation6], 0
    %13 = vsyncpa [#allocation9], 0
    %14 = vsyncpa [#allocation4], 0
    %s15 = scalar_lea.sflag [#allocation4], 1
    %16 = vsyncpa %s15, 0
    loop: start=0, step=1, limit=4
    $region2: #{cnn_lstm_forward.6} parent=1 // loop_pre_header
      _
    $region3: #{cnn_lstm_forward.6} parent=1 // loop_header
      %s18 = sphi 0, %s22
      %p19 = scmp.ge.s32.totalorder %s18, 4
      %s28 = sphi 0, %s30
      %s31 = sphi 0, %s28
      %s32 = sphi 0, %s31
      %s48 = sphi 0, %s32
      %s52 = sphi 0, %s52
      %s54 = sphi 0, %s52
      %s55 = sphi 0, %s54
      %s69 = sphi 0, %s55
      %s73 = sphi 0, %s73
      %s75 = sphi 0, %s73
      %s76 = sphi 0, %s75
      %s90 = sphi 0, %s76
      %s94 = sphi 0, %s94
      %s96 = sphi 0, %s94
      %s97 = sphi 0, %s96
      %s111 = sphi 0, %s97
      %s117 = sphi 0, %s119
      %s120 = sphi 0, %s117
      %s121 = sphi 0, %s120
      %s137 = sphi 0, %s121
    $region4: #{cnn_lstm_forward.6} parent=1 // loop_header_branch
      %21 = sbr.rel (%p19) target = $region8
    $region5: #{cnn_lstm_forward.6} parent=1 // loop_body
      %s23 = ssub.s32 %s18, 1
      %s24 = ssub.s32 %s18, 2
      %s25 = sadd.s32 %s18, 1
      %s26 = ssub.s32 %s18, %s25
      %p27 = scmp.eq.s32.totalorder %s26, 0
      %s29 = sadd.s32 %s28, 1
      %s30 = scalar_select %p27, %s28, %s29
      %p33 = pneg %p27
      %p34 = scmp.eq.s32.totalorder %s18, 1
      %p35 = por %p33, %p34
      %p36 = scmp.ne.s32.totalorder %s28, %s31
      %p37 = scmp.eq.s32.totalorder %s18, 0
      %p38 = por %p36, %p37
      %p39 = scmp.ne.s32.totalorder %s28, %s31
      %p40 = scmp.eq.s32.totalorder %s23, 1
      %p41 = por %p39, %p40
      %p42 = scmp.ne.s32.totalorder %s31, %s32
      %p43 = scmp.eq.s32.totalorder %s23, 0
      %p44 = por %p42, %p43
      %p45 = scmp.ne.s32.totalorder %s31, %s32
      %p46 = scmp.eq.s32.totalorder %s24, 1
      %p47 = por %p45, %p46
      %p49 = scmp.ne.s32.totalorder %s32, %s48
      %p50 = scmp.eq.s32.totalorder %s24, 0
      %p51 = por %p49, %p50
      %s53 = sadd.s32 %s52, 1
      %p56 = scmp.eq.s32.totalorder %s18, 1
      %p57 = scmp.ne.s32.totalorder %s52, %s54
      %p58 = scmp.eq.s32.totalorder %s18, 0
      %p59 = por %p57, %p58
      %p60 = scmp.ne.s32.totalorder %s52, %s54
      %p61 = scmp.eq.s32.totalorder %s23, 1
      %p62 = por %p60, %p61
      %p63 = scmp.ne.s32.totalorder %s54, %s55
      %p64 = scmp.eq.s32.totalorder %s23, 0
      %p65 = por %p63, %p64
      %p66 = scmp.ne.s32.totalorder %s54, %s55
      %p67 = scmp.eq.s32.totalorder %s24, 1
      %p68 = por %p66, %p67
      %p70 = scmp.ne.s32.totalorder %s55, %s69
      %p71 = scmp.eq.s32.totalorder %s24, 0
      %p72 = por %p70, %p71
      %s74 = sadd.s32 %s73, 1
      %p77 = scmp.eq.s32.totalorder %s18, 1
      %p78 = scmp.ne.s32.totalorder %s73, %s75
      %p79 = scmp.eq.s32.totalorder %s18, 0
      %p80 = por %p78, %p79
      %p81 = scmp.ne.s32.totalorder %s73, %s75
      %p82 = scmp.eq.s32.totalorder %s23, 1
      %p83 = por %p81, %p82
      %p84 = scmp.ne.s32.totalorder %s75, %s76
      %p85 = scmp.eq.s32.totalorder %s23, 0
      %p86 = por %p84, %p85
      %p87 = scmp.ne.s32.totalorder %s75, %s76
      %p88 = scmp.eq.s32.totalorder %s24, 1
      %p89 = por %p87, %p88
      %p91 = scmp.ne.s32.totalorder %s76, %s90
      %p92 = scmp.eq.s32.totalorder %s24, 0
      %p93 = por %p91, %p92
      %s95 = sadd.s32 %s94, 1
      %p98 = scmp.eq.s32.totalorder %s18, 1
      %p99 = scmp.ne.s32.totalorder %s94, %s96
      %p100 = scmp.eq.s32.totalorder %s18, 0
      %p101 = por %p99, %p100
      %p102 = scmp.ne.s32.totalorder %s94, %s96
      %p103 = scmp.eq.s32.totalorder %s23, 1
      %p104 = por %p102, %p103
      %p105 = scmp.ne.s32.totalorder %s96, %s97
      %p106 = scmp.eq.s32.totalorder %s23, 0
      %p107 = por %p105, %p106
      %p108 = scmp.ne.s32.totalorder %s96, %s97
      %p109 = scmp.eq.s32.totalorder %s24, 1
      %p110 = por %p108, %p109
      %p112 = scmp.ne.s32.totalorder %s97, %s111
      %p113 = scmp.eq.s32.totalorder %s24, 0
      %p114 = por %p112, %p113
      %s115 = ssub.s32 %s18, %s25
      %p116 = scmp.eq.s32.totalorder %s115, 0
      %s118 = sadd.s32 %s117, 1
      %s119 = scalar_select %p116, %s117, %s118
      %p122 = pneg %p116
      %p123 = scmp.eq.s32.totalorder %s18, 1
      %p124 = por %p122, %p123
      %p125 = scmp.ne.s32.totalorder %s117, %s120
      %p126 = scmp.eq.s32.totalorder %s18, 0
      %p127 = por %p125, %p126
      %p128 = scmp.ne.s32.totalorder %s117, %s120
      %p129 = scmp.eq.s32.totalorder %s23, 1
      %p130 = por %p128, %p129
      %p131 = scmp.ne.s32.totalorder %s120, %s121
      %p132 = scmp.eq.s32.totalorder %s23, 0
      %p133 = por %p131, %p132
      %p134 = scmp.ne.s32.totalorder %s120, %s121
      %p135 = scmp.eq.s32.totalorder %s24, 1
      %p136 = por %p134, %p135
      %p138 = scmp.ne.s32.totalorder %s121, %s137
      %p139 = scmp.eq.s32.totalorder %s24, 0
      %p140 = por %p138, %p139
      %p141 = scmp.le.s32.totalorder 1, %s18
      %p142 = scmp.lt.s32.totalorder %s18, 3
      %p143 = pnand %p141, %p142
      %p144 = pneg %p143
      // Predicated region
      $region9: #{cnn_lstm_forward.6} parent=5 // pred_check
        _
      $region10: #{cnn_lstm_forward.6} parent=5 // pred_check_branch
        %146 = sbr.rel (%p143) target = $region12
      $region11: #{cnn_lstm_forward.6} parent=5 // pred_region
        %s147 = ssub.s32 %s18, 1
        // Predicated region
        $region13: #{cnn_lstm_forward.6} parent=11 // pred_check
          %p148 = pneg %p65
        $region14: #{cnn_lstm_forward.6} parent=11 // pred_check_branch
          %150 = sbr.rel (%p148) target = $region16
        $region15: #{cnn_lstm_forward.6} parent=11 // pred_region
          %s152 = ssub.s32 128, 128
          %153 = vsyncadd [#allocation6], %s152
          %s154 = sshll.u32 [#allocation5], 4
          %s155 = int_to_ptr.vmem [resolvable:$true] %s154
          %160 = dma.hbm_to_vmem [thread:$0]  %s1, 128, %s155, [#allocation6], 64, 64, 4
        $region16: #{cnn_lstm_forward.6} parent=11 // pred_fallthru
          _
        // Predicated region
        $region17: #{cnn_lstm_forward.6} parent=11 // pred_check
          %p161 = pneg %p86
        $region18: #{cnn_lstm_forward.6} parent=11 // pred_check_branch
          %163 = sbr.rel (%p161) target = $region20
        $region19: #{cnn_lstm_forward.6} parent=11 // pred_region
          %s165 = ssub.s32 16, 16
          %166 = vsyncadd [#allocation6], %s165
          %s168 = sshll.u32 [#allocation7], 4
          %s169 = int_to_ptr.vmem [resolvable:$true] %s168
          %171 = dma.hbm_to_vmem [thread:$0]  %s2, 16, %s169, [#allocation6]
        $region20: #{cnn_lstm_forward.6} parent=11 // pred_fallthru
          _
        // Predicated region
        $region21: #{cnn_lstm_forward.6} parent=11 // pred_check
          %p172 = pneg %p107
        $region22: #{cnn_lstm_forward.6} parent=11 // pred_check_branch
          %174 = sbr.rel (%p172) target = $region24
        $region23: #{cnn_lstm_forward.6} parent=11 // pred_region
          %s176 = ssub.s32 16, 16
          %177 = vsyncadd [#allocation9], %s176
          %s179 = sshll.u32 [#allocation8], 4
          %s180 = int_to_ptr.vmem [resolvable:$true] %s179
          %182 = dma.hbm_to_vmem [thread:$0]  %s3, 16, %s180, [#allocation9]
        $region24: #{cnn_lstm_forward.6} parent=11 // pred_fallthru
          _
      $region12: #{cnn_lstm_forward.6} parent=5 // pred_fallthru
        _
      %p183 = scmp.lt.s32.totalorder %s18, 2
      // Predicated region
      $region25: #{cnn_lstm_forward.6} parent=5 // pred_check
        %p184 = pneg %p183
      $region26: #{cnn_lstm_forward.6} parent=5 // pred_check_branch
        %186 = sbr.rel (%p184) target = $region28
      $region27: #{cnn_lstm_forward.6} parent=5 // pred_region
        // Predicated region
        $region29: #{cnn_lstm_forward.6} parent=27 // pred_check
          %p187 = pneg %p38
        $region30: #{cnn_lstm_forward.6} parent=27 // pred_check_branch
          %189 = sbr.rel (%p187) target = $region32
        $region31: #{cnn_lstm_forward.6} parent=27 // pred_region
          %s190 = sand.u32 %s28, 1
          %s191 = scalar_lea.sflag [#allocation3], %s190
          %s192 = sand.u32 %s28, 1
          %s193 = smul.addr %s192, 128
          %s194 = scalar_lea.vmem [#allocation2], %s193
          %s196 = ssub.s32 2048, 2048
          %197 = vsyncadd %s191, %s196
          %s198 = smul.addr %s18, 16
          %s199 = smul.addr %s198, 128
          %s200 = scalar_lea.hbm %s0, %s199
          %s201 = sshll.u32 %s194, 4
          %s202 = int_to_ptr.vmem [resolvable:$true] %s201
          %207 = dma.hbm_to_vmem [thread:$0]  %s200, 2048, %s202, %s191, 128, 128, 8
        $region32: #{cnn_lstm_forward.6} parent=27 // pred_fallthru
          _
      $region28: #{cnn_lstm_forward.6} parent=5 // pred_fallthru
        _
      %p208 = scmp.le.s32.totalorder 1, %s18
      %p209 = scmp.lt.s32.totalorder %s18, 3
      %p210 = pnand %p208, %p209
      %p211 = pneg %p210
      // Predicated region
      $region33: #{cnn_lstm_forward.6} parent=5 // pred_check
        _
      $region34: #{cnn_lstm_forward.6} parent=5 // pred_check_branch
        %213 = sbr.rel (%p210) target = $region36
      $region35: #{cnn_lstm_forward.6} parent=5 // pred_region
        %s214 = ssub.s32 %s18, 1
        %s215 = sand.u32 %s31, 1
        %s216 = scalar_lea.sflag [#allocation3], %s215
        %s217 = sand.u32 %s31, 1
        %s218 = smul.addr %s217, 128
        %s219 = scalar_lea.vmem [#allocation2], %s218
        // Predicated region
        $region37: #{cnn_lstm_forward.6} parent=35 // pred_check
          %p220 = pneg %p44
        $region38: #{cnn_lstm_forward.6} parent=35 // pred_check_branch
          %222 = sbr.rel (%p220) target = $region40
        $region39: #{cnn_lstm_forward.6} parent=35 // pred_region
          %223 = dma.done %s216, 2048
        $region40: #{cnn_lstm_forward.6} parent=35 // pred_fallthru
          _
        // Predicated region
        $region41: #{cnn_lstm_forward.6} parent=35 // pred_check
          %p224 = pneg %p65
        $region42: #{cnn_lstm_forward.6} parent=35 // pred_check_branch
          %226 = sbr.rel (%p224) target = $region44
        $region43: #{cnn_lstm_forward.6} parent=35 // pred_region
          %227 = dma.done [#allocation6], 128
        $region44: #{cnn_lstm_forward.6} parent=35 // pred_fallthru
          _
        // Predicated region
        $region45: #{cnn_lstm_forward.6} parent=35 // pred_check
          %p228 = pneg %p86
        $region46: #{cnn_lstm_forward.6} parent=35 // pred_check_branch
          %230 = sbr.rel (%p228) target = $region48
        $region47: #{cnn_lstm_forward.6} parent=35 // pred_region
          %231 = dma.done [#allocation6], 16
        $region48: #{cnn_lstm_forward.6} parent=35 // pred_fallthru
          _
        // Predicated region
        $region49: #{cnn_lstm_forward.6} parent=35 // pred_check
          %p232 = pneg %p107
        $region50: #{cnn_lstm_forward.6} parent=35 // pred_check_branch
          %234 = sbr.rel (%p232) target = $region52
        $region51: #{cnn_lstm_forward.6} parent=35 // pred_region
          %235 = dma.done [#allocation9], 16
        $region52: #{cnn_lstm_forward.6} parent=35 // pred_fallthru
          _
        %s236 = sand.u32 %s31, 1
        %s237 = scalar_lea.sflag [#allocation3], %s236
        %s238 = sand.u32 %s31, 1
        %s239 = smul.addr %s238, 128
        %s240 = scalar_lea.vmem [#allocation2], %s239
        %p241 = pneg %p44
        %p242 = pneg %p41
        %p243 = pneg %p65
        %p244 = pneg %p62
        %p245 = pneg %p86
        %p246 = pneg %p83
        %p247 = pneg %p107
        %p248 = pneg %p104
        %p249 = pneg %p133
        %p250 = pneg %p130
        %s251 = sand.u32 %s120, 1
        %s252 = scalar_lea.sflag [#allocation4], %s251
        %s253 = sand.u32 %s120, 1
        %s254 = smul.addr %s253, 64
        %s255 = scalar_lea.vmem [#allocation10], %s254
        %v257 = vld [vmem:[%s219] sm:$0xff]
        %v258 = vld [vmem:[%s219 + $0x8] sm:$0xff]
        %v259 = vld [vmem:[%s219 + $0x10] sm:$0xff]
        %v260 = vld [vmem:[%s219 + $0x18] sm:$0xff]
        %v261 = vld [vmem:[%s219 + $0x20] sm:$0xff]
        %v262 = vld [vmem:[%s219 + $0x28] sm:$0xff]
        %v263 = vld [vmem:[%s219 + $0x30] sm:$0xff]
        %v264 = vld [vmem:[%s219 + $0x38] sm:$0xff]
        %v265 = vld [vmem:[%s219 + $0x40] sm:$0xff]
        %v266 = vld [vmem:[%s219 + $0x48] sm:$0xff]
        %v267 = vld [vmem:[%s219 + $0x50] sm:$0xff]
        %v268 = vld [vmem:[%s219 + $0x58] sm:$0xff]
        %v269 = vld [vmem:[%s219 + $0x60] sm:$0xff]
        %v270 = vld [vmem:[%s219 + $0x68] sm:$0xff]
        %v271 = vld [vmem:[%s219 + $0x70] sm:$0xff]
        %v272 = vld [vmem:[%s219 + $0x78] sm:$0xff]
        %v273 = vpack.c.bf16 %v258, %v257
        %v274 = vpack.c.bf16 %v260, %v259
        %v275 = vpack.c.bf16 %v262, %v261
        %v276 = vpack.c.bf16 %v264, %v263
        %v277 = vpack.c.bf16 %v266, %v265
        %v278 = vpack.c.bf16 %v268, %v267
        %v279 = vpack.c.bf16 %v270, %v269
        %v280 = vpack.c.bf16 %v272, %v271
        %v282 = vshrl.u32 %v273, 16
        %v284 = vrot.slane %v282, 7
        %v285 = vshll.u32 %v273, 16
        %v287 = vor.u32 %v284, %v285
        %v289 = vshrl.u32 %v274, 16
        %v291 = vrot.slane %v289, 7
        %v292 = vshll.u32 %v274, 16
        %v294 = vor.u32 %v291, %v292
        %v296 = vshrl.u32 %v275, 16
        %v298 = vrot.slane %v296, 7
        %v299 = vshll.u32 %v275, 16
        %v301 = vor.u32 %v298, %v299
        %v303 = vshrl.u32 %v276, 16
        %v305 = vrot.slane %v303, 7
        %v306 = vshll.u32 %v276, 16
        %v308 = vor.u32 %v305, %v306
        %v310 = vshrl.u32 %v277, 16
        %v312 = vrot.slane %v310, 7
        %v313 = vshll.u32 %v277, 16
        %v315 = vor.u32 %v312, %v313
        %v317 = vshrl.u32 %v278, 16
        %v319 = vrot.slane %v317, 7
        %v320 = vshll.u32 %v278, 16
        %v322 = vor.u32 %v319, %v320
        %v324 = vshrl.u32 %v279, 16
        %v326 = vrot.slane %v324, 7
        %v327 = vshll.u32 %v279, 16
        %v329 = vor.u32 %v326, %v327
        %v331 = vshrl.u32 %v280, 16
        %v333 = vrot.slane %v331, 7
        %v334 = vshll.u32 %v280, 16
        %v336 = vor.u32 %v333, %v334
        %vm353 = vcmask 1040384
        %vm354 = vsmask.f32 256
        %vm355 = vmand %vm353, %vm354
        %v356 = vsel %vm355, 0, %v287
        %v357 = vsel %vm355, 0, %v294
        %v358 = vsel %vm355, 0, %v301
        %v359 = vsel %vm355, 0, %v308
        %v360 = vsel %vm355, 0, %v315
        %v361 = vsel %vm355, 0, %v322
        %v362 = vsel %vm355, 0, %v329
        %v363 = vsel %vm355, 0, %v336
        %v364 = vsel %vm355, %v284, 0
        %v365 = vsel %vm355, %v291, 0
        %v366 = vsel %vm355, %v298, 0
        %v367 = vsel %vm355, %v305, 0
        %v368 = vsel %vm355, %v312, 0
        %v369 = vsel %vm355, %v319, 0
        %v370 = vsel %vm355, %v326, 0
        %v371 = vsel %vm355, %v333, 0
        %vm372 = vsmask.f32 7424
        %v374 = vshrl.u32 0, 16
        %v376 = vshll.u32 0, 16
        %v378 = vrot.slane %v376, 1
        %v379 = vor.u32 %v374, %v378
        %v380 = vsel %vm372, %v379, %v378
        %v382 = vshrl.u32 %v356, 16
        %v384 = vshll.u32 %v356, 16
        %v386 = vrot.slane %v384, 1
        %v387 = vor.u32 %v382, %v386
        %v389 = vshll.u32 %v364, 16
        %v391 = vrot.slane %v389, 1
        %v392 = vsel %vm372, %v387, %v391
        %v394 = vshrl.u32 %v357, 16
        %v396 = vshll.u32 %v357, 16
        %v398 = vrot.slane %v396, 1
        %v399 = vor.u32 %v394, %v398
        %v401 = vshll.u32 %v365, 16
        %v403 = vrot.slane %v401, 1
        %v404 = vsel %vm372, %v399, %v403
        %v406 = vshrl.u32 %v358, 16
        %v408 = vshll.u32 %v358, 16
        %v410 = vrot.slane %v408, 1
        %v411 = vor.u32 %v406, %v410
        %v413 = vshll.u32 %v366, 16
        %v415 = vrot.slane %v413, 1
        %v416 = vsel %vm372, %v411, %v415
        %v418 = vshrl.u32 %v359, 16
        %v420 = vshll.u32 %v359, 16
        %v422 = vrot.slane %v420, 1
        %v423 = vor.u32 %v418, %v422
        %v425 = vshll.u32 %v367, 16
        %v427 = vrot.slane %v425, 1
        %v428 = vsel %vm372, %v423, %v427
        %v430 = vshrl.u32 %v360, 16
        %v432 = vshll.u32 %v360, 16
        %v434 = vrot.slane %v432, 1
        %v435 = vor.u32 %v430, %v434
        %v437 = vshll.u32 %v368, 16
        %v439 = vrot.slane %v437, 1
        %v440 = vsel %vm372, %v435, %v439
        %v442 = vshrl.u32 %v361, 16
        %v444 = vshll.u32 %v361, 16
        %v446 = vrot.slane %v444, 1
        %v447 = vor.u32 %v442, %v446
        %v449 = vshll.u32 %v369, 16
        %v451 = vrot.slane %v449, 1
        %v452 = vsel %vm372, %v447, %v451
        %v454 = vshrl.u32 %v362, 16
        %v456 = vshll.u32 %v362, 16
        %v458 = vrot.slane %v456, 1
        %v459 = vor.u32 %v454, %v458
        %v461 = vshll.u32 %v370, 16
        %v463 = vrot.slane %v461, 1
        %v464 = vsel %vm372, %v459, %v463
        %465 = vrot.lane.b32.xlu0 %v380, 1
        %v466 = vpop.permute.xlu0 %465
        %467 = vrot.lane.b32.xlu0 %v392, 1
        %v468 = vpop.permute.xlu0 %467
        %469 = vrot.lane.b32.xlu0 %v404, 1
        %v470 = vpop.permute.xlu0 %469
        %471 = vrot.lane.b32.xlu0 %v416, 1
        %v472 = vpop.permute.xlu0 %471
        %473 = vrot.lane.b32.xlu0 %v428, 1
        %v474 = vpop.permute.xlu0 %473
        %475 = vrot.lane.b32.xlu0 %v440, 1
        %v476 = vpop.permute.xlu0 %475
        %477 = vrot.lane.b32.xlu0 %v452, 1
        %v478 = vpop.permute.xlu0 %477
        %479 = vrot.lane.b32.xlu0 %v464, 1
        %v480 = vpop.permute.xlu0 %479
        %vm496 = vcmask 1046528
        %v497 = vrot.slane 0, 1
        %v498 = vsel %vm496, %v497, %v497
        %v499 = vrot.slane %v356, 1
        %v500 = vrot.slane %v364, 1
        %v501 = vsel %vm496, %v499, %v500
        %v502 = vrot.slane %v357, 1
        %v503 = vrot.slane %v365, 1
        %v504 = vsel %vm496, %v502, %v503
        %v505 = vrot.slane %v358, 1
        %v506 = vrot.slane %v366, 1
        %v507 = vsel %vm496, %v505, %v506
        %v508 = vrot.slane %v359, 1
        %v509 = vrot.slane %v367, 1
        %v510 = vsel %vm496, %v508, %v509
        %v511 = vrot.slane %v360, 1
        %v512 = vrot.slane %v368, 1
        %v513 = vsel %vm496, %v511, %v512
        %v514 = vrot.slane %v361, 1
        %v515 = vrot.slane %v369, 1
        %v516 = vsel %vm496, %v514, %v515
        %v517 = vrot.slane %v362, 1
        %v518 = vrot.slane %v370, 1
        %v519 = vsel %vm496, %v517, %v518
        %520 = vrot.lane.b32.xlu0 %v498, 2
        %v521 = vpop.permute.xlu0 %520
        %522 = vrot.lane.b32.xlu0 %v501, 2
        %v523 = vpop.permute.xlu0 %522
        %524 = vrot.lane.b32.xlu0 %v504, 2
        %v525 = vpop.permute.xlu0 %524
        %526 = vrot.lane.b32.xlu0 %v507, 2
        %v527 = vpop.permute.xlu0 %526
        %528 = vrot.lane.b32.xlu0 %v510, 2
        %v529 = vpop.permute.xlu0 %528
        %530 = vrot.lane.b32.xlu0 %v513, 2
        %v531 = vpop.permute.xlu0 %530
        %532 = vrot.lane.b32.xlu0 %v516, 2
        %v533 = vpop.permute.xlu0 %532
        %534 = vrot.lane.b32.xlu0 %v519, 2
        %v535 = vpop.permute.xlu0 %534
        %vm536 = vcmask 7168
        %v538 = vsel %vm536, 0, %v466
        %v540 = vsel %vm536, %v356, %v468
        %v542 = vsel %vm536, %v357, %v470
        %v544 = vsel %vm536, %v358, %v472
        %v546 = vsel %vm536, %v359, %v474
        %v548 = vsel %vm536, %v360, %v476
        %v550 = vsel %vm536, %v361, %v478
        %v552 = vsel %vm536, %v362, %v480
        %vm553 = vcmask 15360
        %v555 = vsel %vm553, %v538, %v521
        %v557 = vsel %vm553, %v540, %v523
        %v559 = vsel %vm553, %v542, %v525
        %v561 = vsel %vm553, %v544, %v527
        %v563 = vsel %vm553, %v546, %v529
        %v565 = vsel %vm553, %v548, %v531
        %v567 = vsel %vm553, %v550, %v533
        %v569 = vsel %vm553, %v552, %v535
        %v570 = vld [vmem:[#allocation5] sm:$0x3]
        %v572 = vshrl.u32 %v363, 16
        %v574 = vshll.u32 %v363, 16
        %v576 = vrot.slane %v574, 1
        %v577 = vor.u32 %v572, %v576
        %v579 = vshll.u32 %v371, 16
        %v581 = vrot.slane %v579, 1
        %v582 = vsel %vm372, %v577, %v581
        %583 = vrot.lane.b32.xlu0 %v582, 1
        %v584 = vpop.permute.xlu0 %583
        %v587 = vrot.slane %v363, 1
        %v588 = vrot.slane %v371, 1
        %v589 = vsel %vm496, %v587, %v588
        %590 = vrot.lane.b32.xlu0 %v589, 2
        %v591 = vpop.permute.xlu0 %590
        %v593 = vsel %vm536, %v363, %v584
        %v595 = vsel %vm553, %v593, %v591
        %v596 = vld [vmem:[#allocation5] sm:$0x6]
        %v598 = vunpack.c.l.b16 %v596
        %v599 = vpack.c.b16 %v598, %v598
        %v601 = vshrl.u32 %v599, 16
        %v603 = vrot.slane %v601, 1
        %v604 = vshll.u32 %v599, 16
        %v606 = vrot.slane %v604, 2
        %v607 = vor.u32 %v603, %v606
        %vm608 = vcmask 23552
        %v609 = vsel %vm608, %v557, 0
        %v611 = vsel %vm608, %v559, 0
        %v613 = vsel %vm608, %v561, 0
        %v615 = vsel %vm608, %v563, 0
        %v617 = vsel %vm608, %v565, 0
        %v619 = vsel %vm608, %v567, 0
        %v621 = vsel %vm608, %v569, 0
        %v623 = vsel %vm608, %v595, 0
        %vm625 = vcmask 1040384
        %vm626 = vcmask 1041408
        %v627 = vsel %vm625, 4294967295, 65535
        %v628 = vsel %vm626, %v627, 0
        %v630 = vand.u32 %v607, %v628
        %632 = vmatprep.subr.bf16.mxu0 0
        %633 = vmatpush1.bf16.msra.mxu0 %v630
        %634 = vmatprep.subr.bf16.mxu0 0
        %635 = vmatpush1.bf16.msra.mxu0 0
        %636 = vmatprep.subr.bf16.mxu0 0
        %637 = vmatpush1.bf16.msra.mxu0 0
        %638 = vmatprep.subr.bf16.mxu0 0
        %639 = vmatpush1.bf16.msra.mxu0 0
        %640 = vmatprep.subr.bf16.mxu0 0
        %641 = vmatpush1.bf16.msra.mxu0 0
        %642 = vmatprep.subr.bf16.mxu0 0
        %643 = vmatpush1.bf16.msra.mxu0 0
        %644 = vmatprep.subr.bf16.mxu0 0
        %645 = vmatpush1.bf16.msra.mxu0 0
        %646 = vmatprep.subr.bf16.mxu0 0
        %647 = vmatpush1.bf16.msra.mxu0 0
        %648 = vmatprep.subr.bf16.mxu0 0
        %649 = vmatpush1.bf16.msra.mxu0 0
        %650 = vmatprep.subr.bf16.mxu0 0
        %651 = vmatpush1.bf16.msra.mxu0 0
        %652 = vmatprep.subr.bf16.mxu0 0
        %653 = vmatpush1.bf16.msra.mxu0 0
        %654 = vmatprep.subr.bf16.mxu0 0
        %655 = vmatpush1.bf16.msra.mxu0 0
        %656 = vmatprep.subr.bf16.mxu0 0
        %657 = vmatpush1.bf16.msra.mxu0 0
        %658 = vmatprep.subr.bf16.mxu0 0
        %659 = vmatpush1.bf16.msra.mxu0 0
        %660 = vmatprep.subr.bf16.mxu0 0
        %661 = vmatpush1.bf16.msra.mxu0 0
        %662 = vmatprep.subr.bf16.mxu0 0
        %663 = vmatpush1.bf16.msra.mxu0 0
        %664 = vmatprep.mubr.bf16.mxu0 0
        %665 = vmatmul.mubr.bf16.gmra.mrb[0].mxu0 %v609
        %v666 = vpop.f32.mrb[0].mxu0
        %v667 = vadd.f32 0.0, %v666
        %v668 = vpop.f32.mrb[0].mxu0
        %v669 = vpop.f32.mrb[0].mxu0
        %v670 = vadd.f32 0.0, %v669
        %v671 = vpop.f32.mrb[0].mxu0
        %672 = vmatprep.mubr.bf16.mxu0 0
        %673 = vmatmul.mubr.bf16.gmra.mrb[0].mxu0 %v611
        %v674 = vpop.f32.mrb[0].mxu0
        %v675 = vadd.f32 0.0, %v674
        %v676 = vpop.f32.mrb[0].mxu0
        %v677 = vpop.f32.mrb[0].mxu0
        %v678 = vadd.f32 0.0, %v677
        %v679 = vpop.f32.mrb[0].mxu0
        %680 = vmatprep.mubr.bf16.mxu0 0
        %681 = vmatmul.mubr.bf16.gmra.mrb[0].mxu0 %v613
        %v682 = vpop.f32.mrb[0].mxu0
        %v683 = vadd.f32 0.0, %v682
        %v684 = vpop.f32.mrb[0].mxu0
        %v685 = vpop.f32.mrb[0].mxu0
        %v686 = vadd.f32 0.0, %v685
        %v687 = vpop.f32.mrb[0].mxu0
        %688 = vmatprep.mubr.bf16.mxu0 0
        %689 = vmatmul.mubr.bf16.gmra.mrb[0].mxu0 %v615
        %v690 = vpop.f32.mrb[0].mxu0
        %v691 = vadd.f32 0.0, %v690
        %v692 = vpop.f32.mrb[0].mxu0
        %v693 = vpop.f32.mrb[0].mxu0
        %v694 = vadd.f32 0.0, %v693
        %v695 = vpop.f32.mrb[0].mxu0
        %696 = vmatprep.mubr.bf16.mxu0 0
        %697 = vmatmul.mubr.bf16.gmra.mrb[0].mxu0 %v617
        %v698 = vpop.f32.mrb[0].mxu0
        %v699 = vadd.f32 0.0, %v698
        %v700 = vpop.f32.mrb[0].mxu0
        %v701 = vpop.f32.mrb[0].mxu0
        %v702 = vadd.f32 0.0, %v701
        %v703 = vpop.f32.mrb[0].mxu0
        %704 = vmatprep.mubr.bf16.mxu0 0
        %705 = vmatmul.mubr.bf16.gmra.mrb[0].mxu0 %v619
        %v706 = vpop.f32.mrb[0].mxu0
        %v707 = vadd.f32 0.0, %v706
        %v708 = vpop.f32.mrb[0].mxu0
        %v709 = vpop.f32.mrb[0].mxu0
        %v710 = vadd.f32 0.0, %v709
        %v711 = vpop.f32.mrb[0].mxu0
        %712 = vmatprep.mubr.bf16.mxu0 0
        %713 = vmatmul.mubr.bf16.gmra.mrb[0].mxu0 %v621
        %v714 = vpop.f32.mrb[0].mxu0
        %v715 = vadd.f32 0.0, %v714
        %v716 = vpop.f32.mrb[0].mxu0
        %v717 = vpop.f32.mrb[0].mxu0
        %v718 = vadd.f32 0.0, %v717
        %v719 = vpop.f32.mrb[0].mxu0
        %720 = vmatprep.mubr.bf16.mxu0 0
        %721 = vmatmul.mubr.bf16.gmra.mrb[0].mxu0 %v623
        %v722 = vpop.f32.mrb[0].mxu0
        %v723 = vadd.f32 0.0, %v722
        %v724 = vpop.f32.mrb[0].mxu0
        %v725 = vpop.f32.mrb[0].mxu0
        %v726 = vadd.f32 0.0, %v725
        %v727 = vpop.f32.mrb[0].mxu0
        %728 = vdwg.mxu0
        %v729 = vsel %vm608, %v555, 0
        %v732 = vand.u32 %v570, %v628
        %734 = vmatprep.subr.bf16.mxu0 0
        %735 = vmatpush1.bf16.msra.mxu0 %v732
        %736 = vmatprep.subr.bf16.mxu0 0
        %737 = vmatpush1.bf16.msra.mxu0 0
        %738 = vmatprep.subr.bf16.mxu0 0
        %739 = vmatpush1.bf16.msra.mxu0 0
        %740 = vmatprep.subr.bf16.mxu0 0
        %741 = vmatpush1.bf16.msra.mxu0 0
        %742 = vmatprep.subr.bf16.mxu0 0
        %743 = vmatpush1.bf16.msra.mxu0 0
        %744 = vmatprep.subr.bf16.mxu0 0
        %745 = vmatpush1.bf16.msra.mxu0 0
        %746 = vmatprep.subr.bf16.mxu0 0
        %747 = vmatpush1.bf16.msra.mxu0 0
        %748 = vmatprep.subr.bf16.mxu0 0
        %749 = vmatpush1.bf16.msra.mxu0 0
        %750 = vmatprep.subr.bf16.mxu0 0
        %751 = vmatpush1.bf16.msra.mxu0 0
        %752 = vmatprep.subr.bf16.mxu0 0
        %753 = vmatpush1.bf16.msra.mxu0 0
        %754 = vmatprep.subr.bf16.mxu0 0
        %755 = vmatpush1.bf16.msra.mxu0 0
        %756 = vmatprep.subr.bf16.mxu0 0
        %757 = vmatpush1.bf16.msra.mxu0 0
        %758 = vmatprep.subr.bf16.mxu0 0
        %759 = vmatpush1.bf16.msra.mxu0 0
        %760 = vmatprep.subr.bf16.mxu0 0
        %761 = vmatpush1.bf16.msra.mxu0 0
        %762 = vmatprep.subr.bf16.mxu0 0
        %763 = vmatpush1.bf16.msra.mxu0 0
        %764 = vmatprep.subr.bf16.mxu0 0
        %765 = vmatpush1.bf16.msra.mxu0 0
        %766 = vmatprep.mubr.bf16.mxu0 0
        %767 = vmatmul.mubr.bf16.gmra.mrb[0].mxu0 %v729
        %v768 = vpop.f32.mrb[0].mxu0
        %v769 = vadd.f32 %v667, %v768
        %v770 = vpop.f32.mrb[0].mxu0
        %v771 = vpop.f32.mrb[0].mxu0
        %v772 = vadd.f32 %v670, %v771
        %v773 = vpop.f32.mrb[0].mxu0
        %774 = vmatprep.mubr.bf16.mxu0 0
        %775 = vmatmul.mubr.bf16.gmra.mrb[0].mxu0 %v609
        %v776 = vpop.f32.mrb[0].mxu0
        %v777 = vadd.f32 %v675, %v776
        %v778 = vpop.f32.mrb[0].mxu0
        %v779 = vpop.f32.mrb[0].mxu0
        %v780 = vadd.f32 %v678, %v779
        %v781 = vpop.f32.mrb[0].mxu0
        %782 = vmatprep.mubr.bf16.mxu0 0
        %783 = vmatmul.mubr.bf16.gmra.mrb[0].mxu0 %v611
        %v784 = vpop.f32.mrb[0].mxu0
        %v785 = vadd.f32 %v683, %v784
        %v786 = vpop.f32.mrb[0].mxu0
        %v787 = vpop.f32.mrb[0].mxu0
        %v788 = vadd.f32 %v686, %v787
        %v789 = vpop.f32.mrb[0].mxu0
        %790 = vmatprep.mubr.bf16.mxu0 0
        %791 = vmatmul.mubr.bf16.gmra.mrb[0].mxu0 %v613
        %v792 = vpop.f32.mrb[0].mxu0
        %v793 = vadd.f32 %v691, %v792
        %v794 = vpop.f32.mrb[0].mxu0
        %v795 = vpop.f32.mrb[0].mxu0
        %v796 = vadd.f32 %v694, %v795
        %v797 = vpop.f32.mrb[0].mxu0
        %798 = vmatprep.mubr.bf16.mxu0 0
        %799 = vmatmul.mubr.bf16.gmra.mrb[0].mxu0 %v615
        %v800 = vpop.f32.mrb[0].mxu0
        %v801 = vadd.f32 %v699, %v800
        %v802 = vpop.f32.mrb[0].mxu0
        %v803 = vpop.f32.mrb[0].mxu0
        %v804 = vadd.f32 %v702, %v803
        %v805 = vpop.f32.mrb[0].mxu0
        %806 = vmatprep.mubr.bf16.mxu0 0
        %807 = vmatmul.mubr.bf16.gmra.mrb[0].mxu0 %v617
        %v808 = vpop.f32.mrb[0].mxu0
        %v809 = vadd.f32 %v707, %v808
        %v810 = vpop.f32.mrb[0].mxu0
        %v811 = vpop.f32.mrb[0].mxu0
        %v812 = vadd.f32 %v710, %v811
        %v813 = vpop.f32.mrb[0].mxu0
        %814 = vmatprep.mubr.bf16.mxu0 0
        %815 = vmatmul.mubr.bf16.gmra.mrb[0].mxu0 %v619
        %v816 = vpop.f32.mrb[0].mxu0
        %v817 = vadd.f32 %v715, %v816
        %v818 = vpop.f32.mrb[0].mxu0
        %v819 = vpop.f32.mrb[0].mxu0
        %v820 = vadd.f32 %v718, %v819
        %v821 = vpop.f32.mrb[0].mxu0
        %822 = vmatprep.mubr.bf16.mxu0 0
        %823 = vmatmul.mubr.bf16.gmra.mrb[0].mxu0 %v621
        %v824 = vpop.f32.mrb[0].mxu0
        %v825 = vadd.f32 %v723, %v824
        %v826 = vpop.f32.mrb[0].mxu0
        %v827 = vpop.f32.mrb[0].mxu0
        %v828 = vadd.f32 %v726, %v827
        %v829 = vpop.f32.mrb[0].mxu0
        %830 = vdwg.mxu0
        %v831 = vld [vmem:[#allocation5] sm:$0x8]
        %v832 = vld [vmem:[#allocation5 + $0x4] sm:$0x1]
        %v835 = vunpack.c.l.b16 %v831
        %v836 = vunpack.c.l.b16 %v832
        %v837 = vpack.c.b16 %v836, %v835
        %v838 = vrot.slane %v837, 3
        %v840 = vand.u32 %v838, %v628
        %842 = vmatprep.subr.bf16.mxu0 0
        %843 = vmatpush1.bf16.msra.mxu0 %v840
        %844 = vmatprep.subr.bf16.mxu0 0
        %845 = vmatpush1.bf16.msra.mxu0 0
        %846 = vmatprep.subr.bf16.mxu0 0
        %847 = vmatpush1.bf16.msra.mxu0 0
        %848 = vmatprep.subr.bf16.mxu0 0
        %849 = vmatpush1.bf16.msra.mxu0 0
        %850 = vmatprep.subr.bf16.mxu0 0
        %851 = vmatpush1.bf16.msra.mxu0 0
        %852 = vmatprep.subr.bf16.mxu0 0
        %853 = vmatpush1.bf16.msra.mxu0 0
        %854 = vmatprep.subr.bf16.mxu0 0
        %855 = vmatpush1.bf16.msra.mxu0 0
        %856 = vmatprep.subr.bf16.mxu0 0
        %857 = vmatpush1.bf16.msra.mxu0 0
        %858 = vmatprep.subr.bf16.mxu0 0
        %859 = vmatpush1.bf16.msra.mxu0 0
        %860 = vmatprep.subr.bf16.mxu0 0
        %861 = vmatpush1.bf16.msra.mxu0 0
        %862 = vmatprep.subr.bf16.mxu0 0
        %863 = vmatpush1.bf16.msra.mxu0 0
        %864 = vmatprep.subr.bf16.mxu0 0
        %865 = vmatpush1.bf16.msra.mxu0 0
        %866 = vmatprep.subr.bf16.mxu0 0
        %867 = vmatpush1.bf16.msra.mxu0 0
        %868 = vmatprep.subr.bf16.mxu0 0
        %869 = vmatpush1.bf16.msra.mxu0 0
        %870 = vmatprep.subr.bf16.mxu0 0
        %871 = vmatpush1.bf16.msra.mxu0 0
        %872 = vmatprep.subr.bf16.mxu0 0
        %873 = vmatpush1.bf16.msra.mxu0 0
        %874 = vmatprep.mubr.bf16.mxu0 0
        %875 = vmatmul.mubr.bf16.gmra.mrb[0].mxu0 %v611
        %v876 = vpop.f32.mrb[0].mxu0
        %v877 = vadd.f32 0.0, %v876
        %v878 = vpop.f32.mrb[0].mxu0
        %v879 = vpop.f32.mrb[0].mxu0
        %v880 = vadd.f32 0.0, %v879
        %v881 = vpop.f32.mrb[0].mxu0
        %882 = vmatprep.mubr.bf16.mxu0 0
        %883 = vmatmul.mubr.bf16.gmra.mrb[0].mxu0 %v613
        %v884 = vpop.f32.mrb[0].mxu0
        %v885 = vadd.f32 0.0, %v884
        %v886 = vpop.f32.mrb[0].mxu0
        %v887 = vpop.f32.mrb[0].mxu0
        %v888 = vadd.f32 0.0, %v887
        %v889 = vpop.f32.mrb[0].mxu0
        %890 = vmatprep.mubr.bf16.mxu0 0
        %891 = vmatmul.mubr.bf16.gmra.mrb[0].mxu0 %v615
        %v892 = vpop.f32.mrb[0].mxu0
        %v893 = vadd.f32 0.0, %v892
        %v894 = vpop.f32.mrb[0].mxu0
        %v895 = vpop.f32.mrb[0].mxu0
        %v896 = vadd.f32 0.0, %v895
        %v897 = vpop.f32.mrb[0].mxu0
        %898 = vmatprep.mubr.bf16.mxu0 0
        %899 = vmatmul.mubr.bf16.gmra.mrb[0].mxu0 %v617
        %v900 = vpop.f32.mrb[0].mxu0
        %v901 = vadd.f32 0.0, %v900
        %v902 = vpop.f32.mrb[0].mxu0
        %v903 = vpop.f32.mrb[0].mxu0
        %v904 = vadd.f32 0.0, %v903
        %v905 = vpop.f32.mrb[0].mxu0
        %906 = vmatprep.mubr.bf16.mxu0 0
        %907 = vmatmul.mubr.bf16.gmra.mrb[0].mxu0 %v619
        %v908 = vpop.f32.mrb[0].mxu0
        %v909 = vadd.f32 0.0, %v908
        %v910 = vpop.f32.mrb[0].mxu0
        %v911 = vpop.f32.mrb[0].mxu0
        %v912 = vadd.f32 0.0, %v911
        %v913 = vpop.f32.mrb[0].mxu0
        %914 = vmatprep.mubr.bf16.mxu0 0
        %915 = vmatmul.mubr.bf16.gmra.mrb[0].mxu0 %v621
        %v916 = vpop.f32.mrb[0].mxu0
        %v917 = vadd.f32 0.0, %v916
        %v918 = vpop.f32.mrb[0].mxu0
        %v919 = vpop.f32.mrb[0].mxu0
        %v920 = vadd.f32 0.0, %v919
        %v921 = vpop.f32.mrb[0].mxu0
        %922 = vmatprep.mubr.bf16.mxu0 0
        %923 = vmatmul.mubr.bf16.gmra.mrb[0].mxu0 %v623
        %v924 = vpop.f32.mrb[0].mxu0
        %v925 = vadd.f32 0.0, %v924
        %v926 = vpop.f32.mrb[0].mxu0
        %v927 = vpop.f32.mrb[0].mxu0
        %v928 = vadd.f32 0.0, %v927
        %v929 = vpop.f32.mrb[0].mxu0
        %930 = vmatprep.mubr.bf16.mxu0 0
        %931 = vmatmul.mubr.bf16.gmra.mrb[0].mxu0 %v729
        %v932 = vpop.f32.mrb[0].mxu0
        %v933 = vadd.f32 0.0, %v932
        %v934 = vpop.f32.mrb[0].mxu0
        %v935 = vpop.f32.mrb[0].mxu0
        %v936 = vadd.f32 0.0, %v935
        %v937 = vpop.f32.mrb[0].mxu0
        %938 = vdwg.mxu0
        %v939 = vadd.f32 %v769, %v877
        %v940 = vadd.f32 %v772, %v880
        %v941 = vadd.f32 %v777, %v885
        %v942 = vadd.f32 %v780, %v888
        %v943 = vadd.f32 %v785, %v893
        %v944 = vadd.f32 %v788, %v896
        %v945 = vadd.f32 %v793, %v901
        %v946 = vadd.f32 %v796, %v904
        %v947 = vadd.f32 %v801, %v909
        %v948 = vadd.f32 %v804, %v912
        %v949 = vadd.f32 %v809, %v917
        %v950 = vadd.f32 %v812, %v920
        %v951 = vadd.f32 %v817, %v925
        %v952 = vadd.f32 %v820, %v928
        %v953 = vadd.f32 %v825, %v933
        %v954 = vadd.f32 %v828, %v936
        %v955 = vld [vmem:[#allocation7] sm:$0x1]
        %v957 = vlaneseq
        %v958 = vshrl.u32 %v957, 7
        %v959 = vsub.s32 0, %v958
        %v960 = vrot.slane %v955, %v959
        %v962 = vmul.f32 %v939, %v960
        %v963 = vmul.f32 %v940, %v960
        %v964 = vmul.f32 %v941, %v960
        %v965 = vmul.f32 %v942, %v960
        %v966 = vmul.f32 %v943, %v960
        %v967 = vmul.f32 %v944, %v960
        %v968 = vmul.f32 %v945, %v960
        %v969 = vmul.f32 %v946, %v960
        %v970 = vmul.f32 %v947, %v960
        %v971 = vmul.f32 %v948, %v960
        %v972 = vmul.f32 %v949, %v960
        %v973 = vmul.f32 %v950, %v960
        %v974 = vmul.f32 %v951, %v960
        %v975 = vmul.f32 %v952, %v960
        %v976 = vmul.f32 %v953, %v960
        %v977 = vmul.f32 %v954, %v960
        %v978 = vld [vmem:[#allocation8] sm:$0x1]
        %v980 = vlaneseq
        %v981 = vshrl.u32 %v980, 7
        %v982 = vsub.s32 0, %v981
        %v983 = vrot.slane %v978, %v982
        %v985 = vadd.f32 %v962, %v983
        %v986 = vadd.f32 %v963, %v983
        %v987 = vadd.f32 %v964, %v983
        %v988 = vadd.f32 %v965, %v983
        %v989 = vadd.f32 %v966, %v983
        %v990 = vadd.f32 %v967, %v983
        %v991 = vadd.f32 %v968, %v983
        %v992 = vadd.f32 %v969, %v983
        %v993 = vadd.f32 %v970, %v983
        %v994 = vadd.f32 %v971, %v983
        %v995 = vadd.f32 %v972, %v983
        %v996 = vadd.f32 %v973, %v983
        %v997 = vadd.f32 %v974, %v983
        %v998 = vadd.f32 %v975, %v983
        %v999 = vadd.f32 %v976, %v983
        %v1000 = vadd.f32 %v977, %v983
        %v1001 = vmax.f32 %v985, 0.0
        %v1002 = vmax.f32 %v986, 0.0
        %v1003 = vmax.f32 %v987, 0.0
        %v1004 = vmax.f32 %v988, 0.0
        %v1005 = vmax.f32 %v989, 0.0
        %v1006 = vmax.f32 %v990, 0.0
        %v1007 = vmax.f32 %v991, 0.0
        %v1008 = vmax.f32 %v992, 0.0
        %v1009 = vmax.f32 %v993, 0.0
        %v1010 = vmax.f32 %v994, 0.0
        %v1011 = vmax.f32 %v995, 0.0
        %v1012 = vmax.f32 %v996, 0.0
        %v1013 = vmax.f32 %v997, 0.0
        %v1014 = vmax.f32 %v998, 0.0
        %v1015 = vmax.f32 %v999, 0.0
        %v1016 = vmax.f32 %v1000, 0.0
        %v1017 = vpack.c.bf16 %v1002, %v1001
        %v1018 = vpack.c.bf16 %v1004, %v1003
        %v1019 = vpack.c.bf16 %v1006, %v1005
        %v1020 = vpack.c.bf16 %v1008, %v1007
        %v1021 = vpack.c.bf16 %v1010, %v1009
        %v1022 = vpack.c.bf16 %v1012, %v1011
        %v1023 = vpack.c.bf16 %v1014, %v1013
        %v1024 = vpack.c.bf16 %v1016, %v1015
        %v1033 = vunpack.c.l.b16 %v1017
        %v1034 = vunpack.c.h.b16 %v1017
        %v1035 = vunpack.c.l.b16 %v1018
        %v1036 = vunpack.c.h.b16 %v1018
        %v1037 = vunpack.c.l.b16 %v1019
        %v1038 = vunpack.c.h.b16 %v1019
        %v1039 = vunpack.c.l.b16 %v1020
        %v1040 = vunpack.c.h.b16 %v1020
        %v1041 = vunpack.c.l.b16 %v1021
        %v1042 = vunpack.c.h.b16 %v1021
        %v1043 = vunpack.c.l.b16 %v1022
        %v1044 = vunpack.c.h.b16 %v1022
        %v1045 = vunpack.c.l.b16 %v1023
        %v1046 = vunpack.c.h.b16 %v1023
        %v1047 = vunpack.c.l.b16 %v1024
        %v1048 = vunpack.c.h.b16 %v1024
        %v1049 = vpack.c.b16 %v1033, %v1033
        %v1050 = vpack.c.b16 %v1034, %v1034
        %v1051 = vpack.c.b16 %v1035, %v1035
        %v1052 = vpack.c.b16 %v1036, %v1036
        %v1053 = vpack.c.b16 %v1037, %v1037
        %v1054 = vpack.c.b16 %v1038, %v1038
        %v1055 = vpack.c.b16 %v1039, %v1039
        %v1056 = vpack.c.b16 %v1040, %v1040
        %v1057 = vpack.c.b16 %v1041, %v1041
        %v1058 = vpack.c.b16 %v1042, %v1042
        %v1059 = vpack.c.b16 %v1043, %v1043
        %v1060 = vpack.c.b16 %v1044, %v1044
        %v1061 = vpack.c.b16 %v1045, %v1045
        %v1062 = vpack.c.b16 %v1046, %v1046
        %v1063 = vpack.c.b16 %v1047, %v1047
        %v1064 = vpack.c.b16 %v1048, %v1048
        %vm1081 = vcmask 11264
        %1082 = vst.msk [vmem:[%s255] sm:$0xf] %vm1081, %v1049
        %1083 = vst.msk [vmem:[%s255 + $0x4] sm:$0xf] %vm1081, %v1050
        %1084 = vst.msk [vmem:[%s255 + $0x8] sm:$0xf] %vm1081, %v1051
        %1085 = vst.msk [vmem:[%s255 + $0xc] sm:$0xf] %vm1081, %v1052
        %1086 = vst.msk [vmem:[%s255 + $0x10] sm:$0xf] %vm1081, %v1053
        %1087 = vst.msk [vmem:[%s255 + $0x14] sm:$0xf] %vm1081, %v1054
        %1088 = vst.msk [vmem:[%s255 + $0x18] sm:$0xf] %vm1081, %v1055
        %1089 = vst.msk [vmem:[%s255 + $0x1c] sm:$0xf] %vm1081, %v1056
        %1090 = vst.msk [vmem:[%s255 + $0x20] sm:$0xf] %vm1081, %v1057
        %1091 = vst.msk [vmem:[%s255 + $0x24] sm:$0xf] %vm1081, %v1058
        %1092 = vst.msk [vmem:[%s255 + $0x28] sm:$0xf] %vm1081, %v1059
        %1093 = vst.msk [vmem:[%s255 + $0x2c] sm:$0xf] %vm1081, %v1060
        %1094 = vst.msk [vmem:[%s255 + $0x30] sm:$0xf] %vm1081, %v1061
        %1095 = vst.msk [vmem:[%s255 + $0x34] sm:$0xf] %vm1081, %v1062
        %1096 = vst.msk [vmem:[%s255 + $0x38] sm:$0xf] %vm1081, %v1063
        %1097 = vst.msk [vmem:[%s255 + $0x3c] sm:$0xf] %vm1081, %v1064
        %s1098 = sand.u32 %s120, 1
        %s1099 = scalar_lea.sflag [#allocation4], %s1098
        %s1100 = sand.u32 %s120, 1
        %s1101 = smul.addr %s1100, 64
        %s1102 = scalar_lea.vmem [#allocation10], %s1101
        // Predicated region
        $region53: #{cnn_lstm_forward.6} parent=35 // pred_check
          %p1103 = pneg %p130
        $region54: #{cnn_lstm_forward.6} parent=35 // pred_check_branch
          %1105 = sbr.rel (%p1103) target = $region56
        $region55: #{cnn_lstm_forward.6} parent=35 // pred_region
          %s1107 = ssub.s32 1024, 1024
          %1108 = vsyncadd %s1099, %s1107
          %s1109 = smul.addr %s23, 16
          %s1110 = smul.addr %s1109, 64
          %s1111 = scalar_lea.hbm %s4, %s1110
          %s1112 = sshll.u32 %s1102, 4
          %s1113 = int_to_ptr.vmem [resolvable:$true] %s1112
          %1118 = dma.vmem_to_hbm [thread:$0]  %s1113, 1024, %s1111, %s1099, 64, 64, 4
        $region56: #{cnn_lstm_forward.6} parent=35 // pred_fallthru
          _
      $region36: #{cnn_lstm_forward.6} parent=5 // pred_fallthru
        _
      %p1119 = scmp.le.s32.totalorder 2, %s18
      // Predicated region
      $region57: #{cnn_lstm_forward.6} parent=5 // pred_check
        %p1120 = pneg %p1119
      $region58: #{cnn_lstm_forward.6} parent=5 // pred_check_branch
        %1122 = sbr.rel (%p1120) target = $region60
      $region59: #{cnn_lstm_forward.6} parent=5 // pred_region
        %s1123 = ssub.s32 %s18, 2
        // Predicated region
        $region61: #{cnn_lstm_forward.6} parent=59 // pred_check
          %p1124 = pneg %p136
        $region62: #{cnn_lstm_forward.6} parent=59 // pred_check_branch
          %1126 = sbr.rel (%p1124) target = $region64
        $region63: #{cnn_lstm_forward.6} parent=59 // pred_region
          %s1127 = sand.u32 %s121, 1
          %s1128 = scalar_lea.sflag [#allocation4], %s1127
          %s1129 = sand.u32 %s121, 1
          %s1130 = smul.addr %s1129, 64
          %s1131 = scalar_lea.vmem [#allocation10], %s1130
          %1132 = dma.done %s1128, 1024
        $region64: #{cnn_lstm_forward.6} parent=59 // pred_fallthru
          _
      $region60: #{cnn_lstm_forward.6} parent=5 // pred_fallthru
        _
    $region6: #{cnn_lstm_forward.6} parent=1 // loop_footer
      %s22 = sadd.s32 1, %s18
    $region7: #{cnn_lstm_forward.6} parent=1 // loop_footer_branch
      %17 = sbr.rel target = $region3
    $region8: #{cnn_lstm_forward.6} parent=1 // loop_exit
      _
    %1133 = vsyncpa [#allocation3], 1
    %s1134 = scalar_lea.sflag [#allocation3], 1
    %1135 = vsyncpa %s1134, 1
    %1136 = vsyncpa [#allocation6], 1
    %1137 = vsyncpa [#allocation9], 1
    %1138 = vsyncpa [#allocation4], 1
    %s1139 = scalar_lea.sflag [#allocation4], 1
    %1140 = vsyncpa %s1139, 1

// kernel: cnn_lstm_forward.7
$region0: #{cnn_lstm_forward.7}
  #allocation0 [shape = 'u32[]', space=smem, size = 0x4, offset = 0x4, fixed_abs, tag = 'smem constant byte address 0x4 - core index']
  #allocation1 [shape = 'u32[144,128]{1,0:T(1,128)}', space=vmem, size = 0x12000, scoped, tag = 'internal scratch']
  %s0 = inlined_call_operand.hbm [shape: bf16[2,8,16,2], index: 0, kind: input, shape index: {}]
  %s1 = inlined_call_operand.hbm [shape: bf16[18,2], index: 1, kind: input, shape index: {}]
  %s2 = inlined_call_operand.hbm [shape: f32[1,2], index: 2, kind: input, shape index: {}]
  %s3 = inlined_call_operand.hbm [shape: f32[1,2], index: 3, kind: input, shape index: {}]
  %s4 = inlined_call_operand.hbm [shape: bf16[2,8,8,2], index: 4, kind: output, shape index: {}]
  %s5 = sld [smem:[#allocation0]]
  $region65: #{cnn_lstm_forward.7} parent=0
    _
  %s7 = ssub.s32 1, %s5
  %s8 = scalar_select 0, %s7, %s5
  $region1: #{cnn_lstm_forward.7} parent=0
    #allocation2 [shape = 'u8[65536]{0}', space=vmem, size = 0x10000, scoped, tag = 'input window, operand 0']
    #allocation3 [shape = 's32[2]{0}', space=sflag, size = 0x8, scoped, tag = 'scoped memory for cnn_lstm_forward.7']
    #allocation4 [shape = 's32[2]{0}', space=sflag, size = 0x8, scoped, tag = 'scoped memory for cnn_lstm_forward.7']
    #allocation5 [shape = 'u8[6144]{0}', space=vmem, size = 0x1800, scoped, tag = 'input window, operand 1, single buffered']
    #allocation6 [shape = 's32[1]{0}', space=sflag, size = 0x4, scoped, tag = 'scoped memory for cnn_lstm_forward.7']
    #allocation7 [shape = 'u8[512]{0}', space=vmem, size = 0x400, scoped, tag = 'input window, operand 2, single buffered']
    #allocation8 [shape = 'u8[512]{0}', space=vmem, size = 0x400, scoped, tag = 'input window, operand 3, single buffered']
    #allocation9 [shape = 's32[1]{0}', space=sflag, size = 0x4, scoped, tag = 'scoped memory for cnn_lstm_forward.7']
    #allocation10 [shape = 'u8[32768]{0}', space=vmem, size = 0x8000, scoped, tag = 'output window, operand 0']
    %9 = vsyncpa [#allocation3], 0
    %s10 = scalar_lea.sflag [#allocation3], 1
    %11 = vsyncpa %s10, 0
    %12 = vsyncpa [#allocation6], 0
    %13 = vsyncpa [#allocation9], 0
    %14 = vsyncpa [#allocation4], 0
    %s15 = scalar_lea.sflag [#allocation4], 1
    %16 = vsyncpa %s15, 0
    loop: start=0, step=1, limit=4
    $region2: #{cnn_lstm_forward.7} parent=1 // loop_pre_header
      _
    $region3: #{cnn_lstm_forward.7} parent=1 // loop_header
      %s18 = sphi 0, %s22
      %p19 = scmp.ge.s32.totalorder %s18, 4
      %s28 = sphi 0, %s30
      %s31 = sphi 0, %s28
      %s32 = sphi 0, %s31
      %s48 = sphi 0, %s32
      %s52 = sphi 0, %s52
      %s54 = sphi 0, %s52
      %s55 = sphi 0, %s54
      %s69 = sphi 0, %s55
      %s73 = sphi 0, %s73
      %s75 = sphi 0, %s73
      %s76 = sphi 0, %s75
      %s90 = sphi 0, %s76
      %s94 = sphi 0, %s94
      %s96 = sphi 0, %s94
      %s97 = sphi 0, %s96
      %s111 = sphi 0, %s97
      %s117 = sphi 0, %s119
      %s120 = sphi 0, %s117
      %s121 = sphi 0, %s120
      %s137 = sphi 0, %s121
    $region4: #{cnn_lstm_forward.7} parent=1 // loop_header_branch
      %21 = sbr.rel (%p19) target = $region8
    $region5: #{cnn_lstm_forward.7} parent=1 // loop_body
      %s23 = ssub.s32 %s18, 1
      %s24 = ssub.s32 %s18, 2
      %s25 = sadd.s32 %s18, 1
      %s26 = ssub.s32 %s18, %s25
      %p27 = scmp.eq.s32.totalorder %s26, 0
      %s29 = sadd.s32 %s28, 1
      %s30 = scalar_select %p27, %s28, %s29
      %p33 = pneg %p27
      %p34 = scmp.eq.s32.totalorder %s18, 1
      %p35 = por %p33, %p34
      %p36 = scmp.ne.s32.totalorder %s28, %s31
      %p37 = scmp.eq.s32.totalorder %s18, 0
      %p38 = por %p36, %p37
      %p39 = scmp.ne.s32.totalorder %s28, %s31
      %p40 = scmp.eq.s32.totalorder %s23, 1
      %p41 = por %p39, %p40
      %p42 = scmp.ne.s32.totalorder %s31, %s32
      %p43 = scmp.eq.s32.totalorder %s23, 0
      %p44 = por %p42, %p43
      %p45 = scmp.ne.s32.totalorder %s31, %s32
      %p46 = scmp.eq.s32.totalorder %s24, 1
      %p47 = por %p45, %p46
      %p49 = scmp.ne.s32.totalorder %s32, %s48
      %p50 = scmp.eq.s32.totalorder %s24, 0
      %p51 = por %p49, %p50
      %s53 = sadd.s32 %s52, 1
      %p56 = scmp.eq.s32.totalorder %s18, 1
      %p57 = scmp.ne.s32.totalorder %s52, %s54
      %p58 = scmp.eq.s32.totalorder %s18, 0
      %p59 = por %p57, %p58
      %p60 = scmp.ne.s32.totalorder %s52, %s54
      %p61 = scmp.eq.s32.totalorder %s23, 1
      %p62 = por %p60, %p61
      %p63 = scmp.ne.s32.totalorder %s54, %s55
      %p64 = scmp.eq.s32.totalorder %s23, 0
      %p65 = por %p63, %p64
      %p66 = scmp.ne.s32.totalorder %s54, %s55
      %p67 = scmp.eq.s32.totalorder %s24, 1
      %p68 = por %p66, %p67
      %p70 = scmp.ne.s32.totalorder %s55, %s69
      %p71 = scmp.eq.s32.totalorder %s24, 0
      %p72 = por %p70, %p71
      %s74 = sadd.s32 %s73, 1
      %p77 = scmp.eq.s32.totalorder %s18, 1
      %p78 = scmp.ne.s32.totalorder %s73, %s75
      %p79 = scmp.eq.s32.totalorder %s18, 0
      %p80 = por %p78, %p79
      %p81 = scmp.ne.s32.totalorder %s73, %s75
      %p82 = scmp.eq.s32.totalorder %s23, 1
      %p83 = por %p81, %p82
      %p84 = scmp.ne.s32.totalorder %s75, %s76
      %p85 = scmp.eq.s32.totalorder %s23, 0
      %p86 = por %p84, %p85
      %p87 = scmp.ne.s32.totalorder %s75, %s76
      %p88 = scmp.eq.s32.totalorder %s24, 1
      %p89 = por %p87, %p88
      %p91 = scmp.ne.s32.totalorder %s76, %s90
      %p92 = scmp.eq.s32.totalorder %s24, 0
      %p93 = por %p91, %p92
      %s95 = sadd.s32 %s94, 1
      %p98 = scmp.eq.s32.totalorder %s18, 1
      %p99 = scmp.ne.s32.totalorder %s94, %s96
      %p100 = scmp.eq.s32.totalorder %s18, 0
      %p101 = por %p99, %p100
      %p102 = scmp.ne.s32.totalorder %s94, %s96
      %p103 = scmp.eq.s32.totalorder %s23, 1
      %p104 = por %p102, %p103
      %p105 = scmp.ne.s32.totalorder %s96, %s97
      %p106 = scmp.eq.s32.totalorder %s23, 0
      %p107 = por %p105, %p106
      %p108 = scmp.ne.s32.totalorder %s96, %s97
      %p109 = scmp.eq.s32.totalorder %s24, 1
      %p110 = por %p108, %p109
      %p112 = scmp.ne.s32.totalorder %s97, %s111
      %p113 = scmp.eq.s32.totalorder %s24, 0
      %p114 = por %p112, %p113
      %s115 = ssub.s32 %s18, %s25
      %p116 = scmp.eq.s32.totalorder %s115, 0
      %s118 = sadd.s32 %s117, 1
      %s119 = scalar_select %p116, %s117, %s118
      %p122 = pneg %p116
      %p123 = scmp.eq.s32.totalorder %s18, 1
      %p124 = por %p122, %p123
      %p125 = scmp.ne.s32.totalorder %s117, %s120
      %p126 = scmp.eq.s32.totalorder %s18, 0
      %p127 = por %p125, %p126
      %p128 = scmp.ne.s32.totalorder %s117, %s120
      %p129 = scmp.eq.s32.totalorder %s23, 1
      %p130 = por %p128, %p129
      %p131 = scmp.ne.s32.totalorder %s120, %s121
      %p132 = scmp.eq.s32.totalorder %s23, 0
      %p133 = por %p131, %p132
      %p134 = scmp.ne.s32.totalorder %s120, %s121
      %p135 = scmp.eq.s32.totalorder %s24, 1
      %p136 = por %p134, %p135
      %p138 = scmp.ne.s32.totalorder %s121, %s137
      %p139 = scmp.eq.s32.totalorder %s24, 0
      %p140 = por %p138, %p139
      %p141 = scmp.le.s32.totalorder 1, %s18
      %p142 = scmp.lt.s32.totalorder %s18, 3
      %p143 = pnand %p141, %p142
      %p144 = pneg %p143
      // Predicated region
      $region9: #{cnn_lstm_forward.7} parent=5 // pred_check
        _
      $region10: #{cnn_lstm_forward.7} parent=5 // pred_check_branch
        %146 = sbr.rel (%p143) target = $region12
      $region11: #{cnn_lstm_forward.7} parent=5 // pred_region
        %s147 = ssub.s32 %s18, 1
        // Predicated region
        $region13: #{cnn_lstm_forward.7} parent=11 // pred_check
          %p148 = pneg %p65
        $region14: #{cnn_lstm_forward.7} parent=11 // pred_check_branch
          %150 = sbr.rel (%p148) target = $region16
        $region15: #{cnn_lstm_forward.7} parent=11 // pred_region
          %s152 = ssub.s32 192, 192
          %153 = vsyncadd [#allocation6], %s152
          %s154 = sshll.u32 [#allocation5], 4
          %s155 = int_to_ptr.vmem [resolvable:$true] %s154
          %160 = dma.hbm_to_vmem [thread:$0]  %s1, 192, %s155, [#allocation6], 64, 64, 4
        $region16: #{cnn_lstm_forward.7} parent=11 // pred_fallthru
          _
        // Predicated region
        $region17: #{cnn_lstm_forward.7} parent=11 // pred_check
          %p161 = pneg %p86
        $region18: #{cnn_lstm_forward.7} parent=11 // pred_check_branch
          %163 = sbr.rel (%p161) target = $region20
        $region19: #{cnn_lstm_forward.7} parent=11 // pred_region
          %s165 = ssub.s32 16, 16
          %166 = vsyncadd [#allocation6], %s165
          %s168 = sshll.u32 [#allocation7], 4
          %s169 = int_to_ptr.vmem [resolvable:$true] %s168
          %171 = dma.hbm_to_vmem [thread:$0]  %s2, 16, %s169, [#allocation6]
        $region20: #{cnn_lstm_forward.7} parent=11 // pred_fallthru
          _
        // Predicated region
        $region21: #{cnn_lstm_forward.7} parent=11 // pred_check
          %p172 = pneg %p107
        $region22: #{cnn_lstm_forward.7} parent=11 // pred_check_branch
          %174 = sbr.rel (%p172) target = $region24
        $region23: #{cnn_lstm_forward.7} parent=11 // pred_region
          %s176 = ssub.s32 16, 16
          %177 = vsyncadd [#allocation9], %s176
          %s179 = sshll.u32 [#allocation8], 4
          %s180 = int_to_ptr.vmem [resolvable:$true] %s179
          %182 = dma.hbm_to_vmem [thread:$0]  %s3, 16, %s180, [#allocation9]
        $region24: #{cnn_lstm_forward.7} parent=11 // pred_fallthru
          _
      $region12: #{cnn_lstm_forward.7} parent=5 // pred_fallthru
        _
      %p183 = scmp.lt.s32.totalorder %s18, 2
      // Predicated region
      $region25: #{cnn_lstm_forward.7} parent=5 // pred_check
        %p184 = pneg %p183
      $region26: #{cnn_lstm_forward.7} parent=5 // pred_check_branch
        %186 = sbr.rel (%p184) target = $region28
      $region27: #{cnn_lstm_forward.7} parent=5 // pred_region
        // Predicated region
        $region29: #{cnn_lstm_forward.7} parent=27 // pred_check
          %p187 = pneg %p38
        $region30: #{cnn_lstm_forward.7} parent=27 // pred_check_branch
          %189 = sbr.rel (%p187) target = $region32
        $region31: #{cnn_lstm_forward.7} parent=27 // pred_region
          %s190 = sand.u32 %s28, 1
          %s191 = scalar_lea.sflag [#allocation3], %s190
          %s192 = sand.u32 %s28, 1
          %s193 = smul.addr %s192, 64
          %s194 = scalar_lea.vmem [#allocation2], %s193
          %s196 = ssub.s32 1024, 1024
          %197 = vsyncadd %s191, %s196
          %s198 = smul.addr %s18, 16
          %s199 = smul.addr %s198, 64
          %s200 = scalar_lea.hbm %s0, %s199
          %s201 = sshll.u32 %s194, 4
          %s202 = int_to_ptr.vmem [resolvable:$true] %s201
          %207 = dma.hbm_to_vmem [thread:$0]  %s200, 1024, %s202, %s191, 64, 64, 4
        $region32: #{cnn_lstm_forward.7} parent=27 // pred_fallthru
          _
      $region28: #{cnn_lstm_forward.7} parent=5 // pred_fallthru
        _
      %p208 = scmp.le.s32.totalorder 1, %s18
      %p209 = scmp.lt.s32.totalorder %s18, 3
      %p210 = pnand %p208, %p209
      %p211 = pneg %p210
      // Predicated region
      $region33: #{cnn_lstm_forward.7} parent=5 // pred_check
        _
      $region34: #{cnn_lstm_forward.7} parent=5 // pred_check_branch
        %213 = sbr.rel (%p210) target = $region36
      $region35: #{cnn_lstm_forward.7} parent=5 // pred_region
        %s214 = ssub.s32 %s18, 1
        %s215 = sand.u32 %s31, 1
        %s216 = scalar_lea.sflag [#allocation3], %s215
        %s217 = sand.u32 %s31, 1
        %s218 = smul.addr %s217, 64
        %s219 = scalar_lea.vmem [#allocation2], %s218
        // Predicated region
        $region37: #{cnn_lstm_forward.7} parent=35 // pred_check
          %p220 = pneg %p44
        $region38: #{cnn_lstm_forward.7} parent=35 // pred_check_branch
          %222 = sbr.rel (%p220) target = $region40
        $region39: #{cnn_lstm_forward.7} parent=35 // pred_region
          %223 = dma.done %s216, 1024
        $region40: #{cnn_lstm_forward.7} parent=35 // pred_fallthru
          _
        // Predicated region
        $region41: #{cnn_lstm_forward.7} parent=35 // pred_check
          %p224 = pneg %p65
        $region42: #{cnn_lstm_forward.7} parent=35 // pred_check_branch
          %226 = sbr.rel (%p224) target = $region44
        $region43: #{cnn_lstm_forward.7} parent=35 // pred_region
          %227 = dma.done [#allocation6], 192
        $region44: #{cnn_lstm_forward.7} parent=35 // pred_fallthru
          _
        // Predicated region
        $region45: #{cnn_lstm_forward.7} parent=35 // pred_check
          %p228 = pneg %p86
        $region46: #{cnn_lstm_forward.7} parent=35 // pred_check_branch
          %230 = sbr.rel (%p228) target = $region48
        $region47: #{cnn_lstm_forward.7} parent=35 // pred_region
          %231 = dma.done [#allocation6], 16
        $region48: #{cnn_lstm_forward.7} parent=35 // pred_fallthru
          _
        // Predicated region
        $region49: #{cnn_lstm_forward.7} parent=35 // pred_check
          %p232 = pneg %p107
        $region50: #{cnn_lstm_forward.7} parent=35 // pred_check_branch
          %234 = sbr.rel (%p232) target = $region52
        $region51: #{cnn_lstm_forward.7} parent=35 // pred_region
          %235 = dma.done [#allocation9], 16
        $region52: #{cnn_lstm_forward.7} parent=35 // pred_fallthru
          _
        %s236 = sand.u32 %s31, 1
        %s237 = scalar_lea.sflag [#allocation3], %s236
        %s238 = sand.u32 %s31, 1
        %s239 = smul.addr %s238, 64
        %s240 = scalar_lea.vmem [#allocation2], %s239
        %p241 = pneg %p44
        %p242 = pneg %p41
        %p243 = pneg %p65
        %p244 = pneg %p62
        %p245 = pneg %p86
        %p246 = pneg %p83
        %p247 = pneg %p107
        %p248 = pneg %p104
        %p249 = pneg %p133
        %p250 = pneg %p130
        %s251 = sand.u32 %s120, 1
        %s252 = scalar_lea.sflag [#allocation4], %s251
        %s253 = sand.u32 %s120, 1
        %s254 = smul.addr %s253, 32
        %s255 = scalar_lea.vmem [#allocation10], %s254
        %v257 = vld [vmem:[%s219] sm:$0xf]
        %v258 = vld [vmem:[%s219 + $0x4] sm:$0xf]
        %v259 = vld [vmem:[%s219 + $0x8] sm:$0xf]
        %v260 = vld [vmem:[%s219 + $0xc] sm:$0xf]
        %v261 = vld [vmem:[%s219 + $0x10] sm:$0xf]
        %v262 = vld [vmem:[%s219 + $0x14] sm:$0xf]
        %v263 = vld [vmem:[%s219 + $0x18] sm:$0xf]
        %v264 = vld [vmem:[%s219 + $0x1c] sm:$0xf]
        %v265 = vld [vmem:[%s219 + $0x20] sm:$0xf]
        %v266 = vld [vmem:[%s219 + $0x24] sm:$0xf]
        %v267 = vld [vmem:[%s219 + $0x28] sm:$0xf]
        %v268 = vld [vmem:[%s219 + $0x2c] sm:$0xf]
        %v269 = vld [vmem:[%s219 + $0x30] sm:$0xf]
        %v270 = vld [vmem:[%s219 + $0x34] sm:$0xf]
        %v271 = vld [vmem:[%s219 + $0x38] sm:$0xf]
        %v272 = vld [vmem:[%s219 + $0x3c] sm:$0xf]
        %v289 = vunpack.c.l.b16 %v257
        %v290 = vunpack.c.l.b16 %v258
        %v291 = vunpack.c.l.b16 %v259
        %v292 = vunpack.c.l.b16 %v260
        %v293 = vunpack.c.l.b16 %v261
        %v294 = vunpack.c.l.b16 %v262
        %v295 = vunpack.c.l.b16 %v263
        %v296 = vunpack.c.l.b16 %v264
        %v297 = vunpack.c.l.b16 %v265
        %v298 = vunpack.c.l.b16 %v266
        %v299 = vunpack.c.l.b16 %v267
        %v300 = vunpack.c.l.b16 %v268
        %v301 = vunpack.c.l.b16 %v269
        %v302 = vunpack.c.l.b16 %v270
        %v303 = vunpack.c.l.b16 %v271
        %v304 = vunpack.c.l.b16 %v272
        %v305 = vpack.c.b16 %v290, %v289
        %v306 = vpack.c.b16 %v292, %v291
        %v307 = vpack.c.b16 %v294, %v293
        %v308 = vpack.c.b16 %v296, %v295
        %v309 = vpack.c.b16 %v298, %v297
        %v310 = vpack.c.b16 %v300, %v299
        %v311 = vpack.c.b16 %v302, %v301
        %v312 = vpack.c.b16 %v304, %v303
        %v314 = vshrl.u32 %v305, 16
        %v316 = vrot.slane %v314, 7
        %v317 = vshll.u32 %v305, 16
        %v319 = vor.u32 %v316, %v317
        %v321 = vshrl.u32 %v306, 16
        %v323 = vrot.slane %v321, 7
        %v324 = vshll.u32 %v306, 16
        %v326 = vor.u32 %v323, %v324
        %v328 = vshrl.u32 %v307, 16
        %v330 = vrot.slane %v328, 7
        %v331 = vshll.u32 %v307, 16
        %v333 = vor.u32 %v330, %v331
        %v335 = vshrl.u32 %v308, 16
        %v337 = vrot.slane %v335, 7
        %v338 = vshll.u32 %v308, 16
        %v340 = vor.u32 %v337, %v338
        %v342 = vshrl.u32 %v309, 16
        %v344 = vrot.slane %v342, 7
        %v345 = vshll.u32 %v309, 16
        %v347 = vor.u32 %v344, %v345
        %v349 = vshrl.u32 %v310, 16
        %v351 = vrot.slane %v349, 7
        %v352 = vshll.u32 %v310, 16
        %v354 = vor.u32 %v351, %v352
        %v356 = vshrl.u32 %v311, 16
        %v358 = vrot.slane %v356, 7
        %v359 = vshll.u32 %v311, 16
        %v361 = vor.u32 %v358, %v359
        %v363 = vshrl.u32 %v312, 16
        %v365 = vrot.slane %v363, 7
        %v366 = vshll.u32 %v312, 16
        %v368 = vor.u32 %v365, %v366
        %vm385 = vcmask 1040384
        %vm386 = vsmask.f32 256
        %vm387 = vmand %vm385, %vm386
        %v388 = vsel %vm387, 0, %v319
        %v389 = vsel %vm387, 0, %v326
        %v390 = vsel %vm387, 0, %v333
        %v391 = vsel %vm387, 0, %v340
        %v392 = vsel %vm387, 0, %v347
        %v393 = vsel %vm387, 0, %v354
        %v394 = vsel %vm387, 0, %v361
        %v395 = vsel %vm387, 0, %v368
        %v396 = vsel %vm387, %v316, 0
        %v397 = vsel %vm387, %v323, 0
        %v398 = vsel %vm387, %v330, 0
        %v399 = vsel %vm387, %v337, 0
        %v400 = vsel %vm387, %v344, 0
        %v401 = vsel %vm387, %v351, 0
        %v402 = vsel %vm387, %v358, 0
        %v403 = vsel %vm387, %v365, 0
        %vm404 = vsmask.f32 7424
        %v406 = vshrl.u32 0, 16
        %v408 = vshll.u32 0, 16
        %v410 = vrot.slane %v408, 1
        %v411 = vor.u32 %v406, %v410
        %v412 = vsel %vm404, %v411, %v410
        %v414 = vshrl.u32 %v388, 16
        %v416 = vshll.u32 %v388, 16
        %v418 = vrot.slane %v416, 1
        %v419 = vor.u32 %v414, %v418
        %v421 = vshll.u32 %v396, 16
        %v423 = vrot.slane %v421, 1
        %v424 = vsel %vm404, %v419, %v423
        %v426 = vshrl.u32 %v389, 16
        %v428 = vshll.u32 %v389, 16
        %v430 = vrot.slane %v428, 1
        %v431 = vor.u32 %v426, %v430
        %v433 = vshll.u32 %v397, 16
        %v435 = vrot.slane %v433, 1
        %v436 = vsel %vm404, %v431, %v435
        %v438 = vshrl.u32 %v390, 16
        %v440 = vshll.u32 %v390, 16
        %v442 = vrot.slane %v440, 1
        %v443 = vor.u32 %v438, %v442
        %v445 = vshll.u32 %v398, 16
        %v447 = vrot.slane %v445, 1
        %v448 = vsel %vm404, %v443, %v447
        %v450 = vshrl.u32 %v391, 16
        %v452 = vshll.u32 %v391, 16
        %v454 = vrot.slane %v452, 1
        %v455 = vor.u32 %v450, %v454
        %v457 = vshll.u32 %v399, 16
        %v459 = vrot.slane %v457, 1
        %v460 = vsel %vm404, %v455, %v459
        %v462 = vshrl.u32 %v392, 16
        %v464 = vshll.u32 %v392, 16
        %v466 = vrot.slane %v464, 1
        %v467 = vor.u32 %v462, %v466
        %v469 = vshll.u32 %v400, 16
        %v471 = vrot.slane %v469, 1
        %v472 = vsel %vm404, %v467, %v471
        %v474 = vshrl.u32 %v393, 16
        %v476 = vshll.u32 %v393, 16
        %v478 = vrot.slane %v476, 1
        %v479 = vor.u32 %v474, %v478
        %v481 = vshll.u32 %v401, 16
        %v483 = vrot.slane %v481, 1
        %v484 = vsel %vm404, %v479, %v483
        %v486 = vshrl.u32 %v394, 16
        %v488 = vshll.u32 %v394, 16
        %v490 = vrot.slane %v488, 1
        %v491 = vor.u32 %v486, %v490
        %v493 = vshll.u32 %v402, 16
        %v495 = vrot.slane %v493, 1
        %v496 = vsel %vm404, %v491, %v495
        %497 = vrot.lane.b32.xlu0 %v412, 2
        %v498 = vpop.permute.xlu0 %497
        %499 = vrot.lane.b32.xlu0 %v424, 2
        %v500 = vpop.permute.xlu0 %499
        %501 = vrot.lane.b32.xlu0 %v436, 2
        %v502 = vpop.permute.xlu0 %501
        %503 = vrot.lane.b32.xlu0 %v448, 2
        %v504 = vpop.permute.xlu0 %503
        %505 = vrot.lane.b32.xlu0 %v460, 2
        %v506 = vpop.permute.xlu0 %505
        %507 = vrot.lane.b32.xlu0 %v472, 2
        %v508 = vpop.permute.xlu0 %507
        %509 = vrot.lane.b32.xlu0 %v484, 2
        %v510 = vpop.permute.xlu0 %509
        %511 = vrot.lane.b32.xlu0 %v496, 2
        %v512 = vpop.permute.xlu0 %511
        %vm528 = vcmask 1046528
        %v529 = vrot.slane 0, 1
        %v530 = vsel %vm528, %v529, %v529
        %v531 = vrot.slane %v388, 1
        %v532 = vrot.slane %v396, 1
        %v533 = vsel %vm528, %v531, %v532
        %v534 = vrot.slane %v389, 1
        %v535 = vrot.slane %v397, 1
        %v536 = vsel %vm528, %v534, %v535
        %v537 = vrot.slane %v390, 1
        %v538 = vrot.slane %v398, 1
        %v539 = vsel %vm528, %v537, %v538
        %v540 = vrot.slane %v391, 1
        %v541 = vrot.slane %v399, 1
        %v542 = vsel %vm528, %v540, %v541
        %v543 = vrot.slane %v392, 1
        %v544 = vrot.slane %v400, 1
        %v545 = vsel %vm528, %v543, %v544
        %v546 = vrot.slane %v393, 1
        %v547 = vrot.slane %v401, 1
        %v548 = vsel %vm528, %v546, %v547
        %v549 = vrot.slane %v394, 1
        %v550 = vrot.slane %v402, 1
        %v551 = vsel %vm528, %v549, %v550
        %552 = vrot.lane.b32.xlu0 %v530, 4
        %v553 = vpop.permute.xlu0 %552
        %554 = vrot.lane.b32.xlu0 %v533, 4
        %v555 = vpop.permute.xlu0 %554
        %556 = vrot.lane.b32.xlu0 %v536, 4
        %v557 = vpop.permute.xlu0 %556
        %558 = vrot.lane.b32.xlu0 %v539, 4
        %v559 = vpop.permute.xlu0 %558
        %560 = vrot.lane.b32.xlu0 %v542, 4
        %v561 = vpop.permute.xlu0 %560
        %562 = vrot.lane.b32.xlu0 %v545, 4
        %v563 = vpop.permute.xlu0 %562
        %564 = vrot.lane.b32.xlu0 %v548, 4
        %v565 = vpop.permute.xlu0 %564
        %566 = vrot.lane.b32.xlu0 %v551, 4
        %v567 = vpop.permute.xlu0 %566
        %vm568 = vcmask 15360
        %v570 = vsel %vm568, 0, %v498
        %v572 = vsel %vm568, %v388, %v500
        %v574 = vsel %vm568, %v389, %v502
        %v576 = vsel %vm568, %v390, %v504
        %v578 = vsel %vm568, %v391, %v506
        %v580 = vsel %vm568, %v392, %v508
        %v582 = vsel %vm568, %v393, %v510
        %v584 = vsel %vm568, %v394, %v512
        %vm585 = vcmask 31744
        %v587 = vsel %vm585, %v570, %v553
        %v589 = vsel %vm585, %v572, %v555
        %v591 = vsel %vm585, %v574, %v557
        %v593 = vsel %vm585, %v576, %v559
        %v595 = vsel %vm585, %v578, %v561
        %v597 = vsel %vm585, %v580, %v563
        %v599 = vsel %vm585, %v582, %v565
        %v601 = vsel %vm585, %v584, %v567
        %v602 = vld [vmem:[#allocation5] sm:$0x7]
        %v604 = vshrl.u32 %v395, 16
        %v606 = vshll.u32 %v395, 16
        %v608 = vrot.slane %v606, 1
        %v609 = vor.u32 %v604, %v608
        %v611 = vshll.u32 %v403, 16
        %v613 = vrot.slane %v611, 1
        %v614 = vsel %vm404, %v609, %v613
        %615 = vrot.lane.b32.xlu0 %v614, 2
        %v616 = vpop.permute.xlu0 %615
        %v619 = vrot.slane %v395, 1
        %v620 = vrot.slane %v403, 1
        %v621 = vsel %vm528, %v619, %v620
        %622 = vrot.lane.b32.xlu0 %v621, 4
        %v623 = vpop.permute.xlu0 %622
        %v625 = vsel %vm568, %v395, %v616
        %v627 = vsel %vm585, %v625, %v623
        %v628 = vld [vmem:[#allocation5] sm:$0x8]
        %v629 = vld [vmem:[#allocation5 + $0x4] sm:$0x3]
        %v632 = vunpack.c.l.b16 %v628
        %v633 = vunpack.c.l.b16 %v629
        %v634 = vpack.c.b16 %v633, %v632
        %v635 = vrot.slane %v634, 3
        %vm636 = vcmask 48128
        %v637 = vsel %vm636, %v589, 0
        %v639 = vsel %vm636, %v591, 0
        %v641 = vsel %vm636, %v593, 0
        %v643 = vsel %vm636, %v595, 0
        %v645 = vsel %vm636, %v597, 0
        %v647 = vsel %vm636, %v599, 0
        %v649 = vsel %vm636, %v601, 0
        %v651 = vsel %vm636, %v627, 0
        %vm653 = vcmask 1042432
        %v655 = vsel %vm653, %v635, 0
        %657 = vmatprep.subr.bf16.mxu0 0
        %658 = vmatpush1.bf16.msra.mxu0 %v655
        %659 = vmatprep.subr.bf16.mxu0 0
        %660 = vmatpush1.bf16.msra.mxu0 0
        %661 = vmatprep.subr.bf16.mxu0 0
        %662 = vmatpush1.bf16.msra.mxu0 0
        %663 = vmatprep.subr.bf16.mxu0 0
        %664 = vmatpush1.bf16.msra.mxu0 0
        %665 = vmatprep.subr.bf16.mxu0 0
        %666 = vmatpush1.bf16.msra.mxu0 0
        %667 = vmatprep.subr.bf16.mxu0 0
        %668 = vmatpush1.bf16.msra.mxu0 0
        %669 = vmatprep.subr.bf16.mxu0 0
        %670 = vmatpush1.bf16.msra.mxu0 0
        %671 = vmatprep.subr.bf16.mxu0 0
        %672 = vmatpush1.bf16.msra.mxu0 0
        %673 = vmatprep.subr.bf16.mxu0 0
        %674 = vmatpush1.bf16.msra.mxu0 0
        %675 = vmatprep.subr.bf16.mxu0 0
        %676 = vmatpush1.bf16.msra.mxu0 0
        %677 = vmatprep.subr.bf16.mxu0 0
        %678 = vmatpush1.bf16.msra.mxu0 0
        %679 = vmatprep.subr.bf16.mxu0 0
        %680 = vmatpush1.bf16.msra.mxu0 0
        %681 = vmatprep.subr.bf16.mxu0 0
        %682 = vmatpush1.bf16.msra.mxu0 0
        %683 = vmatprep.subr.bf16.mxu0 0
        %684 = vmatpush1.bf16.msra.mxu0 0
        %685 = vmatprep.subr.bf16.mxu0 0
        %686 = vmatpush1.bf16.msra.mxu0 0
        %687 = vmatprep.subr.bf16.mxu0 0
        %688 = vmatpush1.bf16.msra.mxu0 0
        %689 = vmatprep.mubr.bf16.mxu0 0
        %690 = vmatmul.mubr.bf16.gmra.mrb[0].mxu0 %v637
        %v691 = vpop.f32.mrb[0].mxu0
        %v692 = vadd.f32 0.0, %v691
        %v693 = vpop.f32.mrb[0].mxu0
        %v694 = vpop.f32.mrb[0].mxu0
        %v695 = vadd.f32 0.0, %v694
        %v696 = vpop.f32.mrb[0].mxu0
        %697 = vmatprep.mubr.bf16.mxu0 0
        %698 = vmatmul.mubr.bf16.gmra.mrb[0].mxu0 %v639
        %v699 = vpop.f32.mrb[0].mxu0
        %v700 = vadd.f32 0.0, %v699
        %v701 = vpop.f32.mrb[0].mxu0
        %v702 = vpop.f32.mrb[0].mxu0
        %v703 = vadd.f32 0.0, %v702
        %v704 = vpop.f32.mrb[0].mxu0
        %705 = vmatprep.mubr.bf16.mxu0 0
        %706 = vmatmul.mubr.bf16.gmra.mrb[0].mxu0 %v641
        %v707 = vpop.f32.mrb[0].mxu0
        %v708 = vadd.f32 0.0, %v707
        %v709 = vpop.f32.mrb[0].mxu0
        %v710 = vpop.f32.mrb[0].mxu0
        %v711 = vadd.f32 0.0, %v710
        %v712 = vpop.f32.mrb[0].mxu0
        %713 = vmatprep.mubr.bf16.mxu0 0
        %714 = vmatmul.mubr.bf16.gmra.mrb[0].mxu0 %v643
        %v715 = vpop.f32.mrb[0].mxu0
        %v716 = vadd.f32 0.0, %v715
        %v717 = vpop.f32.mrb[0].mxu0
        %v718 = vpop.f32.mrb[0].mxu0
        %v719 = vadd.f32 0.0, %v718
        %v720 = vpop.f32.mrb[0].mxu0
        %721 = vmatprep.mubr.bf16.mxu0 0
        %722 = vmatmul.mubr.bf16.gmra.mrb[0].mxu0 %v645
        %v723 = vpop.f32.mrb[0].mxu0
        %v724 = vadd.f32 0.0, %v723
        %v725 = vpop.f32.mrb[0].mxu0
        %v726 = vpop.f32.mrb[0].mxu0
        %v727 = vadd.f32 0.0, %v726
        %v728 = vpop.f32.mrb[0].mxu0
        %729 = vmatprep.mubr.bf16.mxu0 0
        %730 = vmatmul.mubr.bf16.gmra.mrb[0].mxu0 %v647
        %v731 = vpop.f32.mrb[0].mxu0
        %v732 = vadd.f32 0.0, %v731
        %v733 = vpop.f32.mrb[0].mxu0
        %v734 = vpop.f32.mrb[0].mxu0
        %v735 = vadd.f32 0.0, %v734
        %v736 = vpop.f32.mrb[0].mxu0
        %737 = vmatprep.mubr.bf16.mxu0 0
        %738 = vmatmul.mubr.bf16.gmra.mrb[0].mxu0 %v649
        %v739 = vpop.f32.mrb[0].mxu0
        %v740 = vadd.f32 0.0, %v739
        %v741 = vpop.f32.mrb[0].mxu0
        %v742 = vpop.f32.mrb[0].mxu0
        %v743 = vadd.f32 0.0, %v742
        %v744 = vpop.f32.mrb[0].mxu0
        %745 = vmatprep.mubr.bf16.mxu0 0
        %746 = vmatmul.mubr.bf16.gmra.mrb[0].mxu0 %v651
        %v747 = vpop.f32.mrb[0].mxu0
        %v748 = vadd.f32 0.0, %v747
        %v749 = vpop.f32.mrb[0].mxu0
        %v750 = vpop.f32.mrb[0].mxu0
        %v751 = vadd.f32 0.0, %v750
        %v752 = vpop.f32.mrb[0].mxu0
        %753 = vdwg.mxu0
        %v754 = vsel %vm636, %v587, 0
        %v757 = vsel %vm653, %v602, 0
        %759 = vmatprep.subr.bf16.mxu0 0
        %760 = vmatpush1.bf16.msra.mxu0 %v757
        %761 = vmatprep.subr.bf16.mxu0 0
        %762 = vmatpush1.bf16.msra.mxu0 0
        %763 = vmatprep.subr.bf16.mxu0 0
        %764 = vmatpush1.bf16.msra.mxu0 0
        %765 = vmatprep.subr.bf16.mxu0 0
        %766 = vmatpush1.bf16.msra.mxu0 0
        %767 = vmatprep.subr.bf16.mxu0 0
        %768 = vmatpush1.bf16.msra.mxu0 0
        %769 = vmatprep.subr.bf16.mxu0 0
        %770 = vmatpush1.bf16.msra.mxu0 0
        %771 = vmatprep.subr.bf16.mxu0 0
        %772 = vmatpush1.bf16.msra.mxu0 0
        %773 = vmatprep.subr.bf16.mxu0 0
        %774 = vmatpush1.bf16.msra.mxu0 0
        %775 = vmatprep.subr.bf16.mxu0 0
        %776 = vmatpush1.bf16.msra.mxu0 0
        %777 = vmatprep.subr.bf16.mxu0 0
        %778 = vmatpush1.bf16.msra.mxu0 0
        %779 = vmatprep.subr.bf16.mxu0 0
        %780 = vmatpush1.bf16.msra.mxu0 0
        %781 = vmatprep.subr.bf16.mxu0 0
        %782 = vmatpush1.bf16.msra.mxu0 0
        %783 = vmatprep.subr.bf16.mxu0 0
        %784 = vmatpush1.bf16.msra.mxu0 0
        %785 = vmatprep.subr.bf16.mxu0 0
        %786 = vmatpush1.bf16.msra.mxu0 0
        %787 = vmatprep.subr.bf16.mxu0 0
        %788 = vmatpush1.bf16.msra.mxu0 0
        %789 = vmatprep.subr.bf16.mxu0 0
        %790 = vmatpush1.bf16.msra.mxu0 0
        %791 = vmatprep.mubr.bf16.mxu0 0
        %792 = vmatmul.mubr.bf16.gmra.mrb[0].mxu0 %v754
        %v793 = vpop.f32.mrb[0].mxu0
        %v794 = vadd.f32 %v692, %v793
        %v795 = vpop.f32.mrb[0].mxu0
        %v796 = vpop.f32.mrb[0].mxu0
        %v797 = vadd.f32 %v695, %v796
        %v798 = vpop.f32.mrb[0].mxu0
        %799 = vmatprep.mubr.bf16.mxu0 0
        %800 = vmatmul.mubr.bf16.gmra.mrb[0].mxu0 %v637
        %v801 = vpop.f32.mrb[0].mxu0
        %v802 = vadd.f32 %v700, %v801
        %v803 = vpop.f32.mrb[0].mxu0
        %v804 = vpop.f32.mrb[0].mxu0
        %v805 = vadd.f32 %v703, %v804
        %v806 = vpop.f32.mrb[0].mxu0
        %807 = vmatprep.mubr.bf16.mxu0 0
        %808 = vmatmul.mubr.bf16.gmra.mrb[0].mxu0 %v639
        %v809 = vpop.f32.mrb[0].mxu0
        %v810 = vadd.f32 %v708, %v809
        %v811 = vpop.f32.mrb[0].mxu0
        %v812 = vpop.f32.mrb[0].mxu0
        %v813 = vadd.f32 %v711, %v812
        %v814 = vpop.f32.mrb[0].mxu0
        %815 = vmatprep.mubr.bf16.mxu0 0
        %816 = vmatmul.mubr.bf16.gmra.mrb[0].mxu0 %v641
        %v817 = vpop.f32.mrb[0].mxu0
        %v818 = vadd.f32 %v716, %v817
        %v819 = vpop.f32.mrb[0].mxu0
        %v820 = vpop.f32.mrb[0].mxu0
        %v821 = vadd.f32 %v719, %v820
        %v822 = vpop.f32.mrb[0].mxu0
        %823 = vmatprep.mubr.bf16.mxu0 0
        %824 = vmatmul.mubr.bf16.gmra.mrb[0].mxu0 %v643
        %v825 = vpop.f32.mrb[0].mxu0
        %v826 = vadd.f32 %v724, %v825
        %v827 = vpop.f32.mrb[0].mxu0
        %v828 = vpop.f32.mrb[0].mxu0
        %v829 = vadd.f32 %v727, %v828
        %v830 = vpop.f32.mrb[0].mxu0
        %831 = vmatprep.mubr.bf16.mxu0 0
        %832 = vmatmul.mubr.bf16.gmra.mrb[0].mxu0 %v645
        %v833 = vpop.f32.mrb[0].mxu0
        %v834 = vadd.f32 %v732, %v833
        %v835 = vpop.f32.mrb[0].mxu0
        %v836 = vpop.f32.mrb[0].mxu0
        %v837 = vadd.f32 %v735, %v836
        %v838 = vpop.f32.mrb[0].mxu0
        %839 = vmatprep.mubr.bf16.mxu0 0
        %840 = vmatmul.mubr.bf16.gmra.mrb[0].mxu0 %v647
        %v841 = vpop.f32.mrb[0].mxu0
        %v842 = vadd.f32 %v740, %v841
        %v843 = vpop.f32.mrb[0].mxu0
        %v844 = vpop.f32.mrb[0].mxu0
        %v845 = vadd.f32 %v743, %v844
        %v846 = vpop.f32.mrb[0].mxu0
        %847 = vmatprep.mubr.bf16.mxu0 0
        %848 = vmatmul.mubr.bf16.gmra.mrb[0].mxu0 %v649
        %v849 = vpop.f32.mrb[0].mxu0
        %v850 = vadd.f32 %v748, %v849
        %v851 = vpop.f32.mrb[0].mxu0
        %v852 = vpop.f32.mrb[0].mxu0
        %v853 = vadd.f32 %v751, %v852
        %v854 = vpop.f32.mrb[0].mxu0
        %855 = vdwg.mxu0
        %v856 = vld [vmem:[#allocation5 + $0x4] sm:$0xc]
        %v857 = vld [vmem:[#allocation5 + $0x8] sm:$0x1]
        %v860 = vunpack.c.l.b16 %v856
        %v861 = vunpack.c.l.b16 %v857
        %v862 = vpack.c.b16 %v861, %v860
        %v863 = vrot.slane %v862, 2
        %v865 = vsel %vm653, %v863, 0
        %867 = vmatprep.subr.bf16.mxu0 0
        %868 = vmatpush1.bf16.msra.mxu0 %v865
        %869 = vmatprep.subr.bf16.mxu0 0
        %870 = vmatpush1.bf16.msra.mxu0 0
        %871 = vmatprep.subr.bf16.mxu0 0
        %872 = vmatpush1.bf16.msra.mxu0 0
        %873 = vmatprep.subr.bf16.mxu0 0
        %874 = vmatpush1.bf16.msra.mxu0 0
        %875 = vmatprep.subr.bf16.mxu0 0
        %876 = vmatpush1.bf16.msra.mxu0 0
        %877 = vmatprep.subr.bf16.mxu0 0
        %878 = vmatpush1.bf16.msra.mxu0 0
        %879 = vmatprep.subr.bf16.mxu0 0
        %880 = vmatpush1.bf16.msra.mxu0 0
        %881 = vmatprep.subr.bf16.mxu0 0
        %882 = vmatpush1.bf16.msra.mxu0 0
        %883 = vmatprep.subr.bf16.mxu0 0
        %884 = vmatpush1.bf16.msra.mxu0 0
        %885 = vmatprep.subr.bf16.mxu0 0
        %886 = vmatpush1.bf16.msra.mxu0 0
        %887 = vmatprep.subr.bf16.mxu0 0
        %888 = vmatpush1.bf16.msra.mxu0 0
        %889 = vmatprep.subr.bf16.mxu0 0
        %890 = vmatpush1.bf16.msra.mxu0 0
        %891 = vmatprep.subr.bf16.mxu0 0
        %892 = vmatpush1.bf16.msra.mxu0 0
        %893 = vmatprep.subr.bf16.mxu0 0
        %894 = vmatpush1.bf16.msra.mxu0 0
        %895 = vmatprep.subr.bf16.mxu0 0
        %896 = vmatpush1.bf16.msra.mxu0 0
        %897 = vmatprep.subr.bf16.mxu0 0
        %898 = vmatpush1.bf16.msra.mxu0 0
        %899 = vmatprep.mubr.bf16.mxu0 0
        %900 = vmatmul.mubr.bf16.gmra.mrb[0].mxu0 %v639
        %v901 = vpop.f32.mrb[0].mxu0
        %v902 = vadd.f32 0.0, %v901
        %v903 = vpop.f32.mrb[0].mxu0
        %v904 = vpop.f32.mrb[0].mxu0
        %v905 = vadd.f32 0.0, %v904
        %v906 = vpop.f32.mrb[0].mxu0
        %907 = vmatprep.mubr.bf16.mxu0 0
        %908 = vmatmul.mubr.bf16.gmra.mrb[0].mxu0 %v641
        %v909 = vpop.f32.mrb[0].mxu0
        %v910 = vadd.f32 0.0, %v909
        %v911 = vpop.f32.mrb[0].mxu0
        %v912 = vpop.f32.mrb[0].mxu0
        %v913 = vadd.f32 0.0, %v912
        %v914 = vpop.f32.mrb[0].mxu0
        %915 = vmatprep.mubr.bf16.mxu0 0
        %916 = vmatmul.mubr.bf16.gmra.mrb[0].mxu0 %v643
        %v917 = vpop.f32.mrb[0].mxu0
        %v918 = vadd.f32 0.0, %v917
        %v919 = vpop.f32.mrb[0].mxu0
        %v920 = vpop.f32.mrb[0].mxu0
        %v921 = vadd.f32 0.0, %v920
        %v922 = vpop.f32.mrb[0].mxu0
        %923 = vmatprep.mubr.bf16.mxu0 0
        %924 = vmatmul.mubr.bf16.gmra.mrb[0].mxu0 %v645
        %v925 = vpop.f32.mrb[0].mxu0
        %v926 = vadd.f32 0.0, %v925
        %v927 = vpop.f32.mrb[0].mxu0
        %v928 = vpop.f32.mrb[0].mxu0
        %v929 = vadd.f32 0.0, %v928
        %v930 = vpop.f32.mrb[0].mxu0
        %931 = vmatprep.mubr.bf16.mxu0 0
        %932 = vmatmul.mubr.bf16.gmra.mrb[0].mxu0 %v647
        %v933 = vpop.f32.mrb[0].mxu0
        %v934 = vadd.f32 0.0, %v933
        %v935 = vpop.f32.mrb[0].mxu0
        %v936 = vpop.f32.mrb[0].mxu0
        %v937 = vadd.f32 0.0, %v936
        %v938 = vpop.f32.mrb[0].mxu0
        %939 = vmatprep.mubr.bf16.mxu0 0
        %940 = vmatmul.mubr.bf16.gmra.mrb[0].mxu0 %v649
        %v941 = vpop.f32.mrb[0].mxu0
        %v942 = vadd.f32 0.0, %v941
        %v943 = vpop.f32.mrb[0].mxu0
        %v944 = vpop.f32.mrb[0].mxu0
        %v945 = vadd.f32 0.0, %v944
        %v946 = vpop.f32.mrb[0].mxu0
        %947 = vmatprep.mubr.bf16.mxu0 0
        %948 = vmatmul.mubr.bf16.gmra.mrb[0].mxu0 %v651
        %v949 = vpop.f32.mrb[0].mxu0
        %v950 = vadd.f32 0.0, %v949
        %v951 = vpop.f32.mrb[0].mxu0
        %v952 = vpop.f32.mrb[0].mxu0
        %v953 = vadd.f32 0.0, %v952
        %v954 = vpop.f32.mrb[0].mxu0
        %955 = vmatprep.mubr.bf16.mxu0 0
        %956 = vmatmul.mubr.bf16.gmra.mrb[0].mxu0 %v754
        %v957 = vpop.f32.mrb[0].mxu0
        %v958 = vadd.f32 0.0, %v957
        %v959 = vpop.f32.mrb[0].mxu0
        %v960 = vpop.f32.mrb[0].mxu0
        %v961 = vadd.f32 0.0, %v960
        %v962 = vpop.f32.mrb[0].mxu0
        %963 = vdwg.mxu0
        %v964 = vadd.f32 %v794, %v902
        %v965 = vadd.f32 %v797, %v905
        %v966 = vadd.f32 %v802, %v910
        %v967 = vadd.f32 %v805, %v913
        %v968 = vadd.f32 %v810, %v918
        %v969 = vadd.f32 %v813, %v921
        %v970 = vadd.f32 %v818, %v926
        %v971 = vadd.f32 %v821, %v929
        %v972 = vadd.f32 %v826, %v934
        %v973 = vadd.f32 %v829, %v937
        %v974 = vadd.f32 %v834, %v942
        %v975 = vadd.f32 %v837, %v945
        %v976 = vadd.f32 %v842, %v950
        %v977 = vadd.f32 %v845, %v953
        %v978 = vadd.f32 %v850, %v958
        %v979 = vadd.f32 %v853, %v961
        %v980 = vld [vmem:[#allocation7] sm:$0x1]
        %v982 = vlaneseq
        %v983 = vshrl.u32 %v982, 7
        %v984 = vsub.s32 0, %v983
        %v985 = vrot.slane %v980, %v984
        %v987 = vmul.f32 %v964, %v985
        %v988 = vmul.f32 %v965, %v985
        %v989 = vmul.f32 %v966, %v985
        %v990 = vmul.f32 %v967, %v985
        %v991 = vmul.f32 %v968, %v985
        %v992 = vmul.f32 %v969, %v985
        %v993 = vmul.f32 %v970, %v985
        %v994 = vmul.f32 %v971, %v985
        %v995 = vmul.f32 %v972, %v985
        %v996 = vmul.f32 %v973, %v985
        %v997 = vmul.f32 %v974, %v985
        %v998 = vmul.f32 %v975, %v985
        %v999 = vmul.f32 %v976, %v985
        %v1000 = vmul.f32 %v977, %v985
        %v1001 = vmul.f32 %v978, %v985
        %v1002 = vmul.f32 %v979, %v985
        %v1003 = vld [vmem:[#allocation8] sm:$0x1]
        %v1005 = vlaneseq
        %v1006 = vshrl.u32 %v1005, 7
        %v1007 = vsub.s32 0, %v1006
        %v1008 = vrot.slane %v1003, %v1007
        %v1010 = vadd.f32 %v987, %v1008
        %v1011 = vadd.f32 %v988, %v1008
        %v1012 = vadd.f32 %v989, %v1008
        %v1013 = vadd.f32 %v990, %v1008
        %v1014 = vadd.f32 %v991, %v1008
        %v1015 = vadd.f32 %v992, %v1008
        %v1016 = vadd.f32 %v993, %v1008
        %v1017 = vadd.f32 %v994, %v1008
        %v1018 = vadd.f32 %v995, %v1008
        %v1019 = vadd.f32 %v996, %v1008
        %v1020 = vadd.f32 %v997, %v1008
        %v1021 = vadd.f32 %v998, %v1008
        %v1022 = vadd.f32 %v999, %v1008
        %v1023 = vadd.f32 %v1000, %v1008
        %v1024 = vadd.f32 %v1001, %v1008
        %v1025 = vadd.f32 %v1002, %v1008
        %v1026 = vmax.f32 %v1010, 0.0
        %v1027 = vmax.f32 %v1011, 0.0
        %v1028 = vmax.f32 %v1012, 0.0
        %v1029 = vmax.f32 %v1013, 0.0
        %v1030 = vmax.f32 %v1014, 0.0
        %v1031 = vmax.f32 %v1015, 0.0
        %v1032 = vmax.f32 %v1016, 0.0
        %v1033 = vmax.f32 %v1017, 0.0
        %v1034 = vmax.f32 %v1018, 0.0
        %v1035 = vmax.f32 %v1019, 0.0
        %v1036 = vmax.f32 %v1020, 0.0
        %v1037 = vmax.f32 %v1021, 0.0
        %v1038 = vmax.f32 %v1022, 0.0
        %v1039 = vmax.f32 %v1023, 0.0
        %v1040 = vmax.f32 %v1024, 0.0
        %v1041 = vmax.f32 %v1025, 0.0
        %v1058 = vcombine.high %v1026, %v1026
        %v1060 = vunpack.c.l.s4 1983009808
        %v1061 = vunpack.c.0.s8 %v1060
        %v1062 = vlaneseq
        %v1063 = vshrl.u32 %v1062, 7
        %v1064 = vsub.s32 %v1061, %v1063
        %v1065 = vrot.slane %v1026, %v1064
        %v1067 = vunpack.c.l.s4 1983009808
        %v1068 = vunpack.c.0.s8 %v1067
        %v1069 = vlaneseq
        %v1070 = vshrl.u32 %v1069, 7
        %v1071 = vsub.s32 %v1068, %v1070
        %v1072 = vrot.slane %v1058, %v1071
        %v1073 = vcombine.high %v1065, %v1065
        %v1074 = vcombine.high %v1072, %v1072
        %v1075 = vcombine.high %v1027, %v1027
        %v1077 = vunpack.c.l.s4 1983009808
        %v1078 = vunpack.c.0.s8 %v1077
        %v1079 = vlaneseq
        %v1080 = vshrl.u32 %v1079, 7
        %v1081 = vsub.s32 %v1078, %v1080
        %v1082 = vrot.slane %v1027, %v1081
        %v1084 = vunpack.c.l.s4 1983009808
        %v1085 = vunpack.c.0.s8 %v1084
        %v1086 = vlaneseq
        %v1087 = vshrl.u32 %v1086, 7
        %v1088 = vsub.s32 %v1085, %v1087
        %v1089 = vrot.slane %v1075, %v1088
        %v1090 = vcombine.high %v1082, %v1082
        %v1091 = vcombine.high %v1089, %v1089
        %v1092 = vcombine.high %v1028, %v1028
        %v1094 = vunpack.c.l.s4 1983009808
        %v1095 = vunpack.c.0.s8 %v1094
        %v1096 = vlaneseq
        %v1097 = vshrl.u32 %v1096, 7
        %v1098 = vsub.s32 %v1095, %v1097
        %v1099 = vrot.slane %v1028, %v1098
        %v1101 = vunpack.c.l.s4 1983009808
        %v1102 = vunpack.c.0.s8 %v1101
        %v1103 = vlaneseq
        %v1104 = vshrl.u32 %v1103, 7
        %v1105 = vsub.s32 %v1102, %v1104
        %v1106 = vrot.slane %v1092, %v1105
        %v1107 = vcombine.high %v1099, %v1099
        %v1108 = vcombine.high %v1106, %v1106
        %v1109 = vcombine.high %v1029, %v1029
        %v1111 = vunpack.c.l.s4 1983009808
        %v1112 = vunpack.c.0.s8 %v1111
        %v1113 = vlaneseq
        %v1114 = vshrl.u32 %v1113, 7
        %v1115 = vsub.s32 %v1112, %v1114
        %v1116 = vrot.slane %v1029, %v1115
        %v1118 = vunpack.c.l.s4 1983009808
        %v1119 = vunpack.c.0.s8 %v1118
        %v1120 = vlaneseq
        %v1121 = vshrl.u32 %v1120, 7
        %v1122 = vsub.s32 %v1119, %v1121
        %v1123 = vrot.slane %v1109, %v1122
        %v1124 = vcombine.high %v1116, %v1116
        %v1125 = vcombine.high %v1123, %v1123
        %v1126 = vcombine.high %v1030, %v1030
        %v1128 = vunpack.c.l.s4 1983009808
        %v1129 = vunpack.c.0.s8 %v1128
        %v1130 = vlaneseq
        %v1131 = vshrl.u32 %v1130, 7
        %v1132 = vsub.s32 %v1129, %v1131
        %v1133 = vrot.slane %v1030, %v1132
        %v1135 = vunpack.c.l.s4 1983009808
        %v1136 = vunpack.c.0.s8 %v1135
        %v1137 = vlaneseq
        %v1138 = vshrl.u32 %v1137, 7
        %v1139 = vsub.s32 %v1136, %v1138
        %v1140 = vrot.slane %v1126, %v1139
        %v1141 = vcombine.high %v1133, %v1133
        %v1142 = vcombine.high %v1140, %v1140
        %v1143 = vcombine.high %v1031, %v1031
        %v1145 = vunpack.c.l.s4 1983009808
        %v1146 = vunpack.c.0.s8 %v1145
        %v1147 = vlaneseq
        %v1148 = vshrl.u32 %v1147, 7
        %v1149 = vsub.s32 %v1146, %v1148
        %v1150 = vrot.slane %v1031, %v1149
        %v1152 = vunpack.c.l.s4 1983009808
        %v1153 = vunpack.c.0.s8 %v1152
        %v1154 = vlaneseq
        %v1155 = vshrl.u32 %v1154, 7
        %v1156 = vsub.s32 %v1153, %v1155
        %v1157 = vrot.slane %v1143, %v1156
        %v1158 = vcombine.high %v1150, %v1150
        %v1159 = vcombine.high %v1157, %v1157
        %v1160 = vcombine.high %v1032, %v1032
        %v1162 = vunpack.c.l.s4 1983009808
        %v1163 = vunpack.c.0.s8 %v1162
        %v1164 = vlaneseq
        %v1165 = vshrl.u32 %v1164, 7
        %v1166 = vsub.s32 %v1163, %v1165
        %v1167 = vrot.slane %v1032, %v1166
        %v1169 = vunpack.c.l.s4 1983009808
        %v1170 = vunpack.c.0.s8 %v1169
        %v1171 = vlaneseq
        %v1172 = vshrl.u32 %v1171, 7
        %v1173 = vsub.s32 %v1170, %v1172
        %v1174 = vrot.slane %v1160, %v1173
        %v1175 = vcombine.high %v1167, %v1167
        %v1176 = vcombine.high %v1174, %v1174
        %v1177 = vcombine.high %v1033, %v1033
        %v1179 = vunpack.c.l.s4 1983009808
        %v1180 = vunpack.c.0.s8 %v1179
        %v1181 = vlaneseq
        %v1182 = vshrl.u32 %v1181, 7
        %v1183 = vsub.s32 %v1180, %v1182
        %v1184 = vrot.slane %v1033, %v1183
        %v1186 = vunpack.c.l.s4 1983009808
        %v1187 = vunpack.c.0.s8 %v1186
        %v1188 = vlaneseq
        %v1189 = vshrl.u32 %v1188, 7
        %v1190 = vsub.s32 %v1187, %v1189
        %v1191 = vrot.slane %v1177, %v1190
        %v1192 = vcombine.high %v1184, %v1184
        %v1193 = vcombine.high %v1191, %v1191
        %v1194 = vcombine.high %v1034, %v1034
        %v1196 = vunpack.c.l.s4 1983009808
        %v1197 = vunpack.c.0.s8 %v1196
        %v1198 = vlaneseq
        %v1199 = vshrl.u32 %v1198, 7
        %v1200 = vsub.s32 %v1197, %v1199
        %v1201 = vrot.slane %v1034, %v1200
        %v1203 = vunpack.c.l.s4 1983009808
        %v1204 = vunpack.c.0.s8 %v1203
        %v1205 = vlaneseq
        %v1206 = vshrl.u32 %v1205, 7
        %v1207 = vsub.s32 %v1204, %v1206
        %v1208 = vrot.slane %v1194, %v1207
        %v1209 = vcombine.high %v1201, %v1201
        %v1210 = vcombine.high %v1208, %v1208
        %v1211 = vcombine.high %v1035, %v1035
        %v1213 = vunpack.c.l.s4 1983009808
        %v1214 = vunpack.c.0.s8 %v1213
        %v1215 = vlaneseq
        %v1216 = vshrl.u32 %v1215, 7
        %v1217 = vsub.s32 %v1214, %v1216
        %v1218 = vrot.slane %v1035, %v1217
        %v1220 = vunpack.c.l.s4 1983009808
        %v1221 = vunpack.c.0.s8 %v1220
        %v1222 = vlaneseq
        %v1223 = vshrl.u32 %v1222, 7
        %v1224 = vsub.s32 %v1221, %v1223
        %v1225 = vrot.slane %v1211, %v1224
        %v1226 = vcombine.high %v1218, %v1218
        %v1227 = vcombine.high %v1225, %v1225
        %v1228 = vcombine.high %v1036, %v1036
        %v1230 = vunpack.c.l.s4 1983009808
        %v1231 = vunpack.c.0.s8 %v1230
        %v1232 = vlaneseq
        %v1233 = vshrl.u32 %v1232, 7
        %v1234 = vsub.s32 %v1231, %v1233
        %v1235 = vrot.slane %v1036, %v1234
        %v1237 = vunpack.c.l.s4 1983009808
        %v1238 = vunpack.c.0.s8 %v1237
        %v1239 = vlaneseq
        %v1240 = vshrl.u32 %v1239, 7
        %v1241 = vsub.s32 %v1238, %v1240
        %v1242 = vrot.slane %v1228, %v1241
        %v1243 = vcombine.high %v1235, %v1235
        %v1244 = vcombine.high %v1242, %v1242
        %v1245 = vcombine.high %v1037, %v1037
        %v1247 = vunpack.c.l.s4 1983009808
        %v1248 = vunpack.c.0.s8 %v1247
        %v1249 = vlaneseq
        %v1250 = vshrl.u32 %v1249, 7
        %v1251 = vsub.s32 %v1248, %v1250
        %v1252 = vrot.slane %v1037, %v1251
        %v1254 = vunpack.c.l.s4 1983009808
        %v1255 = vunpack.c.0.s8 %v1254
        %v1256 = vlaneseq
        %v1257 = vshrl.u32 %v1256, 7
        %v1258 = vsub.s32 %v1255, %v1257
        %v1259 = vrot.slane %v1245, %v1258
        %v1260 = vcombine.high %v1252, %v1252
        %v1261 = vcombine.high %v1259, %v1259
        %v1262 = vcombine.high %v1038, %v1038
        %v1264 = vunpack.c.l.s4 1983009808
        %v1265 = vunpack.c.0.s8 %v1264
        %v1266 = vlaneseq
        %v1267 = vshrl.u32 %v1266, 7
        %v1268 = vsub.s32 %v1265, %v1267
        %v1269 = vrot.slane %v1038, %v1268
        %v1271 = vunpack.c.l.s4 1983009808
        %v1272 = vunpack.c.0.s8 %v1271
        %v1273 = vlaneseq
        %v1274 = vshrl.u32 %v1273, 7
        %v1275 = vsub.s32 %v1272, %v1274
        %v1276 = vrot.slane %v1262, %v1275
        %v1277 = vcombine.high %v1269, %v1269
        %v1278 = vcombine.high %v1276, %v1276
        %v1279 = vcombine.high %v1039, %v1039
        %v1281 = vunpack.c.l.s4 1983009808
        %v1282 = vunpack.c.0.s8 %v1281
        %v1283 = vlaneseq
        %v1284 = vshrl.u32 %v1283, 7
        %v1285 = vsub.s32 %v1282, %v1284
        %v1286 = vrot.slane %v1039, %v1285
        %v1288 = vunpack.c.l.s4 1983009808
        %v1289 = vunpack.c.0.s8 %v1288
        %v1290 = vlaneseq
        %v1291 = vshrl.u32 %v1290, 7
        %v1292 = vsub.s32 %v1289, %v1291
        %v1293 = vrot.slane %v1279, %v1292
        %v1294 = vcombine.high %v1286, %v1286
        %v1295 = vcombine.high %v1293, %v1293
        %v1296 = vcombine.high %v1040, %v1040
        %v1298 = vunpack.c.l.s4 1983009808
        %v1299 = vunpack.c.0.s8 %v1298
        %v1300 = vlaneseq
        %v1301 = vshrl.u32 %v1300, 7
        %v1302 = vsub.s32 %v1299, %v1301
        %v1303 = vrot.slane %v1040, %v1302
        %v1305 = vunpack.c.l.s4 1983009808
        %v1306 = vunpack.c.0.s8 %v1305
        %v1307 = vlaneseq
        %v1308 = vshrl.u32 %v1307, 7
        %v1309 = vsub.s32 %v1306, %v1308
        %v1310 = vrot.slane %v1296, %v1309
        %v1311 = vcombine.high %v1303, %v1303
        %v1312 = vcombine.high %v1310, %v1310
        %v1313 = vcombine.high %v1041, %v1041
        %v1315 = vunpack.c.l.s4 1983009808
        %v1316 = vunpack.c.0.s8 %v1315
        %v1317 = vlaneseq
        %v1318 = vshrl.u32 %v1317, 7
        %v1319 = vsub.s32 %v1316, %v1318
        %v1320 = vrot.slane %v1041, %v1319
        %v1322 = vunpack.c.l.s4 1983009808
        %v1323 = vunpack.c.0.s8 %v1322
        %v1324 = vlaneseq
        %v1325 = vshrl.u32 %v1324, 7
        %v1326 = vsub.s32 %v1323, %v1325
        %v1327 = vrot.slane %v1313, %v1326
        %v1328 = vcombine.high %v1320, %v1320
        %v1329 = vcombine.high %v1327, %v1327
        %v1394 = vrot.slane %v1065, 7
        %v1395 = vrot.slane %v1394, 2
        %v1396 = vrot.slane %v1073, 7
        %v1397 = vrot.slane %v1396, 2
        %v1398 = vrot.slane %v1072, 7
        %v1399 = vrot.slane %v1398, 2
        %v1400 = vrot.slane %v1074, 7
        %v1401 = vrot.slane %v1400, 2
        %v1402 = vrot.slane %v1082, 7
        %v1403 = vrot.slane %v1402, 2
        %v1404 = vrot.slane %v1090, 7
        %v1405 = vrot.slane %v1404, 2
        %v1406 = vrot.slane %v1089, 7
        %v1407 = vrot.slane %v1406, 2
        %v1408 = vrot.slane %v1091, 7
        %v1409 = vrot.slane %v1408, 2
        %v1410 = vrot.slane %v1099, 7
        %v1411 = vrot.slane %v1410, 2
        %v1412 = vrot.slane %v1107, 7
        %v1413 = vrot.slane %v1412, 2
        %v1414 = vrot.slane %v1106, 7
        %v1415 = vrot.slane %v1414, 2
        %v1416 = vrot.slane %v1108, 7
        %v1417 = vrot.slane %v1416, 2
        %v1418 = vrot.slane %v1116, 7
        %v1419 = vrot.slane %v1418, 2
        %v1420 = vrot.slane %v1124, 7
        %v1421 = vrot.slane %v1420, 2
        %v1422 = vrot.slane %v1123, 7
        %v1423 = vrot.slane %v1422, 2
        %v1424 = vrot.slane %v1125, 7
        %v1425 = vrot.slane %v1424, 2
        %v1426 = vrot.slane %v1133, 7
        %v1427 = vrot.slane %v1426, 2
        %v1428 = vrot.slane %v1141, 7
        %v1429 = vrot.slane %v1428, 2
        %v1430 = vrot.slane %v1140, 7
        %v1431 = vrot.slane %v1430, 2
        %v1432 = vrot.slane %v1142, 7
        %v1433 = vrot.slane %v1432, 2
        %v1434 = vrot.slane %v1150, 7
        %v1435 = vrot.slane %v1434, 2
        %v1436 = vrot.slane %v1158, 7
        %v1437 = vrot.slane %v1436, 2
        %v1438 = vrot.slane %v1157, 7
        %v1439 = vrot.slane %v1438, 2
        %v1440 = vrot.slane %v1159, 7
        %v1441 = vrot.slane %v1440, 2
        %v1442 = vrot.slane %v1167, 7
        %v1443 = vrot.slane %v1442, 2
        %v1444 = vrot.slane %v1175, 7
        %v1445 = vrot.slane %v1444, 2
        %v1446 = vrot.slane %v1174, 7
        %v1447 = vrot.slane %v1446, 2
        %v1448 = vrot.slane %v1176, 7
        %v1449 = vrot.slane %v1448, 2
        %v1450 = vrot.slane %v1184, 7
        %v1451 = vrot.slane %v1450, 2
        %v1452 = vrot.slane %v1192, 7
        %v1453 = vrot.slane %v1452, 2
        %v1454 = vrot.slane %v1191, 7
        %v1455 = vrot.slane %v1454, 2
        %v1456 = vrot.slane %v1193, 7
        %v1457 = vrot.slane %v1456, 2
        %v1458 = vrot.slane %v1201, 7
        %v1459 = vrot.slane %v1458, 2
        %v1460 = vrot.slane %v1209, 7
        %v1461 = vrot.slane %v1460, 2
        %v1462 = vrot.slane %v1208, 7
        %v1463 = vrot.slane %v1462, 2
        %v1464 = vrot.slane %v1210, 7
        %v1465 = vrot.slane %v1464, 2
        %v1466 = vrot.slane %v1218, 7
        %v1467 = vrot.slane %v1466, 2
        %v1468 = vrot.slane %v1226, 7
        %v1469 = vrot.slane %v1468, 2
        %v1470 = vrot.slane %v1225, 7
        %v1471 = vrot.slane %v1470, 2
        %v1472 = vrot.slane %v1227, 7
        %v1473 = vrot.slane %v1472, 2
        %v1474 = vrot.slane %v1235, 7
        %v1475 = vrot.slane %v1474, 2
        %v1476 = vrot.slane %v1243, 7
        %v1477 = vrot.slane %v1476, 2
        %v1478 = vrot.slane %v1242, 7
        %v1479 = vrot.slane %v1478, 2
        %v1480 = vrot.slane %v1244, 7
        %v1481 = vrot.slane %v1480, 2
        %v1482 = vrot.slane %v1252, 7
        %v1483 = vrot.slane %v1482, 2
        %v1484 = vrot.slane %v1260, 7
        %v1485 = vrot.slane %v1484, 2
        %v1486 = vrot.slane %v1259, 7
        %v1487 = vrot.slane %v1486, 2
        %v1488 = vrot.slane %v1261, 7
        %v1489 = vrot.slane %v1488, 2
        %v1490 = vrot.slane %v1269, 7
        %v1491 = vrot.slane %v1490, 2
        %v1492 = vrot.slane %v1277, 7
        %v1493 = vrot.slane %v1492, 2
        %v1494 = vrot.slane %v1276, 7
        %v1495 = vrot.slane %v1494, 2
        %v1496 = vrot.slane %v1278, 7
        %v1497 = vrot.slane %v1496, 2
        %v1498 = vrot.slane %v1286, 7
        %v1499 = vrot.slane %v1498, 2
        %v1500 = vrot.slane %v1294, 7
        %v1501 = vrot.slane %v1500, 2
        %v1502 = vrot.slane %v1293, 7
        %v1503 = vrot.slane %v1502, 2
        %v1504 = vrot.slane %v1295, 7
        %v1505 = vrot.slane %v1504, 2
        %v1506 = vrot.slane %v1303, 7
        %v1507 = vrot.slane %v1506, 2
        %v1508 = vrot.slane %v1311, 7
        %v1509 = vrot.slane %v1508, 2
        %v1510 = vrot.slane %v1310, 7
        %v1511 = vrot.slane %v1510, 2
        %v1512 = vrot.slane %v1312, 7
        %v1513 = vrot.slane %v1512, 2
        %v1514 = vrot.slane %v1320, 7
        %v1515 = vrot.slane %v1514, 2
        %v1516 = vrot.slane %v1328, 7
        %v1517 = vrot.slane %v1516, 2
        %v1518 = vrot.slane %v1327, 7
        %v1519 = vrot.slane %v1518, 2
        %v1520 = vrot.slane %v1329, 7
        %v1521 = vrot.slane %v1520, 2
        %v1586 = vmax.f32 %v1065, %v1395
        %v1587 = vmax.f32 %v1073, %v1397
        %v1588 = vmax.f32 %v1072, %v1399
        %v1589 = vmax.f32 %v1074, %v1401
        %v1590 = vmax.f32 %v1082, %v1403
        %v1591 = vmax.f32 %v1090, %v1405
        %v1592 = vmax.f32 %v1089, %v1407
        %v1593 = vmax.f32 %v1091, %v1409
        %v1594 = vmax.f32 %v1099, %v1411
        %v1595 = vmax.f32 %v1107, %v1413
        %v1596 = vmax.f32 %v1106, %v1415
        %v1597 = vmax.f32 %v1108, %v1417
        %v1598 = vmax.f32 %v1116, %v1419
        %v1599 = vmax.f32 %v1124, %v1421
        %v1600 = vmax.f32 %v1123, %v1423
        %v1601 = vmax.f32 %v1125, %v1425
        %v1602 = vmax.f32 %v1133, %v1427
        %v1603 = vmax.f32 %v1141, %v1429
        %v1604 = vmax.f32 %v1140, %v1431
        %v1605 = vmax.f32 %v1142, %v1433
        %v1606 = vmax.f32 %v1150, %v1435
        %v1607 = vmax.f32 %v1158, %v1437
        %v1608 = vmax.f32 %v1157, %v1439
        %v1609 = vmax.f32 %v1159, %v1441
        %v1610 = vmax.f32 %v1167, %v1443
        %v1611 = vmax.f32 %v1175, %v1445
        %v1612 = vmax.f32 %v1174, %v1447
        %v1613 = vmax.f32 %v1176, %v1449
        %v1614 = vmax.f32 %v1184, %v1451
        %v1615 = vmax.f32 %v1192, %v1453
        %v1616 = vmax.f32 %v1191, %v1455
        %v1617 = vmax.f32 %v1193, %v1457
        %v1618 = vmax.f32 %v1201, %v1459
        %v1619 = vmax.f32 %v1209, %v1461
        %v1620 = vmax.f32 %v1208, %v1463
        %v1621 = vmax.f32 %v1210, %v1465
        %v1622 = vmax.f32 %v1218, %v1467
        %v1623 = vmax.f32 %v1226, %v1469
        %v1624 = vmax.f32 %v1225, %v1471
        %v1625 = vmax.f32 %v1227, %v1473
        %v1626 = vmax.f32 %v1235, %v1475
        %v1627 = vmax.f32 %v1243, %v1477
        %v1628 = vmax.f32 %v1242, %v1479
        %v1629 = vmax.f32 %v1244, %v1481
        %v1630 = vmax.f32 %v1252, %v1483
        %v1631 = vmax.f32 %v1260, %v1485
        %v1632 = vmax.f32 %v1259, %v1487
        %v1633 = vmax.f32 %v1261, %v1489
        %v1634 = vmax.f32 %v1269, %v1491
        %v1635 = vmax.f32 %v1277, %v1493
        %v1636 = vmax.f32 %v1276, %v1495
        %v1637 = vmax.f32 %v1278, %v1497
        %v1638 = vmax.f32 %v1286, %v1499
        %v1639 = vmax.f32 %v1294, %v1501
        %v1640 = vmax.f32 %v1293, %v1503
        %v1641 = vmax.f32 %v1295, %v1505
        %v1642 = vmax.f32 %v1303, %v1507
        %v1643 = vmax.f32 %v1311, %v1509
        %v1644 = vmax.f32 %v1310, %v1511
        %v1645 = vmax.f32 %v1312, %v1513
        %v1646 = vmax.f32 %v1320, %v1515
        %v1647 = vmax.f32 %v1328, %v1517
        %v1648 = vmax.f32 %v1327, %v1519
        %v1649 = vmax.f32 %v1329, %v1521
        %v1650 = vpack.c.bf16 %v1586, %v1586
        %v1651 = vpack.c.bf16 %v1587, %v1587
        %v1652 = vpack.c.bf16 %v1588, %v1588
        %v1653 = vpack.c.bf16 %v1589, %v1589
        %v1654 = vpack.c.bf16 %v1590, %v1590
        %v1655 = vpack.c.bf16 %v1591, %v1591
        %v1656 = vpack.c.bf16 %v1592, %v1592
        %v1657 = vpack.c.bf16 %v1593, %v1593
        %v1658 = vpack.c.bf16 %v1594, %v1594
        %v1659 = vpack.c.bf16 %v1595, %v1595
        %v1660 = vpack.c.bf16 %v1596, %v1596
        %v1661 = vpack.c.bf16 %v1597, %v1597
        %v1662 = vpack.c.bf16 %v1598, %v1598
        %v1663 = vpack.c.bf16 %v1599, %v1599
        %v1664 = vpack.c.bf16 %v1600, %v1600
        %v1665 = vpack.c.bf16 %v1601, %v1601
        %v1666 = vpack.c.bf16 %v1602, %v1602
        %v1667 = vpack.c.bf16 %v1603, %v1603
        %v1668 = vpack.c.bf16 %v1604, %v1604
        %v1669 = vpack.c.bf16 %v1605, %v1605
        %v1670 = vpack.c.bf16 %v1606, %v1606
        %v1671 = vpack.c.bf16 %v1607, %v1607
        %v1672 = vpack.c.bf16 %v1608, %v1608
        %v1673 = vpack.c.bf16 %v1609, %v1609
        %v1674 = vpack.c.bf16 %v1610, %v1610
        %v1675 = vpack.c.bf16 %v1611, %v1611
        %v1676 = vpack.c.bf16 %v1612, %v1612
        %v1677 = vpack.c.bf16 %v1613, %v1613
        %v1678 = vpack.c.bf16 %v1614, %v1614
        %v1679 = vpack.c.bf16 %v1615, %v1615
        %v1680 = vpack.c.bf16 %v1616, %v1616
        %v1681 = vpack.c.bf16 %v1617, %v1617
        %v1682 = vpack.c.bf16 %v1618, %v1618
        %v1683 = vpack.c.bf16 %v1619, %v1619
        %v1684 = vpack.c.bf16 %v1620, %v1620
        %v1685 = vpack.c.bf16 %v1621, %v1621
        %v1686 = vpack.c.bf16 %v1622, %v1622
        %v1687 = vpack.c.bf16 %v1623, %v1623
        %v1688 = vpack.c.bf16 %v1624, %v1624
        %v1689 = vpack.c.bf16 %v1625, %v1625
        %v1690 = vpack.c.bf16 %v1626, %v1626
        %v1691 = vpack.c.bf16 %v1627, %v1627
        %v1692 = vpack.c.bf16 %v1628, %v1628
        %v1693 = vpack.c.bf16 %v1629, %v1629
        %v1694 = vpack.c.bf16 %v1630, %v1630
        %v1695 = vpack.c.bf16 %v1631, %v1631
        %v1696 = vpack.c.bf16 %v1632, %v1632
        %v1697 = vpack.c.bf16 %v1633, %v1633
        %v1698 = vpack.c.bf16 %v1634, %v1634
        %v1699 = vpack.c.bf16 %v1635, %v1635
        %v1700 = vpack.c.bf16 %v1636, %v1636
        %v1701 = vpack.c.bf16 %v1637, %v1637
        %v1702 = vpack.c.bf16 %v1638, %v1638
        %v1703 = vpack.c.bf16 %v1639, %v1639
        %v1704 = vpack.c.bf16 %v1640, %v1640
        %v1705 = vpack.c.bf16 %v1641, %v1641
        %v1706 = vpack.c.bf16 %v1642, %v1642
        %v1707 = vpack.c.bf16 %v1643, %v1643
        %v1708 = vpack.c.bf16 %v1644, %v1644
        %v1709 = vpack.c.bf16 %v1645, %v1645
        %v1710 = vpack.c.bf16 %v1646, %v1646
        %v1711 = vpack.c.bf16 %v1647, %v1647
        %v1712 = vpack.c.bf16 %v1648, %v1648
        %v1713 = vpack.c.bf16 %v1649, %v1649
        %v1778 = vunpack.c.l.b16 %v1650
        %v1779 = vunpack.c.l.b16 %v1651
        %v1780 = vunpack.c.l.b16 %v1652
        %v1781 = vunpack.c.l.b16 %v1653
        %v1782 = vunpack.c.l.b16 %v1654
        %v1783 = vunpack.c.l.b16 %v1655
        %v1784 = vunpack.c.l.b16 %v1656
        %v1785 = vunpack.c.l.b16 %v1657
        %v1786 = vunpack.c.l.b16 %v1658
        %v1787 = vunpack.c.l.b16 %v1659
        %v1788 = vunpack.c.l.b16 %v1660
        %v1789 = vunpack.c.l.b16 %v1661
        %v1790 = vunpack.c.l.b16 %v1662
        %v1791 = vunpack.c.l.b16 %v1663
        %v1792 = vunpack.c.l.b16 %v1664
        %v1793 = vunpack.c.l.b16 %v1665
        %v1794 = vunpack.c.l.b16 %v1666
        %v1795 = vunpack.c.l.b16 %v1667
        %v1796 = vunpack.c.l.b16 %v1668
        %v1797 = vunpack.c.l.b16 %v1669
        %v1798 = vunpack.c.l.b16 %v1670
        %v1799 = vunpack.c.l.b16 %v1671
        %v1800 = vunpack.c.l.b16 %v1672
        %v1801 = vunpack.c.l.b16 %v1673
        %v1802 = vunpack.c.l.b16 %v1674
        %v1803 = vunpack.c.l.b16 %v1675
        %v1804 = vunpack.c.l.b16 %v1676
        %v1805 = vunpack.c.l.b16 %v1677
        %v1806 = vunpack.c.l.b16 %v1678
        %v1807 = vunpack.c.l.b16 %v1679
        %v1808 = vunpack.c.l.b16 %v1680
        %v1809 = vunpack.c.l.b16 %v1681
        %v1810 = vunpack.c.l.b16 %v1682
        %v1811 = vunpack.c.l.b16 %v1683
        %v1812 = vunpack.c.l.b16 %v1684
        %v1813 = vunpack.c.l.b16 %v1685
        %v1814 = vunpack.c.l.b16 %v1686
        %v1815 = vunpack.c.l.b16 %v1687
        %v1816 = vunpack.c.l.b16 %v1688
        %v1817 = vunpack.c.l.b16 %v1689
        %v1818 = vunpack.c.l.b16 %v1690
        %v1819 = vunpack.c.l.b16 %v1691
        %v1820 = vunpack.c.l.b16 %v1692
        %v1821 = vunpack.c.l.b16 %v1693
        %v1822 = vunpack.c.l.b16 %v1694
        %v1823 = vunpack.c.l.b16 %v1695
        %v1824 = vunpack.c.l.b16 %v1696
        %v1825 = vunpack.c.l.b16 %v1697
        %v1826 = vunpack.c.l.b16 %v1698
        %v1827 = vunpack.c.l.b16 %v1699
        %v1828 = vunpack.c.l.b16 %v1700
        %v1829 = vunpack.c.l.b16 %v1701
        %v1830 = vunpack.c.l.b16 %v1702
        %v1831 = vunpack.c.l.b16 %v1703
        %v1832 = vunpack.c.l.b16 %v1704
        %v1833 = vunpack.c.l.b16 %v1705
        %v1834 = vunpack.c.l.b16 %v1706
        %v1835 = vunpack.c.l.b16 %v1707
        %v1836 = vunpack.c.l.b16 %v1708
        %v1837 = vunpack.c.l.b16 %v1709
        %v1838 = vunpack.c.l.b16 %v1710
        %v1839 = vunpack.c.l.b16 %v1711
        %v1840 = vunpack.c.l.b16 %v1712
        %v1841 = vunpack.c.l.b16 %v1713
        %v1842 = vpack.c.b16 %v1778, %v1778
        %v1843 = vpack.c.b16 %v1779, %v1779
        %v1844 = vpack.c.b16 %v1780, %v1780
        %v1845 = vpack.c.b16 %v1781, %v1781
        %v1846 = vpack.c.b16 %v1782, %v1782
        %v1847 = vpack.c.b16 %v1783, %v1783
        %v1848 = vpack.c.b16 %v1784, %v1784
        %v1849 = vpack.c.b16 %v1785, %v1785
        %v1850 = vpack.c.b16 %v1786, %v1786
        %v1851 = vpack.c.b16 %v1787, %v1787
        %v1852 = vpack.c.b16 %v1788, %v1788
        %v1853 = vpack.c.b16 %v1789, %v1789
        %v1854 = vpack.c.b16 %v1790, %v1790
        %v1855 = vpack.c.b16 %v1791, %v1791
        %v1856 = vpack.c.b16 %v1792, %v1792
        %v1857 = vpack.c.b16 %v1793, %v1793
        %v1858 = vpack.c.b16 %v1794, %v1794
        %v1859 = vpack.c.b16 %v1795, %v1795
        %v1860 = vpack.c.b16 %v1796, %v1796
        %v1861 = vpack.c.b16 %v1797, %v1797
        %v1862 = vpack.c.b16 %v1798, %v1798
        %v1863 = vpack.c.b16 %v1799, %v1799
        %v1864 = vpack.c.b16 %v1800, %v1800
        %v1865 = vpack.c.b16 %v1801, %v1801
        %v1866 = vpack.c.b16 %v1802, %v1802
        %v1867 = vpack.c.b16 %v1803, %v1803
        %v1868 = vpack.c.b16 %v1804, %v1804
        %v1869 = vpack.c.b16 %v1805, %v1805
        %v1870 = vpack.c.b16 %v1806, %v1806
        %v1871 = vpack.c.b16 %v1807, %v1807
        %v1872 = vpack.c.b16 %v1808, %v1808
        %v1873 = vpack.c.b16 %v1809, %v1809
        %v1874 = vpack.c.b16 %v1810, %v1810
        %v1875 = vpack.c.b16 %v1811, %v1811
        %v1876 = vpack.c.b16 %v1812, %v1812
        %v1877 = vpack.c.b16 %v1813, %v1813
        %v1878 = vpack.c.b16 %v1814, %v1814
        %v1879 = vpack.c.b16 %v1815, %v1815
        %v1880 = vpack.c.b16 %v1816, %v1816
        %v1881 = vpack.c.b16 %v1817, %v1817
        %v1882 = vpack.c.b16 %v1818, %v1818
        %v1883 = vpack.c.b16 %v1819, %v1819
        %v1884 = vpack.c.b16 %v1820, %v1820
        %v1885 = vpack.c.b16 %v1821, %v1821
        %v1886 = vpack.c.b16 %v1822, %v1822
        %v1887 = vpack.c.b16 %v1823, %v1823
        %v1888 = vpack.c.b16 %v1824, %v1824
        %v1889 = vpack.c.b16 %v1825, %v1825
        %v1890 = vpack.c.b16 %v1826, %v1826
        %v1891 = vpack.c.b16 %v1827, %v1827
        %v1892 = vpack.c.b16 %v1828, %v1828
        %v1893 = vpack.c.b16 %v1829, %v1829
        %v1894 = vpack.c.b16 %v1830, %v1830
        %v1895 = vpack.c.b16 %v1831, %v1831
        %v1896 = vpack.c.b16 %v1832, %v1832
        %v1897 = vpack.c.b16 %v1833, %v1833
        %v1898 = vpack.c.b16 %v1834, %v1834
        %v1899 = vpack.c.b16 %v1835, %v1835
        %v1900 = vpack.c.b16 %v1836, %v1836
        %v1901 = vpack.c.b16 %v1837, %v1837
        %v1902 = vpack.c.b16 %v1838, %v1838
        %v1903 = vpack.c.b16 %v1839, %v1839
        %v1904 = vpack.c.b16 %v1840, %v1840
        %v1905 = vpack.c.b16 %v1841, %v1841
        %v1906 = vunpack.c.l.b16 %v1842
        %v1907 = vunpack.c.l.b16 %v1843
        %v1908 = vunpack.c.l.b16 %v1844
        %v1909 = vunpack.c.l.b16 %v1845
        %v1910 = vunpack.c.l.b16 %v1846
        %v1911 = vunpack.c.l.b16 %v1847
        %v1912 = vunpack.c.l.b16 %v1848
        %v1913 = vunpack.c.l.b16 %v1849
        %v1914 = vunpack.c.l.b16 %v1850
        %v1915 = vunpack.c.l.b16 %v1851
        %v1916 = vunpack.c.l.b16 %v1852
        %v1917 = vunpack.c.l.b16 %v1853
        %v1918 = vunpack.c.l.b16 %v1854
        %v1919 = vunpack.c.l.b16 %v1855
        %v1920 = vunpack.c.l.b16 %v1856
        %v1921 = vunpack.c.l.b16 %v1857
        %v1922 = vunpack.c.l.b16 %v1858
        %v1923 = vunpack.c.l.b16 %v1859
        %v1924 = vunpack.c.l.b16 %v1860
        %v1925 = vunpack.c.l.b16 %v1861
        %v1926 = vunpack.c.l.b16 %v1862
        %v1927 = vunpack.c.l.b16 %v1863
        %v1928 = vunpack.c.l.b16 %v1864
        %v1929 = vunpack.c.l.b16 %v1865
        %v1930 = vunpack.c.l.b16 %v1866
        %v1931 = vunpack.c.l.b16 %v1867
        %v1932 = vunpack.c.l.b16 %v1868
        %v1933 = vunpack.c.l.b16 %v1869
        %v1934 = vunpack.c.l.b16 %v1870
        %v1935 = vunpack.c.l.b16 %v1871
        %v1936 = vunpack.c.l.b16 %v1872
        %v1937 = vunpack.c.l.b16 %v1873
        %v1938 = vunpack.c.l.b16 %v1874
        %v1939 = vunpack.c.l.b16 %v1875
        %v1940 = vunpack.c.l.b16 %v1876
        %v1941 = vunpack.c.l.b16 %v1877
        %v1942 = vunpack.c.l.b16 %v1878
        %v1943 = vunpack.c.l.b16 %v1879
        %v1944 = vunpack.c.l.b16 %v1880
        %v1945 = vunpack.c.l.b16 %v1881
        %v1946 = vunpack.c.l.b16 %v1882
        %v1947 = vunpack.c.l.b16 %v1883
        %v1948 = vunpack.c.l.b16 %v1884
        %v1949 = vunpack.c.l.b16 %v1885
        %v1950 = vunpack.c.l.b16 %v1886
        %v1951 = vunpack.c.l.b16 %v1887
        %v1952 = vunpack.c.l.b16 %v1888
        %v1953 = vunpack.c.l.b16 %v1889
        %v1954 = vunpack.c.l.b16 %v1890
        %v1955 = vunpack.c.l.b16 %v1891
        %v1956 = vunpack.c.l.b16 %v1892
        %v1957 = vunpack.c.l.b16 %v1893
        %v1958 = vunpack.c.l.b16 %v1894
        %v1959 = vunpack.c.l.b16 %v1895
        %v1960 = vunpack.c.l.b16 %v1896
        %v1961 = vunpack.c.l.b16 %v1897
        %v1962 = vunpack.c.l.b16 %v1898
        %v1963 = vunpack.c.l.b16 %v1899
        %v1964 = vunpack.c.l.b16 %v1900
        %v1965 = vunpack.c.l.b16 %v1901
        %v1966 = vunpack.c.l.b16 %v1902
        %v1967 = vunpack.c.l.b16 %v1903
        %v1968 = vunpack.c.l.b16 %v1904
        %v1969 = vunpack.c.l.b16 %v1905
        %v1970 = vrot.slane %v1907, 7
        %vm1971 = vcmask 1041409
        %v1972 = vsel %vm1971, %v1970, %v1906
        %v1973 = vrot.slane %v1908, 6
        %vm1974 = vcmask 1042434
        %v1975 = vsel %vm1974, %v1973, %v1972
        %v1976 = vrot.slane %v1909, 5
        %vm1977 = vcmask 1043459
        %v1978 = vsel %vm1977, %v1976, %v1975
        %v1979 = vrot.slane %v1910, 4
        %vm1980 = vcmask 1044484
        %v1981 = vsel %vm1980, %v1979, %v1978
        %v1982 = vrot.slane %v1911, 3
        %vm1983 = vcmask 1045509
        %v1984 = vsel %vm1983, %v1982, %v1981
        %v1985 = vrot.slane %v1912, 2
        %vm1986 = vcmask 1046534
        %v1987 = vsel %vm1986, %v1985, %v1984
        %v1988 = vrot.slane %v1913, 1
        %vm1989 = vcmask 1047559
        %v1990 = vsel %vm1989, %v1988, %v1987
        %v1991 = vrot.slane %v1915, 7
        %v1992 = vsel %vm1971, %v1991, %v1914
        %v1993 = vrot.slane %v1916, 6
        %v1994 = vsel %vm1974, %v1993, %v1992
        %v1995 = vrot.slane %v1917, 5
        %v1996 = vsel %vm1977, %v1995, %v1994
        %v1997 = vrot.slane %v1918, 4
        %v1998 = vsel %vm1980, %v1997, %v1996
        %v1999 = vrot.slane %v1919, 3
        %v2000 = vsel %vm1983, %v1999, %v1998
        %v2001 = vrot.slane %v1920, 2
        %v2002 = vsel %vm1986, %v2001, %v2000
        %v2003 = vrot.slane %v1921, 1
        %v2004 = vsel %vm1989, %v2003, %v2002
        %v2005 = vrot.slane %v1923, 7
        %v2006 = vsel %vm1971, %v2005, %v1922
        %v2007 = vrot.slane %v1924, 6
        %v2008 = vsel %vm1974, %v2007, %v2006
        %v2009 = vrot.slane %v1925, 5
        %v2010 = vsel %vm1977, %v2009, %v2008
        %v2011 = vrot.slane %v1926, 4
        %v2012 = vsel %vm1980, %v2011, %v2010
        %v2013 = vrot.slane %v1927, 3
        %v2014 = vsel %vm1983, %v2013, %v2012
        %v2015 = vrot.slane %v1928, 2
        %v2016 = vsel %vm1986, %v2015, %v2014
        %v2017 = vrot.slane %v1929, 1
        %v2018 = vsel %vm1989, %v2017, %v2016
        %v2019 = vrot.slane %v1931, 7
        %v2020 = vsel %vm1971, %v2019, %v1930
        %v2021 = vrot.slane %v1932, 6
        %v2022 = vsel %vm1974, %v2021, %v2020
        %v2023 = vrot.slane %v1933, 5
        %v2024 = vsel %vm1977, %v2023, %v2022
        %v2025 = vrot.slane %v1934, 4
        %v2026 = vsel %vm1980, %v2025, %v2024
        %v2027 = vrot.slane %v1935, 3
        %v2028 = vsel %vm1983, %v2027, %v2026
        %v2029 = vrot.slane %v1936, 2
        %v2030 = vsel %vm1986, %v2029, %v2028
        %v2031 = vrot.slane %v1937, 1
        %v2032 = vsel %vm1989, %v2031, %v2030
        %v2033 = vrot.slane %v1939, 7
        %v2034 = vsel %vm1971, %v2033, %v1938
        %v2035 = vrot.slane %v1940, 6
        %v2036 = vsel %vm1974, %v2035, %v2034
        %v2037 = vrot.slane %v1941, 5
        %v2038 = vsel %vm1977, %v2037, %v2036
        %v2039 = vrot.slane %v1942, 4
        %v2040 = vsel %vm1980, %v2039, %v2038
        %v2041 = vrot.slane %v1943, 3
        %v2042 = vsel %vm1983, %v2041, %v2040
        %v2043 = vrot.slane %v1944, 2
        %v2044 = vsel %vm1986, %v2043, %v2042
        %v2045 = vrot.slane %v1945, 1
        %v2046 = vsel %vm1989, %v2045, %v2044
        %v2047 = vrot.slane %v1947, 7
        %v2048 = vsel %vm1971, %v2047, %v1946
        %v2049 = vrot.slane %v1948, 6
        %v2050 = vsel %vm1974, %v2049, %v2048
        %v2051 = vrot.slane %v1949, 5
        %v2052 = vsel %vm1977, %v2051, %v2050
        %v2053 = vrot.slane %v1950, 4
        %v2054 = vsel %vm1980, %v2053, %v2052
        %v2055 = vrot.slane %v1951, 3
        %v2056 = vsel %vm1983, %v2055, %v2054
        %v2057 = vrot.slane %v1952, 2
        %v2058 = vsel %vm1986, %v2057, %v2056
        %v2059 = vrot.slane %v1953, 1
        %v2060 = vsel %vm1989, %v2059, %v2058
        %v2061 = vrot.slane %v1955, 7
        %v2062 = vsel %vm1971, %v2061, %v1954
        %v2063 = vrot.slane %v1956, 6
        %v2064 = vsel %vm1974, %v2063, %v2062
        %v2065 = vrot.slane %v1957, 5
        %v2066 = vsel %vm1977, %v2065, %v2064
        %v2067 = vrot.slane %v1958, 4
        %v2068 = vsel %vm1980, %v2067, %v2066
        %v2069 = vrot.slane %v1959, 3
        %v2070 = vsel %vm1983, %v2069, %v2068
        %v2071 = vrot.slane %v1960, 2
        %v2072 = vsel %vm1986, %v2071, %v2070
        %v2073 = vrot.slane %v1961, 1
        %v2074 = vsel %vm1989, %v2073, %v2072
        %v2075 = vrot.slane %v1963, 7
        %v2076 = vsel %vm1971, %v2075, %v1962
        %v2077 = vrot.slane %v1964, 6
        %v2078 = vsel %vm1974, %v2077, %v2076
        %v2079 = vrot.slane %v1965, 5
        %v2080 = vsel %vm1977, %v2079, %v2078
        %v2081 = vrot.slane %v1966, 4
        %v2082 = vsel %vm1980, %v2081, %v2080
        %v2083 = vrot.slane %v1967, 3
        %v2084 = vsel %vm1983, %v2083, %v2082
        %v2085 = vrot.slane %v1968, 2
        %v2086 = vsel %vm1986, %v2085, %v2084
        %v2087 = vrot.slane %v1969, 1
        %v2088 = vsel %vm1989, %v2087, %v2086
        %v2089 = vpack.c.b16 %v1990, %v1990
        %v2090 = vpack.c.b16 %v2004, %v2004
        %v2091 = vpack.c.b16 %v2018, %v2018
        %v2092 = vpack.c.b16 %v2032, %v2032
        %v2093 = vpack.c.b16 %v2046, %v2046
        %v2094 = vpack.c.b16 %v2060, %v2060
        %v2095 = vpack.c.b16 %v2074, %v2074
        %v2096 = vpack.c.b16 %v2088, %v2088
        %vm2105 = vcmask 11264
        %2106 = vst.msk [vmem:[%s255] sm:$0xf] %vm2105, %v2089
        %2107 = vst.msk [vmem:[%s255 + $0x4] sm:$0xf] %vm2105, %v2090
        %2108 = vst.msk [vmem:[%s255 + $0x8] sm:$0xf] %vm2105, %v2091
        %2109 = vst.msk [vmem:[%s255 + $0xc] sm:$0xf] %vm2105, %v2092
        %2110 = vst.msk [vmem:[%s255 + $0x10] sm:$0xf] %vm2105, %v2093
        %2111 = vst.msk [vmem:[%s255 + $0x14] sm:$0xf] %vm2105, %v2094
        %2112 = vst.msk [vmem:[%s255 + $0x18] sm:$0xf] %vm2105, %v2095
        %2113 = vst.msk [vmem:[%s255 + $0x1c] sm:$0xf] %vm2105, %v2096
        %s2114 = sand.u32 %s120, 1
        %s2115 = scalar_lea.sflag [#allocation4], %s2114
        %s2116 = sand.u32 %s120, 1
        %s2117 = smul.addr %s2116, 32
        %s2118 = scalar_lea.vmem [#allocation10], %s2117
        // Predicated region
        $region53: #{cnn_lstm_forward.7} parent=35 // pred_check
          %p2119 = pneg %p130
        $region54: #{cnn_lstm_forward.7} parent=35 // pred_check_branch
          %2121 = sbr.rel (%p2119) target = $region56
        $region55: #{cnn_lstm_forward.7} parent=35 // pred_region
          %s2123 = ssub.s32 512, 512
          %2124 = vsyncadd %s2115, %s2123
          %s2125 = smul.addr %s23, 8
          %s2126 = smul.addr %s2125, 64
          %s2127 = scalar_lea.hbm %s4, %s2126
          %s2128 = sshll.u32 %s2118, 4
          %s2129 = int_to_ptr.vmem [resolvable:$true] %s2128
          %2134 = dma.vmem_to_hbm [thread:$0]  %s2129, 512, %s2127, %s2115, 64, 64, 4
        $region56: #{cnn_lstm_forward.7} parent=35 // pred_fallthru
          _
      $region36: #{cnn_lstm_forward.7} parent=5 // pred_fallthru
        _
      %p2135 = scmp.le.s32.totalorder 2, %s18
      // Predicated region
      $region57: #{cnn_lstm_forward.7} parent=5 // pred_check
        %p2136 = pneg %p2135
      $region58: #{cnn_lstm_forward.7} parent=5 // pred_check_branch
        %2138 = sbr.rel (%p2136) target = $region60
      $region59: #{cnn_lstm_forward.7} parent=5 // pred_region
        %s2139 = ssub.s32 %s18, 2
        // Predicated region
        $region61: #{cnn_lstm_forward.7} parent=59 // pred_check
          %p2140 = pneg %p136
        $region62: #{cnn_lstm_forward.7} parent=59 // pred_check_branch
          %2142 = sbr.rel (%p2140) target = $region64
        $region63: #{cnn_lstm_forward.7} parent=59 // pred_region
          %s2143 = sand.u32 %s121, 1
          %s2144 = scalar_lea.sflag [#allocation4], %s2143
          %s2145 = sand.u32 %s121, 1
          %s2146 = smul.addr %s2145, 32
          %s2147 = scalar_lea.vmem [#allocation10], %s2146
          %2148 = dma.done %s2144, 512
        $region64: #{cnn_lstm_forward.7} parent=59 // pred_fallthru
          _
      $region60: #{cnn_lstm_forward.7} parent=5 // pred_fallthru
        _
    $region6: #{cnn_lstm_forward.7} parent=1 // loop_footer
      %s22 = sadd.s32 1, %s18
    $region7: #{cnn_lstm_forward.7} parent=1 // loop_footer_branch
      %17 = sbr.rel target = $region3
    $region8: #{cnn_lstm_forward.7} parent=1 // loop_exit
      _
    %2149 = vsyncpa [#allocation3], 1
    %s2150 = scalar_lea.sflag [#allocation3], 1
    %2151 = vsyncpa %s2150, 1
    %2152 = vsyncpa [#allocation6], 1
    %2153 = vsyncpa [#allocation9], 1
    %2154 = vsyncpa [#allocation4], 1
    %s2155 = scalar_lea.sflag [#allocation4], 1
    %2156 = vsyncpa %s2155, 1

// kernel: cnn_lstm_forward.8
$region0: #{cnn_lstm_forward.8}
  #allocation0 [shape = 'u32[]', space=smem, size = 0x4, offset = 0x4, fixed_abs, tag = 'smem constant byte address 0x4 - core index']
  #allocation1 [shape = 'u32[144,128]{1,0:T(1,128)}', space=vmem, size = 0x12000, scoped, tag = 'internal scratch']
  %s0 = inlined_call_operand.hbm [shape: bf16[2,8,8,2], index: 0, kind: input, shape index: {}]
  %s1 = inlined_call_operand.hbm [shape: bf16[18,4], index: 1, kind: input, shape index: {}]
  %s2 = inlined_call_operand.hbm [shape: f32[1,4], index: 2, kind: input, shape index: {}]
  %s3 = inlined_call_operand.hbm [shape: f32[1,4], index: 3, kind: input, shape index: {}]
  %s4 = inlined_call_operand.hbm [shape: bf16[2,8,4,4], index: 4, kind: output, shape index: {}]
  %s5 = sld [smem:[#allocation0]]
  $region65: #{cnn_lstm_forward.8} parent=0
    _
  %s7 = ssub.s32 1, %s5
  %s8 = scalar_select 0, %s7, %s5
  $region1: #{cnn_lstm_forward.8} parent=0
    #allocation2 [shape = 'u8[32768]{0}', space=vmem, size = 0x8000, scoped, tag = 'input window, operand 0']
    #allocation3 [shape = 's32[2]{0}', space=sflag, size = 0x8, scoped, tag = 'scoped memory for cnn_lstm_forward.8']
    #allocation4 [shape = 's32[2]{0}', space=sflag, size = 0x8, scoped, tag = 'scoped memory for cnn_lstm_forward.8']
    #allocation5 [shape = 'u8[6144]{0}', space=vmem, size = 0x1800, scoped, tag = 'input window, operand 1, single buffered']
    #allocation6 [shape = 's32[1]{0}', space=sflag, size = 0x4, scoped, tag = 'scoped memory for cnn_lstm_forward.8']
    #allocation7 [shape = 'u8[512]{0}', space=vmem, size = 0x400, scoped, tag = 'input window, operand 2, single buffered']
    #allocation8 [shape = 'u8[512]{0}', space=vmem, size = 0x400, scoped, tag = 'input window, operand 3, single buffered']
    #allocation9 [shape = 's32[1]{0}', space=sflag, size = 0x4, scoped, tag = 'scoped memory for cnn_lstm_forward.8']
    #allocation10 [shape = 'u8[16384]{0}', space=vmem, size = 0x4000, scoped, tag = 'output window, operand 0']
    %9 = vsyncpa [#allocation3], 0
    %s10 = scalar_lea.sflag [#allocation3], 1
    %11 = vsyncpa %s10, 0
    %12 = vsyncpa [#allocation6], 0
    %13 = vsyncpa [#allocation9], 0
    %14 = vsyncpa [#allocation4], 0
    %s15 = scalar_lea.sflag [#allocation4], 1
    %16 = vsyncpa %s15, 0
    loop: start=0, step=1, limit=4
    $region2: #{cnn_lstm_forward.8} parent=1 // loop_pre_header
      _
    $region3: #{cnn_lstm_forward.8} parent=1 // loop_header
      %s18 = sphi 0, %s22
      %p19 = scmp.ge.s32.totalorder %s18, 4
      %s28 = sphi 0, %s30
      %s31 = sphi 0, %s28
      %s32 = sphi 0, %s31
      %s48 = sphi 0, %s32
      %s52 = sphi 0, %s52
      %s54 = sphi 0, %s52
      %s55 = sphi 0, %s54
      %s69 = sphi 0, %s55
      %s73 = sphi 0, %s73
      %s75 = sphi 0, %s73
      %s76 = sphi 0, %s75
      %s90 = sphi 0, %s76
      %s94 = sphi 0, %s94
      %s96 = sphi 0, %s94
      %s97 = sphi 0, %s96
      %s111 = sphi 0, %s97
      %s117 = sphi 0, %s119
      %s120 = sphi 0, %s117
      %s121 = sphi 0, %s120
      %s137 = sphi 0, %s121
    $region4: #{cnn_lstm_forward.8} parent=1 // loop_header_branch
      %21 = sbr.rel (%p19) target = $region8
    $region5: #{cnn_lstm_forward.8} parent=1 // loop_body
      %s23 = ssub.s32 %s18, 1
      %s24 = ssub.s32 %s18, 2
      %s25 = sadd.s32 %s18, 1
      %s26 = ssub.s32 %s18, %s25
      %p27 = scmp.eq.s32.totalorder %s26, 0
      %s29 = sadd.s32 %s28, 1
      %s30 = scalar_select %p27, %s28, %s29
      %p33 = pneg %p27
      %p34 = scmp.eq.s32.totalorder %s18, 1
      %p35 = por %p33, %p34
      %p36 = scmp.ne.s32.totalorder %s28, %s31
      %p37 = scmp.eq.s32.totalorder %s18, 0
      %p38 = por %p36, %p37
      %p39 = scmp.ne.s32.totalorder %s28, %s31
      %p40 = scmp.eq.s32.totalorder %s23, 1
      %p41 = por %p39, %p40
      %p42 = scmp.ne.s32.totalorder %s31, %s32
      %p43 = scmp.eq.s32.totalorder %s23, 0
      %p44 = por %p42, %p43
      %p45 = scmp.ne.s32.totalorder %s31, %s32
      %p46 = scmp.eq.s32.totalorder %s24, 1
      %p47 = por %p45, %p46
      %p49 = scmp.ne.s32.totalorder %s32, %s48
      %p50 = scmp.eq.s32.totalorder %s24, 0
      %p51 = por %p49, %p50
      %s53 = sadd.s32 %s52, 1
      %p56 = scmp.eq.s32.totalorder %s18, 1
      %p57 = scmp.ne.s32.totalorder %s52, %s54
      %p58 = scmp.eq.s32.totalorder %s18, 0
      %p59 = por %p57, %p58
      %p60 = scmp.ne.s32.totalorder %s52, %s54
      %p61 = scmp.eq.s32.totalorder %s23, 1
      %p62 = por %p60, %p61
      %p63 = scmp.ne.s32.totalorder %s54, %s55
      %p64 = scmp.eq.s32.totalorder %s23, 0
      %p65 = por %p63, %p64
      %p66 = scmp.ne.s32.totalorder %s54, %s55
      %p67 = scmp.eq.s32.totalorder %s24, 1
      %p68 = por %p66, %p67
      %p70 = scmp.ne.s32.totalorder %s55, %s69
      %p71 = scmp.eq.s32.totalorder %s24, 0
      %p72 = por %p70, %p71
      %s74 = sadd.s32 %s73, 1
      %p77 = scmp.eq.s32.totalorder %s18, 1
      %p78 = scmp.ne.s32.totalorder %s73, %s75
      %p79 = scmp.eq.s32.totalorder %s18, 0
      %p80 = por %p78, %p79
      %p81 = scmp.ne.s32.totalorder %s73, %s75
      %p82 = scmp.eq.s32.totalorder %s23, 1
      %p83 = por %p81, %p82
      %p84 = scmp.ne.s32.totalorder %s75, %s76
      %p85 = scmp.eq.s32.totalorder %s23, 0
      %p86 = por %p84, %p85
      %p87 = scmp.ne.s32.totalorder %s75, %s76
      %p88 = scmp.eq.s32.totalorder %s24, 1
      %p89 = por %p87, %p88
      %p91 = scmp.ne.s32.totalorder %s76, %s90
      %p92 = scmp.eq.s32.totalorder %s24, 0
      %p93 = por %p91, %p92
      %s95 = sadd.s32 %s94, 1
      %p98 = scmp.eq.s32.totalorder %s18, 1
      %p99 = scmp.ne.s32.totalorder %s94, %s96
      %p100 = scmp.eq.s32.totalorder %s18, 0
      %p101 = por %p99, %p100
      %p102 = scmp.ne.s32.totalorder %s94, %s96
      %p103 = scmp.eq.s32.totalorder %s23, 1
      %p104 = por %p102, %p103
      %p105 = scmp.ne.s32.totalorder %s96, %s97
      %p106 = scmp.eq.s32.totalorder %s23, 0
      %p107 = por %p105, %p106
      %p108 = scmp.ne.s32.totalorder %s96, %s97
      %p109 = scmp.eq.s32.totalorder %s24, 1
      %p110 = por %p108, %p109
      %p112 = scmp.ne.s32.totalorder %s97, %s111
      %p113 = scmp.eq.s32.totalorder %s24, 0
      %p114 = por %p112, %p113
      %s115 = ssub.s32 %s18, %s25
      %p116 = scmp.eq.s32.totalorder %s115, 0
      %s118 = sadd.s32 %s117, 1
      %s119 = scalar_select %p116, %s117, %s118
      %p122 = pneg %p116
      %p123 = scmp.eq.s32.totalorder %s18, 1
      %p124 = por %p122, %p123
      %p125 = scmp.ne.s32.totalorder %s117, %s120
      %p126 = scmp.eq.s32.totalorder %s18, 0
      %p127 = por %p125, %p126
      %p128 = scmp.ne.s32.totalorder %s117, %s120
      %p129 = scmp.eq.s32.totalorder %s23, 1
      %p130 = por %p128, %p129
      %p131 = scmp.ne.s32.totalorder %s120, %s121
      %p132 = scmp.eq.s32.totalorder %s23, 0
      %p133 = por %p131, %p132
      %p134 = scmp.ne.s32.totalorder %s120, %s121
      %p135 = scmp.eq.s32.totalorder %s24, 1
      %p136 = por %p134, %p135
      %p138 = scmp.ne.s32.totalorder %s121, %s137
      %p139 = scmp.eq.s32.totalorder %s24, 0
      %p140 = por %p138, %p139
      %p141 = scmp.le.s32.totalorder 1, %s18
      %p142 = scmp.lt.s32.totalorder %s18, 3
      %p143 = pnand %p141, %p142
      %p144 = pneg %p143
      // Predicated region
      $region9: #{cnn_lstm_forward.8} parent=5 // pred_check
        _
      $region10: #{cnn_lstm_forward.8} parent=5 // pred_check_branch
        %146 = sbr.rel (%p143) target = $region12
      $region11: #{cnn_lstm_forward.8} parent=5 // pred_region
        %s147 = ssub.s32 %s18, 1
        // Predicated region
        $region13: #{cnn_lstm_forward.8} parent=11 // pred_check
          %p148 = pneg %p65
        $region14: #{cnn_lstm_forward.8} parent=11 // pred_check_branch
          %150 = sbr.rel (%p148) target = $region16
        $region15: #{cnn_lstm_forward.8} parent=11 // pred_region
          %s152 = ssub.s32 192, 192
          %153 = vsyncadd [#allocation6], %s152
          %s154 = sshll.u32 [#allocation5], 4
          %s155 = int_to_ptr.vmem [resolvable:$true] %s154
          %160 = dma.hbm_to_vmem [thread:$0]  %s1, 192, %s155, [#allocation6], 64, 64, 4
        $region16: #{cnn_lstm_forward.8} parent=11 // pred_fallthru
          _
        // Predicated region
        $region17: #{cnn_lstm_forward.8} parent=11 // pred_check
          %p161 = pneg %p86
        $region18: #{cnn_lstm_forward.8} parent=11 // pred_check_branch
          %163 = sbr.rel (%p161) target = $region20
        $region19: #{cnn_lstm_forward.8} parent=11 // pred_region
          %s165 = ssub.s32 16, 16
          %166 = vsyncadd [#allocation6], %s165
          %s168 = sshll.u32 [#allocation7], 4
          %s169 = int_to_ptr.vmem [resolvable:$true] %s168
          %171 = dma.hbm_to_vmem [thread:$0]  %s2, 16, %s169, [#allocation6]
        $region20: #{cnn_lstm_forward.8} parent=11 // pred_fallthru
          _
        // Predicated region
        $region21: #{cnn_lstm_forward.8} parent=11 // pred_check
          %p172 = pneg %p107
        $region22: #{cnn_lstm_forward.8} parent=11 // pred_check_branch
          %174 = sbr.rel (%p172) target = $region24
        $region23: #{cnn_lstm_forward.8} parent=11 // pred_region
          %s176 = ssub.s32 16, 16
          %177 = vsyncadd [#allocation9], %s176
          %s179 = sshll.u32 [#allocation8], 4
          %s180 = int_to_ptr.vmem [resolvable:$true] %s179
          %182 = dma.hbm_to_vmem [thread:$0]  %s3, 16, %s180, [#allocation9]
        $region24: #{cnn_lstm_forward.8} parent=11 // pred_fallthru
          _
      $region12: #{cnn_lstm_forward.8} parent=5 // pred_fallthru
        _
      %p183 = scmp.lt.s32.totalorder %s18, 2
      // Predicated region
      $region25: #{cnn_lstm_forward.8} parent=5 // pred_check
        %p184 = pneg %p183
      $region26: #{cnn_lstm_forward.8} parent=5 // pred_check_branch
        %186 = sbr.rel (%p184) target = $region28
      $region27: #{cnn_lstm_forward.8} parent=5 // pred_region
        // Predicated region
        $region29: #{cnn_lstm_forward.8} parent=27 // pred_check
          %p187 = pneg %p38
        $region30: #{cnn_lstm_forward.8} parent=27 // pred_check_branch
          %189 = sbr.rel (%p187) target = $region32
        $region31: #{cnn_lstm_forward.8} parent=27 // pred_region
          %s190 = sand.u32 %s28, 1
          %s191 = scalar_lea.sflag [#allocation3], %s190
          %s192 = sand.u32 %s28, 1
          %s193 = smul.addr %s192, 32
          %s194 = scalar_lea.vmem [#allocation2], %s193
          %s196 = ssub.s32 512, 512
          %197 = vsyncadd %s191, %s196
          %s198 = smul.addr %s18, 8
          %s199 = smul.addr %s198, 64
          %s200 = scalar_lea.hbm %s0, %s199
          %s201 = sshll.u32 %s194, 4
          %s202 = int_to_ptr.vmem [resolvable:$true] %s201
          %207 = dma.hbm_to_vmem [thread:$0]  %s200, 512, %s202, %s191, 64, 64, 4
        $region32: #{cnn_lstm_forward.8} parent=27 // pred_fallthru
          _
      $region28: #{cnn_lstm_forward.8} parent=5 // pred_fallthru
        _
      %p208 = scmp.le.s32.totalorder 1, %s18
      %p209 = scmp.lt.s32.totalorder %s18, 3
      %p210 = pnand %p208, %p209
      %p211 = pneg %p210
      // Predicated region
      $region33: #{cnn_lstm_forward.8} parent=5 // pred_check
        _
      $region34: #{cnn_lstm_forward.8} parent=5 // pred_check_branch
        %213 = sbr.rel (%p210) target = $region36
      $region35: #{cnn_lstm_forward.8} parent=5 // pred_region
        %s214 = ssub.s32 %s18, 1
        %s215 = sand.u32 %s31, 1
        %s216 = scalar_lea.sflag [#allocation3], %s215
        %s217 = sand.u32 %s31, 1
        %s218 = smul.addr %s217, 32
        %s219 = scalar_lea.vmem [#allocation2], %s218
        // Predicated region
        $region37: #{cnn_lstm_forward.8} parent=35 // pred_check
          %p220 = pneg %p44
        $region38: #{cnn_lstm_forward.8} parent=35 // pred_check_branch
          %222 = sbr.rel (%p220) target = $region40
        $region39: #{cnn_lstm_forward.8} parent=35 // pred_region
          %223 = dma.done %s216, 512
        $region40: #{cnn_lstm_forward.8} parent=35 // pred_fallthru
          _
        // Predicated region
        $region41: #{cnn_lstm_forward.8} parent=35 // pred_check
          %p224 = pneg %p65
        $region42: #{cnn_lstm_forward.8} parent=35 // pred_check_branch
          %226 = sbr.rel (%p224) target = $region44
        $region43: #{cnn_lstm_forward.8} parent=35 // pred_region
          %227 = dma.done [#allocation6], 192
        $region44: #{cnn_lstm_forward.8} parent=35 // pred_fallthru
          _
        // Predicated region
        $region45: #{cnn_lstm_forward.8} parent=35 // pred_check
          %p228 = pneg %p86
        $region46: #{cnn_lstm_forward.8} parent=35 // pred_check_branch
          %230 = sbr.rel (%p228) target = $region48
        $region47: #{cnn_lstm_forward.8} parent=35 // pred_region
          %231 = dma.done [#allocation6], 16
        $region48: #{cnn_lstm_forward.8} parent=35 // pred_fallthru
          _
        // Predicated region
        $region49: #{cnn_lstm_forward.8} parent=35 // pred_check
          %p232 = pneg %p107
        $region50: #{cnn_lstm_forward.8} parent=35 // pred_check_branch
          %234 = sbr.rel (%p232) target = $region52
        $region51: #{cnn_lstm_forward.8} parent=35 // pred_region
          %235 = dma.done [#allocation9], 16
        $region52: #{cnn_lstm_forward.8} parent=35 // pred_fallthru
          _
        %s236 = sand.u32 %s31, 1
        %s237 = scalar_lea.sflag [#allocation3], %s236
        %s238 = sand.u32 %s31, 1
        %s239 = smul.addr %s238, 32
        %s240 = scalar_lea.vmem [#allocation2], %s239
        %p241 = pneg %p44
        %p242 = pneg %p41
        %p243 = pneg %p65
        %p244 = pneg %p62
        %p245 = pneg %p86
        %p246 = pneg %p83
        %p247 = pneg %p107
        %p248 = pneg %p104
        %p249 = pneg %p133
        %p250 = pneg %p130
        %s251 = sand.u32 %s120, 1
        %s252 = scalar_lea.sflag [#allocation4], %s251
        %s253 = sand.u32 %s120, 1
        %s254 = smul.addr %s253, 16
        %s255 = scalar_lea.vmem [#allocation10], %s254
        %v257 = vld [vmem:[%s219] sm:$0xf]
        %v258 = vld [vmem:[%s219 + $0x4] sm:$0xf]
        %v259 = vld [vmem:[%s219 + $0x8] sm:$0xf]
        %v260 = vld [vmem:[%s219 + $0xc] sm:$0xf]
        %v261 = vld [vmem:[%s219 + $0x10] sm:$0xf]
        %v262 = vld [vmem:[%s219 + $0x14] sm:$0xf]
        %v263 = vld [vmem:[%s219 + $0x18] sm:$0xf]
        %v264 = vld [vmem:[%s219 + $0x1c] sm:$0xf]
        %v273 = vunpack.c.l.b16 %v257
        %v274 = vunpack.c.l.b16 %v258
        %v275 = vunpack.c.l.b16 %v259
        %v276 = vunpack.c.l.b16 %v260
        %v277 = vunpack.c.l.b16 %v261
        %v278 = vunpack.c.l.b16 %v262
        %v279 = vunpack.c.l.b16 %v263
        %v280 = vunpack.c.l.b16 %v264
        %v281 = vpack.c.b16 %v273, %v273
        %v282 = vpack.c.b16 %v274, %v274
        %v283 = vpack.c.b16 %v275, %v275
        %v284 = vpack.c.b16 %v276, %v276
        %v285 = vpack.c.b16 %v277, %v277
        %v286 = vpack.c.b16 %v278, %v278
        %v287 = vpack.c.b16 %v279, %v279
        %v288 = vpack.c.b16 %v280, %v280
        %v290 = vshrl.u32 %v281, 16
        %v292 = vrot.slane %v290, 7
        %v293 = vshll.u32 %v281, 16
        %v295 = vor.u32 %v292, %v293
        %v297 = vshrl.u32 %v282, 16
        %v299 = vrot.slane %v297, 7
        %v300 = vshll.u32 %v282, 16
        %v302 = vor.u32 %v299, %v300
        %v304 = vshrl.u32 %v283, 16
        %v306 = vrot.slane %v304, 7
        %v307 = vshll.u32 %v283, 16
        %v309 = vor.u32 %v306, %v307
        %v311 = vshrl.u32 %v284, 16
        %v313 = vrot.slane %v311, 7
        %v314 = vshll.u32 %v284, 16
        %v316 = vor.u32 %v313, %v314
        %v318 = vshrl.u32 %v285, 16
        %v320 = vrot.slane %v318, 7
        %v321 = vshll.u32 %v285, 16
        %v323 = vor.u32 %v320, %v321
        %v325 = vshrl.u32 %v286, 16
        %v327 = vrot.slane %v325, 7
        %v328 = vshll.u32 %v286, 16
        %v330 = vor.u32 %v327, %v328
        %v332 = vshrl.u32 %v287, 16
        %v334 = vrot.slane %v332, 7
        %v335 = vshll.u32 %v287, 16
        %v337 = vor.u32 %v334, %v335
        %v339 = vshrl.u32 %v288, 16
        %v341 = vrot.slane %v339, 7
        %v342 = vshll.u32 %v288, 16
        %v344 = vor.u32 %v341, %v342
        %vm353 = vcmask 1040384
        %vm354 = vsmask.f32 256
        %vm355 = vmand %vm353, %vm354
        %v356 = vsel %vm355, 0, %v295
        %v357 = vsel %vm355, 0, %v302
        %v358 = vsel %vm355, 0, %v309
        %v359 = vsel %vm355, 0, %v316
        %v360 = vsel %vm355, 0, %v323
        %v361 = vsel %vm355, 0, %v330
        %v362 = vsel %vm355, 0, %v337
        %v363 = vsel %vm355, 0, %v344
        %vm364 = vcmask 1044480
        %vm365 = vsmask.f32 4352
        %vm366 = vmand %vm364, %vm365
        %v367 = vsel %vm366, %v356, 0
        %v368 = vsel %vm366, %v357, 0
        %v369 = vsel %vm366, %v358, 0
        %v370 = vsel %vm366, %v359, 0
        %v371 = vsel %vm366, %v360, 0
        %v372 = vsel %vm366, %v361, 0
        %v373 = vsel %vm366, %v362, 0
        %v374 = vsel %vm366, %v363, 0
        %v376 = vshrl.u32 0, 16
        %v378 = vshll.u32 0, 16
        %v380 = vrot.slane %v378, 1
        %v381 = vor.u32 %v376, %v380
        %v383 = vshrl.u32 %v367, 16
        %v385 = vshll.u32 %v367, 16
        %v387 = vrot.slane %v385, 1
        %v388 = vor.u32 %v383, %v387
        %v390 = vshrl.u32 %v368, 16
        %v392 = vshll.u32 %v368, 16
        %v394 = vrot.slane %v392, 1
        %v395 = vor.u32 %v390, %v394
        %v397 = vshrl.u32 %v369, 16
        %v399 = vshll.u32 %v369, 16
        %v401 = vrot.slane %v399, 1
        %v402 = vor.u32 %v397, %v401
        %v404 = vshrl.u32 %v370, 16
        %v406 = vshll.u32 %v370, 16
        %v408 = vrot.slane %v406, 1
        %v409 = vor.u32 %v404, %v408
        %v411 = vshrl.u32 %v371, 16
        %v413 = vshll.u32 %v371, 16
        %v415 = vrot.slane %v413, 1
        %v416 = vor.u32 %v411, %v415
        %v418 = vshrl.u32 %v372, 16
        %v420 = vshll.u32 %v372, 16
        %v422 = vrot.slane %v420, 1
        %v423 = vor.u32 %v418, %v422
        %v425 = vshrl.u32 %v373, 16
        %v427 = vshll.u32 %v373, 16
        %v429 = vrot.slane %v427, 1
        %v430 = vor.u32 %v425, %v429
        %431 = vrot.lane.b32.xlu0 %v381, 2
        %v432 = vpop.permute.xlu0 %431
        %433 = vrot.lane.b32.xlu0 %v388, 2
        %v434 = vpop.permute.xlu0 %433
        %435 = vrot.lane.b32.xlu0 %v395, 2
        %v436 = vpop.permute.xlu0 %435
        %437 = vrot.lane.b32.xlu0 %v402, 2
        %v438 = vpop.permute.xlu0 %437
        %439 = vrot.lane.b32.xlu0 %v409, 2
        %v440 = vpop.permute.xlu0 %439
        %441 = vrot.lane.b32.xlu0 %v416, 2
        %v442 = vpop.permute.xlu0 %441
        %443 = vrot.lane.b32.xlu0 %v423, 2
        %v444 = vpop.permute.xlu0 %443
        %445 = vrot.lane.b32.xlu0 %v430, 2
        %v446 = vpop.permute.xlu0 %445
        %v455 = vrot.slane 0, 1
        %v456 = vrot.slane %v367, 1
        %v457 = vrot.slane %v368, 1
        %v458 = vrot.slane %v369, 1
        %v459 = vrot.slane %v370, 1
        %v460 = vrot.slane %v371, 1
        %v461 = vrot.slane %v372, 1
        %v462 = vrot.slane %v373, 1
        %463 = vrot.lane.b32.xlu0 %v455, 4
        %v464 = vpop.permute.xlu0 %463
        %465 = vrot.lane.b32.xlu0 %v456, 4
        %v466 = vpop.permute.xlu0 %465
        %467 = vrot.lane.b32.xlu0 %v457, 4
        %v468 = vpop.permute.xlu0 %467
        %469 = vrot.lane.b32.xlu0 %v458, 4
        %v470 = vpop.permute.xlu0 %469
        %471 = vrot.lane.b32.xlu0 %v459, 4
        %v472 = vpop.permute.xlu0 %471
        %473 = vrot.lane.b32.xlu0 %v460, 4
        %v474 = vpop.permute.xlu0 %473
        %475 = vrot.lane.b32.xlu0 %v461, 4
        %v476 = vpop.permute.xlu0 %475
        %477 = vrot.lane.b32.xlu0 %v462, 4
        %v478 = vpop.permute.xlu0 %477
        %vm479 = vcmask 15360
        %v481 = vsel %vm479, 0, %v432
        %v483 = vsel %vm479, %v367, %v434
        %v485 = vsel %vm479, %v368, %v436
        %v487 = vsel %vm479, %v369, %v438
        %v489 = vsel %vm479, %v370, %v440
        %v491 = vsel %vm479, %v371, %v442
        %v493 = vsel %vm479, %v372, %v444
        %v495 = vsel %vm479, %v373, %v446
        %vm496 = vcmask 31744
        %v498 = vsel %vm496, %v481, %v464
        %v500 = vsel %vm496, %v483, %v466
        %v502 = vsel %vm496, %v485, %v468
        %v504 = vsel %vm496, %v487, %v470
        %v506 = vsel %vm496, %v489, %v472
        %v508 = vsel %vm496, %v491, %v474
        %v510 = vsel %vm496, %v493, %v476
        %v512 = vsel %vm496, %v495, %v478
        %v513 = vld [vmem:[#allocation5] sm:$0x7]
        %v515 = vshrl.u32 %v374, 16
        %v517 = vshll.u32 %v374, 16
        %v519 = vrot.slane %v517, 1
        %v520 = vor.u32 %v515, %v519
        %521 = vrot.lane.b32.xlu0 %v520, 2
        %v522 = vpop.permute.xlu0 %521
        %v524 = vrot.slane %v374, 1
        %525 = vrot.lane.b32.xlu0 %v524, 4
        %v526 = vpop.permute.xlu0 %525
        %v528 = vsel %vm479, %v374, %v522
        %v530 = vsel %vm496, %v528, %v526
        %v531 = vld [vmem:[#allocation5] sm:$0x8]
        %v532 = vld [vmem:[#allocation5 + $0x4] sm:$0x3]
        %v541 = vunpack.c.l.b16 %v500
        %v542 = vunpack.c.l.b16 %v502
        %v543 = vunpack.c.l.b16 %v504
        %v544 = vunpack.c.l.b16 %v506
        %v545 = vunpack.c.l.b16 %v508
        %v546 = vunpack.c.l.b16 %v510
        %v547 = vunpack.c.l.b16 %v512
        %v548 = vunpack.c.l.b16 %v530
        %v549 = vpack.c.b16 %v542, %v541
        %v550 = vpack.c.b16 %v544, %v543
        %v551 = vpack.c.b16 %v546, %v545
        %v552 = vpack.c.b16 %v548, %v547
        %v555 = vunpack.c.l.b16 %v531
        %v556 = vunpack.c.l.b16 %v532
        %v557 = vpack.c.b16 %v556, %v555
        %v558 = vrot.slane %v557, 3
        %vm559 = vcmask 48128
        %v561 = vsel %vm559, %v549, 0
        %v564 = vsel %vm559, %v550, 0
        %v567 = vsel %vm559, %v551, 0
        %v570 = vsel %vm559, %v552, 0
        %vm572 = vcmask 1042432
        %v574 = vsel %vm572, %v558, 0
        %576 = vmatprep.subr.bf16.mxu0 0
        %577 = vmatpush1.bf16.msra.mxu0 %v574
        %578 = vmatprep.subr.bf16.mxu0 0
        %579 = vmatpush1.bf16.msra.mxu0 0
        %580 = vmatprep.subr.bf16.mxu0 0
        %581 = vmatpush1.bf16.msra.mxu0 0
        %582 = vmatprep.subr.bf16.mxu0 0
        %583 = vmatpush1.bf16.msra.mxu0 0
        %584 = vmatprep.subr.bf16.mxu0 0
        %585 = vmatpush1.bf16.msra.mxu0 0
        %586 = vmatprep.subr.bf16.mxu0 0
        %587 = vmatpush1.bf16.msra.mxu0 0
        %588 = vmatprep.subr.bf16.mxu0 0
        %589 = vmatpush1.bf16.msra.mxu0 0
        %590 = vmatprep.subr.bf16.mxu0 0
        %591 = vmatpush1.bf16.msra.mxu0 0
        %592 = vmatprep.subr.bf16.mxu0 0
        %593 = vmatpush1.bf16.msra.mxu0 0
        %594 = vmatprep.subr.bf16.mxu0 0
        %595 = vmatpush1.bf16.msra.mxu0 0
        %596 = vmatprep.subr.bf16.mxu0 0
        %597 = vmatpush1.bf16.msra.mxu0 0
        %598 = vmatprep.subr.bf16.mxu0 0
        %599 = vmatpush1.bf16.msra.mxu0 0
        %600 = vmatprep.subr.bf16.mxu0 0
        %601 = vmatpush1.bf16.msra.mxu0 0
        %602 = vmatprep.subr.bf16.mxu0 0
        %603 = vmatpush1.bf16.msra.mxu0 0
        %604 = vmatprep.subr.bf16.mxu0 0
        %605 = vmatpush1.bf16.msra.mxu0 0
        %606 = vmatprep.subr.bf16.mxu0 0
        %607 = vmatpush1.bf16.msra.mxu0 0
        %608 = vmatprep.mubr.bf16.mxu0 0
        %609 = vmatmul.mubr.bf16.gmra.mrb[0].mxu0 %v561
        %v610 = vpop.f32.mrb[0].mxu0
        %v611 = vadd.f32 0.0, %v610
        %v612 = vpop.f32.mrb[0].mxu0
        %v613 = vpop.f32.mrb[0].mxu0
        %v614 = vadd.f32 0.0, %v613
        %v615 = vpop.f32.mrb[0].mxu0
        %616 = vmatprep.mubr.bf16.mxu0 0
        %617 = vmatmul.mubr.bf16.gmra.mrb[0].mxu0 %v564
        %v618 = vpop.f32.mrb[0].mxu0
        %v619 = vadd.f32 0.0, %v618
        %v620 = vpop.f32.mrb[0].mxu0
        %v621 = vpop.f32.mrb[0].mxu0
        %v622 = vadd.f32 0.0, %v621
        %v623 = vpop.f32.mrb[0].mxu0
        %624 = vmatprep.mubr.bf16.mxu0 0
        %625 = vmatmul.mubr.bf16.gmra.mrb[0].mxu0 %v567
        %v626 = vpop.f32.mrb[0].mxu0
        %v627 = vadd.f32 0.0, %v626
        %v628 = vpop.f32.mrb[0].mxu0
        %v629 = vpop.f32.mrb[0].mxu0
        %v630 = vadd.f32 0.0, %v629
        %v631 = vpop.f32.mrb[0].mxu0
        %632 = vmatprep.mubr.bf16.mxu0 0
        %633 = vmatmul.mubr.bf16.gmra.mrb[0].mxu0 %v570
        %v634 = vpop.f32.mrb[0].mxu0
        %v635 = vadd.f32 0.0, %v634
        %v636 = vpop.f32.mrb[0].mxu0
        %v637 = vpop.f32.mrb[0].mxu0
        %v638 = vadd.f32 0.0, %v637
        %v639 = vpop.f32.mrb[0].mxu0
        %640 = vdwg.mxu0
        %v642 = vunpack.c.l.b16 %v498
        %v643 = vpack.c.b16 %v541, %v642
        %v644 = vpack.c.b16 %v543, %v542
        %v645 = vpack.c.b16 %v545, %v544
        %v646 = vpack.c.b16 %v547, %v546
        %v648 = vsel %vm559, %v643, 0
        %v651 = vsel %vm559, %v644, 0
        %v654 = vsel %vm559, %v645, 0
        %v657 = vsel %vm559, %v646, 0
        %v660 = vsel %vm572, %v513, 0
        %662 = vmatprep.subr.bf16.mxu0 0
        %663 = vmatpush1.bf16.msra.mxu0 %v660
        %664 = vmatprep.subr.bf16.mxu0 0
        %665 = vmatpush1.bf16.msra.mxu0 0
        %666 = vmatprep.subr.bf16.mxu0 0
        %667 = vmatpush1.bf16.msra.mxu0 0
        %668 = vmatprep.subr.bf16.mxu0 0
        %669 = vmatpush1.bf16.msra.mxu0 0
        %670 = vmatprep.subr.bf16.mxu0 0
        %671 = vmatpush1.bf16.msra.mxu0 0
        %672 = vmatprep.subr.bf16.mxu0 0
        %673 = vmatpush1.bf16.msra.mxu0 0
        %674 = vmatprep.subr.bf16.mxu0 0
        %675 = vmatpush1.bf16.msra.mxu0 0
        %676 = vmatprep.subr.bf16.mxu0 0
        %677 = vmatpush1.bf16.msra.mxu0 0
        %678 = vmatprep.subr.bf16.mxu0 0
        %679 = vmatpush1.bf16.msra.mxu0 0
        %680 = vmatprep.subr.bf16.mxu0 0
        %681 = vmatpush1.bf16.msra.mxu0 0
        %682 = vmatprep.subr.bf16.mxu0 0
        %683 = vmatpush1.bf16.msra.mxu0 0
        %684 = vmatprep.subr.bf16.mxu0 0
        %685 = vmatpush1.bf16.msra.mxu0 0
        %686 = vmatprep.subr.bf16.mxu0 0
        %687 = vmatpush1.bf16.msra.mxu0 0
        %688 = vmatprep.subr.bf16.mxu0 0
        %689 = vmatpush1.bf16.msra.mxu0 0
        %690 = vmatprep.subr.bf16.mxu0 0
        %691 = vmatpush1.bf16.msra.mxu0 0
        %692 = vmatprep.subr.bf16.mxu0 0
        %693 = vmatpush1.bf16.msra.mxu0 0
        %694 = vmatprep.mubr.bf16.mxu0 0
        %695 = vmatmul.mubr.bf16.gmra.mrb[0].mxu0 %v648
        %v696 = vpop.f32.mrb[0].mxu0
        %v697 = vadd.f32 %v611, %v696
        %v698 = vpop.f32.mrb[0].mxu0
        %v699 = vpop.f32.mrb[0].mxu0
        %v700 = vadd.f32 %v614, %v699
        %v701 = vpop.f32.mrb[0].mxu0
        %702 = vmatprep.mubr.bf16.mxu0 0
        %703 = vmatmul.mubr.bf16.gmra.mrb[0].mxu0 %v651
        %v704 = vpop.f32.mrb[0].mxu0
        %v705 = vadd.f32 %v619, %v704
        %v706 = vpop.f32.mrb[0].mxu0
        %v707 = vpop.f32.mrb[0].mxu0
        %v708 = vadd.f32 %v622, %v707
        %v709 = vpop.f32.mrb[0].mxu0
        %710 = vmatprep.mubr.bf16.mxu0 0
        %711 = vmatmul.mubr.bf16.gmra.mrb[0].mxu0 %v654
        %v712 = vpop.f32.mrb[0].mxu0
        %v713 = vadd.f32 %v627, %v712
        %v714 = vpop.f32.mrb[0].mxu0
        %v715 = vpop.f32.mrb[0].mxu0
        %v716 = vadd.f32 %v630, %v715
        %v717 = vpop.f32.mrb[0].mxu0
        %718 = vmatprep.mubr.bf16.mxu0 0
        %719 = vmatmul.mubr.bf16.gmra.mrb[0].mxu0 %v657
        %v720 = vpop.f32.mrb[0].mxu0
        %v721 = vadd.f32 %v635, %v720
        %v722 = vpop.f32.mrb[0].mxu0
        %v723 = vpop.f32.mrb[0].mxu0
        %v724 = vadd.f32 %v638, %v723
        %v725 = vpop.f32.mrb[0].mxu0
        %726 = vdwg.mxu0
        %v727 = vld [vmem:[#allocation5 + $0x4] sm:$0xc]
        %v728 = vld [vmem:[#allocation5 + $0x8] sm:$0x1]
        %v729 = vpack.c.b16 %v642, %v548
        %v732 = vunpack.c.l.b16 %v727
        %v733 = vunpack.c.l.b16 %v728
        %v734 = vpack.c.b16 %v733, %v732
        %v735 = vrot.slane %v734, 2
        %v737 = vsel %vm559, %v729, 0
        %v740 = vsel %vm572, %v735, 0
        %742 = vmatprep.subr.bf16.mxu0 0
        %743 = vmatpush1.bf16.msra.mxu0 %v740
        %744 = vmatprep.subr.bf16.mxu0 0
        %745 = vmatpush1.bf16.msra.mxu0 0
        %746 = vmatprep.subr.bf16.mxu0 0
        %747 = vmatpush1.bf16.msra.mxu0 0
        %748 = vmatprep.subr.bf16.mxu0 0
        %749 = vmatpush1.bf16.msra.mxu0 0
        %750 = vmatprep.subr.bf16.mxu0 0
        %751 = vmatpush1.bf16.msra.mxu0 0
        %752 = vmatprep.subr.bf16.mxu0 0
        %753 = vmatpush1.bf16.msra.mxu0 0
        %754 = vmatprep.subr.bf16.mxu0 0
        %755 = vmatpush1.bf16.msra.mxu0 0
        %756 = vmatprep.subr.bf16.mxu0 0
        %757 = vmatpush1.bf16.msra.mxu0 0
        %758 = vmatprep.subr.bf16.mxu0 0
        %759 = vmatpush1.bf16.msra.mxu0 0
        %760 = vmatprep.subr.bf16.mxu0 0
        %761 = vmatpush1.bf16.msra.mxu0 0
        %762 = vmatprep.subr.bf16.mxu0 0
        %763 = vmatpush1.bf16.msra.mxu0 0
        %764 = vmatprep.subr.bf16.mxu0 0
        %765 = vmatpush1.bf16.msra.mxu0 0
        %766 = vmatprep.subr.bf16.mxu0 0
        %767 = vmatpush1.bf16.msra.mxu0 0
        %768 = vmatprep.subr.bf16.mxu0 0
        %769 = vmatpush1.bf16.msra.mxu0 0
        %770 = vmatprep.subr.bf16.mxu0 0
        %771 = vmatpush1.bf16.msra.mxu0 0
        %772 = vmatprep.subr.bf16.mxu0 0
        %773 = vmatpush1.bf16.msra.mxu0 0
        %774 = vmatprep.mubr.bf16.mxu0 0
        %775 = vmatmul.mubr.bf16.gmra.mrb[0].mxu0 %v651
        %v776 = vpop.f32.mrb[0].mxu0
        %v777 = vadd.f32 0.0, %v776
        %v778 = vpop.f32.mrb[0].mxu0
        %v779 = vpop.f32.mrb[0].mxu0
        %v780 = vadd.f32 0.0, %v779
        %v781 = vpop.f32.mrb[0].mxu0
        %782 = vmatprep.mubr.bf16.mxu0 0
        %783 = vmatmul.mubr.bf16.gmra.mrb[0].mxu0 %v654
        %v784 = vpop.f32.mrb[0].mxu0
        %v785 = vadd.f32 0.0, %v784
        %v786 = vpop.f32.mrb[0].mxu0
        %v787 = vpop.f32.mrb[0].mxu0
        %v788 = vadd.f32 0.0, %v787
        %v789 = vpop.f32.mrb[0].mxu0
        %790 = vmatprep.mubr.bf16.mxu0 0
        %791 = vmatmul.mubr.bf16.gmra.mrb[0].mxu0 %v657
        %v792 = vpop.f32.mrb[0].mxu0
        %v793 = vadd.f32 0.0, %v792
        %v794 = vpop.f32.mrb[0].mxu0
        %v795 = vpop.f32.mrb[0].mxu0
        %v796 = vadd.f32 0.0, %v795
        %v797 = vpop.f32.mrb[0].mxu0
        %798 = vmatprep.mubr.bf16.mxu0 0
        %799 = vmatmul.mubr.bf16.gmra.mrb[0].mxu0 %v737
        %v800 = vpop.f32.mrb[0].mxu0
        %v801 = vadd.f32 0.0, %v800
        %v802 = vpop.f32.mrb[0].mxu0
        %v803 = vpop.f32.mrb[0].mxu0
        %v804 = vadd.f32 0.0, %v803
        %v805 = vpop.f32.mrb[0].mxu0
        %806 = vdwg.mxu0
        %v807 = vadd.f32 %v697, %v777
        %v808 = vadd.f32 %v700, %v780
        %v809 = vadd.f32 %v705, %v785
        %v810 = vadd.f32 %v708, %v788
        %v811 = vadd.f32 %v713, %v793
        %v812 = vadd.f32 %v716, %v796
        %v813 = vadd.f32 %v721, %v801
        %v814 = vadd.f32 %v724, %v804
        %v815 = vld [vmem:[#allocation7] sm:$0x1]
        %v817 = vlaneseq
        %v818 = vshrl.u32 %v817, 7
        %v819 = vsub.s32 0, %v818
        %v820 = vrot.slane %v815, %v819
        %v822 = vmul.f32 %v807, %v820
        %v823 = vmul.f32 %v808, %v820
        %v824 = vmul.f32 %v809, %v820
        %v825 = vmul.f32 %v810, %v820
        %v826 = vmul.f32 %v811, %v820
        %v827 = vmul.f32 %v812, %v820
        %v828 = vmul.f32 %v813, %v820
        %v829 = vmul.f32 %v814, %v820
        %v830 = vld [vmem:[#allocation8] sm:$0x1]
        %v832 = vlaneseq
        %v833 = vshrl.u32 %v832, 7
        %v834 = vsub.s32 0, %v833
        %v835 = vrot.slane %v830, %v834
        %v837 = vadd.f32 %v822, %v835
        %v838 = vadd.f32 %v823, %v835
        %v839 = vadd.f32 %v824, %v835
        %v840 = vadd.f32 %v825, %v835
        %v841 = vadd.f32 %v826, %v835
        %v842 = vadd.f32 %v827, %v835
        %v843 = vadd.f32 %v828, %v835
        %v844 = vadd.f32 %v829, %v835
        %v845 = vmax.f32 %v837, 0.0
        %v846 = vmax.f32 %v838, 0.0
        %v847 = vmax.f32 %v839, 0.0
        %v848 = vmax.f32 %v840, 0.0
        %v849 = vmax.f32 %v841, 0.0
        %v850 = vmax.f32 %v842, 0.0
        %v851 = vmax.f32 %v843, 0.0
        %v852 = vmax.f32 %v844, 0.0
        %v861 = vcombine.high %v845, %v845
        %v863 = vunpack.c.l.s4 1983009808
        %v864 = vunpack.c.0.s8 %v863
        %v865 = vlaneseq
        %v866 = vshrl.u32 %v865, 7
        %v867 = vsub.s32 %v864, %v866
        %v868 = vrot.slane %v845, %v867
        %v870 = vunpack.c.l.s4 1983009808
        %v871 = vunpack.c.0.s8 %v870
        %v872 = vlaneseq
        %v873 = vshrl.u32 %v872, 7
        %v874 = vsub.s32 %v871, %v873
        %v875 = vrot.slane %v861, %v874
        %v876 = vcombine.high %v868, %v868
        %v877 = vcombine.high %v875, %v875
        %v878 = vcombine.high %v846, %v846
        %v880 = vunpack.c.l.s4 1983009808
        %v881 = vunpack.c.0.s8 %v880
        %v882 = vlaneseq
        %v883 = vshrl.u32 %v882, 7
        %v884 = vsub.s32 %v881, %v883
        %v885 = vrot.slane %v846, %v884
        %v887 = vunpack.c.l.s4 1983009808
        %v888 = vunpack.c.0.s8 %v887
        %v889 = vlaneseq
        %v890 = vshrl.u32 %v889, 7
        %v891 = vsub.s32 %v888, %v890
        %v892 = vrot.slane %v878, %v891
        %v893 = vcombine.high %v885, %v885
        %v894 = vcombine.high %v892, %v892
        %v895 = vcombine.high %v847, %v847
        %v897 = vunpack.c.l.s4 1983009808
        %v898 = vunpack.c.0.s8 %v897
        %v899 = vlaneseq
        %v900 = vshrl.u32 %v899, 7
        %v901 = vsub.s32 %v898, %v900
        %v902 = vrot.slane %v847, %v901
        %v904 = vunpack.c.l.s4 1983009808
        %v905 = vunpack.c.0.s8 %v904
        %v906 = vlaneseq
        %v907 = vshrl.u32 %v906, 7
        %v908 = vsub.s32 %v905, %v907
        %v909 = vrot.slane %v895, %v908
        %v910 = vcombine.high %v902, %v902
        %v911 = vcombine.high %v909, %v909
        %v912 = vcombine.high %v848, %v848
        %v914 = vunpack.c.l.s4 1983009808
        %v915 = vunpack.c.0.s8 %v914
        %v916 = vlaneseq
        %v917 = vshrl.u32 %v916, 7
        %v918 = vsub.s32 %v915, %v917
        %v919 = vrot.slane %v848, %v918
        %v921 = vunpack.c.l.s4 1983009808
        %v922 = vunpack.c.0.s8 %v921
        %v923 = vlaneseq
        %v924 = vshrl.u32 %v923, 7
        %v925 = vsub.s32 %v922, %v924
        %v926 = vrot.slane %v912, %v925
        %v927 = vcombine.high %v919, %v919
        %v928 = vcombine.high %v926, %v926
        %v929 = vcombine.high %v849, %v849
        %v931 = vunpack.c.l.s4 1983009808
        %v932 = vunpack.c.0.s8 %v931
        %v933 = vlaneseq
        %v934 = vshrl.u32 %v933, 7
        %v935 = vsub.s32 %v932, %v934
        %v936 = vrot.slane %v849, %v935
        %v938 = vunpack.c.l.s4 1983009808
        %v939 = vunpack.c.0.s8 %v938
        %v940 = vlaneseq
        %v941 = vshrl.u32 %v940, 7
        %v942 = vsub.s32 %v939, %v941
        %v943 = vrot.slane %v929, %v942
        %v944 = vcombine.high %v936, %v936
        %v945 = vcombine.high %v943, %v943
        %v946 = vcombine.high %v850, %v850
        %v948 = vunpack.c.l.s4 1983009808
        %v949 = vunpack.c.0.s8 %v948
        %v950 = vlaneseq
        %v951 = vshrl.u32 %v950, 7
        %v952 = vsub.s32 %v949, %v951
        %v953 = vrot.slane %v850, %v952
        %v955 = vunpack.c.l.s4 1983009808
        %v956 = vunpack.c.0.s8 %v955
        %v957 = vlaneseq
        %v958 = vshrl.u32 %v957, 7
        %v959 = vsub.s32 %v956, %v958
        %v960 = vrot.slane %v946, %v959
        %v961 = vcombine.high %v953, %v953
        %v962 = vcombine.high %v960, %v960
        %v963 = vcombine.high %v851, %v851
        %v965 = vunpack.c.l.s4 1983009808
        %v966 = vunpack.c.0.s8 %v965
        %v967 = vlaneseq
        %v968 = vshrl.u32 %v967, 7
        %v969 = vsub.s32 %v966, %v968
        %v970 = vrot.slane %v851, %v969
        %v972 = vunpack.c.l.s4 1983009808
        %v973 = vunpack.c.0.s8 %v972
        %v974 = vlaneseq
        %v975 = vshrl.u32 %v974, 7
        %v976 = vsub.s32 %v973, %v975
        %v977 = vrot.slane %v963, %v976
        %v978 = vcombine.high %v970, %v970
        %v979 = vcombine.high %v977, %v977
        %v980 = vcombine.high %v852, %v852
        %v982 = vunpack.c.l.s4 1983009808
        %v983 = vunpack.c.0.s8 %v982
        %v984 = vlaneseq
        %v985 = vshrl.u32 %v984, 7
        %v986 = vsub.s32 %v983, %v985
        %v987 = vrot.slane %v852, %v986
        %v989 = vunpack.c.l.s4 1983009808
        %v990 = vunpack.c.0.s8 %v989
        %v991 = vlaneseq
        %v992 = vshrl.u32 %v991, 7
        %v993 = vsub.s32 %v990, %v992
        %v994 = vrot.slane %v980, %v993
        %v995 = vcombine.high %v987, %v987
        %v996 = vcombine.high %v994, %v994
        %v1029 = vrot.slane %v868, 7
        %v1030 = vrot.slane %v1029, 2
        %v1031 = vrot.slane %v876, 7
        %v1032 = vrot.slane %v1031, 2
        %v1033 = vrot.slane %v875, 7
        %v1034 = vrot.slane %v1033, 2
        %v1035 = vrot.slane %v877, 7
        %v1036 = vrot.slane %v1035, 2
        %v1037 = vrot.slane %v885, 7
        %v1038 = vrot.slane %v1037, 2
        %v1039 = vrot.slane %v893, 7
        %v1040 = vrot.slane %v1039, 2
        %v1041 = vrot.slane %v892, 7
        %v1042 = vrot.slane %v1041, 2
        %v1043 = vrot.slane %v894, 7
        %v1044 = vrot.slane %v1043, 2
        %v1045 = vrot.slane %v902, 7
        %v1046 = vrot.slane %v1045, 2
        %v1047 = vrot.slane %v910, 7
        %v1048 = vrot.slane %v1047, 2
        %v1049 = vrot.slane %v909, 7
        %v1050 = vrot.slane %v1049, 2
        %v1051 = vrot.slane %v911, 7
        %v1052 = vrot.slane %v1051, 2
        %v1053 = vrot.slane %v919, 7
        %v1054 = vrot.slane %v1053, 2
        %v1055 = vrot.slane %v927, 7
        %v1056 = vrot.slane %v1055, 2
        %v1057 = vrot.slane %v926, 7
        %v1058 = vrot.slane %v1057, 2
        %v1059 = vrot.slane %v928, 7
        %v1060 = vrot.slane %v1059, 2
        %v1061 = vrot.slane %v936, 7
        %v1062 = vrot.slane %v1061, 2
        %v1063 = vrot.slane %v944, 7
        %v1064 = vrot.slane %v1063, 2
        %v1065 = vrot.slane %v943, 7
        %v1066 = vrot.slane %v1065, 2
        %v1067 = vrot.slane %v945, 7
        %v1068 = vrot.slane %v1067, 2
        %v1069 = vrot.slane %v953, 7
        %v1070 = vrot.slane %v1069, 2
        %v1071 = vrot.slane %v961, 7
        %v1072 = vrot.slane %v1071, 2
        %v1073 = vrot.slane %v960, 7
        %v1074 = vrot.slane %v1073, 2
        %v1075 = vrot.slane %v962, 7
        %v1076 = vrot.slane %v1075, 2
        %v1077 = vrot.slane %v970, 7
        %v1078 = vrot.slane %v1077, 2
        %v1079 = vrot.slane %v978, 7
        %v1080 = vrot.slane %v1079, 2
        %v1081 = vrot.slane %v977, 7
        %v1082 = vrot.slane %v1081, 2
        %v1083 = vrot.slane %v979, 7
        %v1084 = vrot.slane %v1083, 2
        %v1085 = vrot.slane %v987, 7
        %v1086 = vrot.slane %v1085, 2
        %v1087 = vrot.slane %v995, 7
        %v1088 = vrot.slane %v1087, 2
        %v1089 = vrot.slane %v994, 7
        %v1090 = vrot.slane %v1089, 2
        %v1091 = vrot.slane %v996, 7
        %v1092 = vrot.slane %v1091, 2
        %v1125 = vmax.f32 %v868, %v1030
        %v1126 = vmax.f32 %v876, %v1032
        %v1127 = vmax.f32 %v875, %v1034
        %v1128 = vmax.f32 %v877, %v1036
        %v1129 = vmax.f32 %v885, %v1038
        %v1130 = vmax.f32 %v893, %v1040
        %v1131 = vmax.f32 %v892, %v1042
        %v1132 = vmax.f32 %v894, %v1044
        %v1133 = vmax.f32 %v902, %v1046
        %v1134 = vmax.f32 %v910, %v1048
        %v1135 = vmax.f32 %v909, %v1050
        %v1136 = vmax.f32 %v911, %v1052
        %v1137 = vmax.f32 %v919, %v1054
        %v1138 = vmax.f32 %v927, %v1056
        %v1139 = vmax.f32 %v926, %v1058
        %v1140 = vmax.f32 %v928, %v1060
        %v1141 = vmax.f32 %v936, %v1062
        %v1142 = vmax.f32 %v944, %v1064
        %v1143 = vmax.f32 %v943, %v1066
        %v1144 = vmax.f32 %v945, %v1068
        %v1145 = vmax.f32 %v953, %v1070
        %v1146 = vmax.f32 %v961, %v1072
        %v1147 = vmax.f32 %v960, %v1074
        %v1148 = vmax.f32 %v962, %v1076
        %v1149 = vmax.f32 %v970, %v1078
        %v1150 = vmax.f32 %v978, %v1080
        %v1151 = vmax.f32 %v977, %v1082
        %v1152 = vmax.f32 %v979, %v1084
        %v1153 = vmax.f32 %v987, %v1086
        %v1154 = vmax.f32 %v995, %v1088
        %v1155 = vmax.f32 %v994, %v1090
        %v1156 = vmax.f32 %v996, %v1092
        %v1157 = vpack.c.bf16 %v1125, %v1125
        %v1158 = vpack.c.bf16 %v1126, %v1126
        %v1159 = vpack.c.bf16 %v1127, %v1127
        %v1160 = vpack.c.bf16 %v1128, %v1128
        %v1161 = vpack.c.bf16 %v1129, %v1129
        %v1162 = vpack.c.bf16 %v1130, %v1130
        %v1163 = vpack.c.bf16 %v1131, %v1131
        %v1164 = vpack.c.bf16 %v1132, %v1132
        %v1165 = vpack.c.bf16 %v1133, %v1133
        %v1166 = vpack.c.bf16 %v1134, %v1134
        %v1167 = vpack.c.bf16 %v1135, %v1135
        %v1168 = vpack.c.bf16 %v1136, %v1136
        %v1169 = vpack.c.bf16 %v1137, %v1137
        %v1170 = vpack.c.bf16 %v1138, %v1138
        %v1171 = vpack.c.bf16 %v1139, %v1139
        %v1172 = vpack.c.bf16 %v1140, %v1140
        %v1173 = vpack.c.bf16 %v1141, %v1141
        %v1174 = vpack.c.bf16 %v1142, %v1142
        %v1175 = vpack.c.bf16 %v1143, %v1143
        %v1176 = vpack.c.bf16 %v1144, %v1144
        %v1177 = vpack.c.bf16 %v1145, %v1145
        %v1178 = vpack.c.bf16 %v1146, %v1146
        %v1179 = vpack.c.bf16 %v1147, %v1147
        %v1180 = vpack.c.bf16 %v1148, %v1148
        %v1181 = vpack.c.bf16 %v1149, %v1149
        %v1182 = vpack.c.bf16 %v1150, %v1150
        %v1183 = vpack.c.bf16 %v1151, %v1151
        %v1184 = vpack.c.bf16 %v1152, %v1152
        %v1185 = vpack.c.bf16 %v1153, %v1153
        %v1186 = vpack.c.bf16 %v1154, %v1154
        %v1187 = vpack.c.bf16 %v1155, %v1155
        %v1188 = vpack.c.bf16 %v1156, %v1156
        %v1222 = vunpack.c.l.s4 1983009808
        %v1223 = vunpack.c.0.s8 %v1222
        %v1224 = vlaneseq
        %v1225 = vshrl.u32 %v1224, 7
        %v1226 = vsub.s32 %v1223, %v1225
        %v1227 = vrot.slane %v1157, %v1226
        %v1229 = vunpack.c.l.s4 1983009808
        %v1230 = vunpack.c.0.s8 %v1229
        %v1231 = vlaneseq
        %v1232 = vshrl.u32 %v1231, 7
        %v1233 = vsub.s32 %v1230, %v1232
        %v1234 = vrot.slane %v1158, %v1233
        %v1236 = vunpack.c.l.s4 1983009808
        %v1237 = vunpack.c.0.s8 %v1236
        %v1238 = vlaneseq
        %v1239 = vshrl.u32 %v1238, 7
        %v1240 = vsub.s32 %v1237, %v1239
        %v1241 = vrot.slane %v1159, %v1240
        %v1243 = vunpack.c.l.s4 1983009808
        %v1244 = vunpack.c.0.s8 %v1243
        %v1245 = vlaneseq
        %v1246 = vshrl.u32 %v1245, 7
        %v1247 = vsub.s32 %v1244, %v1246
        %v1248 = vrot.slane %v1160, %v1247
        %v1250 = vunpack.c.l.s4 1983009808
        %v1251 = vunpack.c.0.s8 %v1250
        %v1252 = vlaneseq
        %v1253 = vshrl.u32 %v1252, 7
        %v1254 = vsub.s32 %v1251, %v1253
        %v1255 = vrot.slane %v1161, %v1254
        %v1257 = vunpack.c.l.s4 1983009808
        %v1258 = vunpack.c.0.s8 %v1257
        %v1259 = vlaneseq
        %v1260 = vshrl.u32 %v1259, 7
        %v1261 = vsub.s32 %v1258, %v1260
        %v1262 = vrot.slane %v1162, %v1261
        %v1264 = vunpack.c.l.s4 1983009808
        %v1265 = vunpack.c.0.s8 %v1264
        %v1266 = vlaneseq
        %v1267 = vshrl.u32 %v1266, 7
        %v1268 = vsub.s32 %v1265, %v1267
        %v1269 = vrot.slane %v1163, %v1268
        %v1271 = vunpack.c.l.s4 1983009808
        %v1272 = vunpack.c.0.s8 %v1271
        %v1273 = vlaneseq
        %v1274 = vshrl.u32 %v1273, 7
        %v1275 = vsub.s32 %v1272, %v1274
        %v1276 = vrot.slane %v1164, %v1275
        %v1278 = vunpack.c.l.s4 1983009808
        %v1279 = vunpack.c.0.s8 %v1278
        %v1280 = vlaneseq
        %v1281 = vshrl.u32 %v1280, 7
        %v1282 = vsub.s32 %v1279, %v1281
        %v1283 = vrot.slane %v1165, %v1282
        %v1285 = vunpack.c.l.s4 1983009808
        %v1286 = vunpack.c.0.s8 %v1285
        %v1287 = vlaneseq
        %v1288 = vshrl.u32 %v1287, 7
        %v1289 = vsub.s32 %v1286, %v1288
        %v1290 = vrot.slane %v1166, %v1289
        %v1292 = vunpack.c.l.s4 1983009808
        %v1293 = vunpack.c.0.s8 %v1292
        %v1294 = vlaneseq
        %v1295 = vshrl.u32 %v1294, 7
        %v1296 = vsub.s32 %v1293, %v1295
        %v1297 = vrot.slane %v1167, %v1296
        %v1299 = vunpack.c.l.s4 1983009808
        %v1300 = vunpack.c.0.s8 %v1299
        %v1301 = vlaneseq
        %v1302 = vshrl.u32 %v1301, 7
        %v1303 = vsub.s32 %v1300, %v1302
        %v1304 = vrot.slane %v1168, %v1303
        %v1306 = vunpack.c.l.s4 1983009808
        %v1307 = vunpack.c.0.s8 %v1306
        %v1308 = vlaneseq
        %v1309 = vshrl.u32 %v1308, 7
        %v1310 = vsub.s32 %v1307, %v1309
        %v1311 = vrot.slane %v1169, %v1310
        %v1313 = vunpack.c.l.s4 1983009808
        %v1314 = vunpack.c.0.s8 %v1313
        %v1315 = vlaneseq
        %v1316 = vshrl.u32 %v1315, 7
        %v1317 = vsub.s32 %v1314, %v1316
        %v1318 = vrot.slane %v1170, %v1317
        %v1320 = vunpack.c.l.s4 1983009808
        %v1321 = vunpack.c.0.s8 %v1320
        %v1322 = vlaneseq
        %v1323 = vshrl.u32 %v1322, 7
        %v1324 = vsub.s32 %v1321, %v1323
        %v1325 = vrot.slane %v1171, %v1324
        %v1327 = vunpack.c.l.s4 1983009808
        %v1328 = vunpack.c.0.s8 %v1327
        %v1329 = vlaneseq
        %v1330 = vshrl.u32 %v1329, 7
        %v1331 = vsub.s32 %v1328, %v1330
        %v1332 = vrot.slane %v1172, %v1331
        %v1334 = vunpack.c.l.s4 1983009808
        %v1335 = vunpack.c.0.s8 %v1334
        %v1336 = vlaneseq
        %v1337 = vshrl.u32 %v1336, 7
        %v1338 = vsub.s32 %v1335, %v1337
        %v1339 = vrot.slane %v1173, %v1338
        %v1341 = vunpack.c.l.s4 1983009808
        %v1342 = vunpack.c.0.s8 %v1341
        %v1343 = vlaneseq
        %v1344 = vshrl.u32 %v1343, 7
        %v1345 = vsub.s32 %v1342, %v1344
        %v1346 = vrot.slane %v1174, %v1345
        %v1348 = vunpack.c.l.s4 1983009808
        %v1349 = vunpack.c.0.s8 %v1348
        %v1350 = vlaneseq
        %v1351 = vshrl.u32 %v1350, 7
        %v1352 = vsub.s32 %v1349, %v1351
        %v1353 = vrot.slane %v1175, %v1352
        %v1355 = vunpack.c.l.s4 1983009808
        %v1356 = vunpack.c.0.s8 %v1355
        %v1357 = vlaneseq
        %v1358 = vshrl.u32 %v1357, 7
        %v1359 = vsub.s32 %v1356, %v1358
        %v1360 = vrot.slane %v1176, %v1359
        %v1362 = vunpack.c.l.s4 1983009808
        %v1363 = vunpack.c.0.s8 %v1362
        %v1364 = vlaneseq
        %v1365 = vshrl.u32 %v1364, 7
        %v1366 = vsub.s32 %v1363, %v1365
        %v1367 = vrot.slane %v1177, %v1366
        %v1369 = vunpack.c.l.s4 1983009808
        %v1370 = vunpack.c.0.s8 %v1369
        %v1371 = vlaneseq
        %v1372 = vshrl.u32 %v1371, 7
        %v1373 = vsub.s32 %v1370, %v1372
        %v1374 = vrot.slane %v1178, %v1373
        %v1376 = vunpack.c.l.s4 1983009808
        %v1377 = vunpack.c.0.s8 %v1376
        %v1378 = vlaneseq
        %v1379 = vshrl.u32 %v1378, 7
        %v1380 = vsub.s32 %v1377, %v1379
        %v1381 = vrot.slane %v1179, %v1380
        %v1383 = vunpack.c.l.s4 1983009808
        %v1384 = vunpack.c.0.s8 %v1383
        %v1385 = vlaneseq
        %v1386 = vshrl.u32 %v1385, 7
        %v1387 = vsub.s32 %v1384, %v1386
        %v1388 = vrot.slane %v1180, %v1387
        %v1390 = vunpack.c.l.s4 1983009808
        %v1391 = vunpack.c.0.s8 %v1390
        %v1392 = vlaneseq
        %v1393 = vshrl.u32 %v1392, 7
        %v1394 = vsub.s32 %v1391, %v1393
        %v1395 = vrot.slane %v1181, %v1394
        %v1397 = vunpack.c.l.s4 1983009808
        %v1398 = vunpack.c.0.s8 %v1397
        %v1399 = vlaneseq
        %v1400 = vshrl.u32 %v1399, 7
        %v1401 = vsub.s32 %v1398, %v1400
        %v1402 = vrot.slane %v1182, %v1401
        %v1404 = vunpack.c.l.s4 1983009808
        %v1405 = vunpack.c.0.s8 %v1404
        %v1406 = vlaneseq
        %v1407 = vshrl.u32 %v1406, 7
        %v1408 = vsub.s32 %v1405, %v1407
        %v1409 = vrot.slane %v1183, %v1408
        %v1411 = vunpack.c.l.s4 1983009808
        %v1412 = vunpack.c.0.s8 %v1411
        %v1413 = vlaneseq
        %v1414 = vshrl.u32 %v1413, 7
        %v1415 = vsub.s32 %v1412, %v1414
        %v1416 = vrot.slane %v1184, %v1415
        %v1418 = vunpack.c.l.s4 1983009808
        %v1419 = vunpack.c.0.s8 %v1418
        %v1420 = vlaneseq
        %v1421 = vshrl.u32 %v1420, 7
        %v1422 = vsub.s32 %v1419, %v1421
        %v1423 = vrot.slane %v1185, %v1422
        %v1425 = vunpack.c.l.s4 1983009808
        %v1426 = vunpack.c.0.s8 %v1425
        %v1427 = vlaneseq
        %v1428 = vshrl.u32 %v1427, 7
        %v1429 = vsub.s32 %v1426, %v1428
        %v1430 = vrot.slane %v1186, %v1429
        %v1432 = vunpack.c.l.s4 1983009808
        %v1433 = vunpack.c.0.s8 %v1432
        %v1434 = vlaneseq
        %v1435 = vshrl.u32 %v1434, 7
        %v1436 = vsub.s32 %v1433, %v1435
        %v1437 = vrot.slane %v1187, %v1436
        %v1439 = vunpack.c.l.s4 1983009808
        %v1440 = vunpack.c.0.s8 %v1439
        %v1441 = vlaneseq
        %v1442 = vshrl.u32 %v1441, 7
        %v1443 = vsub.s32 %v1440, %v1442
        %v1444 = vrot.slane %v1188, %v1443
        %v1446 = vunpack.c.l.s4 1983009808
        %v1447 = vunpack.c.0.s8 %v1446
        %v1448 = vlaneseq
        %v1449 = vshrl.u32 %v1448, 7
        %v1450 = vsub.s32 %v1447, %v1449
        %v1451 = vrot.slane %v1227, %v1450
        %v1453 = vunpack.c.l.s4 1983009808
        %v1454 = vunpack.c.0.s8 %v1453
        %v1455 = vlaneseq
        %v1456 = vshrl.u32 %v1455, 7
        %v1457 = vsub.s32 %v1454, %v1456
        %v1458 = vrot.slane %v1234, %v1457
        %v1460 = vunpack.c.l.s4 1983009808
        %v1461 = vunpack.c.0.s8 %v1460
        %v1462 = vlaneseq
        %v1463 = vshrl.u32 %v1462, 7
        %v1464 = vsub.s32 %v1461, %v1463
        %v1465 = vrot.slane %v1241, %v1464
        %v1467 = vunpack.c.l.s4 1983009808
        %v1468 = vunpack.c.0.s8 %v1467
        %v1469 = vlaneseq
        %v1470 = vshrl.u32 %v1469, 7
        %v1471 = vsub.s32 %v1468, %v1470
        %v1472 = vrot.slane %v1248, %v1471
        %v1474 = vunpack.c.l.s4 1983009808
        %v1475 = vunpack.c.0.s8 %v1474
        %v1476 = vlaneseq
        %v1477 = vshrl.u32 %v1476, 7
        %v1478 = vsub.s32 %v1475, %v1477
        %v1479 = vrot.slane %v1255, %v1478
        %v1481 = vunpack.c.l.s4 1983009808
        %v1482 = vunpack.c.0.s8 %v1481
        %v1483 = vlaneseq
        %v1484 = vshrl.u32 %v1483, 7
        %v1485 = vsub.s32 %v1482, %v1484
        %v1486 = vrot.slane %v1262, %v1485
        %v1488 = vunpack.c.l.s4 1983009808
        %v1489 = vunpack.c.0.s8 %v1488
        %v1490 = vlaneseq
        %v1491 = vshrl.u32 %v1490, 7
        %v1492 = vsub.s32 %v1489, %v1491
        %v1493 = vrot.slane %v1269, %v1492
        %v1495 = vunpack.c.l.s4 1983009808
        %v1496 = vunpack.c.0.s8 %v1495
        %v1497 = vlaneseq
        %v1498 = vshrl.u32 %v1497, 7
        %v1499 = vsub.s32 %v1496, %v1498
        %v1500 = vrot.slane %v1276, %v1499
        %v1502 = vunpack.c.l.s4 1983009808
        %v1503 = vunpack.c.0.s8 %v1502
        %v1504 = vlaneseq
        %v1505 = vshrl.u32 %v1504, 7
        %v1506 = vsub.s32 %v1503, %v1505
        %v1507 = vrot.slane %v1283, %v1506
        %v1509 = vunpack.c.l.s4 1983009808
        %v1510 = vunpack.c.0.s8 %v1509
        %v1511 = vlaneseq
        %v1512 = vshrl.u32 %v1511, 7
        %v1513 = vsub.s32 %v1510, %v1512
        %v1514 = vrot.slane %v1290, %v1513
        %v1516 = vunpack.c.l.s4 1983009808
        %v1517 = vunpack.c.0.s8 %v1516
        %v1518 = vlaneseq
        %v1519 = vshrl.u32 %v1518, 7
        %v1520 = vsub.s32 %v1517, %v1519
        %v1521 = vrot.slane %v1297, %v1520
        %v1523 = vunpack.c.l.s4 1983009808
        %v1524 = vunpack.c.0.s8 %v1523
        %v1525 = vlaneseq
        %v1526 = vshrl.u32 %v1525, 7
        %v1527 = vsub.s32 %v1524, %v1526
        %v1528 = vrot.slane %v1304, %v1527
        %v1530 = vunpack.c.l.s4 1983009808
        %v1531 = vunpack.c.0.s8 %v1530
        %v1532 = vlaneseq
        %v1533 = vshrl.u32 %v1532, 7
        %v1534 = vsub.s32 %v1531, %v1533
        %v1535 = vrot.slane %v1311, %v1534
        %v1537 = vunpack.c.l.s4 1983009808
        %v1538 = vunpack.c.0.s8 %v1537
        %v1539 = vlaneseq
        %v1540 = vshrl.u32 %v1539, 7
        %v1541 = vsub.s32 %v1538, %v1540
        %v1542 = vrot.slane %v1318, %v1541
        %v1544 = vunpack.c.l.s4 1983009808
        %v1545 = vunpack.c.0.s8 %v1544
        %v1546 = vlaneseq
        %v1547 = vshrl.u32 %v1546, 7
        %v1548 = vsub.s32 %v1545, %v1547
        %v1549 = vrot.slane %v1325, %v1548
        %v1551 = vunpack.c.l.s4 1983009808
        %v1552 = vunpack.c.0.s8 %v1551
        %v1553 = vlaneseq
        %v1554 = vshrl.u32 %v1553, 7
        %v1555 = vsub.s32 %v1552, %v1554
        %v1556 = vrot.slane %v1332, %v1555
        %v1558 = vunpack.c.l.s4 1983009808
        %v1559 = vunpack.c.0.s8 %v1558
        %v1560 = vlaneseq
        %v1561 = vshrl.u32 %v1560, 7
        %v1562 = vsub.s32 %v1559, %v1561
        %v1563 = vrot.slane %v1339, %v1562
        %v1565 = vunpack.c.l.s4 1983009808
        %v1566 = vunpack.c.0.s8 %v1565
        %v1567 = vlaneseq
        %v1568 = vshrl.u32 %v1567, 7
        %v1569 = vsub.s32 %v1566, %v1568
        %v1570 = vrot.slane %v1346, %v1569
        %v1572 = vunpack.c.l.s4 1983009808
        %v1573 = vunpack.c.0.s8 %v1572
        %v1574 = vlaneseq
        %v1575 = vshrl.u32 %v1574, 7
        %v1576 = vsub.s32 %v1573, %v1575
        %v1577 = vrot.slane %v1353, %v1576
        %v1579 = vunpack.c.l.s4 1983009808
        %v1580 = vunpack.c.0.s8 %v1579
        %v1581 = vlaneseq
        %v1582 = vshrl.u32 %v1581, 7
        %v1583 = vsub.s32 %v1580, %v1582
        %v1584 = vrot.slane %v1360, %v1583
        %v1586 = vunpack.c.l.s4 1983009808
        %v1587 = vunpack.c.0.s8 %v1586
        %v1588 = vlaneseq
        %v1589 = vshrl.u32 %v1588, 7
        %v1590 = vsub.s32 %v1587, %v1589
        %v1591 = vrot.slane %v1367, %v1590
        %v1593 = vunpack.c.l.s4 1983009808
        %v1594 = vunpack.c.0.s8 %v1593
        %v1595 = vlaneseq
        %v1596 = vshrl.u32 %v1595, 7
        %v1597 = vsub.s32 %v1594, %v1596
        %v1598 = vrot.slane %v1374, %v1597
        %v1600 = vunpack.c.l.s4 1983009808
        %v1601 = vunpack.c.0.s8 %v1600
        %v1602 = vlaneseq
        %v1603 = vshrl.u32 %v1602, 7
        %v1604 = vsub.s32 %v1601, %v1603
        %v1605 = vrot.slane %v1381, %v1604
        %v1607 = vunpack.c.l.s4 1983009808
        %v1608 = vunpack.c.0.s8 %v1607
        %v1609 = vlaneseq
        %v1610 = vshrl.u32 %v1609, 7
        %v1611 = vsub.s32 %v1608, %v1610
        %v1612 = vrot.slane %v1388, %v1611
        %v1614 = vunpack.c.l.s4 1983009808
        %v1615 = vunpack.c.0.s8 %v1614
        %v1616 = vlaneseq
        %v1617 = vshrl.u32 %v1616, 7
        %v1618 = vsub.s32 %v1615, %v1617
        %v1619 = vrot.slane %v1395, %v1618
        %v1621 = vunpack.c.l.s4 1983009808
        %v1622 = vunpack.c.0.s8 %v1621
        %v1623 = vlaneseq
        %v1624 = vshrl.u32 %v1623, 7
        %v1625 = vsub.s32 %v1622, %v1624
        %v1626 = vrot.slane %v1402, %v1625
        %v1628 = vunpack.c.l.s4 1983009808
        %v1629 = vunpack.c.0.s8 %v1628
        %v1630 = vlaneseq
        %v1631 = vshrl.u32 %v1630, 7
        %v1632 = vsub.s32 %v1629, %v1631
        %v1633 = vrot.slane %v1409, %v1632
        %v1635 = vunpack.c.l.s4 1983009808
        %v1636 = vunpack.c.0.s8 %v1635
        %v1637 = vlaneseq
        %v1638 = vshrl.u32 %v1637, 7
        %v1639 = vsub.s32 %v1636, %v1638
        %v1640 = vrot.slane %v1416, %v1639
        %v1642 = vunpack.c.l.s4 1983009808
        %v1643 = vunpack.c.0.s8 %v1642
        %v1644 = vlaneseq
        %v1645 = vshrl.u32 %v1644, 7
        %v1646 = vsub.s32 %v1643, %v1645
        %v1647 = vrot.slane %v1423, %v1646
        %v1649 = vunpack.c.l.s4 1983009808
        %v1650 = vunpack.c.0.s8 %v1649
        %v1651 = vlaneseq
        %v1652 = vshrl.u32 %v1651, 7
        %v1653 = vsub.s32 %v1650, %v1652
        %v1654 = vrot.slane %v1430, %v1653
        %v1656 = vunpack.c.l.s4 1983009808
        %v1657 = vunpack.c.0.s8 %v1656
        %v1658 = vlaneseq
        %v1659 = vshrl.u32 %v1658, 7
        %v1660 = vsub.s32 %v1657, %v1659
        %v1661 = vrot.slane %v1437, %v1660
        %v1663 = vunpack.c.l.s4 1983009808
        %v1664 = vunpack.c.0.s8 %v1663
        %v1665 = vlaneseq
        %v1666 = vshrl.u32 %v1665, 7
        %v1667 = vsub.s32 %v1664, %v1666
        %v1668 = vrot.slane %v1444, %v1667
        %v1669 = vunpack.c.l.b16 %v1451
        %v1670 = vunpack.c.l.b16 %v1458
        %v1671 = vunpack.c.l.b16 %v1465
        %v1672 = vunpack.c.l.b16 %v1472
        %v1673 = vunpack.c.l.b16 %v1479
        %v1674 = vunpack.c.l.b16 %v1486
        %v1675 = vunpack.c.l.b16 %v1493
        %v1676 = vunpack.c.l.b16 %v1500
        %v1677 = vunpack.c.l.b16 %v1507
        %v1678 = vunpack.c.l.b16 %v1514
        %v1679 = vunpack.c.l.b16 %v1521
        %v1680 = vunpack.c.l.b16 %v1528
        %v1681 = vunpack.c.l.b16 %v1535
        %v1682 = vunpack.c.l.b16 %v1542
        %v1683 = vunpack.c.l.b16 %v1549
        %v1684 = vunpack.c.l.b16 %v1556
        %v1685 = vunpack.c.l.b16 %v1563
        %v1686 = vunpack.c.l.b16 %v1570
        %v1687 = vunpack.c.l.b16 %v1577
        %v1688 = vunpack.c.l.b16 %v1584
        %v1689 = vunpack.c.l.b16 %v1591
        %v1690 = vunpack.c.l.b16 %v1598
        %v1691 = vunpack.c.l.b16 %v1605
        %v1692 = vunpack.c.l.b16 %v1612
        %v1693 = vunpack.c.l.b16 %v1619
        %v1694 = vunpack.c.l.b16 %v1626
        %v1695 = vunpack.c.l.b16 %v1633
        %v1696 = vunpack.c.l.b16 %v1640
        %v1697 = vunpack.c.l.b16 %v1647
        %v1698 = vunpack.c.l.b16 %v1654
        %v1699 = vunpack.c.l.b16 %v1661
        %v1700 = vunpack.c.l.b16 %v1668
        %v1701 = vrot.slane %v1670, 7
        %vm1702 = vcmask 1041409
        %v1703 = vsel %vm1702, %v1701, %v1669
        %v1704 = vrot.slane %v1671, 6
        %vm1705 = vcmask 1042434
        %v1706 = vsel %vm1705, %v1704, %v1703
        %v1707 = vrot.slane %v1672, 5
        %vm1708 = vcmask 1043459
        %v1709 = vsel %vm1708, %v1707, %v1706
        %v1710 = vrot.slane %v1674, 7
        %v1711 = vsel %vm1702, %v1710, %v1673
        %v1712 = vrot.slane %v1675, 6
        %v1713 = vsel %vm1705, %v1712, %v1711
        %v1714 = vrot.slane %v1676, 5
        %v1715 = vsel %vm1708, %v1714, %v1713
        %v1716 = vrot.slane %v1678, 7
        %v1717 = vsel %vm1702, %v1716, %v1677
        %v1718 = vrot.slane %v1679, 6
        %v1719 = vsel %vm1705, %v1718, %v1717
        %v1720 = vrot.slane %v1680, 5
        %v1721 = vsel %vm1708, %v1720, %v1719
        %v1722 = vrot.slane %v1682, 7
        %v1723 = vsel %vm1702, %v1722, %v1681
        %v1724 = vrot.slane %v1683, 6
        %v1725 = vsel %vm1705, %v1724, %v1723
        %v1726 = vrot.slane %v1684, 5
        %v1727 = vsel %vm1708, %v1726, %v1725
        %v1728 = vrot.slane %v1686, 7
        %v1729 = vsel %vm1702, %v1728, %v1685
        %v1730 = vrot.slane %v1687, 6
        %v1731 = vsel %vm1705, %v1730, %v1729
        %v1732 = vrot.slane %v1688, 5
        %v1733 = vsel %vm1708, %v1732, %v1731
        %v1734 = vrot.slane %v1690, 7
        %v1735 = vsel %vm1702, %v1734, %v1689
        %v1736 = vrot.slane %v1691, 6
        %v1737 = vsel %vm1705, %v1736, %v1735
        %v1738 = vrot.slane %v1692, 5
        %v1739 = vsel %vm1708, %v1738, %v1737
        %v1740 = vrot.slane %v1694, 7
        %v1741 = vsel %vm1702, %v1740, %v1693
        %v1742 = vrot.slane %v1695, 6
        %v1743 = vsel %vm1705, %v1742, %v1741
        %v1744 = vrot.slane %v1696, 5
        %v1745 = vsel %vm1708, %v1744, %v1743
        %v1746 = vrot.slane %v1698, 7
        %v1747 = vsel %vm1702, %v1746, %v1697
        %v1748 = vrot.slane %v1699, 6
        %v1749 = vsel %vm1705, %v1748, %v1747
        %v1750 = vrot.slane %v1700, 5
        %v1751 = vsel %vm1708, %v1750, %v1749
        %v1752 = vpack.c.b16 %v1709, %v1709
        %v1753 = vpack.c.b16 %v1715, %v1715
        %v1754 = vpack.c.b16 %v1721, %v1721
        %v1755 = vpack.c.b16 %v1727, %v1727
        %v1756 = vpack.c.b16 %v1733, %v1733
        %v1757 = vpack.c.b16 %v1739, %v1739
        %v1758 = vpack.c.b16 %v1745, %v1745
        %v1759 = vpack.c.b16 %v1751, %v1751
        %v1761 = vunpack.c.l.s4 1983009808
        %v1762 = vunpack.c.0.s8 %v1761
        %v1763 = vlaneseq
        %v1764 = vshrl.u32 %v1763, 7
        %v1765 = vsub.s32 %v1762, %v1764
        %v1766 = vrot.slane %v1752, %v1765
        %v1768 = vunpack.c.l.s4 1983009808
        %v1769 = vunpack.c.0.s8 %v1768
        %v1770 = vlaneseq
        %v1771 = vshrl.u32 %v1770, 7
        %v1772 = vsub.s32 %v1769, %v1771
        %v1773 = vrot.slane %v1753, %v1772
        %v1775 = vunpack.c.l.s4 1983009808
        %v1776 = vunpack.c.0.s8 %v1775
        %v1777 = vlaneseq
        %v1778 = vshrl.u32 %v1777, 7
        %v1779 = vsub.s32 %v1776, %v1778
        %v1780 = vrot.slane %v1754, %v1779
        %v1782 = vunpack.c.l.s4 1983009808
        %v1783 = vunpack.c.0.s8 %v1782
        %v1784 = vlaneseq
        %v1785 = vshrl.u32 %v1784, 7
        %v1786 = vsub.s32 %v1783, %v1785
        %v1787 = vrot.slane %v1755, %v1786
        %v1789 = vunpack.c.l.s4 1983009808
        %v1790 = vunpack.c.0.s8 %v1789
        %v1791 = vlaneseq
        %v1792 = vshrl.u32 %v1791, 7
        %v1793 = vsub.s32 %v1790, %v1792
        %v1794 = vrot.slane %v1756, %v1793
        %v1796 = vunpack.c.l.s4 1983009808
        %v1797 = vunpack.c.0.s8 %v1796
        %v1798 = vlaneseq
        %v1799 = vshrl.u32 %v1798, 7
        %v1800 = vsub.s32 %v1797, %v1799
        %v1801 = vrot.slane %v1757, %v1800
        %v1803 = vunpack.c.l.s4 1983009808
        %v1804 = vunpack.c.0.s8 %v1803
        %v1805 = vlaneseq
        %v1806 = vshrl.u32 %v1805, 7
        %v1807 = vsub.s32 %v1804, %v1806
        %v1808 = vrot.slane %v1758, %v1807
        %v1810 = vunpack.c.l.s4 1983009808
        %v1811 = vunpack.c.0.s8 %v1810
        %v1812 = vlaneseq
        %v1813 = vshrl.u32 %v1812, 7
        %v1814 = vsub.s32 %v1811, %v1813
        %v1815 = vrot.slane %v1759, %v1814
        %vm1824 = vcmask 25600
        %1825 = vst.msk [vmem:[%s255] sm:$0x3] %vm1824, %v1766
        %1826 = vst.msk [vmem:[%s255 + $0x2] sm:$0x3] %vm1824, %v1773
        %1827 = vst.msk [vmem:[%s255 + $0x4] sm:$0x3] %vm1824, %v1780
        %1828 = vst.msk [vmem:[%s255 + $0x6] sm:$0x3] %vm1824, %v1787
        %1829 = vst.msk [vmem:[%s255 + $0x8] sm:$0x3] %vm1824, %v1794
        %1830 = vst.msk [vmem:[%s255 + $0xa] sm:$0x3] %vm1824, %v1801
        %1831 = vst.msk [vmem:[%s255 + $0xc] sm:$0x3] %vm1824, %v1808
        %1832 = vst.msk [vmem:[%s255 + $0xe] sm:$0x3] %vm1824, %v1815
        %s1833 = sand.u32 %s120, 1
        %s1834 = scalar_lea.sflag [#allocation4], %s1833
        %s1835 = sand.u32 %s120, 1
        %s1836 = smul.addr %s1835, 16
        %s1837 = scalar_lea.vmem [#allocation10], %s1836
        // Predicated region
        $region53: #{cnn_lstm_forward.8} parent=35 // pred_check
          %p1838 = pneg %p130
        $region54: #{cnn_lstm_forward.8} parent=35 // pred_check_branch
          %1840 = sbr.rel (%p1838) target = $region56
        $region55: #{cnn_lstm_forward.8} parent=35 // pred_region
          %s1842 = ssub.s32 256, 256
          %1843 = vsyncadd %s1834, %s1842
          %s1844 = smul.addr %s23, 8
          %s1845 = smul.addr %s1844, 32
          %s1846 = scalar_lea.hbm %s4, %s1845
          %s1847 = sshll.u32 %s1837, 4
          %s1848 = int_to_ptr.vmem [resolvable:$true] %s1847
          %1853 = dma.vmem_to_hbm [thread:$0]  %s1848, 256, %s1846, %s1834, 32, 32, 2
        $region56: #{cnn_lstm_forward.8} parent=35 // pred_fallthru
          _
      $region36: #{cnn_lstm_forward.8} parent=5 // pred_fallthru
        _
      %p1854 = scmp.le.s32.totalorder 2, %s18
      // Predicated region
      $region57: #{cnn_lstm_forward.8} parent=5 // pred_check
        %p1855 = pneg %p1854
      $region58: #{cnn_lstm_forward.8} parent=5 // pred_check_branch
        %1857 = sbr.rel (%p1855) target = $region60
      $region59: #{cnn_lstm_forward.8} parent=5 // pred_region
        %s1858 = ssub.s32 %s18, 2
        // Predicated region
        $region61: #{cnn_lstm_forward.8} parent=59 // pred_check
          %p1859 = pneg %p136
        $region62: #{cnn_lstm_forward.8} parent=59 // pred_check_branch
          %1861 = sbr.rel (%p1859) target = $region64
        $region63: #{cnn_lstm_forward.8} parent=59 // pred_region
          %s1862 = sand.u32 %s121, 1
          %s1863 = scalar_lea.sflag [#allocation4], %s1862
          %s1864 = sand.u32 %s121, 1
          %s1865 = smul.addr %s1864, 16
          %s1866 = scalar_lea.vmem [#allocation10], %s1865
          %1867 = dma.done %s1863, 256
        $region64: #{cnn_lstm_forward.8} parent=59 // pred_fallthru
          _
      $region60: #{cnn_lstm_forward.8} parent=5 // pred_fallthru
        _
    $region6: #{cnn_lstm_forward.8} parent=1 // loop_footer
      %s22 = sadd.s32 1, %s18
    $region7: #{cnn_lstm_forward.8} parent=1 // loop_footer_branch
      %17 = sbr.rel target = $region3
    $region8: #{cnn_lstm_forward.8} parent=1 // loop_exit
      _
    %1868 = vsyncpa [#allocation3], 1
    %s1869 = scalar_lea.sflag [#allocation3], 1
    %1870 = vsyncpa %s1869, 1
    %1871 = vsyncpa [#allocation6], 1
    %1872 = vsyncpa [#allocation9], 1
    %1873 = vsyncpa [#allocation4], 1
    %s1874 = scalar_lea.sflag [#allocation4], 1
    %1875 = vsyncpa %s1874, 1

// kernel: cnn_lstm_forward.9
$region0: #{cnn_lstm_forward.9}
  #allocation0 [shape = 'u32[]', space=smem, size = 0x4, offset = 0x4, fixed_abs, tag = 'smem constant byte address 0x4 - core index']
  #allocation1 [shape = 'u32[144,128]{1,0:T(1,128)}', space=vmem, size = 0x12000, scoped, tag = 'internal scratch']
  #allocation2 [shape = 'f32[8,1,64]{2,1,0:T(1,128)}', space=vmem, size = 0x1000, scoped, tag = 'scratch operand']
  #allocation3 [shape = 'f32[8,1,64]{2,1,0:T(1,128)}', space=vmem, size = 0x1000, scoped, tag = 'scratch operand']
  #allocation4 [shape = 'bf16[8,1,16]{2,1,0:T(2,128)(2,1)}', space=vmem, size = 0x1000, scoped, tag = 'scratch operand']
  #allocation5 [shape = 'bf16[8,1,16]{2,1,0:T(2,128)(2,1)}', space=vmem, size = 0x1000, scoped, tag = 'scratch operand']
  %s0 = inlined_call_operand.hbm [shape: bf16[2,8,16], index: 0, kind: input, shape index: {}]
  %s1 = inlined_call_operand.hbm [shape: bf16[16,32], index: 1, kind: input, shape index: {}]
  %s2 = inlined_call_operand.hbm [shape: f32[1,32], index: 2, kind: input, shape index: {}]
  %s3 = inlined_call_operand.hbm [shape: bf16[32,64], index: 3, kind: input, shape index: {}]
  %s4 = inlined_call_operand.hbm [shape: bf16[16,64], index: 4, kind: input, shape index: {}]
  %s5 = inlined_call_operand.hbm [shape: f32[1,64], index: 5, kind: input, shape index: {}]
  %s6 = inlined_call_operand.hbm [shape: bf16[32,64], index: 6, kind: input, shape index: {}]
  %s7 = inlined_call_operand.hbm [shape: bf16[16,64], index: 7, kind: input, shape index: {}]
  %s8 = inlined_call_operand.hbm [shape: f32[1,64], index: 8, kind: input, shape index: {}]
  %s9 = inlined_call_operand.hbm [shape: bf16[16,8], index: 9, kind: input, shape index: {}]
  %s10 = inlined_call_operand.hbm [shape: bf16[16,8], index: 10, kind: input, shape index: {}]
  %s11 = inlined_call_operand.hbm [shape: f32[1,8], index: 11, kind: input, shape index: {}]
  %s12 = inlined_call_operand.hbm [shape: f32[2,8,8], index: 12, kind: output, shape index: {}]
  %s13 = sld [smem:[#allocation0]]
  $region136: #{cnn_lstm_forward.9} parent=0
    _
  %s15 = ssub.s32 1, %s13
  %s16 = scalar_select 0, %s15, %s13
  $region1: #{cnn_lstm_forward.9} parent=0
    #allocation6 [shape = 'u8[4096]{0}', space=vmem, size = 0x1000, scoped, tag = 'input window, operand 0']
    #allocation7 [shape = 's32[2]{0}', space=sflag, size = 0x8, scoped, tag = 'scoped memory for cnn_lstm_forward.9']
    #allocation8 [shape = 's32[2]{0}', space=sflag, size = 0x8, scoped, tag = 'scoped memory for cnn_lstm_forward.9']
    #allocation9 [shape = 'u8[4096]{0}', space=vmem, size = 0x1000, scoped, tag = 'input window, operand 1, single buffered']
    #allocation10 [shape = 's32[1]{0}', space=sflag, size = 0x4, scoped, tag = 'scoped memory for cnn_lstm_forward.9']
    #allocation11 [shape = 'u8[512]{0}', space=vmem, size = 0x400, scoped, tag = 'input window, operand 2, single buffered']
    #allocation12 [shape = 'u8[8192]{0}', space=vmem, size = 0x2000, scoped, tag = 'input window, operand 3, single buffered']
    #allocation13 [shape = 's32[1]{0}', space=sflag, size = 0x4, scoped, tag = 'scoped memory for cnn_lstm_forward.9']
    #allocation14 [shape = 'u8[4096]{0}', space=vmem, size = 0x1000, scoped, tag = 'input window, operand 4, single buffered']
    #allocation15 [shape = 'u8[512]{0}', space=vmem, size = 0x400, scoped, tag = 'input window, operand 5, single buffered']
    #allocation16 [shape = 's32[1]{0}', space=sflag, size = 0x4, scoped, tag = 'scoped memory for cnn_lstm_forward.9']
    #allocation17 [shape = 'u8[8192]{0}', space=vmem, size = 0x2000, scoped, tag = 'input window, operand 6, single buffered']
    #allocation18 [shape = 'u8[4096]{0}', space=vmem, size = 0x1000, scoped, tag = 'input window, operand 7, single buffered']
    #allocation19 [shape = 's32[1]{0}', space=sflag, size = 0x4, scoped, tag = 'scoped memory for cnn_lstm_forward.9']
    #allocation20 [shape = 'u8[512]{0}', space=vmem, size = 0x400, scoped, tag = 'input window, operand 8, single buffered']
    #allocation21 [shape = 'u8[4096]{0}', space=vmem, size = 0x1000, scoped, tag = 'input window, operand 9, single buffered']
    #allocation22 [shape = 's32[1]{0}', space=sflag, size = 0x4, scoped, tag = 'scoped memory for cnn_lstm_forward.9']
    #allocation23 [shape = 'u8[4096]{0}', space=vmem, size = 0x1000, scoped, tag = 'input window, operand 10, single buffered']
    #allocation24 [shape = 'u8[512]{0}', space=vmem, size = 0x400, scoped, tag = 'input window, operand 11, single buffered']
    #allocation25 [shape = 's32[1]{0}', space=sflag, size = 0x4, scoped, tag = 'scoped memory for cnn_lstm_forward.9']
    #allocation26 [shape = 'u8[8192]{0}', space=vmem, size = 0x2000, scoped, tag = 'output window, operand 0']
    %17 = vsyncpa [#allocation7], 0
    %s18 = scalar_lea.sflag [#allocation7], 1
    %19 = vsyncpa %s18, 0
    %20 = vsyncpa [#allocation10], 0
    %21 = vsyncpa [#allocation13], 0
    %22 = vsyncpa [#allocation16], 0
    %23 = vsyncpa [#allocation19], 0
    %24 = vsyncpa [#allocation22], 0
    %25 = vsyncpa [#allocation25], 0
    %26 = vsyncpa [#allocation8], 0
    %s27 = scalar_lea.sflag [#allocation8], 1
    %28 = vsyncpa %s27, 0
    loop: start=0, step=1, limit=4
    $region2: #{cnn_lstm_forward.9} parent=1 // loop_pre_header
      _
    $region3: #{cnn_lstm_forward.9} parent=1 // loop_header
      %s30 = sphi 0, %s34
      %p31 = scmp.ge.s32.totalorder %s30, 4
      %s40 = sphi 0, %s42
      %s43 = sphi 0, %s40
      %s44 = sphi 0, %s43
      %s60 = sphi 0, %s44
      %s64 = sphi 0, %s64
      %s66 = sphi 0, %s64
      %s67 = sphi 0, %s66
      %s81 = sphi 0, %s67
      %s85 = sphi 0, %s85
      %s87 = sphi 0, %s85
      %s88 = sphi 0, %s87
      %s102 = sphi 0, %s88
      %s106 = sphi 0, %s106
      %s108 = sphi 0, %s106
      %s109 = sphi 0, %s108
      %s123 = sphi 0, %s109
      %s127 = sphi 0, %s127
      %s129 = sphi 0, %s127
      %s130 = sphi 0, %s129
      %s144 = sphi 0, %s130
      %s148 = sphi 0, %s148
      %s150 = sphi 0, %s148
      %s151 = sphi 0, %s150
      %s165 = sphi 0, %s151
      %s169 = sphi 0, %s169
      %s171 = sphi 0, %s169
      %s172 = sphi 0, %s171
      %s186 = sphi 0, %s172
      %s190 = sphi 0, %s190
      %s192 = sphi 0, %s190
      %s193 = sphi 0, %s192
      %s207 = sphi 0, %s193
      %s211 = sphi 0, %s211
      %s213 = sphi 0, %s211
      %s214 = sphi 0, %s213
      %s228 = sphi 0, %s214
      %s232 = sphi 0, %s232
      %s234 = sphi 0, %s232
      %s235 = sphi 0, %s234
      %s249 = sphi 0, %s235
      %s253 = sphi 0, %s253
      %s255 = sphi 0, %s253
      %s256 = sphi 0, %s255
      %s270 = sphi 0, %s256
      %s274 = sphi 0, %s274
      %s276 = sphi 0, %s274
      %s277 = sphi 0, %s276
      %s291 = sphi 0, %s277
      %s297 = sphi 0, %s299
      %s300 = sphi 0, %s297
      %s301 = sphi 0, %s300
      %s317 = sphi 0, %s301
    $region4: #{cnn_lstm_forward.9} parent=1 // loop_header_branch
      %33 = sbr.rel (%p31) target = $region8
    $region5: #{cnn_lstm_forward.9} parent=1 // loop_body
      %s35 = ssub.s32 %s30, 1
      %s36 = ssub.s32 %s30, 2
      %s37 = sadd.s32 %s30, 1
      %s38 = ssub.s32 %s30, %s37
      %p39 = scmp.eq.s32.totalorder %s38, 0
      %s41 = sadd.s32 %s40, 1
      %s42 = scalar_select %p39, %s40, %s41
      %p45 = pneg %p39
      %p46 = scmp.eq.s32.totalorder %s30, 1
      %p47 = por %p45, %p46
      %p48 = scmp.ne.s32.totalorder %s40, %s43
      %p49 = scmp.eq.s32.totalorder %s30, 0
      %p50 = por %p48, %p49
      %p51 = scmp.ne.s32.totalorder %s40, %s43
      %p52 = scmp.eq.s32.totalorder %s35, 1
      %p53 = por %p51, %p52
      %p54 = scmp.ne.s32.totalorder %s43, %s44
      %p55 = scmp.eq.s32.totalorder %s35, 0
      %p56 = por %p54, %p55
      %p57 = scmp.ne.s32.totalorder %s43, %s44
      %p58 = scmp.eq.s32.totalorder %s36, 1
      %p59 = por %p57, %p58
      %p61 = scmp.ne.s32.totalorder %s44, %s60
      %p62 = scmp.eq.s32.totalorder %s36, 0
      %p63 = por %p61, %p62
      %s65 = sadd.s32 %s64, 1
      %p68 = scmp.eq.s32.totalorder %s30, 1
      %p69 = scmp.ne.s32.totalorder %s64, %s66
      %p70 = scmp.eq.s32.totalorder %s30, 0
      %p71 = por %p69, %p70
      %p72 = scmp.ne.s32.totalorder %s64, %s66
      %p73 = scmp.eq.s32.totalorder %s35, 1
      %p74 = por %p72, %p73
      %p75 = scmp.ne.s32.totalorder %s66, %s67
      %p76 = scmp.eq.s32.totalorder %s35, 0
      %p77 = por %p75, %p76
      %p78 = scmp.ne.s32.totalorder %s66, %s67
      %p79 = scmp.eq.s32.totalorder %s36, 1
      %p80 = por %p78, %p79
      %p82 = scmp.ne.s32.totalorder %s67, %s81
      %p83 = scmp.eq.s32.totalorder %s36, 0
      %p84 = por %p82, %p83
      %s86 = sadd.s32 %s85, 1
      %p89 = scmp.eq.s32.totalorder %s30, 1
      %p90 = scmp.ne.s32.totalorder %s85, %s87
      %p91 = scmp.eq.s32.totalorder %s30, 0
      %p92 = por %p90, %p91
      %p93 = scmp.ne.s32.totalorder %s85, %s87
      %p94 = scmp.eq.s32.totalorder %s35, 1
      %p95 = por %p93, %p94
      %p96 = scmp.ne.s32.totalorder %s87, %s88
      %p97 = scmp.eq.s32.totalorder %s35, 0
      %p98 = por %p96, %p97
      %p99 = scmp.ne.s32.totalorder %s87, %s88
      %p100 = scmp.eq.s32.totalorder %s36, 1
      %p101 = por %p99, %p100
      %p103 = scmp.ne.s32.totalorder %s88, %s102
      %p104 = scmp.eq.s32.totalorder %s36, 0
      %p105 = por %p103, %p104
      %s107 = sadd.s32 %s106, 1
      %p110 = scmp.eq.s32.totalorder %s30, 1
      %p111 = scmp.ne.s32.totalorder %s106, %s108
      %p112 = scmp.eq.s32.totalorder %s30, 0
      %p113 = por %p111, %p112
      %p114 = scmp.ne.s32.totalorder %s106, %s108
      %p115 = scmp.eq.s32.totalorder %s35, 1
      %p116 = por %p114, %p115
      %p117 = scmp.ne.s32.totalorder %s108, %s109
      %p118 = scmp.eq.s32.totalorder %s35, 0
      %p119 = por %p117, %p118
      %p120 = scmp.ne.s32.totalorder %s108, %s109
      %p121 = scmp.eq.s32.totalorder %s36, 1
      %p122 = por %p120, %p121
      %p124 = scmp.ne.s32.totalorder %s109, %s123
      %p125 = scmp.eq.s32.totalorder %s36, 0
      %p126 = por %p124, %p125
      %s128 = sadd.s32 %s127, 1
      %p131 = scmp.eq.s32.totalorder %s30, 1
      %p132 = scmp.ne.s32.totalorder %s127, %s129
      %p133 = scmp.eq.s32.totalorder %s30, 0
      %p134 = por %p132, %p133
      %p135 = scmp.ne.s32.totalorder %s127, %s129
      %p136 = scmp.eq.s32.totalorder %s35, 1
      %p137 = por %p135, %p136
      %p138 = scmp.ne.s32.totalorder %s129, %s130
      %p139 = scmp.eq.s32.totalorder %s35, 0
      %p140 = por %p138, %p139
      %p141 = scmp.ne.s32.totalorder %s129, %s130
      %p142 = scmp.eq.s32.totalorder %s36, 1
      %p143 = por %p141, %p142
      %p145 = scmp.ne.s32.totalorder %s130, %s144
      %p146 = scmp.eq.s32.totalorder %s36, 0
      %p147 = por %p145, %p146
      %s149 = sadd.s32 %s148, 1
      %p152 = scmp.eq.s32.totalorder %s30, 1
      %p153 = scmp.ne.s32.totalorder %s148, %s150
      %p154 = scmp.eq.s32.totalorder %s30, 0
      %p155 = por %p153, %p154
      %p156 = scmp.ne.s32.totalorder %s148, %s150
      %p157 = scmp.eq.s32.totalorder %s35, 1
      %p158 = por %p156, %p157
      %p159 = scmp.ne.s32.totalorder %s150, %s151
      %p160 = scmp.eq.s32.totalorder %s35, 0
      %p161 = por %p159, %p160
      %p162 = scmp.ne.s32.totalorder %s150, %s151
      %p163 = scmp.eq.s32.totalorder %s36, 1
      %p164 = por %p162, %p163
      %p166 = scmp.ne.s32.totalorder %s151, %s165
      %p167 = scmp.eq.s32.totalorder %s36, 0
      %p168 = por %p166, %p167
      %s170 = sadd.s32 %s169, 1
      %p173 = scmp.eq.s32.totalorder %s30, 1
      %p174 = scmp.ne.s32.totalorder %s169, %s171
      %p175 = scmp.eq.s32.totalorder %s30, 0
      %p176 = por %p174, %p175
      %p177 = scmp.ne.s32.totalorder %s169, %s171
      %p178 = scmp.eq.s32.totalorder %s35, 1
      %p179 = por %p177, %p178
      %p180 = scmp.ne.s32.totalorder %s171, %s172
      %p181 = scmp.eq.s32.totalorder %s35, 0
      %p182 = por %p180, %p181
      %p183 = scmp.ne.s32.totalorder %s171, %s172
      %p184 = scmp.eq.s32.totalorder %s36, 1
      %p185 = por %p183, %p184
      %p187 = scmp.ne.s32.totalorder %s172, %s186
      %p188 = scmp.eq.s32.totalorder %s36, 0
      %p189 = por %p187, %p188
      %s191 = sadd.s32 %s190, 1
      %p194 = scmp.eq.s32.totalorder %s30, 1
      %p195 = scmp.ne.s32.totalorder %s190, %s192
      %p196 = scmp.eq.s32.totalorder %s30, 0
      %p197 = por %p195, %p196
      %p198 = scmp.ne.s32.totalorder %s190, %s192
      %p199 = scmp.eq.s32.totalorder %s35, 1
      %p200 = por %p198, %p199
      %p201 = scmp.ne.s32.totalorder %s192, %s193
      %p202 = scmp.eq.s32.totalorder %s35, 0
      %p203 = por %p201, %p202
      %p204 = scmp.ne.s32.totalorder %s192, %s193
      %p205 = scmp.eq.s32.totalorder %s36, 1
      %p206 = por %p204, %p205
      %p208 = scmp.ne.s32.totalorder %s193, %s207
      %p209 = scmp.eq.s32.totalorder %s36, 0
      %p210 = por %p208, %p209
      %s212 = sadd.s32 %s211, 1
      %p215 = scmp.eq.s32.totalorder %s30, 1
      %p216 = scmp.ne.s32.totalorder %s211, %s213
      %p217 = scmp.eq.s32.totalorder %s30, 0
      %p218 = por %p216, %p217
      %p219 = scmp.ne.s32.totalorder %s211, %s213
      %p220 = scmp.eq.s32.totalorder %s35, 1
      %p221 = por %p219, %p220
      %p222 = scmp.ne.s32.totalorder %s213, %s214
      %p223 = scmp.eq.s32.totalorder %s35, 0
      %p224 = por %p222, %p223
      %p225 = scmp.ne.s32.totalorder %s213, %s214
      %p226 = scmp.eq.s32.totalorder %s36, 1
      %p227 = por %p225, %p226
      %p229 = scmp.ne.s32.totalorder %s214, %s228
      %p230 = scmp.eq.s32.totalorder %s36, 0
      %p231 = por %p229, %p230
      %s233 = sadd.s32 %s232, 1
      %p236 = scmp.eq.s32.totalorder %s30, 1
      %p237 = scmp.ne.s32.totalorder %s232, %s234
      %p238 = scmp.eq.s32.totalorder %s30, 0
      %p239 = por %p237, %p238
      %p240 = scmp.ne.s32.totalorder %s232, %s234
      %p241 = scmp.eq.s32.totalorder %s35, 1
      %p242 = por %p240, %p241
      %p243 = scmp.ne.s32.totalorder %s234, %s235
      %p244 = scmp.eq.s32.totalorder %s35, 0
      %p245 = por %p243, %p244
      %p246 = scmp.ne.s32.totalorder %s234, %s235
      %p247 = scmp.eq.s32.totalorder %s36, 1
      %p248 = por %p246, %p247
      %p250 = scmp.ne.s32.totalorder %s235, %s249
      %p251 = scmp.eq.s32.totalorder %s36, 0
      %p252 = por %p250, %p251
      %s254 = sadd.s32 %s253, 1
      %p257 = scmp.eq.s32.totalorder %s30, 1
      %p258 = scmp.ne.s32.totalorder %s253, %s255
      %p259 = scmp.eq.s32.totalorder %s30, 0
      %p260 = por %p258, %p259
      %p261 = scmp.ne.s32.totalorder %s253, %s255
      %p262 = scmp.eq.s32.totalorder %s35, 1
      %p263 = por %p261, %p262
      %p264 = scmp.ne.s32.totalorder %s255, %s256
      %p265 = scmp.eq.s32.totalorder %s35, 0
      %p266 = por %p264, %p265
      %p267 = scmp.ne.s32.totalorder %s255, %s256
      %p268 = scmp.eq.s32.totalorder %s36, 1
      %p269 = por %p267, %p268
      %p271 = scmp.ne.s32.totalorder %s256, %s270
      %p272 = scmp.eq.s32.totalorder %s36, 0
      %p273 = por %p271, %p272
      %s275 = sadd.s32 %s274, 1
      %p278 = scmp.eq.s32.totalorder %s30, 1
      %p279 = scmp.ne.s32.totalorder %s274, %s276
      %p280 = scmp.eq.s32.totalorder %s30, 0
      %p281 = por %p279, %p280
      %p282 = scmp.ne.s32.totalorder %s274, %s276
      %p283 = scmp.eq.s32.totalorder %s35, 1
      %p284 = por %p282, %p283
      %p285 = scmp.ne.s32.totalorder %s276, %s277
      %p286 = scmp.eq.s32.totalorder %s35, 0
      %p287 = por %p285, %p286
      %p288 = scmp.ne.s32.totalorder %s276, %s277
      %p289 = scmp.eq.s32.totalorder %s36, 1
      %p290 = por %p288, %p289
      %p292 = scmp.ne.s32.totalorder %s277, %s291
      %p293 = scmp.eq.s32.totalorder %s36, 0
      %p294 = por %p292, %p293
      %s295 = ssub.s32 %s30, %s37
      %p296 = scmp.eq.s32.totalorder %s295, 0
      %s298 = sadd.s32 %s297, 1
      %s299 = scalar_select %p296, %s297, %s298
      %p302 = pneg %p296
      %p303 = scmp.eq.s32.totalorder %s30, 1
      %p304 = por %p302, %p303
      %p305 = scmp.ne.s32.totalorder %s297, %s300
      %p306 = scmp.eq.s32.totalorder %s30, 0
      %p307 = por %p305, %p306
      %p308 = scmp.ne.s32.totalorder %s297, %s300
      %p309 = scmp.eq.s32.totalorder %s35, 1
      %p310 = por %p308, %p309
      %p311 = scmp.ne.s32.totalorder %s300, %s301
      %p312 = scmp.eq.s32.totalorder %s35, 0
      %p313 = por %p311, %p312
      %p314 = scmp.ne.s32.totalorder %s300, %s301
      %p315 = scmp.eq.s32.totalorder %s36, 1
      %p316 = por %p314, %p315
      %p318 = scmp.ne.s32.totalorder %s301, %s317
      %p319 = scmp.eq.s32.totalorder %s36, 0
      %p320 = por %p318, %p319
      %p321 = scmp.le.s32.totalorder 1, %s30
      %p322 = scmp.lt.s32.totalorder %s30, 3
      %p323 = pnand %p321, %p322
      %p324 = pneg %p323
      // Predicated region
      $region9: #{cnn_lstm_forward.9} parent=5 // pred_check
        _
      $region10: #{cnn_lstm_forward.9} parent=5 // pred_check_branch
        %326 = sbr.rel (%p323) target = $region12
      $region11: #{cnn_lstm_forward.9} parent=5 // pred_region
        %s327 = ssub.s32 %s30, 1
        // Predicated region
        $region13: #{cnn_lstm_forward.9} parent=11 // pred_check
          %p328 = pneg %p77
        $region14: #{cnn_lstm_forward.9} parent=11 // pred_check_branch
          %330 = sbr.rel (%p328) target = $region16
        $region15: #{cnn_lstm_forward.9} parent=11 // pred_region
          %s332 = ssub.s32 128, 128
          %333 = vsyncadd [#allocation10], %s332
          %s334 = sshll.u32 [#allocation9], 4
          %s335 = int_to_ptr.vmem [resolvable:$true] %s334
          %340 = dma.hbm_to_vmem [thread:$0]  %s1, 128, %s335, [#allocation10], 64, 64, 4
        $region16: #{cnn_lstm_forward.9} parent=11 // pred_fallthru
          _
        // Predicated region
        $region17: #{cnn_lstm_forward.9} parent=11 // pred_check
          %p341 = pneg %p98
        $region18: #{cnn_lstm_forward.9} parent=11 // pred_check_branch
          %343 = sbr.rel (%p341) target = $region20
        $region19: #{cnn_lstm_forward.9} parent=11 // pred_region
          %s345 = ssub.s32 16, 16
          %346 = vsyncadd [#allocation10], %s345
          %s348 = sshll.u32 [#allocation11], 4
          %s349 = int_to_ptr.vmem [resolvable:$true] %s348
          %351 = dma.hbm_to_vmem [thread:$0]  %s2, 16, %s349, [#allocation10]
        $region20: #{cnn_lstm_forward.9} parent=11 // pred_fallthru
          _
        // Predicated region
        $region21: #{cnn_lstm_forward.9} parent=11 // pred_check
          %p352 = pneg %p119
        $region22: #{cnn_lstm_forward.9} parent=11 // pred_check_branch
          %354 = sbr.rel (%p352) target = $region24
        $region23: #{cnn_lstm_forward.9} parent=11 // pred_region
          %s356 = ssub.s32 256, 256
          %357 = vsyncadd [#allocation13], %s356
          %s358 = sshll.u32 [#allocation12], 4
          %s359 = int_to_ptr.vmem [resolvable:$true] %s358
          %364 = dma.hbm_to_vmem [thread:$0]  %s3, 256, %s359, [#allocation13], 64, 64, 4
        $region24: #{cnn_lstm_forward.9} parent=11 // pred_fallthru
          _
        // Predicated region
        $region25: #{cnn_lstm_forward.9} parent=11 // pred_check
          %p365 = pneg %p140
        $region26: #{cnn_lstm_forward.9} parent=11 // pred_check_branch
          %367 = sbr.rel (%p365) target = $region28
        $region27: #{cnn_lstm_forward.9} parent=11 // pred_region
          %s369 = ssub.s32 128, 128
          %370 = vsyncadd [#allocation13], %s369
          %s371 = sshll.u32 [#allocation14], 4
          %s372 = int_to_ptr.vmem [resolvable:$true] %s371
          %377 = dma.hbm_to_vmem [thread:$0]  %s4, 128, %s372, [#allocation13], 64, 64, 4
        $region28: #{cnn_lstm_forward.9} parent=11 // pred_fallthru
          _
        // Predicated region
        $region29: #{cnn_lstm_forward.9} parent=11 // pred_check
          %p378 = pneg %p161
        $region30: #{cnn_lstm_forward.9} parent=11 // pred_check_branch
          %380 = sbr.rel (%p378) target = $region32
        $region31: #{cnn_lstm_forward.9} parent=11 // pred_region
          %s382 = ssub.s32 16, 16
          %383 = vsyncadd [#allocation16], %s382
          %s385 = sshll.u32 [#allocation15], 4
          %s386 = int_to_ptr.vmem [resolvable:$true] %s385
          %388 = dma.hbm_to_vmem [thread:$0]  %s5, 16, %s386, [#allocation16]
        $region32: #{cnn_lstm_forward.9} parent=11 // pred_fallthru
          _
        // Predicated region
        $region33: #{cnn_lstm_forward.9} parent=11 // pred_check
          %p389 = pneg %p182
        $region34: #{cnn_lstm_forward.9} parent=11 // pred_check_branch
          %391 = sbr.rel (%p389) target = $region36
        $region35: #{cnn_lstm_forward.9} parent=11 // pred_region
          %s393 = ssub.s32 256, 256
          %394 = vsyncadd [#allocation16], %s393
          %s395 = sshll.u32 [#allocation17], 4
          %s396 = int_to_ptr.vmem [resolvable:$true] %s395
          %401 = dma.hbm_to_vmem [thread:$0]  %s6, 256, %s396, [#allocation16], 64, 64, 4
        $region36: #{cnn_lstm_forward.9} parent=11 // pred_fallthru
          _
        // Predicated region
        $region37: #{cnn_lstm_forward.9} parent=11 // pred_check
          %p402 = pneg %p203
        $region38: #{cnn_lstm_forward.9} parent=11 // pred_check_branch
          %404 = sbr.rel (%p402) target = $region40
        $region39: #{cnn_lstm_forward.9} parent=11 // pred_region
          %s406 = ssub.s32 128, 128
          %407 = vsyncadd [#allocation19], %s406
          %s408 = sshll.u32 [#allocation18], 4
          %s409 = int_to_ptr.vmem [resolvable:$true] %s408
          %414 = dma.hbm_to_vmem [thread:$0]  %s7, 128, %s409, [#allocation19], 64, 64, 4
        $region40: #{cnn_lstm_forward.9} parent=11 // pred_fallthru
          _
        // Predicated region
        $region41: #{cnn_lstm_forward.9} parent=11 // pred_check
          %p415 = pneg %p224
        $region42: #{cnn_lstm_forward.9} parent=11 // pred_check_branch
          %417 = sbr.rel (%p415) target = $region44
        $region43: #{cnn_lstm_forward.9} parent=11 // pred_region
          %s419 = ssub.s32 16, 16
          %420 = vsyncadd [#allocation19], %s419
          %s422 = sshll.u32 [#allocation20], 4
          %s423 = int_to_ptr.vmem [resolvable:$true] %s422
          %425 = dma.hbm_to_vmem [thread:$0]  %s8, 16, %s423, [#allocation19]
        $region44: #{cnn_lstm_forward.9} parent=11 // pred_fallthru
          _
        // Predicated region
        $region45: #{cnn_lstm_forward.9} parent=11 // pred_check
          %p426 = pneg %p245
        $region46: #{cnn_lstm_forward.9} parent=11 // pred_check_branch
          %428 = sbr.rel (%p426) target = $region48
        $region47: #{cnn_lstm_forward.9} parent=11 // pred_region
          %s430 = ssub.s32 128, 128
          %431 = vsyncadd [#allocation22], %s430
          %s432 = sshll.u32 [#allocation21], 4
          %s433 = int_to_ptr.vmem [resolvable:$true] %s432
          %438 = dma.hbm_to_vmem [thread:$0]  %s9, 128, %s433, [#allocation22], 64, 64, 4
        $region48: #{cnn_lstm_forward.9} parent=11 // pred_fallthru
          _
        // Predicated region
        $region49: #{cnn_lstm_forward.9} parent=11 // pred_check
          %p439 = pneg %p266
        $region50: #{cnn_lstm_forward.9} parent=11 // pred_check_branch
          %441 = sbr.rel (%p439) target = $region52
        $region51: #{cnn_lstm_forward.9} parent=11 // pred_region
          %s443 = ssub.s32 128, 128
          %444 = vsyncadd [#allocation22], %s443
          %s445 = sshll.u32 [#allocation23], 4
          %s446 = int_to_ptr.vmem [resolvable:$true] %s445
          %451 = dma.hbm_to_vmem [thread:$0]  %s10, 128, %s446, [#allocation22], 64, 64, 4
        $region52: #{cnn_lstm_forward.9} parent=11 // pred_fallthru
          _
        // Predicated region
        $region53: #{cnn_lstm_forward.9} parent=11 // pred_check
          %p452 = pneg %p287
        $region54: #{cnn_lstm_forward.9} parent=11 // pred_check_branch
          %454 = sbr.rel (%p452) target = $region56
        $region55: #{cnn_lstm_forward.9} parent=11 // pred_region
          %s456 = ssub.s32 16, 16
          %457 = vsyncadd [#allocation25], %s456
          %s459 = sshll.u32 [#allocation24], 4
          %s460 = int_to_ptr.vmem [resolvable:$true] %s459
          %462 = dma.hbm_to_vmem [thread:$0]  %s11, 16, %s460, [#allocation25]
        $region56: #{cnn_lstm_forward.9} parent=11 // pred_fallthru
          _
      $region12: #{cnn_lstm_forward.9} parent=5 // pred_fallthru
        _
      %p463 = scmp.lt.s32.totalorder %s30, 2
      // Predicated region
      $region57: #{cnn_lstm_forward.9} parent=5 // pred_check
        %p464 = pneg %p463
      $region58: #{cnn_lstm_forward.9} parent=5 // pred_check_branch
        %466 = sbr.rel (%p464) target = $region60
      $region59: #{cnn_lstm_forward.9} parent=5 // pred_region
        // Predicated region
        $region61: #{cnn_lstm_forward.9} parent=59 // pred_check
          %p467 = pneg %p50
        $region62: #{cnn_lstm_forward.9} parent=59 // pred_check_branch
          %469 = sbr.rel (%p467) target = $region64
        $region63: #{cnn_lstm_forward.9} parent=59 // pred_region
          %s470 = sand.u32 %s40, 1
          %s471 = scalar_lea.sflag [#allocation7], %s470
          %s472 = sand.u32 %s40, 1
          %s473 = smul.addr %s472, 4
          %s474 = scalar_lea.vmem [#allocation6], %s473
          %s476 = ssub.s32 64, 64
          %477 = vsyncadd %s471, %s476
          %s478 = smul.addr %s30, 64
          %s479 = scalar_lea.hbm %s0, %s478
          %s481 = sshll.u32 %s474, 4
          %s482 = int_to_ptr.vmem [resolvable:$true] %s481
          %484 = dma.hbm_to_vmem [thread:$0]  %s479, 64, %s482, %s471
        $region64: #{cnn_lstm_forward.9} parent=59 // pred_fallthru
          _
      $region60: #{cnn_lstm_forward.9} parent=5 // pred_fallthru
        _
      %p485 = scmp.le.s32.totalorder 1, %s30
      %p486 = scmp.lt.s32.totalorder %s30, 3
      %p487 = pnand %p485, %p486
      %p488 = pneg %p487
      // Predicated region
      $region65: #{cnn_lstm_forward.9} parent=5 // pred_check
        _
      $region66: #{cnn_lstm_forward.9} parent=5 // pred_check_branch
        %490 = sbr.rel (%p487) target = $region68
      $region67: #{cnn_lstm_forward.9} parent=5 // pred_region
        %s491 = ssub.s32 %s30, 1
        %s492 = sand.u32 %s43, 1
        %s493 = scalar_lea.sflag [#allocation7], %s492
        %s494 = sand.u32 %s43, 1
        %s495 = smul.addr %s494, 4
        %s496 = scalar_lea.vmem [#allocation6], %s495
        // Predicated region
        $region69: #{cnn_lstm_forward.9} parent=67 // pred_check
          %p497 = pneg %p56
        $region70: #{cnn_lstm_forward.9} parent=67 // pred_check_branch
          %499 = sbr.rel (%p497) target = $region72
        $region71: #{cnn_lstm_forward.9} parent=67 // pred_region
          %500 = dma.done %s493, 64
        $region72: #{cnn_lstm_forward.9} parent=67 // pred_fallthru
          _
        // Predicated region
        $region73: #{cnn_lstm_forward.9} parent=67 // pred_check
          %p501 = pneg %p77
        $region74: #{cnn_lstm_forward.9} parent=67 // pred_check_branch
          %503 = sbr.rel (%p501) target = $region76
        $region75: #{cnn_lstm_forward.9} parent=67 // pred_region
          %504 = dma.done [#allocation10], 128
        $region76: #{cnn_lstm_forward.9} parent=67 // pred_fallthru
          _
        // Predicated region
        $region77: #{cnn_lstm_forward.9} parent=67 // pred_check
          %p505 = pneg %p98
        $region78: #{cnn_lstm_forward.9} parent=67 // pred_check_branch
          %507 = sbr.rel (%p505) target = $region80
        $region79: #{cnn_lstm_forward.9} parent=67 // pred_region
          %508 = dma.done [#allocation10], 16
        $region80: #{cnn_lstm_forward.9} parent=67 // pred_fallthru
          _
        // Predicated region
        $region81: #{cnn_lstm_forward.9} parent=67 // pred_check
          %p509 = pneg %p119
        $region82: #{cnn_lstm_forward.9} parent=67 // pred_check_branch
          %511 = sbr.rel (%p509) target = $region84
        $region83: #{cnn_lstm_forward.9} parent=67 // pred_region
          %512 = dma.done [#allocation13], 256
        $region84: #{cnn_lstm_forward.9} parent=67 // pred_fallthru
          _
        // Predicated region
        $region85: #{cnn_lstm_forward.9} parent=67 // pred_check
          %p513 = pneg %p140
        $region86: #{cnn_lstm_forward.9} parent=67 // pred_check_branch
          %515 = sbr.rel (%p513) target = $region88
        $region87: #{cnn_lstm_forward.9} parent=67 // pred_region
          %516 = dma.done [#allocation13], 128
        $region88: #{cnn_lstm_forward.9} parent=67 // pred_fallthru
          _
        // Predicated region
        $region89: #{cnn_lstm_forward.9} parent=67 // pred_check
          %p517 = pneg %p161
        $region90: #{cnn_lstm_forward.9} parent=67 // pred_check_branch
          %519 = sbr.rel (%p517) target = $region92
        $region91: #{cnn_lstm_forward.9} parent=67 // pred_region
          %520 = dma.done [#allocation16], 16
        $region92: #{cnn_lstm_forward.9} parent=67 // pred_fallthru
          _
        // Predicated region
        $region93: #{cnn_lstm_forward.9} parent=67 // pred_check
          %p521 = pneg %p182
        $region94: #{cnn_lstm_forward.9} parent=67 // pred_check_branch
          %523 = sbr.rel (%p521) target = $region96
        $region95: #{cnn_lstm_forward.9} parent=67 // pred_region
          %524 = dma.done [#allocation16], 256
        $region96: #{cnn_lstm_forward.9} parent=67 // pred_fallthru
          _
        // Predicated region
        $region97: #{cnn_lstm_forward.9} parent=67 // pred_check
          %p525 = pneg %p203
        $region98: #{cnn_lstm_forward.9} parent=67 // pred_check_branch
          %527 = sbr.rel (%p525) target = $region100
        $region99: #{cnn_lstm_forward.9} parent=67 // pred_region
          %528 = dma.done [#allocation19], 128
        $region100: #{cnn_lstm_forward.9} parent=67 // pred_fallthru
          _
        // Predicated region
        $region101: #{cnn_lstm_forward.9} parent=67 // pred_check
          %p529 = pneg %p224
        $region102: #{cnn_lstm_forward.9} parent=67 // pred_check_branch
          %531 = sbr.rel (%p529) target = $region104
        $region103: #{cnn_lstm_forward.9} parent=67 // pred_region
          %532 = dma.done [#allocation19], 16
        $region104: #{cnn_lstm_forward.9} parent=67 // pred_fallthru
          _
        // Predicated region
        $region105: #{cnn_lstm_forward.9} parent=67 // pred_check
          %p533 = pneg %p245
        $region106: #{cnn_lstm_forward.9} parent=67 // pred_check_branch
          %535 = sbr.rel (%p533) target = $region108
        $region107: #{cnn_lstm_forward.9} parent=67 // pred_region
          %536 = dma.done [#allocation22], 128
        $region108: #{cnn_lstm_forward.9} parent=67 // pred_fallthru
          _
        // Predicated region
        $region109: #{cnn_lstm_forward.9} parent=67 // pred_check
          %p537 = pneg %p266
        $region110: #{cnn_lstm_forward.9} parent=67 // pred_check_branch
          %539 = sbr.rel (%p537) target = $region112
        $region111: #{cnn_lstm_forward.9} parent=67 // pred_region
          %540 = dma.done [#allocation22], 128
        $region112: #{cnn_lstm_forward.9} parent=67 // pred_fallthru
          _
        // Predicated region
        $region113: #{cnn_lstm_forward.9} parent=67 // pred_check
          %p541 = pneg %p287
        $region114: #{cnn_lstm_forward.9} parent=67 // pred_check_branch
          %543 = sbr.rel (%p541) target = $region116
        $region115: #{cnn_lstm_forward.9} parent=67 // pred_region
          %544 = dma.done [#allocation25], 16
        $region116: #{cnn_lstm_forward.9} parent=67 // pred_fallthru
          _
        %s545 = sand.u32 %s43, 1
        %s546 = scalar_lea.sflag [#allocation7], %s545
        %s547 = sand.u32 %s43, 1
        %s548 = smul.addr %s547, 4
        %s549 = scalar_lea.vmem [#allocation6], %s548
        %p550 = pneg %p56
        %p551 = pneg %p53
        %p552 = pneg %p77
        %p553 = pneg %p74
        %p554 = pneg %p98
        %p555 = pneg %p95
        %p556 = pneg %p119
        %p557 = pneg %p116
        %p558 = pneg %p140
        %p559 = pneg %p137
        %p560 = pneg %p161
        %p561 = pneg %p158
        %p562 = pneg %p182
        %p563 = pneg %p179
        %p564 = pneg %p203
        %p565 = pneg %p200
        %p566 = pneg %p224
        %p567 = pneg %p221
        %p568 = pneg %p245
        %p569 = pneg %p242
        %p570 = pneg %p266
        %p571 = pneg %p263
        %p572 = pneg %p287
        %p573 = pneg %p284
        %p574 = pneg %p313
        %p575 = pneg %p310
        %s576 = sand.u32 %s300, 1
        %s577 = scalar_lea.sflag [#allocation8], %s576
        %s578 = sand.u32 %s300, 1
        %s579 = smul.addr %s578, 8
        %s580 = scalar_lea.vmem [#allocation26], %s579
        %v582 = vld [vmem:[%s496] sm:$0xf]
        %v583 = vld [vmem:[#allocation9] sm:$0xf]
        %v584 = vld [vmem:[#allocation9 + $0x4] sm:$0xf]
        %v585 = vld [vmem:[#allocation11] sm:$0x1]
        %v587 = vlaneseq
        %v588 = vshrl.u32 %v587, 7
        %v589 = vsub.s32 0, %v588
        %v590 = vrot.slane %v585, %v589
        %v594 = vunpack.c.l.b16 %v583
        %v595 = vunpack.c.l.b16 %v584
        %v596 = vpack.c.b16 %v595, %v594
        %vm598 = vcmask 130048
        %v600 = vsel %vm598, %v582, 0
        %602 = vmatprep.subr.bf16.mxu0 0
        %603 = vmatpush1.bf16.msra.mxu0 %v596
        %604 = vmatprep.subr.bf16.mxu0 0
        %605 = vmatpush1.bf16.msra.mxu0 0
        %606 = vmatprep.subr.bf16.mxu0 0
        %607 = vmatpush1.bf16.msra.mxu0 0
        %608 = vmatprep.subr.bf16.mxu0 0
        %609 = vmatpush1.bf16.msra.mxu0 0
        %610 = vmatprep.subr.bf16.mxu0 0
        %611 = vmatpush1.bf16.msra.mxu0 0
        %612 = vmatprep.subr.bf16.mxu0 0
        %613 = vmatpush1.bf16.msra.mxu0 0
        %614 = vmatprep.subr.bf16.mxu0 0
        %615 = vmatpush1.bf16.msra.mxu0 0
        %616 = vmatprep.subr.bf16.mxu0 0
        %617 = vmatpush1.bf16.msra.mxu0 0
        %618 = vmatprep.subr.bf16.mxu0 0
        %619 = vmatpush1.bf16.msra.mxu0 0
        %620 = vmatprep.subr.bf16.mxu0 0
        %621 = vmatpush1.bf16.msra.mxu0 0
        %622 = vmatprep.subr.bf16.mxu0 0
        %623 = vmatpush1.bf16.msra.mxu0 0
        %624 = vmatprep.subr.bf16.mxu0 0
        %625 = vmatpush1.bf16.msra.mxu0 0
        %626 = vmatprep.subr.bf16.mxu0 0
        %627 = vmatpush1.bf16.msra.mxu0 0
        %628 = vmatprep.subr.bf16.mxu0 0
        %629 = vmatpush1.bf16.msra.mxu0 0
        %630 = vmatprep.subr.bf16.mxu0 0
        %631 = vmatpush1.bf16.msra.mxu0 0
        %632 = vmatprep.subr.bf16.mxu0 0
        %633 = vmatpush1.bf16.msra.mxu0 0
        %634 = vmatprep.mubr.bf16.mxu0 0
        %635 = vmatmul.mubr.bf16.gmra.mrb[0].mxu0 %v600
        %v636 = vpop.f32.mrb[0].mxu0
        %v637 = vadd.f32 %v590, %v636
        %v638 = vpop.f32.mrb[0].mxu0
        %v639 = vpop.f32.mrb[0].mxu0
        %v640 = vpop.f32.mrb[0].mxu0
        %641 = vdwg.mxu0
        %v642 = vpack.c.bf16 %v637, %v637
        %v644 = vunpack.c.l.s4 1983009808
        %v645 = vunpack.c.0.s8 %v644
        %v646 = vlaneseq
        %v647 = vshrl.u32 %v646, 7
        %v648 = vsub.s32 %v645, %v647
        %v649 = vrot.slane %v642, %v648
        %v650 = vcombine.high %v649, 0
        %v652 = vunpack.c.l.s4 1934713408
        %v653 = vunpack.c.0.s8 %v652
        %v654 = vlaneseq
        %v655 = vshrl.u32 %v654, 7
        %v656 = vsub.s32 %v653, %v655
        %v657 = vrot.slane %v649, %v656
        %v659 = vunpack.c.l.s4 1934713408
        %v660 = vunpack.c.0.s8 %v659
        %v661 = vlaneseq
        %v662 = vshrl.u32 %v661, 7
        %v663 = vsub.s32 %v660, %v662
        %v664 = vrot.slane %v650, %v663
        %v665 = vcombine.high %v657, 0
        %v666 = vcombine.high %v664, 0
        %v669 = vpack.i.b16 0, %v657
        %v670 = vshrl.u32 %v657, 16
        %v671 = vshrl.u32 0, 16
        %v672 = vpack.i.b16 %v671, %v670
        %v674 = vpack.i.b16 0, %v665
        %v675 = vshrl.u32 %v665, 16
        %v676 = vpack.i.b16 %v671, %v675
        %v678 = vpack.i.b16 0, %v664
        %v679 = vshrl.u32 %v664, 16
        %v680 = vpack.i.b16 %v671, %v679
        %v682 = vpack.i.b16 0, %v666
        %v683 = vshrl.u32 %v666, 16
        %v684 = vpack.i.b16 %v671, %v683
        %v685 = vld [vmem:[#allocation12] sm:$0xf]
        %v686 = vld [vmem:[#allocation12 + $0x4] sm:$0xf]
        %v687 = vld [vmem:[#allocation12 + $0x8] sm:$0xf]
        %v688 = vld [vmem:[#allocation12 + $0xc] sm:$0xf]
        %v689 = vld [vmem:[#allocation15] sm:$0x1]
        %v691 = vlaneseq
        %v692 = vshrl.u32 %v691, 7
        %v693 = vsub.s32 0, %v692
        %v694 = vrot.slane %v689, %v693
        %v696 = vunpack.c.l.b16 %v669
        %v697 = vunpack.c.l.b16 %v672
        %v698 = vunpack.c.l.b16 %v674
        %v699 = vunpack.c.l.b16 %v676
        %v700 = vunpack.c.l.b16 %v678
        %v701 = vunpack.c.l.b16 %v680
        %v702 = vunpack.c.l.b16 %v682
        %v703 = vunpack.c.l.b16 %v684
        %v704 = vrot.slane %v697, 7
        %vm705 = vcmask 1041409
        %v706 = vsel %vm705, %v704, %v696
        %v707 = vrot.slane %v698, 6
        %vm708 = vcmask 1042434
        %v709 = vsel %vm708, %v707, %v706
        %v710 = vrot.slane %v699, 5
        %vm711 = vcmask 1043459
        %v712 = vsel %vm711, %v710, %v709
        %v713 = vrot.slane %v700, 4
        %vm714 = vcmask 1044484
        %v715 = vsel %vm714, %v713, %v712
        %v716 = vrot.slane %v701, 3
        %vm717 = vcmask 1045509
        %v718 = vsel %vm717, %v716, %v715
        %v719 = vrot.slane %v702, 2
        %vm720 = vcmask 1046534
        %v721 = vsel %vm720, %v719, %v718
        %v722 = vrot.slane %v703, 1
        %vm723 = vcmask 1047559
        %v724 = vsel %vm723, %v722, %v721
        %v725 = vpack.c.b16 %v724, %v724
        %v730 = vunpack.c.l.b16 %v685
        %v731 = vunpack.c.l.b16 %v686
        %v732 = vunpack.c.l.b16 %v687
        %v733 = vunpack.c.l.b16 %v688
        %v734 = vpack.c.b16 %v731, %v730
        %v735 = vpack.c.b16 %v733, %v732
        %vm738 = vcmask 261120
        %v740 = vsel %vm738, %v725, 0
        %742 = vmatprep.subr.bf16.mxu0 0
        %743 = vmatpush1.bf16.msra.mxu0 %v734
        %744 = vmatprep.subr.bf16.mxu0 0
        %745 = vmatpush1.bf16.msra.mxu0 %v735
        %746 = vmatprep.subr.bf16.mxu0 0
        %747 = vmatpush1.bf16.msra.mxu0 0
        %748 = vmatprep.subr.bf16.mxu0 0
        %749 = vmatpush1.bf16.msra.mxu0 0
        %750 = vmatprep.subr.bf16.mxu0 0
        %751 = vmatpush1.bf16.msra.mxu0 0
        %752 = vmatprep.subr.bf16.mxu0 0
        %753 = vmatpush1.bf16.msra.mxu0 0
        %754 = vmatprep.subr.bf16.mxu0 0
        %755 = vmatpush1.bf16.msra.mxu0 0
        %756 = vmatprep.subr.bf16.mxu0 0
        %757 = vmatpush1.bf16.msra.mxu0 0
        %758 = vmatprep.subr.bf16.mxu0 0
        %759 = vmatpush1.bf16.msra.mxu0 0
        %760 = vmatprep.subr.bf16.mxu0 0
        %761 = vmatpush1.bf16.msra.mxu0 0
        %762 = vmatprep.subr.bf16.mxu0 0
        %763 = vmatpush1.bf16.msra.mxu0 0
        %764 = vmatprep.subr.bf16.mxu0 0
        %765 = vmatpush1.bf16.msra.mxu0 0
        %766 = vmatprep.subr.bf16.mxu0 0
        %767 = vmatpush1.bf16.msra.mxu0 0
        %768 = vmatprep.subr.bf16.mxu0 0
        %769 = vmatpush1.bf16.msra.mxu0 0
        %770 = vmatprep.subr.bf16.mxu0 0
        %771 = vmatpush1.bf16.msra.mxu0 0
        %772 = vmatprep.subr.bf16.mxu0 0
        %773 = vmatpush1.bf16.msra.mxu0 0
        %774 = vmatprep.mubr.bf16.mxu0 0
        %775 = vmatmul.mubr.bf16.gmra.mrb[0].mxu0 %v740
        %v776 = vpop.f32.mrb[0].mxu0
        %v777 = vadd.f32 %v694, %v776
        %v778 = vpop.f32.mrb[0].mxu0
        %v779 = vpop.f32.mrb[0].mxu0
        %v780 = vpop.f32.mrb[0].mxu0
        %781 = vdwg.mxu0
        %v783 = vcombine.high %v777, %v777
        %v785 = vunpack.c.l.s4 1966171168
        %v786 = vunpack.c.0.s8 %v785
        %v787 = vlaneseq
        %v788 = vshrl.u32 %v787, 7
        %v789 = vsub.s32 %v786, %v788
        %v790 = vrot.slane %v777, %v789
        %v792 = vunpack.c.l.s4 1966171168
        %v793 = vunpack.c.0.s8 %v792
        %v794 = vlaneseq
        %v795 = vshrl.u32 %v794, 7
        %v796 = vsub.s32 %v793, %v795
        %v797 = vrot.slane %v783, %v796
        %v798 = vcombine.high %v790, %v790
        %v799 = vcombine.high %v797, %v797
        %v801 = vunpack.c.l.s4 1966171168
        %v802 = vunpack.c.0.s8 %v801
        %v803 = vlaneseq
        %v804 = vshrl.u32 %v803, 7
        %v805 = vsub.s32 %v802, %v804
        %v806 = vrot.slane %v790, %v805
        %v808 = vunpack.c.l.s4 1966171168
        %v809 = vunpack.c.0.s8 %v808
        %v810 = vlaneseq
        %v811 = vshrl.u32 %v810, 7
        %v812 = vsub.s32 %v809, %v811
        %v813 = vrot.slane %v797, %v812
        %v815 = vunpack.c.l.s4 1966171168
        %v816 = vunpack.c.0.s8 %v815
        %v817 = vlaneseq
        %v818 = vshrl.u32 %v817, 7
        %v819 = vsub.s32 %v816, %v818
        %v820 = vrot.slane %v798, %v819
        %v822 = vunpack.c.l.s4 1966171168
        %v823 = vunpack.c.0.s8 %v822
        %v824 = vlaneseq
        %v825 = vshrl.u32 %v824, 7
        %v826 = vsub.s32 %v823, %v825
        %v827 = vrot.slane %v799, %v826
        %v828 = vcombine.high %v806, %v806
        %v829 = vcombine.high %v813, %v813
        %v830 = vcombine.high %v820, %v820
        %v831 = vcombine.high %v827, %v827
        %vm840 = vcmask 516096
        %841 = vst.msk [vmem:[#allocation2] sm:$0x1] %vm840, %v806
        %842 = vst.msk [vmem:[#allocation2 + $0x1] sm:$0x1] %vm840, %v820
        %843 = vst.msk [vmem:[#allocation2 + $0x2] sm:$0x1] %vm840, %v828
        %844 = vst.msk [vmem:[#allocation2 + $0x3] sm:$0x1] %vm840, %v830
        %845 = vst.msk [vmem:[#allocation2 + $0x4] sm:$0x1] %vm840, %v813
        %846 = vst.msk [vmem:[#allocation2 + $0x5] sm:$0x1] %vm840, %v827
        %847 = vst.msk [vmem:[#allocation2 + $0x6] sm:$0x1] %vm840, %v829
        %848 = vst.msk [vmem:[#allocation2 + $0x7] sm:$0x1] %vm840, %v831
        %v849 = vld [vmem:[#allocation17] sm:$0xf]
        %v850 = vld [vmem:[#allocation17 + $0x4] sm:$0xf]
        %v851 = vld [vmem:[#allocation17 + $0x8] sm:$0xf]
        %v852 = vld [vmem:[#allocation17 + $0xc] sm:$0xf]
        %v853 = vld [vmem:[#allocation20] sm:$0x1]
        %v855 = vlaneseq
        %v856 = vshrl.u32 %v855, 7
        %v857 = vsub.s32 0, %v856
        %v858 = vrot.slane %v853, %v857
        %v864 = vunpack.c.l.b16 %v849
        %v865 = vunpack.c.l.b16 %v850
        %v866 = vunpack.c.l.b16 %v851
        %v867 = vunpack.c.l.b16 %v852
        %v868 = vpack.c.b16 %v865, %v864
        %v869 = vpack.c.b16 %v867, %v866
        %872 = vmatprep.subr.bf16.mxu0 0
        %873 = vmatpush1.bf16.msra.mxu0 %v868
        %874 = vmatprep.subr.bf16.mxu0 0
        %875 = vmatpush1.bf16.msra.mxu0 %v869
        %876 = vmatprep.subr.bf16.mxu0 0
        %877 = vmatpush1.bf16.msra.mxu0 0
        %878 = vmatprep.subr.bf16.mxu0 0
        %879 = vmatpush1.bf16.msra.mxu0 0
        %880 = vmatprep.subr.bf16.mxu0 0
        %881 = vmatpush1.bf16.msra.mxu0 0
        %882 = vmatprep.subr.bf16.mxu0 0
        %883 = vmatpush1.bf16.msra.mxu0 0
        %884 = vmatprep.subr.bf16.mxu0 0
        %885 = vmatpush1.bf16.msra.mxu0 0
        %886 = vmatprep.subr.bf16.mxu0 0
        %887 = vmatpush1.bf16.msra.mxu0 0
        %888 = vmatprep.subr.bf16.mxu0 0
        %889 = vmatpush1.bf16.msra.mxu0 0
        %890 = vmatprep.subr.bf16.mxu0 0
        %891 = vmatpush1.bf16.msra.mxu0 0
        %892 = vmatprep.subr.bf16.mxu0 0
        %893 = vmatpush1.bf16.msra.mxu0 0
        %894 = vmatprep.subr.bf16.mxu0 0
        %895 = vmatpush1.bf16.msra.mxu0 0
        %896 = vmatprep.subr.bf16.mxu0 0
        %897 = vmatpush1.bf16.msra.mxu0 0
        %898 = vmatprep.subr.bf16.mxu0 0
        %899 = vmatpush1.bf16.msra.mxu0 0
        %900 = vmatprep.subr.bf16.mxu0 0
        %901 = vmatpush1.bf16.msra.mxu0 0
        %902 = vmatprep.subr.bf16.mxu0 0
        %903 = vmatpush1.bf16.msra.mxu0 0
        %904 = vmatprep.mubr.bf16.mxu0 0
        %905 = vmatmul.mubr.bf16.gmra.mrb[0].mxu0 %v740
        %v906 = vpop.f32.mrb[0].mxu0
        %v907 = vadd.f32 %v858, %v906
        %v908 = vpop.f32.mrb[0].mxu0
        %v909 = vpop.f32.mrb[0].mxu0
        %v910 = vpop.f32.mrb[0].mxu0
        %911 = vdwg.mxu0
        %v913 = vcombine.high %v907, %v907
        %v915 = vunpack.c.l.s4 1966171168
        %v916 = vunpack.c.0.s8 %v915
        %v917 = vlaneseq
        %v918 = vshrl.u32 %v917, 7
        %v919 = vsub.s32 %v916, %v918
        %v920 = vrot.slane %v907, %v919
        %v922 = vunpack.c.l.s4 1966171168
        %v923 = vunpack.c.0.s8 %v922
        %v924 = vlaneseq
        %v925 = vshrl.u32 %v924, 7
        %v926 = vsub.s32 %v923, %v925
        %v927 = vrot.slane %v913, %v926
        %v928 = vcombine.high %v920, %v920
        %v929 = vcombine.high %v927, %v927
        %v931 = vunpack.c.l.s4 1966171168
        %v932 = vunpack.c.0.s8 %v931
        %v933 = vlaneseq
        %v934 = vshrl.u32 %v933, 7
        %v935 = vsub.s32 %v932, %v934
        %v936 = vrot.slane %v920, %v935
        %v938 = vunpack.c.l.s4 1966171168
        %v939 = vunpack.c.0.s8 %v938
        %v940 = vlaneseq
        %v941 = vshrl.u32 %v940, 7
        %v942 = vsub.s32 %v939, %v941
        %v943 = vrot.slane %v927, %v942
        %v945 = vunpack.c.l.s4 1966171168
        %v946 = vunpack.c.0.s8 %v945
        %v947 = vlaneseq
        %v948 = vshrl.u32 %v947, 7
        %v949 = vsub.s32 %v946, %v948
        %v950 = vrot.slane %v928, %v949
        %v952 = vunpack.c.l.s4 1966171168
        %v953 = vunpack.c.0.s8 %v952
        %v954 = vlaneseq
        %v955 = vshrl.u32 %v954, 7
        %v956 = vsub.s32 %v953, %v955
        %v957 = vrot.slane %v929, %v956
        %v958 = vcombine.high %v936, %v936
        %v959 = vcombine.high %v943, %v943
        %v960 = vcombine.high %v950, %v950
        %v961 = vcombine.high %v957, %v957
        %970 = vst.msk [vmem:[#allocation3] sm:$0x1] %vm840, %v936
        %971 = vst.msk [vmem:[#allocation3 + $0x1] sm:$0x1] %vm840, %v950
        %972 = vst.msk [vmem:[#allocation3 + $0x2] sm:$0x1] %vm840, %v958
        %973 = vst.msk [vmem:[#allocation3 + $0x3] sm:$0x1] %vm840, %v960
        %974 = vst.msk [vmem:[#allocation3 + $0x4] sm:$0x1] %vm840, %v943
        %975 = vst.msk [vmem:[#allocation3 + $0x5] sm:$0x1] %vm840, %v957
        %976 = vst.msk [vmem:[#allocation3 + $0x6] sm:$0x1] %vm840, %v959
        %977 = vst.msk [vmem:[#allocation3 + $0x7] sm:$0x1] %vm840, %v961
        %v978 = vld [vmem:[#allocation14] sm:$0xf]
        %v979 = vld [vmem:[#allocation14 + $0x4] sm:$0xf]
        %v980 = vld [vmem:[#allocation18] sm:$0xf]
        %v981 = vld [vmem:[#allocation18 + $0x4] sm:$0xf]
        loop: start=0, step=1, limit=8
        $region117: #{cnn_lstm_forward.9} parent=67 // loop_pre_header
          _
        $region118: #{cnn_lstm_forward.9} parent=67 // loop_header
          %s983 = sphi 0, %s987
          %p984 = scmp.ge.s32.totalorder %s983, 8
          %v988 = vphi 0.0, %v1128
          %v989 = vphi 0.0, %v1122
          %v990 = vphi 0.0, %v1152
          %v991 = vphi 0.0, %v1146
        $region119: #{cnn_lstm_forward.9} parent=67 // loop_header_branch
          %986 = sbr.rel (%p984) target = $region123
        $region120: #{cnn_lstm_forward.9} parent=67 // loop_body
          %s992 = scalar_lea.vmem [#allocation2], %s983
          %v993 = vld [vmem:[%s992] sm:$0x1]
          %v994 = vpack.c.bf16 %v988, %v988
          %996 = vrot.lane.b32.xlu0 %v994, 80
          %v997 = vpop.permute.xlu0 %996
          %v1000 = vunpack.c.l.b16 %v978
          %v1001 = vunpack.c.l.b16 %v979
          %v1002 = vpack.c.b16 %v1001, %v1000
          %v1005 = vsel %vm598, %v997, 0
          %1007 = vmatprep.subr.bf16.mxu0 0
          %1008 = vmatpush1.bf16.msra.mxu0 %v1002
          %1009 = vmatprep.subr.bf16.mxu0 0
          %1010 = vmatpush1.bf16.msra.mxu0 0
          %1011 = vmatprep.subr.bf16.mxu0 0
          %1012 = vmatpush1.bf16.msra.mxu0 0
          %1013 = vmatprep.subr.bf16.mxu0 0
          %1014 = vmatpush1.bf16.msra.mxu0 0
          %1015 = vmatprep.subr.bf16.mxu0 0
          %1016 = vmatpush1.bf16.msra.mxu0 0
          %1017 = vmatprep.subr.bf16.mxu0 0
          %1018 = vmatpush1.bf16.msra.mxu0 0
          %1019 = vmatprep.subr.bf16.mxu0 0
          %1020 = vmatpush1.bf16.msra.mxu0 0
          %1021 = vmatprep.subr.bf16.mxu0 0
          %1022 = vmatpush1.bf16.msra.mxu0 0
          %1023 = vmatprep.subr.bf16.mxu0 0
          %1024 = vmatpush1.bf16.msra.mxu0 0
          %1025 = vmatprep.subr.bf16.mxu0 0
          %1026 = vmatpush1.bf16.msra.mxu0 0
          %1027 = vmatprep.subr.bf16.mxu0 0
          %1028 = vmatpush1.bf16.msra.mxu0 0
          %1029 = vmatprep.subr.bf16.mxu0 0
          %1030 = vmatpush1.bf16.msra.mxu0 0
          %1031 = vmatprep.subr.bf16.mxu0 0
          %1032 = vmatpush1.bf16.msra.mxu0 0
          %1033 = vmatprep.subr.bf16.mxu0 0
          %1034 = vmatpush1.bf16.msra.mxu0 0
          %1035 = vmatprep.subr.bf16.mxu0 0
          %1036 = vmatpush1.bf16.msra.mxu0 0
          %1037 = vmatprep.subr.bf16.mxu0 0
          %1038 = vmatpush1.bf16.msra.mxu0 0
          %1039 = vmatprep.mubr.bf16.mxu0 0
          %1040 = vmatmul.mubr.bf16.gmra.mrb[0].mxu0 %v1005
          %v1041 = vpop.f32.mrb[0].mxu0
          %v1042 = vadd.f32 0.0, %v1041
          %v1043 = vpop.f32.mrb[0].mxu0
          %v1044 = vpop.f32.mrb[0].mxu0
          %v1045 = vpop.f32.mrb[0].mxu0
          %1046 = vdwg.mxu0
          %v1047 = vadd.f32 %v993, %v1042
          %s1048 = ssub.s32 7, %s983
          %s1049 = scalar_lea.vmem [#allocation3], %s1048
          %v1050 = vld [vmem:[%s1049] sm:$0x1]
          %v1051 = vpack.c.bf16 %v990, %v990
          %1053 = vrot.lane.b32.xlu0 %v1051, 80
          %v1054 = vpop.permute.xlu0 %1053
          %v1057 = vunpack.c.l.b16 %v980
          %v1058 = vunpack.c.l.b16 %v981
          %v1059 = vpack.c.b16 %v1058, %v1057
          %v1062 = vsel %vm598, %v1054, 0
          %1064 = vmatprep.subr.bf16.mxu0 0
          %1065 = vmatpush1.bf16.msra.mxu0 %v1059
          %1066 = vmatprep.subr.bf16.mxu0 0
          %1067 = vmatpush1.bf16.msra.mxu0 0
          %1068 = vmatprep.subr.bf16.mxu0 0
          %1069 = vmatpush1.bf16.msra.mxu0 0
          %1070 = vmatprep.subr.bf16.mxu0 0
          %1071 = vmatpush1.bf16.msra.mxu0 0
          %1072 = vmatprep.subr.bf16.mxu0 0
          %1073 = vmatpush1.bf16.msra.mxu0 0
          %1074 = vmatprep.subr.bf16.mxu0 0
          %1075 = vmatpush1.bf16.msra.mxu0 0
          %1076 = vmatprep.subr.bf16.mxu0 0
          %1077 = vmatpush1.bf16.msra.mxu0 0
          %1078 = vmatprep.subr.bf16.mxu0 0
          %1079 = vmatpush1.bf16.msra.mxu0 0
          %1080 = vmatprep.subr.bf16.mxu0 0
          %1081 = vmatpush1.bf16.msra.mxu0 0
          %1082 = vmatprep.subr.bf16.mxu0 0
          %1083 = vmatpush1.bf16.msra.mxu0 0
          %1084 = vmatprep.subr.bf16.mxu0 0
          %1085 = vmatpush1.bf16.msra.mxu0 0
          %1086 = vmatprep.subr.bf16.mxu0 0
          %1087 = vmatpush1.bf16.msra.mxu0 0
          %1088 = vmatprep.subr.bf16.mxu0 0
          %1089 = vmatpush1.bf16.msra.mxu0 0
          %1090 = vmatprep.subr.bf16.mxu0 0
          %1091 = vmatpush1.bf16.msra.mxu0 0
          %1092 = vmatprep.subr.bf16.mxu0 0
          %1093 = vmatpush1.bf16.msra.mxu0 0
          %1094 = vmatprep.subr.bf16.mxu0 0
          %1095 = vmatpush1.bf16.msra.mxu0 0
          %1096 = vmatprep.mubr.bf16.mxu0 0
          %1097 = vmatmul.mubr.bf16.gmra.mrb[0].mxu0 %v1062
          %v1098 = vpop.f32.mrb[0].mxu0
          %v1099 = vadd.f32 0.0, %v1098
          %v1100 = vpop.f32.mrb[0].mxu0
          %v1101 = vpop.f32.mrb[0].mxu0
          %v1102 = vpop.f32.mrb[0].mxu0
          %1103 = vdwg.mxu0
          %v1104 = vadd.f32 %v1050, %v1099
          %v1105 = vxor.u32 %v1047, 2147483648
          %v1106 = vmul.f32 %v1105, 1.442695
          %v1107 = vpow.pop %v1106
          %v1108 = vadd.f32 %v1107, 1.0
          %v1109 = vrcp.pop %v1108
          %v1110 = vmul.f32 1.0, %v1109
          %v1111 = vtanh.pop %v1047
          %v1112 = vmul.f32 %v1110, %v989
          %1114 = vrot.lane.b32.xlu0 %v1111, 96
          %v1115 = vpop.permute.xlu0 %1114
          %v1117 = vmul.f32 %v1110, %v1115
          %1119 = vrot.lane.b32.xlu0 %v1117, 16
          %v1120 = vpop.permute.xlu0 %1119
          %v1122 = vadd.f32 %v1112, %v1120
          %v1123 = vtanh.pop %v1122
          %1125 = vrot.lane.b32.xlu0 %v1123, 32
          %v1126 = vpop.permute.xlu0 %1125
          %v1128 = vmul.f32 %v1110, %v1126
          %v1129 = vxor.u32 %v1104, 2147483648
          %v1130 = vmul.f32 %v1129, 1.442695
          %v1131 = vpow.pop %v1130
          %v1132 = vadd.f32 %v1131, 1.0
          %v1133 = vrcp.pop %v1132
          %v1134 = vmul.f32 1.0, %v1133
          %v1135 = vtanh.pop %v1104
          %v1136 = vmul.f32 %v1134, %v991
          %1138 = vrot.lane.b32.xlu0 %v1135, 96
          %v1139 = vpop.permute.xlu0 %1138
          %v1141 = vmul.f32 %v1134, %v1139
          %1143 = vrot.lane.b32.xlu0 %v1141, 16
          %v1144 = vpop.permute.xlu0 %1143
          %v1146 = vadd.f32 %v1136, %v1144
          %v1147 = vtanh.pop %v1146
          %1149 = vrot.lane.b32.xlu0 %v1147, 32
          %v1150 = vpop.permute.xlu0 %1149
          %v1152 = vmul.f32 %v1134, %v1150
          %v1153 = vpack.c.bf16 %v1128, %v1128
          %v1156 = vunpack.c.l.s4 1966171168
          %v1157 = vunpack.c.0.s8 %v1156
          %v1158 = vlaneseq
          %v1159 = vshrl.u32 %v1158, 7
          %v1160 = vsub.s32 %v1157, %v1159
          %v1161 = vrot.slane %v1153, %v1160
          %v1163 = vunpack.c.l.s4 1966171168
          %v1164 = vunpack.c.0.s8 %v1163
          %v1165 = vlaneseq
          %v1166 = vshrl.u32 %v1165, 7
          %v1167 = vsub.s32 %v1164, %v1166
          %v1168 = vrot.slane %v1161, %v1167
          %1169 = vrot.lane.b32.xlu0 %v1168, 80
          %v1170 = vpop.permute.xlu0 %1169
          %s1172 = scalar_lea.vmem [#allocation4], %s983
          %vm1173 = vcmask 122880
          %vm1174 = vsmask.f32 256
          %vm1175 = vmand %vm1173, %vm1174
          %v1176 = vld [vmem:[%s1172] sm:$0x1]
          %v1177 = vsel %vm1175, %v1170, %v1176
          %1178 = vst [vmem:[%s1172] sm:$0x1] %v1177
          %v1179 = vpack.c.bf16 %v1152, %v1152
          %v1182 = vunpack.c.l.s4 1966171168
          %v1183 = vunpack.c.0.s8 %v1182
          %v1184 = vlaneseq
          %v1185 = vshrl.u32 %v1184, 7
          %v1186 = vsub.s32 %v1183, %v1185
          %v1187 = vrot.slane %v1179, %v1186
          %v1189 = vunpack.c.l.s4 1966171168
          %v1190 = vunpack.c.0.s8 %v1189
          %v1191 = vlaneseq
          %v1192 = vshrl.u32 %v1191, 7
          %v1193 = vsub.s32 %v1190, %v1192
          %v1194 = vrot.slane %v1187, %v1193
          %1195 = vrot.lane.b32.xlu0 %v1194, 80
          %v1196 = vpop.permute.xlu0 %1195
          %s1198 = scalar_lea.vmem [#allocation5], %s1048
          %v1199 = vld [vmem:[%s1198] sm:$0x1]
          %v1200 = vsel %vm1175, %v1196, %v1199
          %1201 = vst [vmem:[%s1198] sm:$0x1] %v1200
        $region121: #{cnn_lstm_forward.9} parent=67 // loop_footer
          %s987 = sadd.s32 1, %s983
        $region122: #{cnn_lstm_forward.9} parent=67 // loop_footer_branch
          %982 = sbr.rel target = $region118
        $region123: #{cnn_lstm_forward.9} parent=67 // loop_exit
          _
        %v1202 = vld [vmem:[#allocation4] sm:$0x1]
        %v1203 = vld [vmem:[#allocation4 + $0x1] sm:$0x1]
        %v1204 = vld [vmem:[#allocation4 + $0x2] sm:$0x1]
        %v1205 = vld [vmem:[#allocation4 + $0x3] sm:$0x1]
        %v1206 = vld [vmem:[#allocation4 + $0x4] sm:$0x1]
        %v1207 = vld [vmem:[#allocation4 + $0x5] sm:$0x1]
        %v1208 = vld [vmem:[#allocation4 + $0x6] sm:$0x1]
        %v1209 = vld [vmem:[#allocation4 + $0x7] sm:$0x1]
        %v1210 = vld [vmem:[#allocation5] sm:$0x1]
        %v1211 = vld [vmem:[#allocation5 + $0x1] sm:$0x1]
        %v1212 = vld [vmem:[#allocation5 + $0x2] sm:$0x1]
        %v1213 = vld [vmem:[#allocation5 + $0x3] sm:$0x1]
        %v1214 = vld [vmem:[#allocation5 + $0x4] sm:$0x1]
        %v1215 = vld [vmem:[#allocation5 + $0x5] sm:$0x1]
        %v1216 = vld [vmem:[#allocation5 + $0x6] sm:$0x1]
        %v1217 = vld [vmem:[#allocation5 + $0x7] sm:$0x1]
        %v1218 = vld [vmem:[#allocation21] sm:$0xf]
        %v1219 = vld [vmem:[#allocation21 + $0x4] sm:$0xf]
        %v1220 = vld [vmem:[#allocation23] sm:$0xf]
        %v1221 = vld [vmem:[#allocation23 + $0x4] sm:$0xf]
        %v1231 = vunpack.c.l.s4 1966171168
        %v1232 = vunpack.c.0.s8 %v1231
        %v1233 = vlaneseq
        %v1234 = vshrl.u32 %v1233, 7
        %v1235 = vsub.s32 %v1232, %v1234
        %v1236 = vrot.slane %v1210, %v1235
        %v1238 = vunpack.c.l.s4 1966171168
        %v1239 = vunpack.c.0.s8 %v1238
        %v1240 = vlaneseq
        %v1241 = vshrl.u32 %v1240, 7
        %v1242 = vsub.s32 %v1239, %v1241
        %v1243 = vrot.slane %v1236, %v1242
        %v1245 = vunpack.c.l.s4 1966171168
        %v1246 = vunpack.c.0.s8 %v1245
        %v1247 = vlaneseq
        %v1248 = vshrl.u32 %v1247, 7
        %v1249 = vsub.s32 %v1246, %v1248
        %v1250 = vrot.slane %v1211, %v1249
        %v1252 = vunpack.c.l.s4 1966171168
        %v1253 = vunpack.c.0.s8 %v1252
        %v1254 = vlaneseq
        %v1255 = vshrl.u32 %v1254, 7
        %v1256 = vsub.s32 %v1253, %v1255
        %v1257 = vrot.slane %v1250, %v1256
        %v1259 = vunpack.c.l.s4 1966171168
        %v1260 = vunpack.c.0.s8 %v1259
        %v1261 = vlaneseq
        %v1262 = vshrl.u32 %v1261, 7
        %v1263 = vsub.s32 %v1260, %v1262
        %v1264 = vrot.slane %v1212, %v1263
        %v1266 = vunpack.c.l.s4 1966171168
        %v1267 = vunpack.c.0.s8 %v1266
        %v1268 = vlaneseq
        %v1269 = vshrl.u32 %v1268, 7
        %v1270 = vsub.s32 %v1267, %v1269
        %v1271 = vrot.slane %v1264, %v1270
        %v1273 = vunpack.c.l.s4 1966171168
        %v1274 = vunpack.c.0.s8 %v1273
        %v1275 = vlaneseq
        %v1276 = vshrl.u32 %v1275, 7
        %v1277 = vsub.s32 %v1274, %v1276
        %v1278 = vrot.slane %v1213, %v1277
        %v1280 = vunpack.c.l.s4 1966171168
        %v1281 = vunpack.c.0.s8 %v1280
        %v1282 = vlaneseq
        %v1283 = vshrl.u32 %v1282, 7
        %v1284 = vsub.s32 %v1281, %v1283
        %v1285 = vrot.slane %v1278, %v1284
        %v1287 = vunpack.c.l.s4 1966171168
        %v1288 = vunpack.c.0.s8 %v1287
        %v1289 = vlaneseq
        %v1290 = vshrl.u32 %v1289, 7
        %v1291 = vsub.s32 %v1288, %v1290
        %v1292 = vrot.slane %v1214, %v1291
        %v1294 = vunpack.c.l.s4 1966171168
        %v1295 = vunpack.c.0.s8 %v1294
        %v1296 = vlaneseq
        %v1297 = vshrl.u32 %v1296, 7
        %v1298 = vsub.s32 %v1295, %v1297
        %v1299 = vrot.slane %v1292, %v1298
        %v1301 = vunpack.c.l.s4 1966171168
        %v1302 = vunpack.c.0.s8 %v1301
        %v1303 = vlaneseq
        %v1304 = vshrl.u32 %v1303, 7
        %v1305 = vsub.s32 %v1302, %v1304
        %v1306 = vrot.slane %v1215, %v1305
        %v1308 = vunpack.c.l.s4 1966171168
        %v1309 = vunpack.c.0.s8 %v1308
        %v1310 = vlaneseq
        %v1311 = vshrl.u32 %v1310, 7
        %v1312 = vsub.s32 %v1309, %v1311
        %v1313 = vrot.slane %v1306, %v1312
        %v1315 = vunpack.c.l.s4 1966171168
        %v1316 = vunpack.c.0.s8 %v1315
        %v1317 = vlaneseq
        %v1318 = vshrl.u32 %v1317, 7
        %v1319 = vsub.s32 %v1316, %v1318
        %v1320 = vrot.slane %v1216, %v1319
        %v1322 = vunpack.c.l.s4 1966171168
        %v1323 = vunpack.c.0.s8 %v1322
        %v1324 = vlaneseq
        %v1325 = vshrl.u32 %v1324, 7
        %v1326 = vsub.s32 %v1323, %v1325
        %v1327 = vrot.slane %v1320, %v1326
        %v1329 = vunpack.c.l.s4 1966171168
        %v1330 = vunpack.c.0.s8 %v1329
        %v1331 = vlaneseq
        %v1332 = vshrl.u32 %v1331, 7
        %v1333 = vsub.s32 %v1330, %v1332
        %v1334 = vrot.slane %v1217, %v1333
        %v1336 = vunpack.c.l.s4 1966171168
        %v1337 = vunpack.c.0.s8 %v1336
        %v1338 = vlaneseq
        %v1339 = vshrl.u32 %v1338, 7
        %v1340 = vsub.s32 %v1337, %v1339
        %v1341 = vrot.slane %v1334, %v1340
        %v1342 = vunpack.c.l.b16 %v1243
        %v1343 = vunpack.c.l.b16 %v1257
        %v1344 = vunpack.c.l.b16 %v1271
        %v1345 = vunpack.c.l.b16 %v1285
        %v1346 = vunpack.c.l.b16 %v1299
        %v1347 = vunpack.c.l.b16 %v1313
        %v1348 = vunpack.c.l.b16 %v1327
        %v1349 = vunpack.c.l.b16 %v1341
        %v1350 = vrot.slane %v1343, 7
        %v1351 = vsel %vm705, %v1350, %v1342
        %v1352 = vrot.slane %v1344, 6
        %v1353 = vsel %vm708, %v1352, %v1351
        %v1354 = vrot.slane %v1345, 5
        %v1355 = vsel %vm711, %v1354, %v1353
        %v1356 = vrot.slane %v1346, 4
        %v1357 = vsel %vm714, %v1356, %v1355
        %v1358 = vrot.slane %v1347, 3
        %v1359 = vsel %vm717, %v1358, %v1357
        %v1360 = vrot.slane %v1348, 2
        %v1361 = vsel %vm720, %v1360, %v1359
        %v1362 = vrot.slane %v1349, 1
        %v1363 = vsel %vm723, %v1362, %v1361
        %v1364 = vpack.c.b16 %v1363, %v1363
        %v1367 = vunpack.c.l.b16 %v1220
        %v1368 = vunpack.c.l.b16 %v1221
        %v1369 = vpack.c.b16 %v1368, %v1367
        %v1372 = vsel %vm598, %v1364, 0
        %1374 = vmatprep.subr.bf16.mxu0 0
        %1375 = vmatpush1.bf16.msra.mxu0 %v1369
        %1376 = vmatprep.subr.bf16.mxu0 0
        %1377 = vmatpush1.bf16.msra.mxu0 0
        %1378 = vmatprep.subr.bf16.mxu0 0
        %1379 = vmatpush1.bf16.msra.mxu0 0
        %1380 = vmatprep.subr.bf16.mxu0 0
        %1381 = vmatpush1.bf16.msra.mxu0 0
        %1382 = vmatprep.subr.bf16.mxu0 0
        %1383 = vmatpush1.bf16.msra.mxu0 0
        %1384 = vmatprep.subr.bf16.mxu0 0
        %1385 = vmatpush1.bf16.msra.mxu0 0
        %1386 = vmatprep.subr.bf16.mxu0 0
        %1387 = vmatpush1.bf16.msra.mxu0 0
        %1388 = vmatprep.subr.bf16.mxu0 0
        %1389 = vmatpush1.bf16.msra.mxu0 0
        %1390 = vmatprep.subr.bf16.mxu0 0
        %1391 = vmatpush1.bf16.msra.mxu0 0
        %1392 = vmatprep.subr.bf16.mxu0 0
        %1393 = vmatpush1.bf16.msra.mxu0 0
        %1394 = vmatprep.subr.bf16.mxu0 0
        %1395 = vmatpush1.bf16.msra.mxu0 0
        %1396 = vmatprep.subr.bf16.mxu0 0
        %1397 = vmatpush1.bf16.msra.mxu0 0
        %1398 = vmatprep.subr.bf16.mxu0 0
        %1399 = vmatpush1.bf16.msra.mxu0 0
        %1400 = vmatprep.subr.bf16.mxu0 0
        %1401 = vmatpush1.bf16.msra.mxu0 0
        %1402 = vmatprep.subr.bf16.mxu0 0
        %1403 = vmatpush1.bf16.msra.mxu0 0
        %1404 = vmatprep.subr.bf16.mxu0 0
        %1405 = vmatpush1.bf16.msra.mxu0 0
        %1406 = vmatprep.mubr.bf16.mxu0 0
        %1407 = vmatmul.mubr.bf16.gmra.mrb[0].mxu0 %v1372
        %v1408 = vpop.f32.mrb[0].mxu0
        %v1409 = vadd.f32 0.0, %v1408
        %v1410 = vpop.f32.mrb[0].mxu0
        %v1411 = vpop.f32.mrb[0].mxu0
        %v1412 = vpop.f32.mrb[0].mxu0
        %1413 = vdwg.mxu0
        %v1423 = vunpack.c.l.s4 1966171168
        %v1424 = vunpack.c.0.s8 %v1423
        %v1425 = vlaneseq
        %v1426 = vshrl.u32 %v1425, 7
        %v1427 = vsub.s32 %v1424, %v1426
        %v1428 = vrot.slane %v1202, %v1427
        %v1430 = vunpack.c.l.s4 1966171168
        %v1431 = vunpack.c.0.s8 %v1430
        %v1432 = vlaneseq
        %v1433 = vshrl.u32 %v1432, 7
        %v1434 = vsub.s32 %v1431, %v1433
        %v1435 = vrot.slane %v1428, %v1434
        %v1437 = vunpack.c.l.s4 1966171168
        %v1438 = vunpack.c.0.s8 %v1437
        %v1439 = vlaneseq
        %v1440 = vshrl.u32 %v1439, 7
        %v1441 = vsub.s32 %v1438, %v1440
        %v1442 = vrot.slane %v1203, %v1441
        %v1444 = vunpack.c.l.s4 1966171168
        %v1445 = vunpack.c.0.s8 %v1444
        %v1446 = vlaneseq
        %v1447 = vshrl.u32 %v1446, 7
        %v1448 = vsub.s32 %v1445, %v1447
        %v1449 = vrot.slane %v1442, %v1448
        %v1451 = vunpack.c.l.s4 1966171168
        %v1452 = vunpack.c.0.s8 %v1451
        %v1453 = vlaneseq
        %v1454 = vshrl.u32 %v1453, 7
        %v1455 = vsub.s32 %v1452, %v1454
        %v1456 = vrot.slane %v1204, %v1455
        %v1458 = vunpack.c.l.s4 1966171168
        %v1459 = vunpack.c.0.s8 %v1458
        %v1460 = vlaneseq
        %v1461 = vshrl.u32 %v1460, 7
        %v1462 = vsub.s32 %v1459, %v1461
        %v1463 = vrot.slane %v1456, %v1462
        %v1465 = vunpack.c.l.s4 1966171168
        %v1466 = vunpack.c.0.s8 %v1465
        %v1467 = vlaneseq
        %v1468 = vshrl.u32 %v1467, 7
        %v1469 = vsub.s32 %v1466, %v1468
        %v1470 = vrot.slane %v1205, %v1469
        %v1472 = vunpack.c.l.s4 1966171168
        %v1473 = vunpack.c.0.s8 %v1472
        %v1474 = vlaneseq
        %v1475 = vshrl.u32 %v1474, 7
        %v1476 = vsub.s32 %v1473, %v1475
        %v1477 = vrot.slane %v1470, %v1476
        %v1479 = vunpack.c.l.s4 1966171168
        %v1480 = vunpack.c.0.s8 %v1479
        %v1481 = vlaneseq
        %v1482 = vshrl.u32 %v1481, 7
        %v1483 = vsub.s32 %v1480, %v1482
        %v1484 = vrot.slane %v1206, %v1483
        %v1486 = vunpack.c.l.s4 1966171168
        %v1487 = vunpack.c.0.s8 %v1486
        %v1488 = vlaneseq
        %v1489 = vshrl.u32 %v1488, 7
        %v1490 = vsub.s32 %v1487, %v1489
        %v1491 = vrot.slane %v1484, %v1490
        %v1493 = vunpack.c.l.s4 1966171168
        %v1494 = vunpack.c.0.s8 %v1493
        %v1495 = vlaneseq
        %v1496 = vshrl.u32 %v1495, 7
        %v1497 = vsub.s32 %v1494, %v1496
        %v1498 = vrot.slane %v1207, %v1497
        %v1500 = vunpack.c.l.s4 1966171168
        %v1501 = vunpack.c.0.s8 %v1500
        %v1502 = vlaneseq
        %v1503 = vshrl.u32 %v1502, 7
        %v1504 = vsub.s32 %v1501, %v1503
        %v1505 = vrot.slane %v1498, %v1504
        %v1507 = vunpack.c.l.s4 1966171168
        %v1508 = vunpack.c.0.s8 %v1507
        %v1509 = vlaneseq
        %v1510 = vshrl.u32 %v1509, 7
        %v1511 = vsub.s32 %v1508, %v1510
        %v1512 = vrot.slane %v1208, %v1511
        %v1514 = vunpack.c.l.s4 1966171168
        %v1515 = vunpack.c.0.s8 %v1514
        %v1516 = vlaneseq
        %v1517 = vshrl.u32 %v1516, 7
        %v1518 = vsub.s32 %v1515, %v1517
        %v1519 = vrot.slane %v1512, %v1518
        %v1521 = vunpack.c.l.s4 1966171168
        %v1522 = vunpack.c.0.s8 %v1521
        %v1523 = vlaneseq
        %v1524 = vshrl.u32 %v1523, 7
        %v1525 = vsub.s32 %v1522, %v1524
        %v1526 = vrot.slane %v1209, %v1525
        %v1528 = vunpack.c.l.s4 1966171168
        %v1529 = vunpack.c.0.s8 %v1528
        %v1530 = vlaneseq
        %v1531 = vshrl.u32 %v1530, 7
        %v1532 = vsub.s32 %v1529, %v1531
        %v1533 = vrot.slane %v1526, %v1532
        %v1534 = vunpack.c.l.b16 %v1435
        %v1535 = vunpack.c.l.b16 %v1449
        %v1536 = vunpack.c.l.b16 %v1463
        %v1537 = vunpack.c.l.b16 %v1477
        %v1538 = vunpack.c.l.b16 %v1491
        %v1539 = vunpack.c.l.b16 %v1505
        %v1540 = vunpack.c.l.b16 %v1519
        %v1541 = vunpack.c.l.b16 %v1533
        %v1542 = vrot.slane %v1535, 7
        %v1543 = vsel %vm705, %v1542, %v1534
        %v1544 = vrot.slane %v1536, 6
        %v1545 = vsel %vm708, %v1544, %v1543
        %v1546 = vrot.slane %v1537, 5
        %v1547 = vsel %vm711, %v1546, %v1545
        %v1548 = vrot.slane %v1538, 4
        %v1549 = vsel %vm714, %v1548, %v1547
        %v1550 = vrot.slane %v1539, 3
        %v1551 = vsel %vm717, %v1550, %v1549
        %v1552 = vrot.slane %v1540, 2
        %v1553 = vsel %vm720, %v1552, %v1551
        %v1554 = vrot.slane %v1541, 1
        %v1555 = vsel %vm723, %v1554, %v1553
        %v1556 = vpack.c.b16 %v1555, %v1555
        %v1559 = vunpack.c.l.b16 %v1218
        %v1560 = vunpack.c.l.b16 %v1219
        %v1561 = vpack.c.b16 %v1560, %v1559
        %v1564 = vsel %vm598, %v1556, 0
        %1566 = vmatprep.subr.bf16.mxu0 0
        %1567 = vmatpush1.bf16.msra.mxu0 %v1561
        %1568 = vmatprep.subr.bf16.mxu0 0
        %1569 = vmatpush1.bf16.msra.mxu0 0
        %1570 = vmatprep.subr.bf16.mxu0 0
        %1571 = vmatpush1.bf16.msra.mxu0 0
        %1572 = vmatprep.subr.bf16.mxu0 0
        %1573 = vmatpush1.bf16.msra.mxu0 0
        %1574 = vmatprep.subr.bf16.mxu0 0
        %1575 = vmatpush1.bf16.msra.mxu0 0
        %1576 = vmatprep.subr.bf16.mxu0 0
        %1577 = vmatpush1.bf16.msra.mxu0 0
        %1578 = vmatprep.subr.bf16.mxu0 0
        %1579 = vmatpush1.bf16.msra.mxu0 0
        %1580 = vmatprep.subr.bf16.mxu0 0
        %1581 = vmatpush1.bf16.msra.mxu0 0
        %1582 = vmatprep.subr.bf16.mxu0 0
        %1583 = vmatpush1.bf16.msra.mxu0 0
        %1584 = vmatprep.subr.bf16.mxu0 0
        %1585 = vmatpush1.bf16.msra.mxu0 0
        %1586 = vmatprep.subr.bf16.mxu0 0
        %1587 = vmatpush1.bf16.msra.mxu0 0
        %1588 = vmatprep.subr.bf16.mxu0 0
        %1589 = vmatpush1.bf16.msra.mxu0 0
        %1590 = vmatprep.subr.bf16.mxu0 0
        %1591 = vmatpush1.bf16.msra.mxu0 0
        %1592 = vmatprep.subr.bf16.mxu0 0
        %1593 = vmatpush1.bf16.msra.mxu0 0
        %1594 = vmatprep.subr.bf16.mxu0 0
        %1595 = vmatpush1.bf16.msra.mxu0 0
        %1596 = vmatprep.subr.bf16.mxu0 0
        %1597 = vmatpush1.bf16.msra.mxu0 0
        %1598 = vmatprep.mubr.bf16.mxu0 0
        %1599 = vmatmul.mubr.bf16.gmra.mrb[0].mxu0 %v1564
        %v1600 = vpop.f32.mrb[0].mxu0
        %v1601 = vadd.f32 %v1409, %v1600
        %v1602 = vpop.f32.mrb[0].mxu0
        %v1603 = vpop.f32.mrb[0].mxu0
        %v1604 = vpop.f32.mrb[0].mxu0
        %1605 = vdwg.mxu0
        %v1606 = vld [vmem:[#allocation24] sm:$0x1]
        %v1608 = vlaneseq
        %v1609 = vshrl.u32 %v1608, 7
        %v1610 = vsub.s32 0, %v1609
        %v1611 = vrot.slane %v1606, %v1610
        %v1613 = vadd.f32 %v1601, %v1611
        %v1615 = vcombine.high %v1613, %v1613
        %v1617 = vunpack.c.l.s4 1966171168
        %v1618 = vunpack.c.0.s8 %v1617
        %v1619 = vlaneseq
        %v1620 = vshrl.u32 %v1619, 7
        %v1621 = vsub.s32 %v1618, %v1620
        %v1622 = vrot.slane %v1613, %v1621
        %v1624 = vunpack.c.l.s4 1966171168
        %v1625 = vunpack.c.0.s8 %v1624
        %v1626 = vlaneseq
        %v1627 = vshrl.u32 %v1626, 7
        %v1628 = vsub.s32 %v1625, %v1627
        %v1629 = vrot.slane %v1615, %v1628
        %v1630 = vcombine.high %v1622, %v1622
        %v1631 = vcombine.high %v1629, %v1629
        %v1633 = vunpack.c.l.s4 1966171168
        %v1634 = vunpack.c.0.s8 %v1633
        %v1635 = vlaneseq
        %v1636 = vshrl.u32 %v1635, 7
        %v1637 = vsub.s32 %v1634, %v1636
        %v1638 = vrot.slane %v1622, %v1637
        %v1640 = vunpack.c.l.s4 1966171168
        %v1641 = vunpack.c.0.s8 %v1640
        %v1642 = vlaneseq
        %v1643 = vshrl.u32 %v1642, 7
        %v1644 = vsub.s32 %v1641, %v1643
        %v1645 = vrot.slane %v1629, %v1644
        %v1647 = vunpack.c.l.s4 1966171168
        %v1648 = vunpack.c.0.s8 %v1647
        %v1649 = vlaneseq
        %v1650 = vshrl.u32 %v1649, 7
        %v1651 = vsub.s32 %v1648, %v1650
        %v1652 = vrot.slane %v1630, %v1651
        %v1654 = vunpack.c.l.s4 1966171168
        %v1655 = vunpack.c.0.s8 %v1654
        %v1656 = vlaneseq
        %v1657 = vshrl.u32 %v1656, 7
        %v1658 = vsub.s32 %v1655, %v1657
        %v1659 = vrot.slane %v1631, %v1658
        %v1660 = vcombine.high %v1638, %v1638
        %v1661 = vcombine.high %v1645, %v1645
        %v1662 = vcombine.high %v1652, %v1652
        %v1663 = vcombine.high %v1659, %v1659
        %v1664 = vcombine.low %v1638, %v1652
        %v1665 = vcombine.low %v1660, %v1662
        %v1666 = vcombine.low %v1645, %v1659
        %v1667 = vcombine.low %v1661, %v1663
        %v1669 = vunpack.c.l.s4 1966171168
        %v1670 = vunpack.c.0.s8 %v1669
        %v1671 = vlaneseq
        %v1672 = vshrl.u32 %v1671, 7
        %v1673 = vsub.s32 %v1670, %v1672
        %v1674 = vrot.slane %v1664, %v1673
        %v1676 = vunpack.c.l.s4 1966171168
        %v1677 = vunpack.c.0.s8 %v1676
        %v1678 = vlaneseq
        %v1679 = vshrl.u32 %v1678, 7
        %v1680 = vsub.s32 %v1677, %v1679
        %v1681 = vrot.slane %v1665, %v1680
        %v1683 = vunpack.c.l.s4 1966171168
        %v1684 = vunpack.c.0.s8 %v1683
        %v1685 = vlaneseq
        %v1686 = vshrl.u32 %v1685, 7
        %v1687 = vsub.s32 %v1684, %v1686
        %v1688 = vrot.slane %v1666, %v1687
        %v1690 = vunpack.c.l.s4 1966171168
        %v1691 = vunpack.c.0.s8 %v1690
        %v1692 = vlaneseq
        %v1693 = vshrl.u32 %v1692, 7
        %v1694 = vsub.s32 %v1691, %v1693
        %v1695 = vrot.slane %v1667, %v1694
        %v1696 = vcombine.low %v1674, %v1681
        %v1697 = vcombine.low %v1688, %v1695
        %v1699 = vunpack.c.l.s4 1966171168
        %v1700 = vunpack.c.0.s8 %v1699
        %v1701 = vlaneseq
        %v1702 = vshrl.u32 %v1701, 7
        %v1703 = vsub.s32 %v1700, %v1702
        %v1704 = vrot.slane %v1696, %v1703
        %v1706 = vunpack.c.l.s4 1966171168
        %v1707 = vunpack.c.0.s8 %v1706
        %v1708 = vlaneseq
        %v1709 = vshrl.u32 %v1708, 7
        %v1710 = vsub.s32 %v1707, %v1709
        %v1711 = vrot.slane %v1697, %v1710
        %v1712 = vcombine.low %v1704, %v1711
        %vm1714 = vcmask 64512
        %1715 = vst.msk [vmem:[%s580] sm:$0xff] %vm1714, %v1712
        %s1716 = sand.u32 %s300, 1
        %s1717 = scalar_lea.sflag [#allocation8], %s1716
        %s1718 = sand.u32 %s300, 1
        %s1719 = smul.addr %s1718, 8
        %s1720 = scalar_lea.vmem [#allocation26], %s1719
        // Predicated region
        $region124: #{cnn_lstm_forward.9} parent=67 // pred_check
          %p1721 = pneg %p310
        $region125: #{cnn_lstm_forward.9} parent=67 // pred_check_branch
          %1723 = sbr.rel (%p1721) target = $region127
        $region126: #{cnn_lstm_forward.9} parent=67 // pred_region
          %s1725 = ssub.s32 128, 128
          %1726 = vsyncadd %s1717, %s1725
          %s1727 = smul.addr %s35, 128
          %s1728 = scalar_lea.hbm %s12, %s1727
          %s1730 = sshll.u32 %s1720, 4
          %s1731 = int_to_ptr.vmem [resolvable:$true] %s1730
          %1733 = dma.vmem_to_hbm [thread:$0]  %s1731, 128, %s1728, %s1717
        $region127: #{cnn_lstm_forward.9} parent=67 // pred_fallthru
          _
      $region68: #{cnn_lstm_forward.9} parent=5 // pred_fallthru
        _
      %p1734 = scmp.le.s32.totalorder 2, %s30
      // Predicated region
      $region128: #{cnn_lstm_forward.9} parent=5 // pred_check
        %p1735 = pneg %p1734
      $region129: #{cnn_lstm_forward.9} parent=5 // pred_check_branch
        %1737 = sbr.rel (%p1735) target = $region131
      $region130: #{cnn_lstm_forward.9} parent=5 // pred_region
        %s1738 = ssub.s32 %s30, 2
        // Predicated region
        $region132: #{cnn_lstm_forward.9} parent=130 // pred_check
          %p1739 = pneg %p316
        $region133: #{cnn_lstm_forward.9} parent=130 // pred_check_branch
          %1741 = sbr.rel (%p1739) target = $region135
        $region134: #{cnn_lstm_forward.9} parent=130 // pred_region
          %s1742 = sand.u32 %s301, 1
          %s1743 = scalar_lea.sflag [#allocation8], %s1742
          %s1744 = sand.u32 %s301, 1
          %s1745 = smul.addr %s1744, 8
          %s1746 = scalar_lea.vmem [#allocation26], %s1745
          %1747 = dma.done %s1743, 128
        $region135: #{cnn_lstm_forward.9} parent=130 // pred_fallthru
          _
      $region131: #{cnn_lstm_forward.9} parent=5 // pred_fallthru
        _
    $region6: #{cnn_lstm_forward.9} parent=1 // loop_footer
      %s34 = sadd.s32 1, %s30
    $region7: #{cnn_lstm_forward.9} parent=1 // loop_footer_branch
      %29 = sbr.rel target = $region3
    $region8: #{cnn_lstm_forward.9} parent=1 // loop_exit
      _
    %1748 = vsyncpa [#allocation7], 1
    %s1749 = scalar_lea.sflag [#allocation7], 1
    %1750 = vsyncpa %s1749, 1
    %1751 = vsyncpa [#allocation10], 1
    %1752 = vsyncpa [#allocation13], 1
    %1753 = vsyncpa [#allocation16], 1
    %1754 = vsyncpa [#allocation19], 1
    %1755 = vsyncpa [#allocation22], 1
    %1756 = vsyncpa [#allocation25], 1
    %1757 = vsyncpa [#allocation8], 1
    %s1758 = scalar_lea.sflag [#allocation8], 1
    %1759 = vsyncpa %s1758, 1

</llo_original>
